<compile_context>
chip_gen: v6e
topology: v6e:2x2x1
jax: 0.10.0
libtpu: 0.0.40
codegen_flags: <defaults>
</compile_context>

<pallas_src>
import functools

import jax
import jax.numpy as jnp
from jax.experimental import pallas as pl
from jax.experimental.pallas import tpu as pltpu

EPS = 1e-5
VMEM_LIMIT = 48 * 1024 * 1024  # <= v7x's 64 MiB per TensorCore, plenty on v5e/v6e


# ---------------------------------------------------------------------------
# Tiling helpers
# ---------------------------------------------------------------------------
def _round_up(x, m):
    return (x + m - 1) // m * m


def _split_dim(d, unit, cap):
    """Pick (tile, padded_dim): tile is a multiple of `unit`, tile <= cap,
    padded_dim = tile * nblocks >= d with minimal padding."""
    d = _round_up(max(d, 1), unit)
    if d <= cap:
        return d, d
    best_t, best_pad = cap, _round_up(d, cap)
    nb0 = -(-d // cap)
    for nb in range(nb0, nb0 + 8):
        t = _round_up(-(-d // nb), unit)
        if t > cap:
            continue
        pad = t * nb
        if pad < best_pad:
            best_t, best_pad = t, pad
    return best_t, best_pad


def _pad2(a, rows, cols):
    r, c = a.shape
    if r == rows and c == cols:
        return a
    return jnp.pad(a, ((0, rows - r), (0, cols - c)))


# ---------------------------------------------------------------------------
# Pallas kernels
# ---------------------------------------------------------------------------
def _conv_bn_kernel(x_ref, w_ref, scale_ref, shift_ref, o_ref, acc_ref, *, relu):
    # x: [tm, tk] bf16, w: [tk, tn] bf16, scale/shift: [1, tn] f32, acc: [tm, tn] f32
    k = pl.program_id(2)

    @pl.when(k == 0)
    def _():
        acc_ref[...] = jnp.zeros_like(acc_ref)

    acc_ref[...] += jnp.dot(x_ref[...], w_ref[...],
                            preferred_element_type=jnp.float32)

    @pl.when(k == pl.num_programs(2) - 1)
    def _():
        y = acc_ref[...] * scale_ref[...] + shift_ref[...]
        if relu:
            y = jnp.maximum(y, 0.0)
        o_ref[...] = y.astype(o_ref.dtype)


def _conv_bn_res_kernel(x_ref, w_ref, scale_ref, shift_ref, r_ref, o_ref, acc_ref,
                        *, relu):
    # Same as above, plus residual add (and optional ReLU AFTER the add).
    k = pl.program_id(2)

    @pl.when(k == 0)
    def _():
        acc_ref[...] = jnp.zeros_like(acc_ref)

    acc_ref[...] += jnp.dot(x_ref[...], w_ref[...],
                            preferred_element_type=jnp.float32)

    @pl.when(k == pl.num_programs(2) - 1)
    def _():
        y = acc_ref[...] * scale_ref[...] + shift_ref[...] + r_ref[...]
        if relu:
            y = jnp.maximum(y, 0.0)
        o_ref[...] = y.astype(o_ref.dtype)


def _maxpool_kernel(p_ref, o_ref):
    # p: [9, tm, C]; the tap axis is an untiled leading dim, so this lowers to
    # 8 elementwise VPU maximums (no cross-sublane reduction, no 9->16 padding).
    o_ref[...] = jnp.max(p_ref[...], axis=0)


def _head_kernel(f_ref, w_ref, b_ref, o_ref, *, inv_hw):
    # AdaptiveAvgPool2d((1,1)) as sum * 1/(H*W) in f32, then Linear.
    pooled = jnp.sum(f_ref[...], axis=1) * inv_hw           # [N, C] f32
    o_ref[...] = jnp.dot(pooled, w_ref[...],
                         preferred_element_type=jnp.float32) + b_ref[...]


# ---------------------------------------------------------------------------
# im2col glue (data movement only; compute lives in the kernels)
# ---------------------------------------------------------------------------
def _shifted_views(x, kh, kw, stride, pad, pad_value):
    # x: [N, H, W, C] -> list of kh*kw shifted/strided views, each [N, Ho, Wo, C]
    N, H, W, C = x.shape
    xp = jnp.pad(x, ((0, 0), (pad, pad), (pad, pad), (0, 0)),
                 constant_values=pad_value)
    Ho = (H + 2 * pad - kh) // stride + 1
    Wo = (W + 2 * pad - kw) // stride + 1
    views = []
    for i in range(kh):
        for j in range(kw):
            views.append(
                xp[:, i:i + stride * (Ho - 1) + 1:stride,
                      j:j + stride * (Wo - 1) + 1:stride, :])
    return views, Ho, Wo


# ---------------------------------------------------------------------------
# Fused conv + batchnorm (+relu) (+residual) layer — tiled matmul
# ---------------------------------------------------------------------------
def conv_bn(x, w, b, bn, *, stride, pad, relu, residual=None):
    # x: [N, H, W, Cin]; w: [Cout, Cin, kh, kw] (PyTorch layout); bn = (g, b, mean, var)
    gamma, beta, mean, var = bn
    Cout, Cin, kh, kw = w.shape
    N = x.shape[0]

    views, Ho, Wo = _shifted_views(x, kh, kw, stride, pad, 0.0)
    M = N * Ho * Wo
    K = kh * kw * Cin
    # im2col with K ordered (kh, kw, Cin) — must match the weight flattening.
    x2 = jnp.stack(views, axis=3).reshape(M, K)
    w2 = jnp.transpose(w, (2, 3, 1, 0)).reshape(K, Cout)

    # Fold conv bias + eval-mode BN into per-channel (scale, shift), applied in f32.
    scale = (gamma / jnp.sqrt(var + EPS)).astype(jnp.float32)
    shift = (beta + (b - mean) * scale).astype(jnp.float32)

    # Tile sizes: M sublane-aligned (8), K/Cout lane-dense (128 multiples).
    tm, Mp = _split_dim(M, 8, 256)
    tk, Kp = _split_dim(K, 128, 512)
    tn, Np = _split_dim(Cout, 128, 256)

    x2 = _pad2(x2, Mp, Kp).astype(jnp.bfloat16)       # bf16 MXU operands
    w2 = _pad2(w2, Kp, Np).astype(jnp.bfloat16)
    scale2 = _pad2(scale.reshape(1, Cout), 1, Np)
    shift2 = _pad2(shift.reshape(1, Cout), 1, Np)

    grid = (Mp // tm, Np // tn, Kp // tk)
    in_specs = [
        pl.BlockSpec((tm, tk), lambda i, j, k: (i, k)),
        pl.BlockSpec((tk, tn), lambda i, j, k: (k, j)),
        pl.BlockSpec((1, tn), lambda i, j, k: (0, j)),
        pl.BlockSpec((1, tn), lambda i, j, k: (0, j)),
    ]
    operands = [x2, w2, scale2, shift2]

    if residual is None:
        kernel = functools.partial(_conv_bn_kernel, relu=relu)
    else:
        r2 = _pad2(residual.reshape(M, Cout).astype(jnp.float32), Mp, Np)
        in_specs.append(pl.BlockSpec((tm, tn), lambda i, j, k: (i, j)))
        operands.append(r2)
        kernel = functools.partial(_conv_bn_res_kernel, relu=relu)

    out = pl.pallas_call(
        kernel,
        grid=grid,
        in_specs=in_specs,
        out_specs=pl.BlockSpec((tm, tn), lambda i, j, k: (i, j)),
        out_shape=jax.ShapeDtypeStruct((Mp, Np), jnp.float32),
        scratch_shapes=[pltpu.VMEM((tm, tn), jnp.float32)],
        compiler_params=pltpu.CompilerParams(
            dimension_semantics=("parallel", "parallel", "arbitrary"),
            vmem_limit_bytes=VMEM_LIMIT),
    )(*operands)

    return out[:M, :Cout].reshape(N, Ho, Wo, Cout)


def maxpool_3x3_s2_p1(x):
    N, H, W, C = x.shape
    # PyTorch MaxPool2d pads with -inf (padding never wins the max).
    views, Ho, Wo = _shifted_views(x, 3, 3, 2, 1, -jnp.inf)
    M = N * Ho * Wo
    taps = jnp.stack([v.reshape(M, C) for v in views], axis=0)   # [9, M, C]

    tm, Mp = _split_dim(M, 8, 512)
    if Mp != M:
        taps = jnp.pad(taps, ((0, 0), (0, Mp - M), (0, 0)))

    out = pl.pallas_call(
        _maxpool_kernel,
        grid=(Mp // tm,),
        in_specs=[pl.BlockSpec((9, tm, C), lambda i: (0, i, 0))],
        out_specs=pl.BlockSpec((tm, C), lambda i: (i, 0)),
        out_shape=jax.ShapeDtypeStruct((Mp, C), jnp.float32),
        compiler_params=pltpu.CompilerParams(
            dimension_semantics=("parallel",),
            vmem_limit_bytes=VMEM_LIMIT),
    )(taps)
    return out[:M].reshape(N, Ho, Wo, C)


def head(x, fc_w, fc_b):
    # AdaptiveAvgPool2d((1,1)) -> flatten -> Linear(512, num_classes)
    N, H, W, C = x.shape
    num_classes = fc_w.shape[0]
    NCp = _round_up(num_classes, 128)      # lane-dense output block, sliced outside
    f = x.reshape(N, H * W, C).astype(jnp.float32)
    w2 = _pad2(fc_w.T.astype(jnp.float32), C, NCp)
    b2 = _pad2(fc_b.reshape(1, num_classes).astype(jnp.float32), 1, NCp)

    out = pl.pallas_call(
        functools.partial(_head_kernel, inv_hw=1.0 / (H * W)),
        grid=(1,),
        in_specs=[pl.BlockSpec((N, H * W, C), lambda i: (0, 0, 0)),
                  pl.BlockSpec((C, NCp), lambda i: (0, 0)),
                  pl.BlockSpec((1, NCp), lambda i: (0, 0))],
        out_specs=pl.BlockSpec((N, NCp), lambda i: (0, 0)),
        out_shape=jax.ShapeDtypeStruct((N, NCp), jnp.float32),
        compiler_params=pltpu.CompilerParams(vmem_limit_bytes=VMEM_LIMIT),
    )(f, w2, b2)
    return out[:, :num_classes]


# ---------------------------------------------------------------------------
# Model: ResidualBlock + CustomResNet forward
# ---------------------------------------------------------------------------
def residual_block(x, p, stride):
    cin = x.shape[-1]
    cout = p["conv1_w"].shape[0]
    if stride != 1 or cin != cout:
        identity = conv_bn(x, p["skip_w"], p["skip_b"], p["bn_skip"],
                           stride=stride, pad=0, relu=False)
    else:
        identity = x
    out = conv_bn(x, p["conv1_w"], p["conv1_b"], p["bn1"],
                  stride=stride, pad=1, relu=True)
    # conv2 + bn2, add identity, then ReLU — fused in a single tiled kernel.
    out = conv_bn(out, p["conv2_w"], p["conv2_b"], p["bn2"],
                  stride=1, pad=1, relu=True, residual=identity)
    return out


def custom_resnet_forward(x_nchw, params):
    x = jnp.transpose(x_nchw, (0, 2, 3, 1)).astype(jnp.float32)  # NCHW -> NHWC
    p1 = params["layer1"]
    x = conv_bn(x, p1["w"], p1["b"], p1["bn"], stride=2, pad=3, relu=True)
    x = maxpool_3x3_s2_p1(x)
    x = residual_block(x, params["layer2"], stride=2)
    x = residual_block(x, params["layer3"], stride=2)
    x = residual_block(x, params["layer4"], stride=2)
    return head(x, params["fc_w"], params["fc_b"])


# ---------------------------------------------------------------------------
# Deterministic parameter initialization (synthetic; no checkpoint load)
# ---------------------------------------------------------------------------
def init_params(key, num_classes=7):
    keys = iter(jax.random.split(key, 128))

    def conv_w(cout, cin, k):
        return 0.05 * jax.random.normal(next(keys), (cout, cin, k, k), jnp.float32)

    def bias(c):
        return 0.02 * jax.random.normal(next(keys), (c,), jnp.float32)

    def bn(c):
        # eval-mode BatchNorm: (gamma, beta, running_mean, running_var)
        g = 1.0 + 0.1 * jax.random.normal(next(keys), (c,), jnp.float32)
        b = 0.1 * jax.random.normal(next(keys), (c,), jnp.float32)
        m = 0.05 * jax.random.normal(next(keys), (c,), jnp.float32)
        v = 1.0 + 0.1 * jnp.abs(jax.random.normal(next(keys), (c,), jnp.float32))
        return (g, b, m, v)

    def res_block(cin, cout):
        return dict(
            conv1_w=conv_w(cout, cin, 3), conv1_b=bias(cout), bn1=bn(cout),
            conv2_w=conv_w(cout, cout, 3), conv2_b=bias(cout), bn2=bn(cout),
            skip_w=conv_w(cout, cin, 1), skip_b=bias(cout), bn_skip=bn(cout),
        )

    return dict(
        layer1=dict(w=conv_w(64, 3, 7), b=bias(64), bn=bn(64)),
        layer2=res_block(64, 128),
        layer3=res_block(128, 256),
        layer4=res_block(256, 512),
        fc_w=0.05 * jax.random.normal(next(keys), (num_classes, 512), jnp.float32),
        fc_b=0.02 * jax.random.normal(next(keys), (num_classes,), jnp.float32),
    )


if __name__ == "__main__":
    key = jax.random.PRNGKey(0)
    pkey, xkey = jax.random.split(key)
    params = init_params(pkey, num_classes=7)

    # Small deterministic input: N=2, C=3, H=W=32 (NCHW, matching PyTorch).
    x = jax.random.normal(xkey, (2, 3, 32, 32), jnp.float32)

    fwd = jax.jit(custom_resnet_forward)
    out = jax.block_until_ready(fwd(x, params))

    assert out.shape == (2, 7), out.shape
    assert bool(jnp.all(jnp.isfinite(out)))
    print("KERNEL_OK")
</pallas_src>

<mosaic_0001>
module attributes {stable_mosaic.version = 11 : i64} {
  func.func @_conv_bn_kernel(%arg0: i32, %arg1: i32, %arg2: i32, %arg3: memref<256x256xbf16, #tpu.memory_space<vmem>>, %arg4: memref<256x128xbf16, #tpu.memory_space<vmem>>, %arg5: memref<1x128xf32, #tpu.memory_space<vmem>>, %arg6: memref<1x128xf32, #tpu.memory_space<vmem>>, %arg7: memref<256x128xf32, #tpu.memory_space<vmem>>, %arg8: memref<256x128xf32, #tpu.memory_space<vmem>>) attributes {dimension_semantics = [#tpu.dimension_semantics<parallel>, #tpu.dimension_semantics<parallel>, #tpu.dimension_semantics<arbitrary>], iteration_bounds = array<i64: 2, 1, 1>, scalar_prefetch = 0 : i64, scratch_operands = 1 : i64, tpu.core_type = #tpu.core_type<tc>, window_params = [{transform_indices = @transform_0, window_bounds = array<i64: 256, 256>}, {transform_indices = @transform_1, window_bounds = array<i64: 256, 128>}, {transform_indices = @transform_2, window_bounds = array<i64: 1, 128>}, {transform_indices = @transform_3, window_bounds = array<i64: 1, 128>}, {transform_indices = @transform_4, window_bounds = array<i64: 256, 128>}]} {
    %c0_i32 = arith.constant 0 : i32
    %0 = arith.cmpi eq, %arg2, %c0_i32 : i32
    %1 = arith.extui %0 : i1 to i32
    %c0_i32_0 = arith.constant 0 : i32
    %2 = arith.cmpi ne, %1, %c0_i32_0 : i32
    scf.if %2 {
      %cst_10 = arith.constant 0.000000e+00 : f32
      %12 = vector.broadcast %cst_10 : f32 to vector<256x128xf32>
      %c0_11 = arith.constant 0 : index
      %c0_12 = arith.constant 0 : index
      %13 = vector.load %arg8[%c0_11, %c0_12] : memref<256x128xf32, #tpu.memory_space<vmem>>, vector<256x128xf32>
      tpu.vector_store %arg8[%c0_11, %c0_12], %12 {strides = array<i32>} : memref<256x128xf32, #tpu.memory_space<vmem>>, vector<256x128xf32>,
    } else {
    }
    %c0 = arith.constant 0 : index
    %c0_1 = arith.constant 0 : index
    %3 = vector.load %arg8[%c0, %c0_1] : memref<256x128xf32, #tpu.memory_space<vmem>>, vector<256x128xf32>
    %c0_2 = arith.constant 0 : index
    %c0_3 = arith.constant 0 : index
    %4 = vector.load %arg3[%c0_2, %c0_3] : memref<256x256xbf16, #tpu.memory_space<vmem>>, vector<256x256xbf16>
    %c0_4 = arith.constant 0 : index
    %c0_5 = arith.constant 0 : index
    %5 = vector.load %arg4[%c0_4, %c0_5] : memref<256x128xbf16, #tpu.memory_space<vmem>>, vector<256x128xbf16>
    %cst = arith.constant dense<0.000000e+00> : vector<256x128xf32>
    %6 = tpu.matmul %4, %5, %cst {dimension_numbers = #tpu.dot_dimension_numbers<[1], [0], [0], [1], [0, 0, 1, 1], [], []>} : vector<256x256xbf16>, vector<256x128xbf16>, vector<256x128xf32> -> vector<256x128xf32>
    %7 = arith.addf %3, %6 : vector<256x128xf32>
    %c0_6 = arith.constant 0 : index
    %c0_7 = arith.constant 0 : index
    %8 = vector.load %arg8[%c0_6, %c0_7] : memref<256x128xf32, #tpu.memory_space<vmem>>, vector<256x128xf32>
    tpu.vector_store %arg8[%c0_6, %c0_7], %7 {strides = array<i32>} : memref<256x128xf32, #tpu.memory_space<vmem>>, vector<256x128xf32>,
    %c0_i32_8 = arith.constant 0 : i32
    %9 = arith.cmpi eq, %arg2, %c0_i32_8 : i32
    %10 = arith.extui %9 : i1 to i32
    %c0_i32_9 = arith.constant 0 : i32
    %11 = arith.cmpi ne, %10, %c0_i32_9 : i32
    scf.if %11 {
      %c0_10 = arith.constant 0 : index
      %c0_11 = arith.constant 0 : index
      %12 = vector.load %arg8[%c0_10, %c0_11] : memref<256x128xf32, #tpu.memory_space<vmem>>, vector<256x128xf32>
      %c0_12 = arith.constant 0 : index
      %c0_13 = arith.constant 0 : index
      %13 = vector.load %arg5[%c0_12, %c0_13] : memref<1x128xf32, #tpu.memory_space<vmem>>, vector<1x128xf32>
      %14 = vector.broadcast %13 : vector<1x128xf32> to vector<256x128xf32>
      %15 = arith.mulf %12, %14 : vector<256x128xf32>
      %c0_14 = arith.constant 0 : index
      %c0_15 = arith.constant 0 : index
      %16 = vector.load %arg6[%c0_14, %c0_15] : memref<1x128xf32, #tpu.memory_space<vmem>>, vector<1x128xf32>
      %17 = vector.broadcast %16 : vector<1x128xf32> to vector<256x128xf32>
      %18 = arith.addf %15, %17 : vector<256x128xf32>
      %cst_16 = arith.constant 0.000000e+00 : f32
      %19 = vector.broadcast %cst_16 : f32 to vector<256x128xf32>
      %20 = arith.maximumf %18, %19 : vector<256x128xf32>
      %c0_17 = arith.constant 0 : index
      %c0_18 = arith.constant 0 : index
      %21 = vector.load %arg7[%c0_17, %c0_18] : memref<256x128xf32, #tpu.memory_space<vmem>>, vector<256x128xf32>
      tpu.vector_store %arg7[%c0_17, %c0_18], %20 {strides = array<i32>} : memref<256x128xf32, #tpu.memory_space<vmem>>, vector<256x128xf32>,
    } else {
    }
    return
  }
  func.func @transform_0(%arg0: i32, %arg1: i32, %arg2: i32) -> (i32, i32) {
    %c0_i32 = arith.constant 0 : i32
    return %arg0, %arg2 : i32, i32
  }
  func.func @transform_1(%arg0: i32, %arg1: i32, %arg2: i32) -> (i32, i32) {
    %c0_i32 = arith.constant 0 : i32
    return %arg2, %arg1 : i32, i32
  }
  func.func @transform_2(%arg0: i32, %arg1: i32, %arg2: i32) -> (i32, i32) {
    %c0_i32 = arith.constant 0 : i32
    %c0_i32_0 = arith.constant 0 : i32
    return %c0_i32, %arg1 : i32, i32
  }
  func.func @transform_3(%arg0: i32, %arg1: i32, %arg2: i32) -> (i32, i32) {
    %c0_i32 = arith.constant 0 : i32
    %c0_i32_0 = arith.constant 0 : i32
    return %c0_i32, %arg1 : i32, i32
  }
  func.func @transform_4(%arg0: i32, %arg1: i32, %arg2: i32) -> (i32, i32) {
    %c0_i32 = arith.constant 0 : i32
    return %arg0, %arg1 : i32, i32
  }
}

module attributes {stable_mosaic.version = 11 : i64} {
  func.func @_maxpool_kernel(%arg0: i32, %arg1: memref<9x128x64xf32, #tpu.memory_space<vmem>>, %arg2: memref<128x64xf32, #tpu.memory_space<vmem>>) attributes {dimension_semantics = [#tpu.dimension_semantics<parallel>], iteration_bounds = array<i64: 1>, scalar_prefetch = 0 : i64, scratch_operands = 0 : i64, tpu.core_type = #tpu.core_type<tc>, window_params = [{transform_indices = @transform_0, window_bounds = array<i64: 9, 128, 64>}, {transform_indices = @transform_1, window_bounds = array<i64: 128, 64>}]} {
    %c0 = arith.constant 0 : index
    %c0_0 = arith.constant 0 : index
    %c0_1 = arith.constant 0 : index
    %0 = vector.load %arg1[%c0, %c0_0, %c0_1] : memref<9x128x64xf32, #tpu.memory_space<vmem>>, vector<9x128x64xf32>
    %cst = arith.constant dense<0xFF800000> : vector<128x64xf32>
    %1 = vector.multi_reduction <maximumf>, %0, %cst [0] : vector<9x128x64xf32> to vector<128x64xf32>
    %c0_2 = arith.constant 0 : index
    %c0_3 = arith.constant 0 : index
    %2 = vector.load %arg2[%c0_2, %c0_3] : memref<128x64xf32, #tpu.memory_space<vmem>>, vector<128x64xf32>
    tpu.vector_store %arg2[%c0_2, %c0_3], %1 {strides = array<i32>} : memref<128x64xf32, #tpu.memory_space<vmem>>, vector<128x64xf32>,
    return
  }
  func.func @transform_0(%arg0: i32) -> (i32, i32, i32) {
    %c0_i32 = arith.constant 0 : i32
    %c0_i32_0 = arith.constant 0 : i32
    %c0_i32_1 = arith.constant 0 : i32
    return %c0_i32, %arg0, %c0_i32_0 : i32, i32, i32
  }
  func.func @transform_1(%arg0: i32) -> (i32, i32) {
    %c0_i32 = arith.constant 0 : i32
    %c0_i32_0 = arith.constant 0 : i32
    return %arg0, %c0_i32 : i32, i32
  }
}

module attributes {stable_mosaic.version = 11 : i64} {
  func.func @_conv_bn_kernel(%arg0: i32, %arg1: i32, %arg2: i32, %arg3: memref<32x128xbf16, #tpu.memory_space<vmem>>, %arg4: memref<128x128xbf16, #tpu.memory_space<vmem>>, %arg5: memref<1x128xf32, #tpu.memory_space<vmem>>, %arg6: memref<1x128xf32, #tpu.memory_space<vmem>>, %arg7: memref<32x128xf32, #tpu.memory_space<vmem>>, %arg8: memref<32x128xf32, #tpu.memory_space<vmem>>) attributes {dimension_semantics = [#tpu.dimension_semantics<parallel>, #tpu.dimension_semantics<parallel>, #tpu.dimension_semantics<arbitrary>], iteration_bounds = array<i64: 1, 1, 5>, scalar_prefetch = 0 : i64, scratch_operands = 1 : i64, tpu.core_type = #tpu.core_type<tc>, window_params = [{transform_indices = @transform_0, window_bounds = array<i64: 32, 128>}, {transform_indices = @transform_1, window_bounds = array<i64: 128, 128>}, {transform_indices = @transform_2, window_bounds = array<i64: 1, 128>}, {transform_indices = @transform_3, window_bounds = array<i64: 1, 128>}, {transform_indices = @transform_4, window_bounds = array<i64: 32, 128>}]} {
    %c0_i32 = arith.constant 0 : i32
    %0 = arith.cmpi eq, %arg2, %c0_i32 : i32
    %1 = arith.extui %0 : i1 to i32
    %c0_i32_0 = arith.constant 0 : i32
    %2 = arith.cmpi ne, %1, %c0_i32_0 : i32
    scf.if %2 {
      %cst_9 = arith.constant 0.000000e+00 : f32
      %12 = vector.broadcast %cst_9 : f32 to vector<32x128xf32>
      %c0_10 = arith.constant 0 : index
      %c0_11 = arith.constant 0 : index
      %13 = vector.load %arg8[%c0_10, %c0_11] : memref<32x128xf32, #tpu.memory_space<vmem>>, vector<32x128xf32>
      tpu.vector_store %arg8[%c0_10, %c0_11], %12 {strides = array<i32>} : memref<32x128xf32, #tpu.memory_space<vmem>>, vector<32x128xf32>,
    } else {
    }
    %c0 = arith.constant 0 : index
    %c0_1 = arith.constant 0 : index
    %3 = vector.load %arg8[%c0, %c0_1] : memref<32x128xf32, #tpu.memory_space<vmem>>, vector<32x128xf32>
    %c0_2 = arith.constant 0 : index
    %c0_3 = arith.constant 0 : index
    %4 = vector.load %arg3[%c0_2, %c0_3] : memref<32x128xbf16, #tpu.memory_space<vmem>>, vector<32x128xbf16>
    %c0_4 = arith.constant 0 : index
    %c0_5 = arith.constant 0 : index
    %5 = vector.load %arg4[%c0_4, %c0_5] : memref<128x128xbf16, #tpu.memory_space<vmem>>, vector<128x128xbf16>
    %cst = arith.constant dense<0.000000e+00> : vector<32x128xf32>
    %6 = tpu.matmul %4, %5, %cst {dimension_numbers = #tpu.dot_dimension_numbers<[1], [0], [0], [1], [0, 0, 1, 1], [], []>} : vector<32x128xbf16>, vector<128x128xbf16>, vector<32x128xf32> -> vector<32x128xf32>
    %7 = arith.addf %3, %6 : vector<32x128xf32>
    %c0_6 = arith.constant 0 : index
    %c0_7 = arith.constant 0 : index
    %8 = vector.load %arg8[%c0_6, %c0_7] : memref<32x128xf32, #tpu.memory_space<vmem>>, vector<32x128xf32>
    tpu.vector_store %arg8[%c0_6, %c0_7], %7 {strides = array<i32>} : memref<32x128xf32, #tpu.memory_space<vmem>>, vector<32x128xf32>,
    %c4_i32 = arith.constant 4 : i32
    %9 = arith.cmpi eq, %arg2, %c4_i32 : i32
    %10 = arith.extui %9 : i1 to i32
    %c0_i32_8 = arith.constant 0 : i32
    %11 = arith.cmpi ne, %10, %c0_i32_8 : i32
    scf.if %11 {
      %c0_9 = arith.constant 0 : index
      %c0_10 = arith.constant 0 : index
      %12 = vector.load %arg8[%c0_9, %c0_10] : memref<32x128xf32, #tpu.memory_space<vmem>>, vector<32x128xf32>
      %c0_11 = arith.constant 0 : index
      %c0_12 = arith.constant 0 : index
      %13 = vector.load %arg5[%c0_11, %c0_12] : memref<1x128xf32, #tpu.memory_space<vmem>>, vector<1x128xf32>
      %14 = vector.broadcast %13 : vector<1x128xf32> to vector<32x128xf32>
      %15 = arith.mulf %12, %14 : vector<32x128xf32>
      %c0_13 = arith.constant 0 : index
      %c0_14 = arith.constant 0 : index
      %16 = vector.load %arg6[%c0_13, %c0_14] : memref<1x128xf32, #tpu.memory_space<vmem>>, vector<1x128xf32>
      %17 = vector.broadcast %16 : vector<1x128xf32> to vector<32x128xf32>
      %18 = arith.addf %15, %17 : vector<32x128xf32>
      %cst_15 = arith.constant 0.000000e+00 : f32
      %19 = vector.broadcast %cst_15 : f32 to vector<32x128xf32>
      %20 = arith.maximumf %18, %19 : vector<32x128xf32>
      %c0_16 = arith.constant 0 : index
      %c0_17 = arith.constant 0 : index
      %21 = vector.load %arg7[%c0_16, %c0_17] : memref<32x128xf32, #tpu.memory_space<vmem>>, vector<32x128xf32>
      tpu.vector_store %arg7[%c0_16, %c0_17], %20 {strides = array<i32>} : memref<32x128xf32, #tpu.memory_space<vmem>>, vector<32x128xf32>,
    } else {
    }
    return
  }
  func.func @transform_0(%arg0: i32, %arg1: i32, %arg2: i32) -> (i32, i32) {
    %c0_i32 = arith.constant 0 : i32
    return %arg0, %arg2 : i32, i32
  }
  func.func @transform_1(%arg0: i32, %arg1: i32, %arg2: i32) -> (i32, i32) {
    %c0_i32 = arith.constant 0 : i32
    return %arg2, %arg1 : i32, i32
  }
  func.func @transform_2(%arg0: i32, %arg1: i32, %arg2: i32) -> (i32, i32) {
    %c0_i32 = arith.constant 0 : i32
    %c0_i32_0 = arith.constant 0 : i32
    return %c0_i32, %arg1 : i32, i32
  }
  func.func @transform_3(%arg0: i32, %arg1: i32, %arg2: i32) -> (i32, i32) {
    %c0_i32 = arith.constant 0 : i32
    %c0_i32_0 = arith.constant 0 : i32
    return %c0_i32, %arg1 : i32, i32
  }
  func.func @transform_4(%arg0: i32, %arg1: i32, %arg2: i32) -> (i32, i32) {
    %c0_i32 = arith.constant 0 : i32
    return %arg0, %arg1 : i32, i32
  }
}

module attributes {stable_mosaic.version = 11 : i64} {
  func.func @_conv_bn_res_kernel(%arg0: i32, %arg1: i32, %arg2: i32, %arg3: memref<32x384xbf16, #tpu.memory_space<vmem>>, %arg4: memref<384x128xbf16, #tpu.memory_space<vmem>>, %arg5: memref<1x128xf32, #tpu.memory_space<vmem>>, %arg6: memref<1x128xf32, #tpu.memory_space<vmem>>, %arg7: memref<32x128xf32, #tpu.memory_space<vmem>>, %arg8: memref<32x128xf32, #tpu.memory_space<vmem>>, %arg9: memref<32x128xf32, #tpu.memory_space<vmem>>) attributes {dimension_semantics = [#tpu.dimension_semantics<parallel>, #tpu.dimension_semantics<parallel>, #tpu.dimension_semantics<arbitrary>], iteration_bounds = array<i64: 1, 1, 3>, scalar_prefetch = 0 : i64, scratch_operands = 1 : i64, tpu.core_type = #tpu.core_type<tc>, window_params = [{transform_indices = @transform_0, window_bounds = array<i64: 32, 384>}, {transform_indices = @transform_1, window_bounds = array<i64: 384, 128>}, {transform_indices = @transform_2, window_bounds = array<i64: 1, 128>}, {transform_indices = @transform_3, window_bounds = array<i64: 1, 128>}, {transform_indices = @transform_4, window_bounds = array<i64: 32, 128>}, {transform_indices = @transform_5, window_bounds = array<i64: 32, 128>}]} {
    %c0_i32 = arith.constant 0 : i32
    %0 = arith.cmpi eq, %arg2, %c0_i32 : i32
    %1 = arith.extui %0 : i1 to i32
    %c0_i32_0 = arith.constant 0 : i32
    %2 = arith.cmpi ne, %1, %c0_i32_0 : i32
    scf.if %2 {
      %cst_9 = arith.constant 0.000000e+00 : f32
      %12 = vector.broadcast %cst_9 : f32 to vector<32x128xf32>
      %c0_10 = arith.constant 0 : index
      %c0_11 = arith.constant 0 : index
      %13 = vector.load %arg9[%c0_10, %c0_11] : memref<32x128xf32, #tpu.memory_space<vmem>>, vector<32x128xf32>
      tpu.vector_store %arg9[%c0_10, %c0_11], %12 {strides = array<i32>} : memref<32x128xf32, #tpu.memory_space<vmem>>, vector<32x128xf32>,
    } else {
    }
    %c0 = arith.constant 0 : index
    %c0_1 = arith.constant 0 : index
    %3 = vector.load %arg9[%c0, %c0_1] : memref<32x128xf32, #tpu.memory_space<vmem>>, vector<32x128xf32>
    %c0_2 = arith.constant 0 : index
    %c0_3 = arith.constant 0 : index
    %4 = vector.load %arg3[%c0_2, %c0_3] : memref<32x384xbf16, #tpu.memory_space<vmem>>, vector<32x384xbf16>
    %c0_4 = arith.constant 0 : index
    %c0_5 = arith.constant 0 : index
    %5 = vector.load %arg4[%c0_4, %c0_5] : memref<384x128xbf16, #tpu.memory_space<vmem>>, vector<384x128xbf16>
    %cst = arith.constant dense<0.000000e+00> : vector<32x128xf32>
    %6 = tpu.matmul %4, %5, %cst {dimension_numbers = #tpu.dot_dimension_numbers<[1], [0], [0], [1], [0, 0, 1, 1], [], []>} : vector<32x384xbf16>, vector<384x128xbf16>, vector<32x128xf32> -> vector<32x128xf32>
    %7 = arith.addf %3, %6 : vector<32x128xf32>
    %c0_6 = arith.constant 0 : index
    %c0_7 = arith.constant 0 : index
    %8 = vector.load %arg9[%c0_6, %c0_7] : memref<32x128xf32, #tpu.memory_space<vmem>>, vector<32x128xf32>
    tpu.vector_store %arg9[%c0_6, %c0_7], %7 {strides = array<i32>} : memref<32x128xf32, #tpu.memory_space<vmem>>, vector<32x128xf32>,
    %c2_i32 = arith.constant 2 : i32
    %9 = arith.cmpi eq, %arg2, %c2_i32 : i32
    %10 = arith.extui %9 : i1 to i32
    %c0_i32_8 = arith.constant 0 : i32
    %11 = arith.cmpi ne, %10, %c0_i32_8 : i32
    scf.if %11 {
      %c0_9 = arith.constant 0 : index
      %c0_10 = arith.constant 0 : index
      %12 = vector.load %arg9[%c0_9, %c0_10] : memref<32x128xf32, #tpu.memory_space<vmem>>, vector<32x128xf32>
      %c0_11 = arith.constant 0 : index
      %c0_12 = arith.constant 0 : index
      %13 = vector.load %arg5[%c0_11, %c0_12] : memref<1x128xf32, #tpu.memory_space<vmem>>, vector<1x128xf32>
      %14 = vector.broadcast %13 : vector<1x128xf32> to vector<32x128xf32>
      %15 = arith.mulf %12, %14 : vector<32x128xf32>
      %c0_13 = arith.constant 0 : index
      %c0_14 = arith.constant 0 : index
      %16 = vector.load %arg6[%c0_13, %c0_14] : memref<1x128xf32, #tpu.memory_space<vmem>>, vector<1x128xf32>
      %17 = vector.broadcast %16 : vector<1x128xf32> to vector<32x128xf32>
      %18 = arith.addf %15, %17 : vector<32x128xf32>
      %c0_15 = arith.constant 0 : index
      %c0_16 = arith.constant 0 : index
      %19 = vector.load %arg7[%c0_15, %c0_16] : memref<32x128xf32, #tpu.memory_space<vmem>>, vector<32x128xf32>
      %20 = arith.addf %18, %19 : vector<32x128xf32>
      %cst_17 = arith.constant 0.000000e+00 : f32
      %21 = vector.broadcast %cst_17 : f32 to vector<32x128xf32>
      %22 = arith.maximumf %20, %21 : vector<32x128xf32>
      %c0_18 = arith.constant 0 : index
      %c0_19 = arith.constant 0 : index
      %23 = vector.load %arg8[%c0_18, %c0_19] : memref<32x128xf32, #tpu.memory_space<vmem>>, vector<32x128xf32>
      tpu.vector_store %arg8[%c0_18, %c0_19], %22 {strides = array<i32>} : memref<32x128xf32, #tpu.memory_space<vmem>>, vector<32x128xf32>,
    } else {
    }
    return
  }
  func.func @transform_0(%arg0: i32, %arg1: i32, %arg2: i32) -> (i32, i32) {
    %c0_i32 = arith.constant 0 : i32
    return %arg0, %arg2 : i32, i32
  }
  func.func @transform_1(%arg0: i32, %arg1: i32, %arg2: i32) -> (i32, i32) {
    %c0_i32 = arith.constant 0 : i32
    return %arg2, %arg1 : i32, i32
  }
  func.func @transform_2(%arg0: i32, %arg1: i32, %arg2: i32) -> (i32, i32) {
    %c0_i32 = arith.constant 0 : i32
    %c0_i32_0 = arith.constant 0 : i32
    return %c0_i32, %arg1 : i32, i32
  }
  func.func @transform_3(%arg0: i32, %arg1: i32, %arg2: i32) -> (i32, i32) {
    %c0_i32 = arith.constant 0 : i32
    %c0_i32_0 = arith.constant 0 : i32
    return %c0_i32, %arg1 : i32, i32
  }
  func.func @transform_4(%arg0: i32, %arg1: i32, %arg2: i32) -> (i32, i32) {
    %c0_i32 = arith.constant 0 : i32
    return %arg0, %arg1 : i32, i32
  }
  func.func @transform_5(%arg0: i32, %arg1: i32, %arg2: i32) -> (i32, i32) {
    %c0_i32 = arith.constant 0 : i32
    return %arg0, %arg1 : i32, i32
  }
}

module attributes {stable_mosaic.version = 11 : i64} {
  func.func @_conv_bn_kernel(%arg0: i32, %arg1: i32, %arg2: i32, %arg3: memref<32x128xbf16, #tpu.memory_space<vmem>>, %arg4: memref<128x128xbf16, #tpu.memory_space<vmem>>, %arg5: memref<1x128xf32, #tpu.memory_space<vmem>>, %arg6: memref<1x128xf32, #tpu.memory_space<vmem>>, %arg7: memref<32x128xf32, #tpu.memory_space<vmem>>, %arg8: memref<32x128xf32, #tpu.memory_space<vmem>>) attributes {dimension_semantics = [#tpu.dimension_semantics<parallel>, #tpu.dimension_semantics<parallel>, #tpu.dimension_semantics<arbitrary>], iteration_bounds = array<i64: 1, 1, 1>, scalar_prefetch = 0 : i64, scratch_operands = 1 : i64, tpu.core_type = #tpu.core_type<tc>, window_params = [{transform_indices = @transform_0, window_bounds = array<i64: 32, 128>}, {transform_indices = @transform_1, window_bounds = array<i64: 128, 128>}, {transform_indices = @transform_2, window_bounds = array<i64: 1, 128>}, {transform_indices = @transform_3, window_bounds = array<i64: 1, 128>}, {transform_indices = @transform_4, window_bounds = array<i64: 32, 128>}]} {
    %c0_i32 = arith.constant 0 : i32
    %0 = arith.cmpi eq, %arg2, %c0_i32 : i32
    %1 = arith.extui %0 : i1 to i32
    %c0_i32_0 = arith.constant 0 : i32
    %2 = arith.cmpi ne, %1, %c0_i32_0 : i32
    scf.if %2 {
      %cst_10 = arith.constant 0.000000e+00 : f32
      %12 = vector.broadcast %cst_10 : f32 to vector<32x128xf32>
      %c0_11 = arith.constant 0 : index
      %c0_12 = arith.constant 0 : index
      %13 = vector.load %arg8[%c0_11, %c0_12] : memref<32x128xf32, #tpu.memory_space<vmem>>, vector<32x128xf32>
      tpu.vector_store %arg8[%c0_11, %c0_12], %12 {strides = array<i32>} : memref<32x128xf32, #tpu.memory_space<vmem>>, vector<32x128xf32>,
    } else {
    }
    %c0 = arith.constant 0 : index
    %c0_1 = arith.constant 0 : index
    %3 = vector.load %arg8[%c0, %c0_1] : memref<32x128xf32, #tpu.memory_space<vmem>>, vector<32x128xf32>
    %c0_2 = arith.constant 0 : index
    %c0_3 = arith.constant 0 : index
    %4 = vector.load %arg3[%c0_2, %c0_3] : memref<32x128xbf16, #tpu.memory_space<vmem>>, vector<32x128xbf16>
    %c0_4 = arith.constant 0 : index
    %c0_5 = arith.constant 0 : index
    %5 = vector.load %arg4[%c0_4, %c0_5] : memref<128x128xbf16, #tpu.memory_space<vmem>>, vector<128x128xbf16>
    %cst = arith.constant dense<0.000000e+00> : vector<32x128xf32>
    %6 = tpu.matmul %4, %5, %cst {dimension_numbers = #tpu.dot_dimension_numbers<[1], [0], [0], [1], [0, 0, 1, 1], [], []>} : vector<32x128xbf16>, vector<128x128xbf16>, vector<32x128xf32> -> vector<32x128xf32>
    %7 = arith.addf %3, %6 : vector<32x128xf32>
    %c0_6 = arith.constant 0 : index
    %c0_7 = arith.constant 0 : index
    %8 = vector.load %arg8[%c0_6, %c0_7] : memref<32x128xf32, #tpu.memory_space<vmem>>, vector<32x128xf32>
    tpu.vector_store %arg8[%c0_6, %c0_7], %7 {strides = array<i32>} : memref<32x128xf32, #tpu.memory_space<vmem>>, vector<32x128xf32>,
    %c0_i32_8 = arith.constant 0 : i32
    %9 = arith.cmpi eq, %arg2, %c0_i32_8 : i32
    %10 = arith.extui %9 : i1 to i32
    %c0_i32_9 = arith.constant 0 : i32
    %11 = arith.cmpi ne, %10, %c0_i32_9 : i32
    scf.if %11 {
      %c0_10 = arith.constant 0 : index
      %c0_11 = arith.constant 0 : index
      %12 = vector.load %arg8[%c0_10, %c0_11] : memref<32x128xf32, #tpu.memory_space<vmem>>, vector<32x128xf32>
      %c0_12 = arith.constant 0 : index
      %c0_13 = arith.constant 0 : index
      %13 = vector.load %arg5[%c0_12, %c0_13] : memref<1x128xf32, #tpu.memory_space<vmem>>, vector<1x128xf32>
      %14 = vector.broadcast %13 : vector<1x128xf32> to vector<32x128xf32>
      %15 = arith.mulf %12, %14 : vector<32x128xf32>
      %c0_14 = arith.constant 0 : index
      %c0_15 = arith.constant 0 : index
      %16 = vector.load %arg6[%c0_14, %c0_15] : memref<1x128xf32, #tpu.memory_space<vmem>>, vector<1x128xf32>
      %17 = vector.broadcast %16 : vector<1x128xf32> to vector<32x128xf32>
      %18 = arith.addf %15, %17 : vector<32x128xf32>
      %c0_16 = arith.constant 0 : index
      %c0_17 = arith.constant 0 : index
      %19 = vector.load %arg7[%c0_16, %c0_17] : memref<32x128xf32, #tpu.memory_space<vmem>>, vector<32x128xf32>
      tpu.vector_store %arg7[%c0_16, %c0_17], %18 {strides = array<i32>} : memref<32x128xf32, #tpu.memory_space<vmem>>, vector<32x128xf32>,
    } else {
    }
    return
  }
  func.func @transform_0(%arg0: i32, %arg1: i32, %arg2: i32) -> (i32, i32) {
    %c0_i32 = arith.constant 0 : i32
    return %arg0, %arg2 : i32, i32
  }
  func.func @transform_1(%arg0: i32, %arg1: i32, %arg2: i32) -> (i32, i32) {
    %c0_i32 = arith.constant 0 : i32
    return %arg2, %arg1 : i32, i32
  }
  func.func @transform_2(%arg0: i32, %arg1: i32, %arg2: i32) -> (i32, i32) {
    %c0_i32 = arith.constant 0 : i32
    %c0_i32_0 = arith.constant 0 : i32
    return %c0_i32, %arg1 : i32, i32
  }
  func.func @transform_3(%arg0: i32, %arg1: i32, %arg2: i32) -> (i32, i32) {
    %c0_i32 = arith.constant 0 : i32
    %c0_i32_0 = arith.constant 0 : i32
    return %c0_i32, %arg1 : i32, i32
  }
  func.func @transform_4(%arg0: i32, %arg1: i32, %arg2: i32) -> (i32, i32) {
    %c0_i32 = arith.constant 0 : i32
    return %arg0, %arg1 : i32, i32
  }
}

module attributes {stable_mosaic.version = 11 : i64} {
  func.func @_conv_bn_kernel(%arg0: i32, %arg1: i32, %arg2: i32, %arg3: memref<8x384xbf16, #tpu.memory_space<vmem>>, %arg4: memref<384x256xbf16, #tpu.memory_space<vmem>>, %arg5: memref<1x256xf32, #tpu.memory_space<vmem>>, %arg6: memref<1x256xf32, #tpu.memory_space<vmem>>, %arg7: memref<8x256xf32, #tpu.memory_space<vmem>>, %arg8: memref<8x256xf32, #tpu.memory_space<vmem>>) attributes {dimension_semantics = [#tpu.dimension_semantics<parallel>, #tpu.dimension_semantics<parallel>, #tpu.dimension_semantics<arbitrary>], iteration_bounds = array<i64: 1, 1, 3>, scalar_prefetch = 0 : i64, scratch_operands = 1 : i64, tpu.core_type = #tpu.core_type<tc>, window_params = [{transform_indices = @transform_0, window_bounds = array<i64: 8, 384>}, {transform_indices = @transform_1, window_bounds = array<i64: 384, 256>}, {transform_indices = @transform_2, window_bounds = array<i64: 1, 256>}, {transform_indices = @transform_3, window_bounds = array<i64: 1, 256>}, {transform_indices = @transform_4, window_bounds = array<i64: 8, 256>}]} {
    %c0_i32 = arith.constant 0 : i32
    %0 = arith.cmpi eq, %arg2, %c0_i32 : i32
    %1 = arith.extui %0 : i1 to i32
    %c0_i32_0 = arith.constant 0 : i32
    %2 = arith.cmpi ne, %1, %c0_i32_0 : i32
    scf.if %2 {
      %cst_9 = arith.constant 0.000000e+00 : f32
      %12 = vector.broadcast %cst_9 : f32 to vector<8x256xf32>
      %c0_10 = arith.constant 0 : index
      %c0_11 = arith.constant 0 : index
      %13 = vector.load %arg8[%c0_10, %c0_11] : memref<8x256xf32, #tpu.memory_space<vmem>>, vector<8x256xf32>
      tpu.vector_store %arg8[%c0_10, %c0_11], %12 {strides = array<i32>} : memref<8x256xf32, #tpu.memory_space<vmem>>, vector<8x256xf32>,
    } else {
    }
    %c0 = arith.constant 0 : index
    %c0_1 = arith.constant 0 : index
    %3 = vector.load %arg8[%c0, %c0_1] : memref<8x256xf32, #tpu.memory_space<vmem>>, vector<8x256xf32>
    %c0_2 = arith.constant 0 : index
    %c0_3 = arith.constant 0 : index
    %4 = vector.load %arg3[%c0_2, %c0_3] : memref<8x384xbf16, #tpu.memory_space<vmem>>, vector<8x384xbf16>
    %c0_4 = arith.constant 0 : index
    %c0_5 = arith.constant 0 : index
    %5 = vector.load %arg4[%c0_4, %c0_5] : memref<384x256xbf16, #tpu.memory_space<vmem>>, vector<384x256xbf16>
    %cst = arith.constant dense<0.000000e+00> : vector<8x256xf32>
    %6 = tpu.matmul %4, %5, %cst {dimension_numbers = #tpu.dot_dimension_numbers<[1], [0], [0], [1], [0, 0, 1, 1], [], []>} : vector<8x384xbf16>, vector<384x256xbf16>, vector<8x256xf32> -> vector<8x256xf32>
    %7 = arith.addf %3, %6 : vector<8x256xf32>
    %c0_6 = arith.constant 0 : index
    %c0_7 = arith.constant 0 : index
    %8 = vector.load %arg8[%c0_6, %c0_7] : memref<8x256xf32, #tpu.memory_space<vmem>>, vector<8x256xf32>
    tpu.vector_store %arg8[%c0_6, %c0_7], %7 {strides = array<i32>} : memref<8x256xf32, #tpu.memory_space<vmem>>, vector<8x256xf32>,
    %c2_i32 = arith.constant 2 : i32
    %9 = arith.cmpi eq, %arg2, %c2_i32 : i32
    %10 = arith.extui %9 : i1 to i32
    %c0_i32_8 = arith.constant 0 : i32
    %11 = arith.cmpi ne, %10, %c0_i32_8 : i32
    scf.if %11 {
      %c0_9 = arith.constant 0 : index
      %c0_10 = arith.constant 0 : index
      %12 = vector.load %arg8[%c0_9, %c0_10] : memref<8x256xf32, #tpu.memory_space<vmem>>, vector<8x256xf32>
      %c0_11 = arith.constant 0 : index
      %c0_12 = arith.constant 0 : index
      %13 = vector.load %arg5[%c0_11, %c0_12] : memref<1x256xf32, #tpu.memory_space<vmem>>, vector<1x256xf32>
      %14 = vector.broadcast %13 : vector<1x256xf32> to vector<8x256xf32>
      %15 = arith.mulf %12, %14 : vector<8x256xf32>
      %c0_13 = arith.constant 0 : index
      %c0_14 = arith.constant 0 : index
      %16 = vector.load %arg6[%c0_13, %c0_14] : memref<1x256xf32, #tpu.memory_space<vmem>>, vector<1x256xf32>
      %17 = vector.broadcast %16 : vector<1x256xf32> to vector<8x256xf32>
      %18 = arith.addf %15, %17 : vector<8x256xf32>
      %cst_15 = arith.constant 0.000000e+00 : f32
      %19 = vector.broadcast %cst_15 : f32 to vector<8x256xf32>
      %20 = arith.maximumf %18, %19 : vector<8x256xf32>
      %c0_16 = arith.constant 0 : index
      %c0_17 = arith.constant 0 : index
      %21 = vector.load %arg7[%c0_16, %c0_17] : memref<8x256xf32, #tpu.memory_space<vmem>>, vector<8x256xf32>
      tpu.vector_store %arg7[%c0_16, %c0_17], %20 {strides = array<i32>} : memref<8x256xf32, #tpu.memory_space<vmem>>, vector<8x256xf32>,
    } else {
    }
    return
  }
  func.func @transform_0(%arg0: i32, %arg1: i32, %arg2: i32) -> (i32, i32) {
    %c0_i32 = arith.constant 0 : i32
    return %arg0, %arg2 : i32, i32
  }
  func.func @transform_1(%arg0: i32, %arg1: i32, %arg2: i32) -> (i32, i32) {
    %c0_i32 = arith.constant 0 : i32
    return %arg2, %arg1 : i32, i32
  }
  func.func @transform_2(%arg0: i32, %arg1: i32, %arg2: i32) -> (i32, i32) {
    %c0_i32 = arith.constant 0 : i32
    %c0_i32_0 = arith.constant 0 : i32
    return %c0_i32, %arg1 : i32, i32
  }
  func.func @transform_3(%arg0: i32, %arg1: i32, %arg2: i32) -> (i32, i32) {
    %c0_i32 = arith.constant 0 : i32
    %c0_i32_0 = arith.constant 0 : i32
    return %c0_i32, %arg1 : i32, i32
  }
  func.func @transform_4(%arg0: i32, %arg1: i32, %arg2: i32) -> (i32, i32) {
    %c0_i32 = arith.constant 0 : i32
    return %arg0, %arg1 : i32, i32
  }
}

module attributes {stable_mosaic.version = 11 : i64} {
  func.func @_conv_bn_kernel(%arg0: i32, %arg1: i32, %arg2: i32, %arg3: memref<8x128xbf16, #tpu.memory_space<vmem>>, %arg4: memref<128x256xbf16, #tpu.memory_space<vmem>>, %arg5: memref<1x256xf32, #tpu.memory_space<vmem>>, %arg6: memref<1x256xf32, #tpu.memory_space<vmem>>, %arg7: memref<8x256xf32, #tpu.memory_space<vmem>>, %arg8: memref<8x256xf32, #tpu.memory_space<vmem>>) attributes {dimension_semantics = [#tpu.dimension_semantics<parallel>, #tpu.dimension_semantics<parallel>, #tpu.dimension_semantics<arbitrary>], iteration_bounds = array<i64: 1, 1, 1>, scalar_prefetch = 0 : i64, scratch_operands = 1 : i64, tpu.core_type = #tpu.core_type<tc>, window_params = [{transform_indices = @transform_0, window_bounds = array<i64: 8, 128>}, {transform_indices = @transform_1, window_bounds = array<i64: 128, 256>}, {transform_indices = @transform_2, window_bounds = array<i64: 1, 256>}, {transform_indices = @transform_3, window_bounds = array<i64: 1, 256>}, {transform_indices = @transform_4, window_bounds = array<i64: 8, 256>}]} {
    %c0_i32 = arith.constant 0 : i32
    %0 = arith.cmpi eq, %arg2, %c0_i32 : i32
    %1 = arith.extui %0 : i1 to i32
    %c0_i32_0 = arith.constant 0 : i32
    %2 = arith.cmpi ne, %1, %c0_i32_0 : i32
    scf.if %2 {
      %cst_10 = arith.constant 0.000000e+00 : f32
      %12 = vector.broadcast %cst_10 : f32 to vector<8x256xf32>
      %c0_11 = arith.constant 0 : index
      %c0_12 = arith.constant 0 : index
      %13 = vector.load %arg8[%c0_11, %c0_12] : memref<8x256xf32, #tpu.memory_space<vmem>>, vector<8x256xf32>
      tpu.vector_store %arg8[%c0_11, %c0_12], %12 {strides = array<i32>} : memref<8x256xf32, #tpu.memory_space<vmem>>, vector<8x256xf32>,
    } else {
    }
    %c0 = arith.constant 0 : index
    %c0_1 = arith.constant 0 : index
    %3 = vector.load %arg8[%c0, %c0_1] : memref<8x256xf32, #tpu.memory_space<vmem>>, vector<8x256xf32>
    %c0_2 = arith.constant 0 : index
    %c0_3 = arith.constant 0 : index
    %4 = vector.load %arg3[%c0_2, %c0_3] : memref<8x128xbf16, #tpu.memory_space<vmem>>, vector<8x128xbf16>
    %c0_4 = arith.constant 0 : index
    %c0_5 = arith.constant 0 : index
    %5 = vector.load %arg4[%c0_4, %c0_5] : memref<128x256xbf16, #tpu.memory_space<vmem>>, vector<128x256xbf16>
    %cst = arith.constant dense<0.000000e+00> : vector<8x256xf32>
    %6 = tpu.matmul %4, %5, %cst {dimension_numbers = #tpu.dot_dimension_numbers<[1], [0], [0], [1], [0, 0, 1, 1], [], []>} : vector<8x128xbf16>, vector<128x256xbf16>, vector<8x256xf32> -> vector<8x256xf32>
    %7 = arith.addf %3, %6 : vector<8x256xf32>
    %c0_6 = arith.constant 0 : index
    %c0_7 = arith.constant 0 : index
    %8 = vector.load %arg8[%c0_6, %c0_7] : memref<8x256xf32, #tpu.memory_space<vmem>>, vector<8x256xf32>
    tpu.vector_store %arg8[%c0_6, %c0_7], %7 {strides = array<i32>} : memref<8x256xf32, #tpu.memory_space<vmem>>, vector<8x256xf32>,
    %c0_i32_8 = arith.constant 0 : i32
    %9 = arith.cmpi eq, %arg2, %c0_i32_8 : i32
    %10 = arith.extui %9 : i1 to i32
    %c0_i32_9 = arith.constant 0 : i32
    %11 = arith.cmpi ne, %10, %c0_i32_9 : i32
    scf.if %11 {
      %c0_10 = arith.constant 0 : index
      %c0_11 = arith.constant 0 : index
      %12 = vector.load %arg8[%c0_10, %c0_11] : memref<8x256xf32, #tpu.memory_space<vmem>>, vector<8x256xf32>
      %c0_12 = arith.constant 0 : index
      %c0_13 = arith.constant 0 : index
      %13 = vector.load %arg5[%c0_12, %c0_13] : memref<1x256xf32, #tpu.memory_space<vmem>>, vector<1x256xf32>
      %14 = vector.broadcast %13 : vector<1x256xf32> to vector<8x256xf32>
      %15 = arith.mulf %12, %14 : vector<8x256xf32>
      %c0_14 = arith.constant 0 : index
      %c0_15 = arith.constant 0 : index
      %16 = vector.load %arg6[%c0_14, %c0_15] : memref<1x256xf32, #tpu.memory_space<vmem>>, vector<1x256xf32>
      %17 = vector.broadcast %16 : vector<1x256xf32> to vector<8x256xf32>
      %18 = arith.addf %15, %17 : vector<8x256xf32>
      %c0_16 = arith.constant 0 : index
      %c0_17 = arith.constant 0 : index
      %19 = vector.load %arg7[%c0_16, %c0_17] : memref<8x256xf32, #tpu.memory_space<vmem>>, vector<8x256xf32>
      tpu.vector_store %arg7[%c0_16, %c0_17], %18 {strides = array<i32>} : memref<8x256xf32, #tpu.memory_space<vmem>>, vector<8x256xf32>,
    } else {
    }
    return
  }
  func.func @transform_0(%arg0: i32, %arg1: i32, %arg2: i32) -> (i32, i32) {
    %c0_i32 = arith.constant 0 : i32
    return %arg0, %arg2 : i32, i32
  }
  func.func @transform_1(%arg0: i32, %arg1: i32, %arg2: i32) -> (i32, i32) {
    %c0_i32 = arith.constant 0 : i32
    return %arg2, %arg1 : i32, i32
  }
  func.func @transform_2(%arg0: i32, %arg1: i32, %arg2: i32) -> (i32, i32) {
    %c0_i32 = arith.constant 0 : i32
    %c0_i32_0 = arith.constant 0 : i32
    return %c0_i32, %arg1 : i32, i32
  }
  func.func @transform_3(%arg0: i32, %arg1: i32, %arg2: i32) -> (i32, i32) {
    %c0_i32 = arith.constant 0 : i32
    %c0_i32_0 = arith.constant 0 : i32
    return %c0_i32, %arg1 : i32, i32
  }
  func.func @transform_4(%arg0: i32, %arg1: i32, %arg2: i32) -> (i32, i32) {
    %c0_i32 = arith.constant 0 : i32
    return %arg0, %arg1 : i32, i32
  }
}

module attributes {stable_mosaic.version = 11 : i64} {
  func.func @_conv_bn_res_kernel(%arg0: i32, %arg1: i32, %arg2: i32, %arg3: memref<8x384xbf16, #tpu.memory_space<vmem>>, %arg4: memref<384x256xbf16, #tpu.memory_space<vmem>>, %arg5: memref<1x256xf32, #tpu.memory_space<vmem>>, %arg6: memref<1x256xf32, #tpu.memory_space<vmem>>, %arg7: memref<8x256xf32, #tpu.memory_space<vmem>>, %arg8: memref<8x256xf32, #tpu.memory_space<vmem>>, %arg9: memref<8x256xf32, #tpu.memory_space<vmem>>) attributes {dimension_semantics = [#tpu.dimension_semantics<parallel>, #tpu.dimension_semantics<parallel>, #tpu.dimension_semantics<arbitrary>], iteration_bounds = array<i64: 1, 1, 6>, scalar_prefetch = 0 : i64, scratch_operands = 1 : i64, tpu.core_type = #tpu.core_type<tc>, window_params = [{transform_indices = @transform_0, window_bounds = array<i64: 8, 384>}, {transform_indices = @transform_1, window_bounds = array<i64: 384, 256>}, {transform_indices = @transform_2, window_bounds = array<i64: 1, 256>}, {transform_indices = @transform_3, window_bounds = array<i64: 1, 256>}, {transform_indices = @transform_4, window_bounds = array<i64: 8, 256>}, {transform_indices = @transform_5, window_bounds = array<i64: 8, 256>}]} {
    %c0_i32 = arith.constant 0 : i32
    %0 = arith.cmpi eq, %arg2, %c0_i32 : i32
    %1 = arith.extui %0 : i1 to i32
    %c0_i32_0 = arith.constant 0 : i32
    %2 = arith.cmpi ne, %1, %c0_i32_0 : i32
    scf.if %2 {
      %cst_9 = arith.constant 0.000000e+00 : f32
      %12 = vector.broadcast %cst_9 : f32 to vector<8x256xf32>
      %c0_10 = arith.constant 0 : index
      %c0_11 = arith.constant 0 : index
      %13 = vector.load %arg9[%c0_10, %c0_11] : memref<8x256xf32, #tpu.memory_space<vmem>>, vector<8x256xf32>
      tpu.vector_store %arg9[%c0_10, %c0_11], %12 {strides = array<i32>} : memref<8x256xf32, #tpu.memory_space<vmem>>, vector<8x256xf32>,
    } else {
    }
    %c0 = arith.constant 0 : index
    %c0_1 = arith.constant 0 : index
    %3 = vector.load %arg9[%c0, %c0_1] : memref<8x256xf32, #tpu.memory_space<vmem>>, vector<8x256xf32>
    %c0_2 = arith.constant 0 : index
    %c0_3 = arith.constant 0 : index
    %4 = vector.load %arg3[%c0_2, %c0_3] : memref<8x384xbf16, #tpu.memory_space<vmem>>, vector<8x384xbf16>
    %c0_4 = arith.constant 0 : index
    %c0_5 = arith.constant 0 : index
    %5 = vector.load %arg4[%c0_4, %c0_5] : memref<384x256xbf16, #tpu.memory_space<vmem>>, vector<384x256xbf16>
    %cst = arith.constant dense<0.000000e+00> : vector<8x256xf32>
    %6 = tpu.matmul %4, %5, %cst {dimension_numbers = #tpu.dot_dimension_numbers<[1], [0], [0], [1], [0, 0, 1, 1], [], []>} : vector<8x384xbf16>, vector<384x256xbf16>, vector<8x256xf32> -> vector<8x256xf32>
    %7 = arith.addf %3, %6 : vector<8x256xf32>
    %c0_6 = arith.constant 0 : index
    %c0_7 = arith.constant 0 : index
    %8 = vector.load %arg9[%c0_6, %c0_7] : memref<8x256xf32, #tpu.memory_space<vmem>>, vector<8x256xf32>
    tpu.vector_store %arg9[%c0_6, %c0_7], %7 {strides = array<i32>} : memref<8x256xf32, #tpu.memory_space<vmem>>, vector<8x256xf32>,
    %c5_i32 = arith.constant 5 : i32
    %9 = arith.cmpi eq, %arg2, %c5_i32 : i32
    %10 = arith.extui %9 : i1 to i32
    %c0_i32_8 = arith.constant 0 : i32
    %11 = arith.cmpi ne, %10, %c0_i32_8 : i32
    scf.if %11 {
      %c0_9 = arith.constant 0 : index
      %c0_10 = arith.constant 0 : index
      %12 = vector.load %arg9[%c0_9, %c0_10] : memref<8x256xf32, #tpu.memory_space<vmem>>, vector<8x256xf32>
      %c0_11 = arith.constant 0 : index
      %c0_12 = arith.constant 0 : index
      %13 = vector.load %arg5[%c0_11, %c0_12] : memref<1x256xf32, #tpu.memory_space<vmem>>, vector<1x256xf32>
      %14 = vector.broadcast %13 : vector<1x256xf32> to vector<8x256xf32>
      %15 = arith.mulf %12, %14 : vector<8x256xf32>
      %c0_13 = arith.constant 0 : index
      %c0_14 = arith.constant 0 : index
      %16 = vector.load %arg6[%c0_13, %c0_14] : memref<1x256xf32, #tpu.memory_space<vmem>>, vector<1x256xf32>
      %17 = vector.broadcast %16 : vector<1x256xf32> to vector<8x256xf32>
      %18 = arith.addf %15, %17 : vector<8x256xf32>
      %c0_15 = arith.constant 0 : index
      %c0_16 = arith.constant 0 : index
      %19 = vector.load %arg7[%c0_15, %c0_16] : memref<8x256xf32, #tpu.memory_space<vmem>>, vector<8x256xf32>
      %20 = arith.addf %18, %19 : vector<8x256xf32>
      %cst_17 = arith.constant 0.000000e+00 : f32
      %21 = vector.broadcast %cst_17 : f32 to vector<8x256xf32>
      %22 = arith.maximumf %20, %21 : vector<8x256xf32>
      %c0_18 = arith.constant 0 : index
      %c0_19 = arith.constant 0 : index
      %23 = vector.load %arg8[%c0_18, %c0_19] : memref<8x256xf32, #tpu.memory_space<vmem>>, vector<8x256xf32>
      tpu.vector_store %arg8[%c0_18, %c0_19], %22 {strides = array<i32>} : memref<8x256xf32, #tpu.memory_space<vmem>>, vector<8x256xf32>,
    } else {
    }
    return
  }
  func.func @transform_0(%arg0: i32, %arg1: i32, %arg2: i32) -> (i32, i32) {
    %c0_i32 = arith.constant 0 : i32
    return %arg0, %arg2 : i32, i32
  }
  func.func @transform_1(%arg0: i32, %arg1: i32, %arg2: i32) -> (i32, i32) {
    %c0_i32 = arith.constant 0 : i32
    return %arg2, %arg1 : i32, i32
  }
  func.func @transform_2(%arg0: i32, %arg1: i32, %arg2: i32) -> (i32, i32) {
    %c0_i32 = arith.constant 0 : i32
    %c0_i32_0 = arith.constant 0 : i32
    return %c0_i32, %arg1 : i32, i32
  }
  func.func @transform_3(%arg0: i32, %arg1: i32, %arg2: i32) -> (i32, i32) {
    %c0_i32 = arith.constant 0 : i32
    %c0_i32_0 = arith.constant 0 : i32
    return %c0_i32, %arg1 : i32, i32
  }
  func.func @transform_4(%arg0: i32, %arg1: i32, %arg2: i32) -> (i32, i32) {
    %c0_i32 = arith.constant 0 : i32
    return %arg0, %arg1 : i32, i32
  }
  func.func @transform_5(%arg0: i32, %arg1: i32, %arg2: i32) -> (i32, i32) {
    %c0_i32 = arith.constant 0 : i32
    return %arg0, %arg1 : i32, i32
  }
}

module attributes {stable_mosaic.version = 11 : i64} {
  func.func @_conv_bn_kernel(%arg0: i32, %arg1: i32, %arg2: i32, %arg3: memref<8x384xbf16, #tpu.memory_space<vmem>>, %arg4: memref<384x256xbf16, #tpu.memory_space<vmem>>, %arg5: memref<1x256xf32, #tpu.memory_space<vmem>>, %arg6: memref<1x256xf32, #tpu.memory_space<vmem>>, %arg7: memref<8x256xf32, #tpu.memory_space<vmem>>, %arg8: memref<8x256xf32, #tpu.memory_space<vmem>>) attributes {dimension_semantics = [#tpu.dimension_semantics<parallel>, #tpu.dimension_semantics<parallel>, #tpu.dimension_semantics<arbitrary>], iteration_bounds = array<i64: 1, 2, 6>, scalar_prefetch = 0 : i64, scratch_operands = 1 : i64, tpu.core_type = #tpu.core_type<tc>, window_params = [{transform_indices = @transform_0, window_bounds = array<i64: 8, 384>}, {transform_indices = @transform_1, window_bounds = array<i64: 384, 256>}, {transform_indices = @transform_2, window_bounds = array<i64: 1, 256>}, {transform_indices = @transform_3, window_bounds = array<i64: 1, 256>}, {transform_indices = @transform_4, window_bounds = array<i64: 8, 256>}]} {
    %c0_i32 = arith.constant 0 : i32
    %0 = arith.cmpi eq, %arg2, %c0_i32 : i32
    %1 = arith.extui %0 : i1 to i32
    %c0_i32_0 = arith.constant 0 : i32
    %2 = arith.cmpi ne, %1, %c0_i32_0 : i32
    scf.if %2 {
      %cst_9 = arith.constant 0.000000e+00 : f32
      %12 = vector.broadcast %cst_9 : f32 to vector<8x256xf32>
      %c0_10 = arith.constant 0 : index
      %c0_11 = arith.constant 0 : index
      %13 = vector.load %arg8[%c0_10, %c0_11] : memref<8x256xf32, #tpu.memory_space<vmem>>, vector<8x256xf32>
      tpu.vector_store %arg8[%c0_10, %c0_11], %12 {strides = array<i32>} : memref<8x256xf32, #tpu.memory_space<vmem>>, vector<8x256xf32>,
    } else {
    }
    %c0 = arith.constant 0 : index
    %c0_1 = arith.constant 0 : index
    %3 = vector.load %arg8[%c0, %c0_1] : memref<8x256xf32, #tpu.memory_space<vmem>>, vector<8x256xf32>
    %c0_2 = arith.constant 0 : index
    %c0_3 = arith.constant 0 : index
    %4 = vector.load %arg3[%c0_2, %c0_3] : memref<8x384xbf16, #tpu.memory_space<vmem>>, vector<8x384xbf16>
    %c0_4 = arith.constant 0 : index
    %c0_5 = arith.constant 0 : index
    %5 = vector.load %arg4[%c0_4, %c0_5] : memref<384x256xbf16, #tpu.memory_space<vmem>>, vector<384x256xbf16>
    %cst = arith.constant dense<0.000000e+00> : vector<8x256xf32>
    %6 = tpu.matmul %4, %5, %cst {dimension_numbers = #tpu.dot_dimension_numbers<[1], [0], [0], [1], [0, 0, 1, 1], [], []>} : vector<8x384xbf16>, vector<384x256xbf16>, vector<8x256xf32> -> vector<8x256xf32>
    %7 = arith.addf %3, %6 : vector<8x256xf32>
    %c0_6 = arith.constant 0 : index
    %c0_7 = arith.constant 0 : index
    %8 = vector.load %arg8[%c0_6, %c0_7] : memref<8x256xf32, #tpu.memory_space<vmem>>, vector<8x256xf32>
    tpu.vector_store %arg8[%c0_6, %c0_7], %7 {strides = array<i32>} : memref<8x256xf32, #tpu.memory_space<vmem>>, vector<8x256xf32>,
    %c5_i32 = arith.constant 5 : i32
    %9 = arith.cmpi eq, %arg2, %c5_i32 : i32
    %10 = arith.extui %9 : i1 to i32
    %c0_i32_8 = arith.constant 0 : i32
    %11 = arith.cmpi ne, %10, %c0_i32_8 : i32
    scf.if %11 {
      %c0_9 = arith.constant 0 : index
      %c0_10 = arith.constant 0 : index
      %12 = vector.load %arg8[%c0_9, %c0_10] : memref<8x256xf32, #tpu.memory_space<vmem>>, vector<8x256xf32>
      %c0_11 = arith.constant 0 : index
      %c0_12 = arith.constant 0 : index
      %13 = vector.load %arg5[%c0_11, %c0_12] : memref<1x256xf32, #tpu.memory_space<vmem>>, vector<1x256xf32>
      %14 = vector.broadcast %13 : vector<1x256xf32> to vector<8x256xf32>
      %15 = arith.mulf %12, %14 : vector<8x256xf32>
      %c0_13 = arith.constant 0 : index
      %c0_14 = arith.constant 0 : index
      %16 = vector.load %arg6[%c0_13, %c0_14] : memref<1x256xf32, #tpu.memory_space<vmem>>, vector<1x256xf32>
      %17 = vector.broadcast %16 : vector<1x256xf32> to vector<8x256xf32>
      %18 = arith.addf %15, %17 : vector<8x256xf32>
      %cst_15 = arith.constant 0.000000e+00 : f32
      %19 = vector.broadcast %cst_15 : f32 to vector<8x256xf32>
      %20 = arith.maximumf %18, %19 : vector<8x256xf32>
      %c0_16 = arith.constant 0 : index
      %c0_17 = arith.constant 0 : index
      %21 = vector.load %arg7[%c0_16, %c0_17] : memref<8x256xf32, #tpu.memory_space<vmem>>, vector<8x256xf32>
      tpu.vector_store %arg7[%c0_16, %c0_17], %20 {strides = array<i32>} : memref<8x256xf32, #tpu.memory_space<vmem>>, vector<8x256xf32>,
    } else {
    }
    return
  }
  func.func @transform_0(%arg0: i32, %arg1: i32, %arg2: i32) -> (i32, i32) {
    %c0_i32 = arith.constant 0 : i32
    return %arg0, %arg2 : i32, i32
  }
  func.func @transform_1(%arg0: i32, %arg1: i32, %arg2: i32) -> (i32, i32) {
    %c0_i32 = arith.constant 0 : i32
    return %arg2, %arg1 : i32, i32
  }
  func.func @transform_2(%arg0: i32, %arg1: i32, %arg2: i32) -> (i32, i32) {
    %c0_i32 = arith.constant 0 : i32
    %c0_i32_0 = arith.constant 0 : i32
    return %c0_i32, %arg1 : i32, i32
  }
  func.func @transform_3(%arg0: i32, %arg1: i32, %arg2: i32) -> (i32, i32) {
    %c0_i32 = arith.constant 0 : i32
    %c0_i32_0 = arith.constant 0 : i32
    return %c0_i32, %arg1 : i32, i32
  }
  func.func @transform_4(%arg0: i32, %arg1: i32, %arg2: i32) -> (i32, i32) {
    %c0_i32 = arith.constant 0 : i32
    return %arg0, %arg1 : i32, i32
  }
}

module attributes {stable_mosaic.version = 11 : i64} {
  func.func @_conv_bn_kernel(%arg0: i32, %arg1: i32, %arg2: i32, %arg3: memref<8x256xbf16, #tpu.memory_space<vmem>>, %arg4: memref<256x256xbf16, #tpu.memory_space<vmem>>, %arg5: memref<1x256xf32, #tpu.memory_space<vmem>>, %arg6: memref<1x256xf32, #tpu.memory_space<vmem>>, %arg7: memref<8x256xf32, #tpu.memory_space<vmem>>, %arg8: memref<8x256xf32, #tpu.memory_space<vmem>>) attributes {dimension_semantics = [#tpu.dimension_semantics<parallel>, #tpu.dimension_semantics<parallel>, #tpu.dimension_semantics<arbitrary>], iteration_bounds = array<i64: 1, 2, 1>, scalar_prefetch = 0 : i64, scratch_operands = 1 : i64, tpu.core_type = #tpu.core_type<tc>, window_params = [{transform_indices = @transform_0, window_bounds = array<i64: 8, 256>}, {transform_indices = @transform_1, window_bounds = array<i64: 256, 256>}, {transform_indices = @transform_2, window_bounds = array<i64: 1, 256>}, {transform_indices = @transform_3, window_bounds = array<i64: 1, 256>}, {transform_indices = @transform_4, window_bounds = array<i64: 8, 256>}]} {
    %c0_i32 = arith.constant 0 : i32
    %0 = arith.cmpi eq, %arg2, %c0_i32 : i32
    %1 = arith.extui %0 : i1 to i32
    %c0_i32_0 = arith.constant 0 : i32
    %2 = arith.cmpi ne, %1, %c0_i32_0 : i32
    scf.if %2 {
      %cst_10 = arith.constant 0.000000e+00 : f32
      %12 = vector.broadcast %cst_10 : f32 to vector<8x256xf32>
      %c0_11 = arith.constant 0 : index
      %c0_12 = arith.constant 0 : index
      %13 = vector.load %arg8[%c0_11, %c0_12] : memref<8x256xf32, #tpu.memory_space<vmem>>, vector<8x256xf32>
      tpu.vector_store %arg8[%c0_11, %c0_12], %12 {strides = array<i32>} : memref<8x256xf32, #tpu.memory_space<vmem>>, vector<8x256xf32>,
    } else {
    }
    %c0 = arith.constant 0 : index
    %c0_1 = arith.constant 0 : index
    %3 = vector.load %arg8[%c0, %c0_1] : memref<8x256xf32, #tpu.memory_space<vmem>>, vector<8x256xf32>
    %c0_2 = arith.constant 0 : index
    %c0_3 = arith.constant 0 : index
    %4 = vector.load %arg3[%c0_2, %c0_3] : memref<8x256xbf16, #tpu.memory_space<vmem>>, vector<8x256xbf16>
    %c0_4 = arith.constant 0 : index
    %c0_5 = arith.constant 0 : index
    %5 = vector.load %arg4[%c0_4, %c0_5] : memref<256x256xbf16, #tpu.memory_space<vmem>>, vector<256x256xbf16>
    %cst = arith.constant dense<0.000000e+00> : vector<8x256xf32>
    %6 = tpu.matmul %4, %5, %cst {dimension_numbers = #tpu.dot_dimension_numbers<[1], [0], [0], [1], [0, 0, 1, 1], [], []>} : vector<8x256xbf16>, vector<256x256xbf16>, vector<8x256xf32> -> vector<8x256xf32>
    %7 = arith.addf %3, %6 : vector<8x256xf32>
    %c0_6 = arith.constant 0 : index
    %c0_7 = arith.constant 0 : index
    %8 = vector.load %arg8[%c0_6, %c0_7] : memref<8x256xf32, #tpu.memory_space<vmem>>, vector<8x256xf32>
    tpu.vector_store %arg8[%c0_6, %c0_7], %7 {strides = array<i32>} : memref<8x256xf32, #tpu.memory_space<vmem>>, vector<8x256xf32>,
    %c0_i32_8 = arith.constant 0 : i32
    %9 = arith.cmpi eq, %arg2, %c0_i32_8 : i32
    %10 = arith.extui %9 : i1 to i32
    %c0_i32_9 = arith.constant 0 : i32
    %11 = arith.cmpi ne, %10, %c0_i32_9 : i32
    scf.if %11 {
      %c0_10 = arith.constant 0 : index
      %c0_11 = arith.constant 0 : index
      %12 = vector.load %arg8[%c0_10, %c0_11] : memref<8x256xf32, #tpu.memory_space<vmem>>, vector<8x256xf32>
      %c0_12 = arith.constant 0 : index
      %c0_13 = arith.constant 0 : index
      %13 = vector.load %arg5[%c0_12, %c0_13] : memref<1x256xf32, #tpu.memory_space<vmem>>, vector<1x256xf32>
      %14 = vector.broadcast %13 : vector<1x256xf32> to vector<8x256xf32>
      %15 = arith.mulf %12, %14 : vector<8x256xf32>
      %c0_14 = arith.constant 0 : index
      %c0_15 = arith.constant 0 : index
      %16 = vector.load %arg6[%c0_14, %c0_15] : memref<1x256xf32, #tpu.memory_space<vmem>>, vector<1x256xf32>
      %17 = vector.broadcast %16 : vector<1x256xf32> to vector<8x256xf32>
      %18 = arith.addf %15, %17 : vector<8x256xf32>
      %c0_16 = arith.constant 0 : index
      %c0_17 = arith.constant 0 : index
      %19 = vector.load %arg7[%c0_16, %c0_17] : memref<8x256xf32, #tpu.memory_space<vmem>>, vector<8x256xf32>
      tpu.vector_store %arg7[%c0_16, %c0_17], %18 {strides = array<i32>} : memref<8x256xf32, #tpu.memory_space<vmem>>, vector<8x256xf32>,
    } else {
    }
    return
  }
  func.func @transform_0(%arg0: i32, %arg1: i32, %arg2: i32) -> (i32, i32) {
    %c0_i32 = arith.constant 0 : i32
    return %arg0, %arg2 : i32, i32
  }
  func.func @transform_1(%arg0: i32, %arg1: i32, %arg2: i32) -> (i32, i32) {
    %c0_i32 = arith.constant 0 : i32
    return %arg2, %arg1 : i32, i32
  }
  func.func @transform_2(%arg0: i32, %arg1: i32, %arg2: i32) -> (i32, i32) {
    %c0_i32 = arith.constant 0 : i32
    %c0_i32_0 = arith.constant 0 : i32
    return %c0_i32, %arg1 : i32, i32
  }
  func.func @transform_3(%arg0: i32, %arg1: i32, %arg2: i32) -> (i32, i32) {
    %c0_i32 = arith.constant 0 : i32
    %c0_i32_0 = arith.constant 0 : i32
    return %c0_i32, %arg1 : i32, i32
  }
  func.func @transform_4(%arg0: i32, %arg1: i32, %arg2: i32) -> (i32, i32) {
    %c0_i32 = arith.constant 0 : i32
    return %arg0, %arg1 : i32, i32
  }
}

module attributes {stable_mosaic.version = 11 : i64} {
  func.func @_conv_bn_res_kernel(%arg0: i32, %arg1: i32, %arg2: i32, %arg3: memref<8x512xbf16, #tpu.memory_space<vmem>>, %arg4: memref<512x256xbf16, #tpu.memory_space<vmem>>, %arg5: memref<1x256xf32, #tpu.memory_space<vmem>>, %arg6: memref<1x256xf32, #tpu.memory_space<vmem>>, %arg7: memref<8x256xf32, #tpu.memory_space<vmem>>, %arg8: memref<8x256xf32, #tpu.memory_space<vmem>>, %arg9: memref<8x256xf32, #tpu.memory_space<vmem>>) attributes {dimension_semantics = [#tpu.dimension_semantics<parallel>, #tpu.dimension_semantics<parallel>, #tpu.dimension_semantics<arbitrary>], iteration_bounds = array<i64: 1, 2, 9>, scalar_prefetch = 0 : i64, scratch_operands = 1 : i64, tpu.core_type = #tpu.core_type<tc>, window_params = [{transform_indices = @transform_0, window_bounds = array<i64: 8, 512>}, {transform_indices = @transform_1, window_bounds = array<i64: 512, 256>}, {transform_indices = @transform_2, window_bounds = array<i64: 1, 256>}, {transform_indices = @transform_3, window_bounds = array<i64: 1, 256>}, {transform_indices = @transform_4, window_bounds = array<i64: 8, 256>}, {transform_indices = @transform_5, window_bounds = array<i64: 8, 256>}]} {
    %c0_i32 = arith.constant 0 : i32
    %0 = arith.cmpi eq, %arg2, %c0_i32 : i32
    %1 = arith.extui %0 : i1 to i32
    %c0_i32_0 = arith.constant 0 : i32
    %2 = arith.cmpi ne, %1, %c0_i32_0 : i32
    scf.if %2 {
      %cst_9 = arith.constant 0.000000e+00 : f32
      %12 = vector.broadcast %cst_9 : f32 to vector<8x256xf32>
      %c0_10 = arith.constant 0 : index
      %c0_11 = arith.constant 0 : index
      %13 = vector.load %arg9[%c0_10, %c0_11] : memref<8x256xf32, #tpu.memory_space<vmem>>, vector<8x256xf32>
      tpu.vector_store %arg9[%c0_10, %c0_11], %12 {strides = array<i32>} : memref<8x256xf32, #tpu.memory_space<vmem>>, vector<8x256xf32>,
    } else {
    }
    %c0 = arith.constant 0 : index
    %c0_1 = arith.constant 0 : index
    %3 = vector.load %arg9[%c0, %c0_1] : memref<8x256xf32, #tpu.memory_space<vmem>>, vector<8x256xf32>
    %c0_2 = arith.constant 0 : index
    %c0_3 = arith.constant 0 : index
    %4 = vector.load %arg3[%c0_2, %c0_3] : memref<8x512xbf16, #tpu.memory_space<vmem>>, vector<8x512xbf16>
    %c0_4 = arith.constant 0 : index
    %c0_5 = arith.constant 0 : index
    %5 = vector.load %arg4[%c0_4, %c0_5] : memref<512x256xbf16, #tpu.memory_space<vmem>>, vector<512x256xbf16>
    %cst = arith.constant dense<0.000000e+00> : vector<8x256xf32>
    %6 = tpu.matmul %4, %5, %cst {dimension_numbers = #tpu.dot_dimension_numbers<[1], [0], [0], [1], [0, 0, 1, 1], [], []>} : vector<8x512xbf16>, vector<512x256xbf16>, vector<8x256xf32> -> vector<8x256xf32>
    %7 = arith.addf %3, %6 : vector<8x256xf32>
    %c0_6 = arith.constant 0 : index
    %c0_7 = arith.constant 0 : index
    %8 = vector.load %arg9[%c0_6, %c0_7] : memref<8x256xf32, #tpu.memory_space<vmem>>, vector<8x256xf32>
    tpu.vector_store %arg9[%c0_6, %c0_7], %7 {strides = array<i32>} : memref<8x256xf32, #tpu.memory_space<vmem>>, vector<8x256xf32>,
    %c8_i32 = arith.constant 8 : i32
    %9 = arith.cmpi eq, %arg2, %c8_i32 : i32
    %10 = arith.extui %9 : i1 to i32
    %c0_i32_8 = arith.constant 0 : i32
    %11 = arith.cmpi ne, %10, %c0_i32_8 : i32
    scf.if %11 {
      %c0_9 = arith.constant 0 : index
      %c0_10 = arith.constant 0 : index
      %12 = vector.load %arg9[%c0_9, %c0_10] : memref<8x256xf32, #tpu.memory_space<vmem>>, vector<8x256xf32>
      %c0_11 = arith.constant 0 : index
      %c0_12 = arith.constant 0 : index
      %13 = vector.load %arg5[%c0_11, %c0_12] : memref<1x256xf32, #tpu.memory_space<vmem>>, vector<1x256xf32>
      %14 = vector.broadcast %13 : vector<1x256xf32> to vector<8x256xf32>
      %15 = arith.mulf %12, %14 : vector<8x256xf32>
      %c0_13 = arith.constant 0 : index
      %c0_14 = arith.constant 0 : index
      %16 = vector.load %arg6[%c0_13, %c0_14] : memref<1x256xf32, #tpu.memory_space<vmem>>, vector<1x256xf32>
      %17 = vector.broadcast %16 : vector<1x256xf32> to vector<8x256xf32>
      %18 = arith.addf %15, %17 : vector<8x256xf32>
      %c0_15 = arith.constant 0 : index
      %c0_16 = arith.constant 0 : index
      %19 = vector.load %arg7[%c0_15, %c0_16] : memref<8x256xf32, #tpu.memory_space<vmem>>, vector<8x256xf32>
      %20 = arith.addf %18, %19 : vector<8x256xf32>
      %cst_17 = arith.constant 0.000000e+00 : f32
      %21 = vector.broadcast %cst_17 : f32 to vector<8x256xf32>
      %22 = arith.maximumf %20, %21 : vector<8x256xf32>
      %c0_18 = arith.constant 0 : index
      %c0_19 = arith.constant 0 : index
      %23 = vector.load %arg8[%c0_18, %c0_19] : memref<8x256xf32, #tpu.memory_space<vmem>>, vector<8x256xf32>
      tpu.vector_store %arg8[%c0_18, %c0_19], %22 {strides = array<i32>} : memref<8x256xf32, #tpu.memory_space<vmem>>, vector<8x256xf32>,
    } else {
    }
    return
  }
  func.func @transform_0(%arg0: i32, %arg1: i32, %arg2: i32) -> (i32, i32) {
    %c0_i32 = arith.constant 0 : i32
    return %arg0, %arg2 : i32, i32
  }
  func.func @transform_1(%arg0: i32, %arg1: i32, %arg2: i32) -> (i32, i32) {
    %c0_i32 = arith.constant 0 : i32
    return %arg2, %arg1 : i32, i32
  }
  func.func @transform_2(%arg0: i32, %arg1: i32, %arg2: i32) -> (i32, i32) {
    %c0_i32 = arith.constant 0 : i32
    %c0_i32_0 = arith.constant 0 : i32
    return %c0_i32, %arg1 : i32, i32
  }
  func.func @transform_3(%arg0: i32, %arg1: i32, %arg2: i32) -> (i32, i32) {
    %c0_i32 = arith.constant 0 : i32
    %c0_i32_0 = arith.constant 0 : i32
    return %c0_i32, %arg1 : i32, i32
  }
  func.func @transform_4(%arg0: i32, %arg1: i32, %arg2: i32) -> (i32, i32) {
    %c0_i32 = arith.constant 0 : i32
    return %arg0, %arg1 : i32, i32
  }
  func.func @transform_5(%arg0: i32, %arg1: i32, %arg2: i32) -> (i32, i32) {
    %c0_i32 = arith.constant 0 : i32
    return %arg0, %arg1 : i32, i32
  }
}

module attributes {stable_mosaic.version = 11 : i64} {
  func.func @_head_kernel(%arg0: i32, %arg1: memref<2x1x512xf32, #tpu.memory_space<vmem>>, %arg2: memref<512x128xf32, #tpu.memory_space<vmem>>, %arg3: memref<1x128xf32, #tpu.memory_space<vmem>>, %arg4: memref<2x128xf32, #tpu.memory_space<vmem>>) attributes {dimension_semantics = [#tpu.dimension_semantics<arbitrary>], iteration_bounds = array<i64: 1>, scalar_prefetch = 0 : i64, scratch_operands = 0 : i64, tpu.core_type = #tpu.core_type<tc>, window_params = [{pipeline_mode = #tpu.pipeline_mode<synchronous>, transform_indices = @transform_0, window_bounds = array<i64: 2, 1, 512>}, {pipeline_mode = #tpu.pipeline_mode<synchronous>, transform_indices = @transform_1, window_bounds = array<i64: 512, 128>}, {pipeline_mode = #tpu.pipeline_mode<synchronous>, transform_indices = @transform_2, window_bounds = array<i64: 1, 128>}, {pipeline_mode = #tpu.pipeline_mode<synchronous>, transform_indices = @transform_3, window_bounds = array<i64: 2, 128>}]} {
    %c0 = arith.constant 0 : index
    %c0_0 = arith.constant 0 : index
    %c0_1 = arith.constant 0 : index
    %0 = vector.load %arg1[%c0, %c0_0, %c0_1] : memref<2x1x512xf32, #tpu.memory_space<vmem>>, vector<2x1x512xf32>
    %cst = arith.constant dense<0.000000e+00> : vector<2x512xf32>
    %1 = vector.multi_reduction <add>, %0, %cst [1] : vector<2x1x512xf32> to vector<2x512xf32>
    %cst_2 = arith.constant 1.000000e+00 : f32
    %2 = vector.broadcast %cst_2 : f32 to vector<2x512xf32>
    %3 = arith.mulf %1, %2 : vector<2x512xf32>
    %c0_3 = arith.constant 0 : index
    %c0_4 = arith.constant 0 : index
    %4 = vector.load %arg2[%c0_3, %c0_4] : memref<512x128xf32, #tpu.memory_space<vmem>>, vector<512x128xf32>
    %cst_5 = arith.constant dense<0.000000e+00> : vector<2x128xf32>
    %5 = tpu.matmul %3, %4, %cst_5 {dimension_numbers = #tpu.dot_dimension_numbers<[1], [0], [0], [1], [0, 0, 1, 1], [], []>} : vector<2x512xf32>, vector<512x128xf32>, vector<2x128xf32> -> vector<2x128xf32>
    %c0_6 = arith.constant 0 : index
    %c0_7 = arith.constant 0 : index
    %6 = vector.load %arg3[%c0_6, %c0_7] : memref<1x128xf32, #tpu.memory_space<vmem>>, vector<1x128xf32>
    %7 = vector.broadcast %6 : vector<1x128xf32> to vector<2x128xf32>
    %8 = arith.addf %5, %7 : vector<2x128xf32>
    %c0_8 = arith.constant 0 : index
    %c0_9 = arith.constant 0 : index
    %9 = vector.load %arg4[%c0_8, %c0_9] : memref<2x128xf32, #tpu.memory_space<vmem>>, vector<2x128xf32>
    tpu.vector_store %arg4[%c0_8, %c0_9], %8 {strides = array<i32>} : memref<2x128xf32, #tpu.memory_space<vmem>>, vector<2x128xf32>,
    return
  }
  func.func @transform_0(%arg0: i32) -> (i32, i32, i32) {
    %c0_i32 = arith.constant 0 : i32
    %c0_i32_0 = arith.constant 0 : i32
    %c0_i32_1 = arith.constant 0 : i32
    %c0_i32_2 = arith.constant 0 : i32
    return %c0_i32, %c0_i32_0, %c0_i32_1 : i32, i32, i32
  }
  func.func @transform_1(%arg0: i32) -> (i32, i32) {
    %c0_i32 = arith.constant 0 : i32
    %c0_i32_0 = arith.constant 0 : i32
    %c0_i32_1 = arith.constant 0 : i32
    return %c0_i32, %c0_i32_0 : i32, i32
  }
  func.func @transform_2(%arg0: i32) -> (i32, i32) {
    %c0_i32 = arith.constant 0 : i32
    %c0_i32_0 = arith.constant 0 : i32
    %c0_i32_1 = arith.constant 0 : i32
    return %c0_i32, %c0_i32_0 : i32, i32
  }
  func.func @transform_3(%arg0: i32) -> (i32, i32) {
    %c0_i32 = arith.constant 0 : i32
    %c0_i32_0 = arith.constant 0 : i32
    %c0_i32_1 = arith.constant 0 : i32
    return %c0_i32, %c0_i32_0 : i32, i32
  }
}

</mosaic_0001>

<llo_original>
// kernel: custom_resnet_forward.12
$region0: #{custom_resnet_forward.12}
  #allocation0 [shape = 'u32[]', space=smem, size = 0x4, offset = 0x4, fixed_abs, tag = 'smem constant byte address 0x4 - core index']
  #allocation1 [shape = 'u32[144,128]{1,0:T(1,128)}', space=vmem, size = 0x12000, scoped, tag = 'internal scratch']
  #allocation2 [shape = 'f32[256,128]{1,0:T(8,128)}', space=vmem, size = 0x20000, scoped, tag = 'scratch operand']
  %s0 = inlined_call_operand.vmem [shape: bf16[512,256], index: 0, kind: input, shape index: {}]
  %s1 = inlined_call_operand.vmem [shape: bf16[256,128], index: 1, kind: input, shape index: {}]
  %s2 = inlined_call_operand.vmem [shape: f32[1,128], index: 2, kind: input, shape index: {}]
  %s3 = inlined_call_operand.vmem [shape: f32[1,128], index: 3, kind: input, shape index: {}]
  %s4 = inlined_call_operand.vmem [shape: f32[512,128], index: 4, kind: output, shape index: {}]
  %s5 = sld [smem:[#allocation0]]
  $region57: #{custom_resnet_forward.12} parent=0
    _
  %s7 = ssub.s32 1, %s5
  %s8 = scalar_select 0, %s7, %s5
  loop: start=0, step=1, limit=4
  $region2: #{custom_resnet_forward.12} parent=0 // loop_pre_header
    _
  $region3: #{custom_resnet_forward.12} parent=0 // loop_header
    %s10 = sphi 0, %s14
    %p11 = scmp.ge.s32.totalorder %s10, 4
    %s17 = sphi 0, %s36
    %s18 = sphi 0, %s32
    %s19 = sphi 0, %s28
    %s20 = sphi 0, %s17
    %s21 = sphi 0, %s18
    %s22 = sphi 0, %s19
    %s23 = sphi 0, %s20
    %s24 = sphi 0, %s21
    %s25 = sphi 0, %s22
    %s41 = sphi 0, %s43
    %s44 = sphi 0, %s41
    %s45 = sphi 0, %s44
    %s61 = sphi 0, %s45
    %s69 = sphi 0, %s71
    %s72 = sphi 0, %s69
    %s73 = sphi 0, %s72
    %s89 = sphi 0, %s73
    %s95 = sphi 0, %s97
    %s98 = sphi 0, %s95
    %s99 = sphi 0, %s98
    %s115 = sphi 0, %s99
    %s121 = sphi 0, %s123
    %s124 = sphi 0, %s121
    %s125 = sphi 0, %s124
    %s141 = sphi 0, %s125
    %s149 = sphi 0, %s151
    %s152 = sphi 0, %s149
    %s153 = sphi 0, %s152
    %s169 = sphi 0, %s153
  $region4: #{custom_resnet_forward.12} parent=0 // loop_header_branch
    %13 = sbr.rel (%p11) target = $region8
  $region5: #{custom_resnet_forward.12} parent=0 // loop_body
    %s15 = ssub.s32 %s10, 1
    %s16 = ssub.s32 %s10, 2
    %s26 = sadd.s32 1, %s19
    %p27 = scmp.ge.s32.totalorder %s26, 1
    %s28 = scalar_select %p27, 0, %s26
    %s29 = sadd.s32 1, %s18
    %s30 = scalar_select %p27, %s29, %s18
    %p31 = scmp.ge.s32.totalorder %s30, 1
    %s32 = scalar_select %p31, 0, %s30
    %s33 = sadd.s32 1, %s17
    %s34 = scalar_select %p31, %s33, %s17
    %p35 = scmp.ge.s32.totalorder %s34, 2
    %s36 = scalar_select %p35, 0, %s34
    %s37 = ssub.s32 %s17, %s36
    %s38 = ssub.s32 %s19, %s28
    %s39 = sor.u32 %s37, %s38
    %p40 = scmp.eq.s32.totalorder %s39, 0
    %s42 = sadd.s32 %s41, 1
    %s43 = scalar_select %p40, %s41, %s42
    %p46 = pneg %p40
    %p47 = scmp.eq.s32.totalorder %s10, 1
    %p48 = por %p46, %p47
    %p49 = scmp.ne.s32.totalorder %s41, %s44
    %p50 = scmp.eq.s32.totalorder %s10, 0
    %p51 = por %p49, %p50
    %p52 = scmp.ne.s32.totalorder %s41, %s44
    %p53 = scmp.eq.s32.totalorder %s15, 1
    %p54 = por %p52, %p53
    %p55 = scmp.ne.s32.totalorder %s44, %s45
    %p56 = scmp.eq.s32.totalorder %s15, 0
    %p57 = por %p55, %p56
    %p58 = scmp.ne.s32.totalorder %s44, %s45
    %p59 = scmp.eq.s32.totalorder %s16, 1
    %p60 = por %p58, %p59
    %p62 = scmp.ne.s32.totalorder %s45, %s61
    %p63 = scmp.eq.s32.totalorder %s16, 0
    %p64 = por %p62, %p63
    %s65 = ssub.s32 %s19, %s28
    %s66 = ssub.s32 %s18, %s32
    %s67 = sor.u32 %s65, %s66
    %p68 = scmp.eq.s32.totalorder %s67, 0
    %s70 = sadd.s32 %s69, 1
    %s71 = scalar_select %p68, %s69, %s70
    %p74 = pneg %p68
    %p75 = scmp.eq.s32.totalorder %s10, 1
    %p76 = por %p74, %p75
    %p77 = scmp.ne.s32.totalorder %s69, %s72
    %p78 = scmp.eq.s32.totalorder %s10, 0
    %p79 = por %p77, %p78
    %p80 = scmp.ne.s32.totalorder %s69, %s72
    %p81 = scmp.eq.s32.totalorder %s15, 1
    %p82 = por %p80, %p81
    %p83 = scmp.ne.s32.totalorder %s72, %s73
    %p84 = scmp.eq.s32.totalorder %s15, 0
    %p85 = por %p83, %p84
    %p86 = scmp.ne.s32.totalorder %s72, %s73
    %p87 = scmp.eq.s32.totalorder %s16, 1
    %p88 = por %p86, %p87
    %p90 = scmp.ne.s32.totalorder %s73, %s89
    %p91 = scmp.eq.s32.totalorder %s16, 0
    %p92 = por %p90, %p91
    %s93 = ssub.s32 %s18, %s32
    %p94 = scmp.eq.s32.totalorder %s93, 0
    %s96 = sadd.s32 %s95, 1
    %s97 = scalar_select %p94, %s95, %s96
    %p100 = pneg %p94
    %p101 = scmp.eq.s32.totalorder %s10, 1
    %p102 = por %p100, %p101
    %p103 = scmp.ne.s32.totalorder %s95, %s98
    %p104 = scmp.eq.s32.totalorder %s10, 0
    %p105 = por %p103, %p104
    %p106 = scmp.ne.s32.totalorder %s95, %s98
    %p107 = scmp.eq.s32.totalorder %s15, 1
    %p108 = por %p106, %p107
    %p109 = scmp.ne.s32.totalorder %s98, %s99
    %p110 = scmp.eq.s32.totalorder %s15, 0
    %p111 = por %p109, %p110
    %p112 = scmp.ne.s32.totalorder %s98, %s99
    %p113 = scmp.eq.s32.totalorder %s16, 1
    %p114 = por %p112, %p113
    %p116 = scmp.ne.s32.totalorder %s99, %s115
    %p117 = scmp.eq.s32.totalorder %s16, 0
    %p118 = por %p116, %p117
    %s119 = ssub.s32 %s18, %s32
    %p120 = scmp.eq.s32.totalorder %s119, 0
    %s122 = sadd.s32 %s121, 1
    %s123 = scalar_select %p120, %s121, %s122
    %p126 = pneg %p120
    %p127 = scmp.eq.s32.totalorder %s10, 1
    %p128 = por %p126, %p127
    %p129 = scmp.ne.s32.totalorder %s121, %s124
    %p130 = scmp.eq.s32.totalorder %s10, 0
    %p131 = por %p129, %p130
    %p132 = scmp.ne.s32.totalorder %s121, %s124
    %p133 = scmp.eq.s32.totalorder %s15, 1
    %p134 = por %p132, %p133
    %p135 = scmp.ne.s32.totalorder %s124, %s125
    %p136 = scmp.eq.s32.totalorder %s15, 0
    %p137 = por %p135, %p136
    %p138 = scmp.ne.s32.totalorder %s124, %s125
    %p139 = scmp.eq.s32.totalorder %s16, 1
    %p140 = por %p138, %p139
    %p142 = scmp.ne.s32.totalorder %s125, %s141
    %p143 = scmp.eq.s32.totalorder %s16, 0
    %p144 = por %p142, %p143
    %s145 = ssub.s32 %s17, %s36
    %s146 = ssub.s32 %s18, %s32
    %s147 = sor.u32 %s145, %s146
    %p148 = scmp.eq.s32.totalorder %s147, 0
    %s150 = sadd.s32 %s149, 1
    %s151 = scalar_select %p148, %s149, %s150
    %p154 = pneg %p148
    %p155 = scmp.eq.s32.totalorder %s10, 1
    %p156 = por %p154, %p155
    %p157 = scmp.ne.s32.totalorder %s149, %s152
    %p158 = scmp.eq.s32.totalorder %s10, 0
    %p159 = por %p157, %p158
    %p160 = scmp.ne.s32.totalorder %s149, %s152
    %p161 = scmp.eq.s32.totalorder %s15, 1
    %p162 = por %p160, %p161
    %p163 = scmp.ne.s32.totalorder %s152, %s153
    %p164 = scmp.eq.s32.totalorder %s15, 0
    %p165 = por %p163, %p164
    %p166 = scmp.ne.s32.totalorder %s152, %s153
    %p167 = scmp.eq.s32.totalorder %s16, 1
    %p168 = por %p166, %p167
    %p170 = scmp.ne.s32.totalorder %s153, %s169
    %p171 = scmp.eq.s32.totalorder %s16, 0
    %p172 = por %p170, %p171
    %p173 = scmp.le.s32.totalorder 1, %s10
    %p174 = scmp.lt.s32.totalorder %s10, 3
    %p175 = pnand %p173, %p174
    %p176 = pneg %p175
    // Predicated region
    $region9: #{custom_resnet_forward.12} parent=5 // pred_check
      _
    $region10: #{custom_resnet_forward.12} parent=5 // pred_check_branch
      %178 = sbr.rel (%p175) target = $region12
    $region11: #{custom_resnet_forward.12} parent=5 // pred_region
      %s179 = ssub.s32 %s10, 1
      // Predicated region
      $region13: #{custom_resnet_forward.12} parent=11 // pred_check
        %p180 = pneg %p85
      $region14: #{custom_resnet_forward.12} parent=11 // pred_check_branch
        %182 = sbr.rel (%p180) target = $region16
      $region15: #{custom_resnet_forward.12} parent=11 // pred_region
        %s183 = smul.u32 32, %s22
        %p184 = scmp.lt.s32.totalorder %s183, 31
        %s185 = scalar_select %p184, %s183, 31
        %p186 = scmp.lt.s32.totalorder %s21, 0
        %s187 = scalar_select %p186, %s21, 0
        %s188 = sadd.s32 %s187, %s185
        %s189 = smul.addr %s188, 4
        %s190 = scalar_lea.vmem %s1, %s189
        %s191 = smul.u32 32, %s22
      $region16: #{custom_resnet_forward.12} parent=11 // pred_fallthru
        _
      // Predicated region
      $region17: #{custom_resnet_forward.12} parent=11 // pred_check
        %p192 = pneg %p111
      $region18: #{custom_resnet_forward.12} parent=11 // pred_check_branch
        %194 = sbr.rel (%p192) target = $region20
      $region19: #{custom_resnet_forward.12} parent=11 // pred_region
        %p195 = scmp.lt.s32.totalorder %s21, 0
        %s196 = scalar_select %p195, %s21, 0
        %s197 = scalar_lea.vmem %s2, %s196
      $region20: #{custom_resnet_forward.12} parent=11 // pred_fallthru
        _
      // Predicated region
      $region21: #{custom_resnet_forward.12} parent=11 // pred_check
        %p198 = pneg %p137
      $region22: #{custom_resnet_forward.12} parent=11 // pred_check_branch
        %200 = sbr.rel (%p198) target = $region24
      $region23: #{custom_resnet_forward.12} parent=11 // pred_region
        %p201 = scmp.lt.s32.totalorder %s21, 0
        %s202 = scalar_select %p201, %s21, 0
        %s203 = scalar_lea.vmem %s3, %s202
      $region24: #{custom_resnet_forward.12} parent=11 // pred_fallthru
        _
    $region12: #{custom_resnet_forward.12} parent=5 // pred_fallthru
      _
    %p204 = scmp.lt.s32.totalorder %s10, 2
    // Predicated region
    $region25: #{custom_resnet_forward.12} parent=5 // pred_check
      %p205 = pneg %p204
    $region26: #{custom_resnet_forward.12} parent=5 // pred_check_branch
      %207 = sbr.rel (%p205) target = $region28
    $region27: #{custom_resnet_forward.12} parent=5 // pred_region
      // Predicated region
      $region29: #{custom_resnet_forward.12} parent=27 // pred_check
        %p208 = pneg %p51
      $region30: #{custom_resnet_forward.12} parent=27 // pred_check_branch
        %210 = sbr.rel (%p208) target = $region32
      $region31: #{custom_resnet_forward.12} parent=27 // pred_region
        %s211 = smul.u32 32, %s17
        %s212 = smul.u32 2, %s19
        %p213 = scmp.lt.s32.totalorder %s211, 63
        %s214 = scalar_select %p213, %s211, 63
        %p215 = scmp.lt.s32.totalorder %s212, 1
        %s216 = scalar_select %p215, %s212, 1
        %s217 = smul.addr %s214, 2
        %s218 = sadd.s32 %s216, %s217
        %s219 = smul.addr %s218, 4
        %s220 = scalar_lea.vmem %s0, %s219
        %s221 = smul.u32 32, %s17
        %s222 = smul.u32 2, %s19
      $region32: #{custom_resnet_forward.12} parent=27 // pred_fallthru
        _
    $region28: #{custom_resnet_forward.12} parent=5 // pred_fallthru
      _
    %p223 = scmp.le.s32.totalorder 1, %s10
    %p224 = scmp.lt.s32.totalorder %s10, 3
    %p225 = pnand %p223, %p224
    %p226 = pneg %p225
    // Predicated region
    $region33: #{custom_resnet_forward.12} parent=5 // pred_check
      _
    $region34: #{custom_resnet_forward.12} parent=5 // pred_check_branch
      %228 = sbr.rel (%p225) target = $region36
    $region35: #{custom_resnet_forward.12} parent=5 // pred_region
      %s229 = ssub.s32 %s10, 1
      %s230 = smul.u32 32, %s20
      %s231 = smul.u32 2, %s22
      %p232 = scmp.lt.s32.totalorder %s230, 63
      %s233 = scalar_select %p232, %s230, 63
      %p234 = scmp.lt.s32.totalorder %s231, 1
      %s235 = scalar_select %p234, %s231, 1
      %s236 = smul.addr %s233, 2
      %s237 = sadd.s32 %s235, %s236
      %s238 = smul.addr %s237, 4
      %s239 = scalar_lea.vmem %s0, %s238
      %p240 = pneg %p57
      %p241 = pneg %p54
      %s242 = smul.u32 32, %s22
      %p243 = scmp.lt.s32.totalorder %s242, 31
      %s244 = scalar_select %p243, %s242, 31
      %p245 = scmp.lt.s32.totalorder %s21, 0
      %s246 = scalar_select %p245, %s21, 0
      %s247 = sadd.s32 %s246, %s244
      %s248 = smul.addr %s247, 4
      %s249 = scalar_lea.vmem %s1, %s248
      %p250 = pneg %p85
      %p251 = pneg %p82
      %p252 = scmp.lt.s32.totalorder %s21, 0
      %s253 = scalar_select %p252, %s21, 0
      %s254 = scalar_lea.vmem %s2, %s253
      %p255 = pneg %p111
      %p256 = pneg %p108
      %p257 = scmp.lt.s32.totalorder %s21, 0
      %s258 = scalar_select %p257, %s21, 0
      %s259 = scalar_lea.vmem %s3, %s258
      %p260 = pneg %p137
      %p261 = pneg %p134
      %p262 = pneg %p165
      %p263 = pneg %p162
      %s264 = smul.u32 32, %s20
      %p265 = scmp.lt.s32.totalorder %s264, 63
      %s266 = scalar_select %p265, %s264, 63
      %p267 = scmp.lt.s32.totalorder %s21, 0
      %s268 = scalar_select %p267, %s21, 0
      %s269 = sadd.s32 %s268, %s266
      %s270 = smul.addr %s269, 8
      %s271 = scalar_lea.vmem %s4, %s270
      %s272 = smul.u32 32, %s20
      %s273 = smul.u32 2, %s22
      %p274 = scmp.lt.s32.totalorder %s272, 63
      %s275 = scalar_select %p274, %s272, 63
      %p276 = scmp.lt.s32.totalorder %s273, 1
      %s277 = scalar_select %p276, %s273, 1
      %s278 = smul.addr %s275, 2
      %s279 = sadd.s32 %s277, %s278
      %s280 = smul.addr %s279, 4
      %s281 = scalar_lea.vmem %s0, %s280
      %s282 = smul.u32 32, %s20
      %s283 = smul.u32 2, %s22
      %s284 = smul.u32 32, %s22
      %p285 = scmp.lt.s32.totalorder %s284, 31
      %s286 = scalar_select %p285, %s284, 31
      %p287 = scmp.lt.s32.totalorder %s21, 0
      %s288 = scalar_select %p287, %s21, 0
      %s289 = sadd.s32 %s288, %s286
      %s290 = smul.addr %s289, 4
      %s291 = scalar_lea.vmem %s1, %s290
      %s292 = smul.u32 32, %s22
      %p293 = scmp.lt.s32.totalorder %s21, 0
      %s294 = scalar_select %p293, %s21, 0
      %s295 = scalar_lea.vmem %s2, %s294
      %p296 = scmp.lt.s32.totalorder %s21, 0
      %s297 = scalar_select %p296, %s21, 0
      %s298 = scalar_lea.vmem %s3, %s297
      %s299 = smul.u32 32, %s20
      %p300 = scmp.lt.s32.totalorder %s299, 63
      %s301 = scalar_select %p300, %s299, 63
      %p302 = scmp.lt.s32.totalorder %s21, 0
      %s303 = scalar_select %p302, %s21, 0
      %s304 = sadd.s32 %s303, %s301
      %s305 = smul.addr %s304, 8
      %s306 = scalar_lea.vmem %s4, %s305
      %s307 = smul.u32 32, %s20
      %p309 = scmp.eq.s32.totalorder %s22, 0
      // Predicated region
      $region37: #{custom_resnet_forward.12} parent=35 // pred_check
        %p310 = pneg %p309
      $region38: #{custom_resnet_forward.12} parent=35 // pred_check_branch
        %312 = sbr.rel (%p310) target = $region40
      $region39: #{custom_resnet_forward.12} parent=35 // pred_region
        %313 = vst [vmem:[#allocation2] sm:$0xff] 0.0
        %314 = vst [vmem:[#allocation2 + $0x8] sm:$0xff] 0.0
        %315 = vst [vmem:[#allocation2 + $0x10] sm:$0xff] 0.0
        %316 = vst [vmem:[#allocation2 + $0x18] sm:$0xff] 0.0
        %317 = vst [vmem:[#allocation2 + $0x20] sm:$0xff] 0.0
        %318 = vst [vmem:[#allocation2 + $0x28] sm:$0xff] 0.0
        %319 = vst [vmem:[#allocation2 + $0x30] sm:$0xff] 0.0
        %320 = vst [vmem:[#allocation2 + $0x38] sm:$0xff] 0.0
        %321 = vst [vmem:[#allocation2 + $0x40] sm:$0xff] 0.0
        %322 = vst [vmem:[#allocation2 + $0x48] sm:$0xff] 0.0
        %323 = vst [vmem:[#allocation2 + $0x50] sm:$0xff] 0.0
        %324 = vst [vmem:[#allocation2 + $0x58] sm:$0xff] 0.0
        %325 = vst [vmem:[#allocation2 + $0x60] sm:$0xff] 0.0
        %326 = vst [vmem:[#allocation2 + $0x68] sm:$0xff] 0.0
        %327 = vst [vmem:[#allocation2 + $0x70] sm:$0xff] 0.0
        %328 = vst [vmem:[#allocation2 + $0x78] sm:$0xff] 0.0
        %329 = vst [vmem:[#allocation2 + $0x80] sm:$0xff] 0.0
        %330 = vst [vmem:[#allocation2 + $0x88] sm:$0xff] 0.0
        %331 = vst [vmem:[#allocation2 + $0x90] sm:$0xff] 0.0
        %332 = vst [vmem:[#allocation2 + $0x98] sm:$0xff] 0.0
        %333 = vst [vmem:[#allocation2 + $0xa0] sm:$0xff] 0.0
        %334 = vst [vmem:[#allocation2 + $0xa8] sm:$0xff] 0.0
        %335 = vst [vmem:[#allocation2 + $0xb0] sm:$0xff] 0.0
        %336 = vst [vmem:[#allocation2 + $0xb8] sm:$0xff] 0.0
        %337 = vst [vmem:[#allocation2 + $0xc0] sm:$0xff] 0.0
        %338 = vst [vmem:[#allocation2 + $0xc8] sm:$0xff] 0.0
        %339 = vst [vmem:[#allocation2 + $0xd0] sm:$0xff] 0.0
        %340 = vst [vmem:[#allocation2 + $0xd8] sm:$0xff] 0.0
        %341 = vst [vmem:[#allocation2 + $0xe0] sm:$0xff] 0.0
        %342 = vst [vmem:[#allocation2 + $0xe8] sm:$0xff] 0.0
        %343 = vst [vmem:[#allocation2 + $0xf0] sm:$0xff] 0.0
        %344 = vst [vmem:[#allocation2 + $0xf8] sm:$0xff] 0.0
      $region40: #{custom_resnet_forward.12} parent=35 // pred_fallthru
        _
      %v345 = vld [vmem:[#allocation2] sm:$0xff]
      %v346 = vld [vmem:[#allocation2 + $0x8] sm:$0xff]
      %v347 = vld [vmem:[#allocation2 + $0x10] sm:$0xff]
      %v348 = vld [vmem:[#allocation2 + $0x18] sm:$0xff]
      %v349 = vld [vmem:[#allocation2 + $0x20] sm:$0xff]
      %v350 = vld [vmem:[#allocation2 + $0x28] sm:$0xff]
      %v351 = vld [vmem:[#allocation2 + $0x30] sm:$0xff]
      %v352 = vld [vmem:[#allocation2 + $0x38] sm:$0xff]
      %v353 = vld [vmem:[#allocation2 + $0x40] sm:$0xff]
      %v354 = vld [vmem:[#allocation2 + $0x48] sm:$0xff]
      %v355 = vld [vmem:[#allocation2 + $0x50] sm:$0xff]
      %v356 = vld [vmem:[#allocation2 + $0x58] sm:$0xff]
      %v357 = vld [vmem:[#allocation2 + $0x60] sm:$0xff]
      %v358 = vld [vmem:[#allocation2 + $0x68] sm:$0xff]
      %v359 = vld [vmem:[#allocation2 + $0x70] sm:$0xff]
      %v360 = vld [vmem:[#allocation2 + $0x78] sm:$0xff]
      %v361 = vld [vmem:[#allocation2 + $0x80] sm:$0xff]
      %v362 = vld [vmem:[#allocation2 + $0x88] sm:$0xff]
      %v363 = vld [vmem:[#allocation2 + $0x90] sm:$0xff]
      %v364 = vld [vmem:[#allocation2 + $0x98] sm:$0xff]
      %v365 = vld [vmem:[#allocation2 + $0xa0] sm:$0xff]
      %v366 = vld [vmem:[#allocation2 + $0xa8] sm:$0xff]
      %v367 = vld [vmem:[#allocation2 + $0xb0] sm:$0xff]
      %v368 = vld [vmem:[#allocation2 + $0xb8] sm:$0xff]
      %v369 = vld [vmem:[#allocation2 + $0xc0] sm:$0xff]
      %v370 = vld [vmem:[#allocation2 + $0xc8] sm:$0xff]
      %v371 = vld [vmem:[#allocation2 + $0xd0] sm:$0xff]
      %v372 = vld [vmem:[#allocation2 + $0xd8] sm:$0xff]
      %v373 = vld [vmem:[#allocation2 + $0xe0] sm:$0xff]
      %v374 = vld [vmem:[#allocation2 + $0xe8] sm:$0xff]
      %v375 = vld [vmem:[#allocation2 + $0xf0] sm:$0xff]
      %v376 = vld [vmem:[#allocation2 + $0xf8] sm:$0xff]
      %v377 = vld [vmem:[%s281] sm:$0xff]
      %v378 = vld [vmem:[%s281 + $0x8] sm:$0xff]
      %v379 = vld [vmem:[%s281 + $0x10] sm:$0xff]
      %v380 = vld [vmem:[%s281 + $0x18] sm:$0xff]
      %v381 = vld [vmem:[%s281 + $0x20] sm:$0xff]
      %v382 = vld [vmem:[%s281 + $0x28] sm:$0xff]
      %v383 = vld [vmem:[%s281 + $0x30] sm:$0xff]
      %v384 = vld [vmem:[%s281 + $0x38] sm:$0xff]
      %v385 = vld [vmem:[%s281 + $0x40] sm:$0xff]
      %v386 = vld [vmem:[%s281 + $0x48] sm:$0xff]
      %v387 = vld [vmem:[%s281 + $0x50] sm:$0xff]
      %v388 = vld [vmem:[%s281 + $0x58] sm:$0xff]
      %v389 = vld [vmem:[%s281 + $0x60] sm:$0xff]
      %v390 = vld [vmem:[%s281 + $0x68] sm:$0xff]
      %v391 = vld [vmem:[%s281 + $0x70] sm:$0xff]
      %v392 = vld [vmem:[%s281 + $0x78] sm:$0xff]
      %v393 = vld [vmem:[%s281 + $0x80] sm:$0xff]
      %v394 = vld [vmem:[%s281 + $0x88] sm:$0xff]
      %v395 = vld [vmem:[%s281 + $0x90] sm:$0xff]
      %v396 = vld [vmem:[%s281 + $0x98] sm:$0xff]
      %v397 = vld [vmem:[%s281 + $0xa0] sm:$0xff]
      %v398 = vld [vmem:[%s281 + $0xa8] sm:$0xff]
      %v399 = vld [vmem:[%s281 + $0xb0] sm:$0xff]
      %v400 = vld [vmem:[%s281 + $0xb8] sm:$0xff]
      %v401 = vld [vmem:[%s281 + $0xc0] sm:$0xff]
      %v402 = vld [vmem:[%s281 + $0xc8] sm:$0xff]
      %v403 = vld [vmem:[%s281 + $0xd0] sm:$0xff]
      %v404 = vld [vmem:[%s281 + $0xd8] sm:$0xff]
      %v405 = vld [vmem:[%s281 + $0xe0] sm:$0xff]
      %v406 = vld [vmem:[%s281 + $0xe8] sm:$0xff]
      %v407 = vld [vmem:[%s281 + $0xf0] sm:$0xff]
      %v408 = vld [vmem:[%s281 + $0xf8] sm:$0xff]
      %v409 = vld [vmem:[%s291] sm:$0xf]
      %v410 = vld [vmem:[%s291 + $0x4] sm:$0xf]
      %v411 = vld [vmem:[%s291 + $0x8] sm:$0xf]
      %v412 = vld [vmem:[%s291 + $0xc] sm:$0xf]
      %v413 = vld [vmem:[%s291 + $0x10] sm:$0xf]
      %v414 = vld [vmem:[%s291 + $0x14] sm:$0xf]
      %v415 = vld [vmem:[%s291 + $0x18] sm:$0xf]
      %v416 = vld [vmem:[%s291 + $0x1c] sm:$0xf]
      %v417 = vld [vmem:[%s291 + $0x20] sm:$0xf]
      %v418 = vld [vmem:[%s291 + $0x24] sm:$0xf]
      %v419 = vld [vmem:[%s291 + $0x28] sm:$0xf]
      %v420 = vld [vmem:[%s291 + $0x2c] sm:$0xf]
      %v421 = vld [vmem:[%s291 + $0x30] sm:$0xf]
      %v422 = vld [vmem:[%s291 + $0x34] sm:$0xf]
      %v423 = vld [vmem:[%s291 + $0x38] sm:$0xf]
      %v424 = vld [vmem:[%s291 + $0x3c] sm:$0xf]
      %v425 = vld [vmem:[%s291 + $0x40] sm:$0xf]
      %v426 = vld [vmem:[%s291 + $0x44] sm:$0xf]
      %v427 = vld [vmem:[%s291 + $0x48] sm:$0xf]
      %v428 = vld [vmem:[%s291 + $0x4c] sm:$0xf]
      %v429 = vld [vmem:[%s291 + $0x50] sm:$0xf]
      %v430 = vld [vmem:[%s291 + $0x54] sm:$0xf]
      %v431 = vld [vmem:[%s291 + $0x58] sm:$0xf]
      %v432 = vld [vmem:[%s291 + $0x5c] sm:$0xf]
      %v433 = vld [vmem:[%s291 + $0x60] sm:$0xf]
      %v434 = vld [vmem:[%s291 + $0x64] sm:$0xf]
      %v435 = vld [vmem:[%s291 + $0x68] sm:$0xf]
      %v436 = vld [vmem:[%s291 + $0x6c] sm:$0xf]
      %v437 = vld [vmem:[%s291 + $0x70] sm:$0xf]
      %v438 = vld [vmem:[%s291 + $0x74] sm:$0xf]
      %v439 = vld [vmem:[%s291 + $0x78] sm:$0xf]
      %v440 = vld [vmem:[%s291 + $0x7c] sm:$0xf]
      %v473 = vunpack.c.l.b16 %v377
      %v474 = vunpack.c.h.b16 %v377
      %v475 = vunpack.c.l.b16 %v378
      %v476 = vunpack.c.h.b16 %v378
      %v477 = vunpack.c.l.b16 %v379
      %v478 = vunpack.c.h.b16 %v379
      %v479 = vunpack.c.l.b16 %v380
      %v480 = vunpack.c.h.b16 %v380
      %v481 = vunpack.c.l.b16 %v381
      %v482 = vunpack.c.h.b16 %v381
      %v483 = vunpack.c.l.b16 %v382
      %v484 = vunpack.c.h.b16 %v382
      %v485 = vunpack.c.l.b16 %v383
      %v486 = vunpack.c.h.b16 %v383
      %v487 = vunpack.c.l.b16 %v384
      %v488 = vunpack.c.h.b16 %v384
      %v489 = vunpack.c.l.b16 %v385
      %v490 = vunpack.c.h.b16 %v385
      %v491 = vunpack.c.l.b16 %v386
      %v492 = vunpack.c.h.b16 %v386
      %v493 = vunpack.c.l.b16 %v387
      %v494 = vunpack.c.h.b16 %v387
      %v495 = vunpack.c.l.b16 %v388
      %v496 = vunpack.c.h.b16 %v388
      %v497 = vunpack.c.l.b16 %v389
      %v498 = vunpack.c.h.b16 %v389
      %v499 = vunpack.c.l.b16 %v390
      %v500 = vunpack.c.h.b16 %v390
      %v501 = vunpack.c.l.b16 %v391
      %v502 = vunpack.c.h.b16 %v391
      %v503 = vunpack.c.l.b16 %v392
      %v504 = vunpack.c.h.b16 %v392
      %v505 = vunpack.c.l.b16 %v393
      %v506 = vunpack.c.h.b16 %v393
      %v507 = vunpack.c.l.b16 %v394
      %v508 = vunpack.c.h.b16 %v394
      %v509 = vunpack.c.l.b16 %v395
      %v510 = vunpack.c.h.b16 %v395
      %v511 = vunpack.c.l.b16 %v396
      %v512 = vunpack.c.h.b16 %v396
      %v513 = vunpack.c.l.b16 %v397
      %v514 = vunpack.c.h.b16 %v397
      %v515 = vunpack.c.l.b16 %v398
      %v516 = vunpack.c.h.b16 %v398
      %v517 = vunpack.c.l.b16 %v399
      %v518 = vunpack.c.h.b16 %v399
      %v519 = vunpack.c.l.b16 %v400
      %v520 = vunpack.c.h.b16 %v400
      %v521 = vunpack.c.l.b16 %v401
      %v522 = vunpack.c.h.b16 %v401
      %v523 = vunpack.c.l.b16 %v402
      %v524 = vunpack.c.h.b16 %v402
      %v525 = vunpack.c.l.b16 %v403
      %v526 = vunpack.c.h.b16 %v403
      %v527 = vunpack.c.l.b16 %v404
      %v528 = vunpack.c.h.b16 %v404
      %v529 = vunpack.c.l.b16 %v405
      %v530 = vunpack.c.h.b16 %v405
      %v531 = vunpack.c.l.b16 %v406
      %v532 = vunpack.c.h.b16 %v406
      %v533 = vunpack.c.l.b16 %v407
      %v534 = vunpack.c.h.b16 %v407
      %v535 = vunpack.c.l.b16 %v408
      %v536 = vunpack.c.h.b16 %v408
      %v537 = vpack.c.b16 %v475, %v473
      %v538 = vpack.c.b16 %v476, %v474
      %v539 = vpack.c.b16 %v479, %v477
      %v540 = vpack.c.b16 %v480, %v478
      %v541 = vpack.c.b16 %v483, %v481
      %v542 = vpack.c.b16 %v484, %v482
      %v543 = vpack.c.b16 %v487, %v485
      %v544 = vpack.c.b16 %v488, %v486
      %v545 = vpack.c.b16 %v491, %v489
      %v546 = vpack.c.b16 %v492, %v490
      %v547 = vpack.c.b16 %v495, %v493
      %v548 = vpack.c.b16 %v496, %v494
      %v549 = vpack.c.b16 %v499, %v497
      %v550 = vpack.c.b16 %v500, %v498
      %v551 = vpack.c.b16 %v503, %v501
      %v552 = vpack.c.b16 %v504, %v502
      %v553 = vpack.c.b16 %v507, %v505
      %v554 = vpack.c.b16 %v508, %v506
      %v555 = vpack.c.b16 %v511, %v509
      %v556 = vpack.c.b16 %v512, %v510
      %v557 = vpack.c.b16 %v515, %v513
      %v558 = vpack.c.b16 %v516, %v514
      %v559 = vpack.c.b16 %v519, %v517
      %v560 = vpack.c.b16 %v520, %v518
      %v561 = vpack.c.b16 %v523, %v521
      %v562 = vpack.c.b16 %v524, %v522
      %v563 = vpack.c.b16 %v527, %v525
      %v564 = vpack.c.b16 %v528, %v526
      %v565 = vpack.c.b16 %v531, %v529
      %v566 = vpack.c.b16 %v532, %v530
      %v567 = vpack.c.b16 %v535, %v533
      %v568 = vpack.c.b16 %v536, %v534
      %v633 = vunpack.c.l.b16 %v409
      %v634 = vunpack.c.l.b16 %v410
      %v635 = vunpack.c.l.b16 %v411
      %v636 = vunpack.c.l.b16 %v412
      %v637 = vunpack.c.l.b16 %v413
      %v638 = vunpack.c.l.b16 %v414
      %v639 = vunpack.c.l.b16 %v415
      %v640 = vunpack.c.l.b16 %v416
      %v641 = vunpack.c.l.b16 %v417
      %v642 = vunpack.c.l.b16 %v418
      %v643 = vunpack.c.l.b16 %v419
      %v644 = vunpack.c.l.b16 %v420
      %v645 = vunpack.c.l.b16 %v421
      %v646 = vunpack.c.l.b16 %v422
      %v647 = vunpack.c.l.b16 %v423
      %v648 = vunpack.c.l.b16 %v424
      %v649 = vunpack.c.l.b16 %v425
      %v650 = vunpack.c.l.b16 %v426
      %v651 = vunpack.c.l.b16 %v427
      %v652 = vunpack.c.l.b16 %v428
      %v653 = vunpack.c.l.b16 %v429
      %v654 = vunpack.c.l.b16 %v430
      %v655 = vunpack.c.l.b16 %v431
      %v656 = vunpack.c.l.b16 %v432
      %v657 = vunpack.c.l.b16 %v433
      %v658 = vunpack.c.l.b16 %v434
      %v659 = vunpack.c.l.b16 %v435
      %v660 = vunpack.c.l.b16 %v436
      %v661 = vunpack.c.l.b16 %v437
      %v662 = vunpack.c.l.b16 %v438
      %v663 = vunpack.c.l.b16 %v439
      %v664 = vunpack.c.l.b16 %v440
      %v665 = vpack.c.b16 %v634, %v633
      %v666 = vpack.c.b16 %v636, %v635
      %v667 = vpack.c.b16 %v638, %v637
      %v668 = vpack.c.b16 %v640, %v639
      %v669 = vpack.c.b16 %v642, %v641
      %v670 = vpack.c.b16 %v644, %v643
      %v671 = vpack.c.b16 %v646, %v645
      %v672 = vpack.c.b16 %v648, %v647
      %v673 = vpack.c.b16 %v650, %v649
      %v674 = vpack.c.b16 %v652, %v651
      %v675 = vpack.c.b16 %v654, %v653
      %v676 = vpack.c.b16 %v656, %v655
      %v677 = vpack.c.b16 %v658, %v657
      %v678 = vpack.c.b16 %v660, %v659
      %v679 = vpack.c.b16 %v662, %v661
      %v680 = vpack.c.b16 %v664, %v663
      %697 = vmatprep.subr.bf16.mxu0 0
      %698 = vmatpush1.bf16.msra.mxu0 %v672
      %699 = vmatprep.subr.bf16.mxu0 0
      %700 = vmatpush1.bf16.msra.mxu0 %v671
      %701 = vmatprep.subr.bf16.mxu0 0
      %702 = vmatpush1.bf16.msra.mxu0 %v670
      %703 = vmatprep.subr.bf16.mxu0 0
      %704 = vmatpush1.bf16.msra.mxu0 %v669
      %705 = vmatprep.subr.bf16.mxu0 0
      %706 = vmatpush1.bf16.msra.mxu0 %v668
      %707 = vmatprep.subr.bf16.mxu0 0
      %708 = vmatpush1.bf16.msra.mxu0 %v667
      %709 = vmatprep.subr.bf16.mxu0 0
      %710 = vmatpush1.bf16.msra.mxu0 %v666
      %711 = vmatprep.subr.bf16.mxu0 0
      %712 = vmatpush1.bf16.msra.mxu0 %v665
      %713 = vmatprep.subr.bf16.mxu0 0
      %714 = vmatpush2.bf16.msra.mxu0 %v680
      %715 = vmatprep.subr.bf16.mxu0 0
      %716 = vmatpush2.bf16.msra.mxu0 %v679
      %717 = vmatprep.subr.bf16.mxu0 0
      %718 = vmatpush2.bf16.msra.mxu0 %v678
      %719 = vmatprep.subr.bf16.mxu0 0
      %720 = vmatpush2.bf16.msra.mxu0 %v677
      %721 = vmatprep.subr.bf16.mxu0 0
      %722 = vmatpush2.bf16.msra.mxu0 %v676
      %723 = vmatprep.subr.bf16.mxu0 0
      %724 = vmatpush2.bf16.msra.mxu0 %v675
      %725 = vmatprep.subr.bf16.mxu0 0
      %726 = vmatpush2.bf16.msra.mxu0 %v674
      %727 = vmatprep.subr.bf16.mxu0 0
      %728 = vmatpush2.bf16.msra.mxu0 %v673
      %729 = vmatprep.mubr.bf16.mxu0 %v538
      %730 = vmatmul.mubr.bf16.gmra.mxu0 %v537
      %v731 = vpop.f32.mrf.mxu0
      %v732 = vadd.f32 0.0, %v731
      %v733 = vpop.f32.mrf.mxu0
      %v734 = vpop.f32.mrf.mxu0
      %v735 = vadd.f32 0.0, %v734
      %v736 = vpop.f32.mrf.mxu0
      %737 = vmatprep.mubr.bf16.mxu0 %v540
      %738 = vmatmul.mubr.bf16.gmra.mxu0 %v539
      %v739 = vpop.f32.mrf.mxu0
      %v740 = vadd.f32 0.0, %v739
      %v741 = vpop.f32.mrf.mxu0
      %v742 = vpop.f32.mrf.mxu0
      %v743 = vadd.f32 0.0, %v742
      %v744 = vpop.f32.mrf.mxu0
      %745 = vmatprep.mubr.bf16.mxu0 %v542
      %746 = vmatmul.mubr.bf16.gmra.mxu0 %v541
      %v747 = vpop.f32.mrf.mxu0
      %v748 = vadd.f32 0.0, %v747
      %v749 = vpop.f32.mrf.mxu0
      %v750 = vpop.f32.mrf.mxu0
      %v751 = vadd.f32 0.0, %v750
      %v752 = vpop.f32.mrf.mxu0
      %753 = vmatprep.mubr.bf16.mxu0 %v544
      %754 = vmatmul.mubr.bf16.gmra.mxu0 %v543
      %v755 = vpop.f32.mrf.mxu0
      %v756 = vadd.f32 0.0, %v755
      %v757 = vpop.f32.mrf.mxu0
      %v758 = vpop.f32.mrf.mxu0
      %v759 = vadd.f32 0.0, %v758
      %v760 = vpop.f32.mrf.mxu0
      %761 = vmatprep.mubr.bf16.mxu0 %v546
      %762 = vmatmul.mubr.bf16.gmra.mxu0 %v545
      %v763 = vpop.f32.mrf.mxu0
      %v764 = vadd.f32 0.0, %v763
      %v765 = vpop.f32.mrf.mxu0
      %v766 = vpop.f32.mrf.mxu0
      %v767 = vadd.f32 0.0, %v766
      %v768 = vpop.f32.mrf.mxu0
      %769 = vmatprep.mubr.bf16.mxu0 %v548
      %770 = vmatmul.mubr.bf16.gmra.mxu0 %v547
      %v771 = vpop.f32.mrf.mxu0
      %v772 = vadd.f32 0.0, %v771
      %v773 = vpop.f32.mrf.mxu0
      %v774 = vpop.f32.mrf.mxu0
      %v775 = vadd.f32 0.0, %v774
      %v776 = vpop.f32.mrf.mxu0
      %777 = vmatprep.mubr.bf16.mxu0 %v550
      %778 = vmatmul.mubr.bf16.gmra.mxu0 %v549
      %v779 = vpop.f32.mrf.mxu0
      %v780 = vadd.f32 0.0, %v779
      %v781 = vpop.f32.mrf.mxu0
      %v782 = vpop.f32.mrf.mxu0
      %v783 = vadd.f32 0.0, %v782
      %v784 = vpop.f32.mrf.mxu0
      %785 = vmatprep.mubr.bf16.mxu0 %v552
      %786 = vmatmul.mubr.bf16.gmra.mxu0 %v551
      %v787 = vpop.f32.mrf.mxu0
      %v788 = vadd.f32 0.0, %v787
      %v789 = vpop.f32.mrf.mxu0
      %v790 = vpop.f32.mrf.mxu0
      %v791 = vadd.f32 0.0, %v790
      %v792 = vpop.f32.mrf.mxu0
      %793 = vmatprep.mubr.bf16.mxu0 %v554
      %794 = vmatmul.mubr.bf16.gmra.mxu0 %v553
      %v795 = vpop.f32.mrf.mxu0
      %v796 = vadd.f32 0.0, %v795
      %v797 = vpop.f32.mrf.mxu0
      %v798 = vpop.f32.mrf.mxu0
      %v799 = vadd.f32 0.0, %v798
      %v800 = vpop.f32.mrf.mxu0
      %801 = vmatprep.mubr.bf16.mxu0 %v556
      %802 = vmatmul.mubr.bf16.gmra.mxu0 %v555
      %v803 = vpop.f32.mrf.mxu0
      %v804 = vadd.f32 0.0, %v803
      %v805 = vpop.f32.mrf.mxu0
      %v806 = vpop.f32.mrf.mxu0
      %v807 = vadd.f32 0.0, %v806
      %v808 = vpop.f32.mrf.mxu0
      %809 = vmatprep.mubr.bf16.mxu0 %v558
      %810 = vmatmul.mubr.bf16.gmra.mxu0 %v557
      %v811 = vpop.f32.mrf.mxu0
      %v812 = vadd.f32 0.0, %v811
      %v813 = vpop.f32.mrf.mxu0
      %v814 = vpop.f32.mrf.mxu0
      %v815 = vadd.f32 0.0, %v814
      %v816 = vpop.f32.mrf.mxu0
      %817 = vmatprep.mubr.bf16.mxu0 %v560
      %818 = vmatmul.mubr.bf16.gmra.mxu0 %v559
      %v819 = vpop.f32.mrf.mxu0
      %v820 = vadd.f32 0.0, %v819
      %v821 = vpop.f32.mrf.mxu0
      %v822 = vpop.f32.mrf.mxu0
      %v823 = vadd.f32 0.0, %v822
      %v824 = vpop.f32.mrf.mxu0
      %825 = vmatprep.mubr.bf16.mxu0 %v562
      %826 = vmatmul.mubr.bf16.gmra.mxu0 %v561
      %v827 = vpop.f32.mrf.mxu0
      %v828 = vadd.f32 0.0, %v827
      %v829 = vpop.f32.mrf.mxu0
      %v830 = vpop.f32.mrf.mxu0
      %v831 = vadd.f32 0.0, %v830
      %v832 = vpop.f32.mrf.mxu0
      %833 = vmatprep.mubr.bf16.mxu0 %v564
      %834 = vmatmul.mubr.bf16.gmra.mxu0 %v563
      %v835 = vpop.f32.mrf.mxu0
      %v836 = vadd.f32 0.0, %v835
      %v837 = vpop.f32.mrf.mxu0
      %v838 = vpop.f32.mrf.mxu0
      %v839 = vadd.f32 0.0, %v838
      %v840 = vpop.f32.mrf.mxu0
      %841 = vmatprep.mubr.bf16.mxu0 %v566
      %842 = vmatmul.mubr.bf16.gmra.mxu0 %v565
      %v843 = vpop.f32.mrf.mxu0
      %v844 = vadd.f32 0.0, %v843
      %v845 = vpop.f32.mrf.mxu0
      %v846 = vpop.f32.mrf.mxu0
      %v847 = vadd.f32 0.0, %v846
      %v848 = vpop.f32.mrf.mxu0
      %849 = vmatprep.mubr.bf16.mxu0 %v568
      %850 = vmatmul.mubr.bf16.gmra.mxu0 %v567
      %v851 = vpop.f32.mrf.mxu0
      %v852 = vadd.f32 0.0, %v851
      %v853 = vpop.f32.mrf.mxu0
      %v854 = vpop.f32.mrf.mxu0
      %v855 = vadd.f32 0.0, %v854
      %v856 = vpop.f32.mrf.mxu0
      %857 = vdwg.mxu0
      %v858 = vadd.f32 %v345, %v732
      %v859 = vadd.f32 %v346, %v735
      %v860 = vadd.f32 %v347, %v740
      %v861 = vadd.f32 %v348, %v743
      %v862 = vadd.f32 %v349, %v748
      %v863 = vadd.f32 %v350, %v751
      %v864 = vadd.f32 %v351, %v756
      %v865 = vadd.f32 %v352, %v759
      %v866 = vadd.f32 %v353, %v764
      %v867 = vadd.f32 %v354, %v767
      %v868 = vadd.f32 %v355, %v772
      %v869 = vadd.f32 %v356, %v775
      %v870 = vadd.f32 %v357, %v780
      %v871 = vadd.f32 %v358, %v783
      %v872 = vadd.f32 %v359, %v788
      %v873 = vadd.f32 %v360, %v791
      %v874 = vadd.f32 %v361, %v796
      %v875 = vadd.f32 %v362, %v799
      %v876 = vadd.f32 %v363, %v804
      %v877 = vadd.f32 %v364, %v807
      %v878 = vadd.f32 %v365, %v812
      %v879 = vadd.f32 %v366, %v815
      %v880 = vadd.f32 %v367, %v820
      %v881 = vadd.f32 %v368, %v823
      %v882 = vadd.f32 %v369, %v828
      %v883 = vadd.f32 %v370, %v831
      %v884 = vadd.f32 %v371, %v836
      %v885 = vadd.f32 %v372, %v839
      %v886 = vadd.f32 %v373, %v844
      %v887 = vadd.f32 %v374, %v847
      %v888 = vadd.f32 %v375, %v852
      %v889 = vadd.f32 %v376, %v855
      %890 = vst [vmem:[#allocation2] sm:$0xff] %v858
      %891 = vst [vmem:[#allocation2 + $0x8] sm:$0xff] %v859
      %892 = vst [vmem:[#allocation2 + $0x10] sm:$0xff] %v860
      %893 = vst [vmem:[#allocation2 + $0x18] sm:$0xff] %v861
      %894 = vst [vmem:[#allocation2 + $0x20] sm:$0xff] %v862
      %895 = vst [vmem:[#allocation2 + $0x28] sm:$0xff] %v863
      %896 = vst [vmem:[#allocation2 + $0x30] sm:$0xff] %v864
      %897 = vst [vmem:[#allocation2 + $0x38] sm:$0xff] %v865
      %898 = vst [vmem:[#allocation2 + $0x40] sm:$0xff] %v866
      %899 = vst [vmem:[#allocation2 + $0x48] sm:$0xff] %v867
      %900 = vst [vmem:[#allocation2 + $0x50] sm:$0xff] %v868
      %901 = vst [vmem:[#allocation2 + $0x58] sm:$0xff] %v869
      %902 = vst [vmem:[#allocation2 + $0x60] sm:$0xff] %v870
      %903 = vst [vmem:[#allocation2 + $0x68] sm:$0xff] %v871
      %904 = vst [vmem:[#allocation2 + $0x70] sm:$0xff] %v872
      %905 = vst [vmem:[#allocation2 + $0x78] sm:$0xff] %v873
      %906 = vst [vmem:[#allocation2 + $0x80] sm:$0xff] %v874
      %907 = vst [vmem:[#allocation2 + $0x88] sm:$0xff] %v875
      %908 = vst [vmem:[#allocation2 + $0x90] sm:$0xff] %v876
      %909 = vst [vmem:[#allocation2 + $0x98] sm:$0xff] %v877
      %910 = vst [vmem:[#allocation2 + $0xa0] sm:$0xff] %v878
      %911 = vst [vmem:[#allocation2 + $0xa8] sm:$0xff] %v879
      %912 = vst [vmem:[#allocation2 + $0xb0] sm:$0xff] %v880
      %913 = vst [vmem:[#allocation2 + $0xb8] sm:$0xff] %v881
      %914 = vst [vmem:[#allocation2 + $0xc0] sm:$0xff] %v882
      %915 = vst [vmem:[#allocation2 + $0xc8] sm:$0xff] %v883
      %916 = vst [vmem:[#allocation2 + $0xd0] sm:$0xff] %v884
      %917 = vst [vmem:[#allocation2 + $0xd8] sm:$0xff] %v885
      %918 = vst [vmem:[#allocation2 + $0xe0] sm:$0xff] %v886
      %919 = vst [vmem:[#allocation2 + $0xe8] sm:$0xff] %v887
      %920 = vst [vmem:[#allocation2 + $0xf0] sm:$0xff] %v888
      %921 = vst [vmem:[#allocation2 + $0xf8] sm:$0xff] %v889
      // Predicated region
      $region41: #{custom_resnet_forward.12} parent=35 // pred_check
        %p922 = pneg %p309
      $region42: #{custom_resnet_forward.12} parent=35 // pred_check_branch
        %924 = sbr.rel (%p922) target = $region44
      $region43: #{custom_resnet_forward.12} parent=35 // pred_region
        %v925 = vld [vmem:[#allocation2] sm:$0xff]
        %v926 = vld [vmem:[#allocation2 + $0x8] sm:$0xff]
        %v927 = vld [vmem:[#allocation2 + $0x10] sm:$0xff]
        %v928 = vld [vmem:[#allocation2 + $0x18] sm:$0xff]
        %v929 = vld [vmem:[#allocation2 + $0x20] sm:$0xff]
        %v930 = vld [vmem:[#allocation2 + $0x28] sm:$0xff]
        %v931 = vld [vmem:[#allocation2 + $0x30] sm:$0xff]
        %v932 = vld [vmem:[#allocation2 + $0x38] sm:$0xff]
        %v933 = vld [vmem:[#allocation2 + $0x40] sm:$0xff]
        %v934 = vld [vmem:[#allocation2 + $0x48] sm:$0xff]
        %v935 = vld [vmem:[#allocation2 + $0x50] sm:$0xff]
        %v936 = vld [vmem:[#allocation2 + $0x58] sm:$0xff]
        %v937 = vld [vmem:[#allocation2 + $0x60] sm:$0xff]
        %v938 = vld [vmem:[#allocation2 + $0x68] sm:$0xff]
        %v939 = vld [vmem:[#allocation2 + $0x70] sm:$0xff]
        %v940 = vld [vmem:[#allocation2 + $0x78] sm:$0xff]
        %v941 = vld [vmem:[#allocation2 + $0x80] sm:$0xff]
        %v942 = vld [vmem:[#allocation2 + $0x88] sm:$0xff]
        %v943 = vld [vmem:[#allocation2 + $0x90] sm:$0xff]
        %v944 = vld [vmem:[#allocation2 + $0x98] sm:$0xff]
        %v945 = vld [vmem:[#allocation2 + $0xa0] sm:$0xff]
        %v946 = vld [vmem:[#allocation2 + $0xa8] sm:$0xff]
        %v947 = vld [vmem:[#allocation2 + $0xb0] sm:$0xff]
        %v948 = vld [vmem:[#allocation2 + $0xb8] sm:$0xff]
        %v949 = vld [vmem:[#allocation2 + $0xc0] sm:$0xff]
        %v950 = vld [vmem:[#allocation2 + $0xc8] sm:$0xff]
        %v951 = vld [vmem:[#allocation2 + $0xd0] sm:$0xff]
        %v952 = vld [vmem:[#allocation2 + $0xd8] sm:$0xff]
        %v953 = vld [vmem:[#allocation2 + $0xe0] sm:$0xff]
        %v954 = vld [vmem:[#allocation2 + $0xe8] sm:$0xff]
        %v955 = vld [vmem:[#allocation2 + $0xf0] sm:$0xff]
        %v956 = vld [vmem:[#allocation2 + $0xf8] sm:$0xff]
        %v957 = vld [vmem:[%s295] sm:$0x1]
        %v959 = vlaneseq
        %v960 = vshrl.u32 %v959, 7
        %v961 = vsub.s32 0, %v960
        %v962 = vrot.slane %v957, %v961
        %v964 = vmul.f32 %v925, %v962
        %v965 = vmul.f32 %v926, %v962
        %v966 = vmul.f32 %v927, %v962
        %v967 = vmul.f32 %v928, %v962
        %v968 = vmul.f32 %v929, %v962
        %v969 = vmul.f32 %v930, %v962
        %v970 = vmul.f32 %v931, %v962
        %v971 = vmul.f32 %v932, %v962
        %v972 = vmul.f32 %v933, %v962
        %v973 = vmul.f32 %v934, %v962
        %v974 = vmul.f32 %v935, %v962
        %v975 = vmul.f32 %v936, %v962
        %v976 = vmul.f32 %v937, %v962
        %v977 = vmul.f32 %v938, %v962
        %v978 = vmul.f32 %v939, %v962
        %v979 = vmul.f32 %v940, %v962
        %v980 = vmul.f32 %v941, %v962
        %v981 = vmul.f32 %v942, %v962
        %v982 = vmul.f32 %v943, %v962
        %v983 = vmul.f32 %v944, %v962
        %v984 = vmul.f32 %v945, %v962
        %v985 = vmul.f32 %v946, %v962
        %v986 = vmul.f32 %v947, %v962
        %v987 = vmul.f32 %v948, %v962
        %v988 = vmul.f32 %v949, %v962
        %v989 = vmul.f32 %v950, %v962
        %v990 = vmul.f32 %v951, %v962
        %v991 = vmul.f32 %v952, %v962
        %v992 = vmul.f32 %v953, %v962
        %v993 = vmul.f32 %v954, %v962
        %v994 = vmul.f32 %v955, %v962
        %v995 = vmul.f32 %v956, %v962
        %v996 = vld [vmem:[%s298] sm:$0x1]
        %v998 = vlaneseq
        %v999 = vshrl.u32 %v998, 7
        %v1000 = vsub.s32 0, %v999
        %v1001 = vrot.slane %v996, %v1000
        %v1003 = vadd.f32 %v964, %v1001
        %v1004 = vadd.f32 %v965, %v1001
        %v1005 = vadd.f32 %v966, %v1001
        %v1006 = vadd.f32 %v967, %v1001
        %v1007 = vadd.f32 %v968, %v1001
        %v1008 = vadd.f32 %v969, %v1001
        %v1009 = vadd.f32 %v970, %v1001
        %v1010 = vadd.f32 %v971, %v1001
        %v1011 = vadd.f32 %v972, %v1001
        %v1012 = vadd.f32 %v973, %v1001
        %v1013 = vadd.f32 %v974, %v1001
        %v1014 = vadd.f32 %v975, %v1001
        %v1015 = vadd.f32 %v976, %v1001
        %v1016 = vadd.f32 %v977, %v1001
        %v1017 = vadd.f32 %v978, %v1001
        %v1018 = vadd.f32 %v979, %v1001
        %v1019 = vadd.f32 %v980, %v1001
        %v1020 = vadd.f32 %v981, %v1001
        %v1021 = vadd.f32 %v982, %v1001
        %v1022 = vadd.f32 %v983, %v1001
        %v1023 = vadd.f32 %v984, %v1001
        %v1024 = vadd.f32 %v985, %v1001
        %v1025 = vadd.f32 %v986, %v1001
        %v1026 = vadd.f32 %v987, %v1001
        %v1027 = vadd.f32 %v988, %v1001
        %v1028 = vadd.f32 %v989, %v1001
        %v1029 = vadd.f32 %v990, %v1001
        %v1030 = vadd.f32 %v991, %v1001
        %v1031 = vadd.f32 %v992, %v1001
        %v1032 = vadd.f32 %v993, %v1001
        %v1033 = vadd.f32 %v994, %v1001
        %v1034 = vadd.f32 %v995, %v1001
        %v1035 = vmax.f32 %v1003, 0.0
        %v1036 = vmax.f32 %v1004, 0.0
        %v1037 = vmax.f32 %v1005, 0.0
        %v1038 = vmax.f32 %v1006, 0.0
        %v1039 = vmax.f32 %v1007, 0.0
        %v1040 = vmax.f32 %v1008, 0.0
        %v1041 = vmax.f32 %v1009, 0.0
        %v1042 = vmax.f32 %v1010, 0.0
        %v1043 = vmax.f32 %v1011, 0.0
        %v1044 = vmax.f32 %v1012, 0.0
        %v1045 = vmax.f32 %v1013, 0.0
        %v1046 = vmax.f32 %v1014, 0.0
        %v1047 = vmax.f32 %v1015, 0.0
        %v1048 = vmax.f32 %v1016, 0.0
        %v1049 = vmax.f32 %v1017, 0.0
        %v1050 = vmax.f32 %v1018, 0.0
        %v1051 = vmax.f32 %v1019, 0.0
        %v1052 = vmax.f32 %v1020, 0.0
        %v1053 = vmax.f32 %v1021, 0.0
        %v1054 = vmax.f32 %v1022, 0.0
        %v1055 = vmax.f32 %v1023, 0.0
        %v1056 = vmax.f32 %v1024, 0.0
        %v1057 = vmax.f32 %v1025, 0.0
        %v1058 = vmax.f32 %v1026, 0.0
        %v1059 = vmax.f32 %v1027, 0.0
        %v1060 = vmax.f32 %v1028, 0.0
        %v1061 = vmax.f32 %v1029, 0.0
        %v1062 = vmax.f32 %v1030, 0.0
        %v1063 = vmax.f32 %v1031, 0.0
        %v1064 = vmax.f32 %v1032, 0.0
        %v1065 = vmax.f32 %v1033, 0.0
        %v1066 = vmax.f32 %v1034, 0.0
        %1067 = vst [vmem:[%s306] sm:$0xff] %v1035
        %1068 = vst [vmem:[%s306 + $0x8] sm:$0xff] %v1036
        %1069 = vst [vmem:[%s306 + $0x10] sm:$0xff] %v1037
        %1070 = vst [vmem:[%s306 + $0x18] sm:$0xff] %v1038
        %1071 = vst [vmem:[%s306 + $0x20] sm:$0xff] %v1039
        %1072 = vst [vmem:[%s306 + $0x28] sm:$0xff] %v1040
        %1073 = vst [vmem:[%s306 + $0x30] sm:$0xff] %v1041
        %1074 = vst [vmem:[%s306 + $0x38] sm:$0xff] %v1042
        %1075 = vst [vmem:[%s306 + $0x40] sm:$0xff] %v1043
        %1076 = vst [vmem:[%s306 + $0x48] sm:$0xff] %v1044
        %1077 = vst [vmem:[%s306 + $0x50] sm:$0xff] %v1045
        %1078 = vst [vmem:[%s306 + $0x58] sm:$0xff] %v1046
        %1079 = vst [vmem:[%s306 + $0x60] sm:$0xff] %v1047
        %1080 = vst [vmem:[%s306 + $0x68] sm:$0xff] %v1048
        %1081 = vst [vmem:[%s306 + $0x70] sm:$0xff] %v1049
        %1082 = vst [vmem:[%s306 + $0x78] sm:$0xff] %v1050
        %1083 = vst [vmem:[%s306 + $0x80] sm:$0xff] %v1051
        %1084 = vst [vmem:[%s306 + $0x88] sm:$0xff] %v1052
        %1085 = vst [vmem:[%s306 + $0x90] sm:$0xff] %v1053
        %1086 = vst [vmem:[%s306 + $0x98] sm:$0xff] %v1054
        %1087 = vst [vmem:[%s306 + $0xa0] sm:$0xff] %v1055
        %1088 = vst [vmem:[%s306 + $0xa8] sm:$0xff] %v1056
        %1089 = vst [vmem:[%s306 + $0xb0] sm:$0xff] %v1057
        %1090 = vst [vmem:[%s306 + $0xb8] sm:$0xff] %v1058
        %1091 = vst [vmem:[%s306 + $0xc0] sm:$0xff] %v1059
        %1092 = vst [vmem:[%s306 + $0xc8] sm:$0xff] %v1060
        %1093 = vst [vmem:[%s306 + $0xd0] sm:$0xff] %v1061
        %1094 = vst [vmem:[%s306 + $0xd8] sm:$0xff] %v1062
        %1095 = vst [vmem:[%s306 + $0xe0] sm:$0xff] %v1063
        %1096 = vst [vmem:[%s306 + $0xe8] sm:$0xff] %v1064
        %1097 = vst [vmem:[%s306 + $0xf0] sm:$0xff] %v1065
        %1098 = vst [vmem:[%s306 + $0xf8] sm:$0xff] %v1066
      $region44: #{custom_resnet_forward.12} parent=35 // pred_fallthru
        _
      %s1099 = smul.u32 32, %s20
      %p1100 = scmp.lt.s32.totalorder %s1099, 63
      %s1101 = scalar_select %p1100, %s1099, 63
      %p1102 = scmp.lt.s32.totalorder %s21, 0
      %s1103 = scalar_select %p1102, %s21, 0
      %s1104 = sadd.s32 %s1103, %s1101
      %s1105 = smul.addr %s1104, 8
      %s1106 = scalar_lea.vmem %s4, %s1105
      // Predicated region
      $region45: #{custom_resnet_forward.12} parent=35 // pred_check
        %p1107 = pneg %p162
      $region46: #{custom_resnet_forward.12} parent=35 // pred_check_branch
        %1109 = sbr.rel (%p1107) target = $region48
      $region47: #{custom_resnet_forward.12} parent=35 // pred_region
        %s1110 = smul.u32 32, %s20
      $region48: #{custom_resnet_forward.12} parent=35 // pred_fallthru
        _
    $region36: #{custom_resnet_forward.12} parent=5 // pred_fallthru
      _
    %p1111 = scmp.le.s32.totalorder 2, %s10
    // Predicated region
    $region49: #{custom_resnet_forward.12} parent=5 // pred_check
      %p1112 = pneg %p1111
    $region50: #{custom_resnet_forward.12} parent=5 // pred_check_branch
      %1114 = sbr.rel (%p1112) target = $region52
    $region51: #{custom_resnet_forward.12} parent=5 // pred_region
      %s1115 = ssub.s32 %s10, 2
      // Predicated region
      $region53: #{custom_resnet_forward.12} parent=51 // pred_check
        %p1116 = pneg %p168
      $region54: #{custom_resnet_forward.12} parent=51 // pred_check_branch
        %1118 = sbr.rel (%p1116) target = $region56
      $region55: #{custom_resnet_forward.12} parent=51 // pred_region
        %s1119 = smul.u32 32, %s23
        %p1120 = scmp.lt.s32.totalorder %s1119, 63
        %s1121 = scalar_select %p1120, %s1119, 63
        %p1122 = scmp.lt.s32.totalorder %s24, 0
        %s1123 = scalar_select %p1122, %s24, 0
        %s1124 = sadd.s32 %s1123, %s1121
        %s1125 = smul.addr %s1124, 8
        %s1126 = scalar_lea.vmem %s4, %s1125
      $region56: #{custom_resnet_forward.12} parent=51 // pred_fallthru
        _
    $region52: #{custom_resnet_forward.12} parent=5 // pred_fallthru
      _
  $region6: #{custom_resnet_forward.12} parent=0 // loop_footer
    %s14 = sadd.s32 1, %s10
  $region7: #{custom_resnet_forward.12} parent=0 // loop_footer_branch
    %9 = sbr.rel target = $region3
  $region8: #{custom_resnet_forward.12} parent=0 // loop_exit
    _

// kernel: custom_resnet_forward.13
$region0: #{custom_resnet_forward.13}
  #allocation0 [shape = 'u32[]', space=smem, size = 0x4, offset = 0x4, fixed_abs, tag = 'smem constant byte address 0x4 - core index']
  #allocation1 [shape = 'u32[144,128]{1,0:T(1,128)}', space=vmem, size = 0x12000, scoped, tag = 'internal scratch']
  %s0 = inlined_call_operand.vmem [shape: f32[9,128,64], index: 0, kind: input, shape index: {}]
  %s1 = inlined_call_operand.vmem [shape: f32[128,64], index: 1, kind: output, shape index: {}]
  %s2 = sld [smem:[#allocation0]]
  $region14: #{custom_resnet_forward.13} parent=0
    _
  %s4 = ssub.s32 1, %s2
  %s5 = scalar_select 0, %s4, %s2
  // Predicated region
  $region2: #{custom_resnet_forward.13} parent=0 // pred_check
    _
  $region3: #{custom_resnet_forward.13} parent=0 // pred_check_branch
    %7 = sbr.rel (0) target = $region5
  $region4: #{custom_resnet_forward.13} parent=0 // pred_region
    _
  $region5: #{custom_resnet_forward.13} parent=0 // pred_fallthru
    _
  %v8 = vld [vmem:[%s0] sm:$0xff]
  %v9 = vld [vmem:[%s0 + $0x8] sm:$0xff]
  %v10 = vld [vmem:[%s0 + $0x10] sm:$0xff]
  %v11 = vld [vmem:[%s0 + $0x18] sm:$0xff]
  %v12 = vld [vmem:[%s0 + $0x20] sm:$0xff]
  %v13 = vld [vmem:[%s0 + $0x28] sm:$0xff]
  %v14 = vld [vmem:[%s0 + $0x30] sm:$0xff]
  %v15 = vld [vmem:[%s0 + $0x38] sm:$0xff]
  %v16 = vld [vmem:[%s0 + $0x40] sm:$0xff]
  %v17 = vld [vmem:[%s0 + $0x48] sm:$0xff]
  %v18 = vld [vmem:[%s0 + $0x50] sm:$0xff]
  %v19 = vld [vmem:[%s0 + $0x58] sm:$0xff]
  %v20 = vld [vmem:[%s0 + $0x60] sm:$0xff]
  %v21 = vld [vmem:[%s0 + $0x68] sm:$0xff]
  %v22 = vld [vmem:[%s0 + $0x70] sm:$0xff]
  %v23 = vld [vmem:[%s0 + $0x78] sm:$0xff]
  %v24 = vld [vmem:[%s0 + $0x80] sm:$0xff]
  %v25 = vld [vmem:[%s0 + $0x88] sm:$0xff]
  %v26 = vld [vmem:[%s0 + $0x90] sm:$0xff]
  %v27 = vld [vmem:[%s0 + $0x98] sm:$0xff]
  %v28 = vld [vmem:[%s0 + $0xa0] sm:$0xff]
  %v29 = vld [vmem:[%s0 + $0xa8] sm:$0xff]
  %v30 = vld [vmem:[%s0 + $0xb0] sm:$0xff]
  %v31 = vld [vmem:[%s0 + $0xb8] sm:$0xff]
  %v32 = vld [vmem:[%s0 + $0xc0] sm:$0xff]
  %v33 = vld [vmem:[%s0 + $0xc8] sm:$0xff]
  %v34 = vld [vmem:[%s0 + $0xd0] sm:$0xff]
  %v35 = vld [vmem:[%s0 + $0xd8] sm:$0xff]
  %v36 = vld [vmem:[%s0 + $0xe0] sm:$0xff]
  %v37 = vld [vmem:[%s0 + $0xe8] sm:$0xff]
  %v38 = vld [vmem:[%s0 + $0xf0] sm:$0xff]
  %v39 = vld [vmem:[%s0 + $0xf8] sm:$0xff]
  %v40 = vld [vmem:[%s0 + $0x100] sm:$0xff]
  %v41 = vld [vmem:[%s0 + $0x108] sm:$0xff]
  %v42 = vld [vmem:[%s0 + $0x110] sm:$0xff]
  %v43 = vld [vmem:[%s0 + $0x118] sm:$0xff]
  %v44 = vld [vmem:[%s0 + $0x120] sm:$0xff]
  %v45 = vld [vmem:[%s0 + $0x128] sm:$0xff]
  %v46 = vld [vmem:[%s0 + $0x130] sm:$0xff]
  %v47 = vld [vmem:[%s0 + $0x138] sm:$0xff]
  %v48 = vld [vmem:[%s0 + $0x140] sm:$0xff]
  %v49 = vld [vmem:[%s0 + $0x148] sm:$0xff]
  %v50 = vld [vmem:[%s0 + $0x150] sm:$0xff]
  %v51 = vld [vmem:[%s0 + $0x158] sm:$0xff]
  %v52 = vld [vmem:[%s0 + $0x160] sm:$0xff]
  %v53 = vld [vmem:[%s0 + $0x168] sm:$0xff]
  %v54 = vld [vmem:[%s0 + $0x170] sm:$0xff]
  %v55 = vld [vmem:[%s0 + $0x178] sm:$0xff]
  %v56 = vld [vmem:[%s0 + $0x180] sm:$0xff]
  %v57 = vld [vmem:[%s0 + $0x188] sm:$0xff]
  %v58 = vld [vmem:[%s0 + $0x190] sm:$0xff]
  %v59 = vld [vmem:[%s0 + $0x198] sm:$0xff]
  %v60 = vld [vmem:[%s0 + $0x1a0] sm:$0xff]
  %v61 = vld [vmem:[%s0 + $0x1a8] sm:$0xff]
  %v62 = vld [vmem:[%s0 + $0x1b0] sm:$0xff]
  %v63 = vld [vmem:[%s0 + $0x1b8] sm:$0xff]
  %v64 = vld [vmem:[%s0 + $0x1c0] sm:$0xff]
  %v65 = vld [vmem:[%s0 + $0x1c8] sm:$0xff]
  %v66 = vld [vmem:[%s0 + $0x1d0] sm:$0xff]
  %v67 = vld [vmem:[%s0 + $0x1d8] sm:$0xff]
  %v68 = vld [vmem:[%s0 + $0x1e0] sm:$0xff]
  %v69 = vld [vmem:[%s0 + $0x1e8] sm:$0xff]
  %v70 = vld [vmem:[%s0 + $0x1f0] sm:$0xff]
  %v71 = vld [vmem:[%s0 + $0x1f8] sm:$0xff]
  %v72 = vld [vmem:[%s0 + $0x200] sm:$0xff]
  %v73 = vld [vmem:[%s0 + $0x208] sm:$0xff]
  %v74 = vld [vmem:[%s0 + $0x210] sm:$0xff]
  %v75 = vld [vmem:[%s0 + $0x218] sm:$0xff]
  %v76 = vld [vmem:[%s0 + $0x220] sm:$0xff]
  %v77 = vld [vmem:[%s0 + $0x228] sm:$0xff]
  %v78 = vld [vmem:[%s0 + $0x230] sm:$0xff]
  %v79 = vld [vmem:[%s0 + $0x238] sm:$0xff]
  %v80 = vld [vmem:[%s0 + $0x240] sm:$0xff]
  %v81 = vld [vmem:[%s0 + $0x248] sm:$0xff]
  %v82 = vld [vmem:[%s0 + $0x250] sm:$0xff]
  %v83 = vld [vmem:[%s0 + $0x258] sm:$0xff]
  %v84 = vld [vmem:[%s0 + $0x260] sm:$0xff]
  %v85 = vld [vmem:[%s0 + $0x268] sm:$0xff]
  %v86 = vld [vmem:[%s0 + $0x270] sm:$0xff]
  %v87 = vld [vmem:[%s0 + $0x278] sm:$0xff]
  %v88 = vld [vmem:[%s0 + $0x280] sm:$0xff]
  %v89 = vld [vmem:[%s0 + $0x288] sm:$0xff]
  %v90 = vld [vmem:[%s0 + $0x290] sm:$0xff]
  %v91 = vld [vmem:[%s0 + $0x298] sm:$0xff]
  %v92 = vld [vmem:[%s0 + $0x2a0] sm:$0xff]
  %v93 = vld [vmem:[%s0 + $0x2a8] sm:$0xff]
  %v94 = vld [vmem:[%s0 + $0x2b0] sm:$0xff]
  %v95 = vld [vmem:[%s0 + $0x2b8] sm:$0xff]
  %v96 = vld [vmem:[%s0 + $0x2c0] sm:$0xff]
  %v97 = vld [vmem:[%s0 + $0x2c8] sm:$0xff]
  %v98 = vld [vmem:[%s0 + $0x2d0] sm:$0xff]
  %v99 = vld [vmem:[%s0 + $0x2d8] sm:$0xff]
  %v100 = vld [vmem:[%s0 + $0x2e0] sm:$0xff]
  %v101 = vld [vmem:[%s0 + $0x2e8] sm:$0xff]
  %v102 = vld [vmem:[%s0 + $0x2f0] sm:$0xff]
  %v103 = vld [vmem:[%s0 + $0x2f8] sm:$0xff]
  %v104 = vld [vmem:[%s0 + $0x300] sm:$0xff]
  %v105 = vld [vmem:[%s0 + $0x308] sm:$0xff]
  %v106 = vld [vmem:[%s0 + $0x310] sm:$0xff]
  %v107 = vld [vmem:[%s0 + $0x318] sm:$0xff]
  %v108 = vld [vmem:[%s0 + $0x320] sm:$0xff]
  %v109 = vld [vmem:[%s0 + $0x328] sm:$0xff]
  %v110 = vld [vmem:[%s0 + $0x330] sm:$0xff]
  %v111 = vld [vmem:[%s0 + $0x338] sm:$0xff]
  %v112 = vld [vmem:[%s0 + $0x340] sm:$0xff]
  %v113 = vld [vmem:[%s0 + $0x348] sm:$0xff]
  %v114 = vld [vmem:[%s0 + $0x350] sm:$0xff]
  %v115 = vld [vmem:[%s0 + $0x358] sm:$0xff]
  %v116 = vld [vmem:[%s0 + $0x360] sm:$0xff]
  %v117 = vld [vmem:[%s0 + $0x368] sm:$0xff]
  %v118 = vld [vmem:[%s0 + $0x370] sm:$0xff]
  %v119 = vld [vmem:[%s0 + $0x378] sm:$0xff]
  %v120 = vld [vmem:[%s0 + $0x380] sm:$0xff]
  %v121 = vld [vmem:[%s0 + $0x388] sm:$0xff]
  %v122 = vld [vmem:[%s0 + $0x390] sm:$0xff]
  %v123 = vld [vmem:[%s0 + $0x398] sm:$0xff]
  %v124 = vld [vmem:[%s0 + $0x3a0] sm:$0xff]
  %v125 = vld [vmem:[%s0 + $0x3a8] sm:$0xff]
  %v126 = vld [vmem:[%s0 + $0x3b0] sm:$0xff]
  %v127 = vld [vmem:[%s0 + $0x3b8] sm:$0xff]
  %v128 = vld [vmem:[%s0 + $0x3c0] sm:$0xff]
  %v129 = vld [vmem:[%s0 + $0x3c8] sm:$0xff]
  %v130 = vld [vmem:[%s0 + $0x3d0] sm:$0xff]
  %v131 = vld [vmem:[%s0 + $0x3d8] sm:$0xff]
  %v132 = vld [vmem:[%s0 + $0x3e0] sm:$0xff]
  %v133 = vld [vmem:[%s0 + $0x3e8] sm:$0xff]
  %v134 = vld [vmem:[%s0 + $0x3f0] sm:$0xff]
  %v135 = vld [vmem:[%s0 + $0x3f8] sm:$0xff]
  %v136 = vld [vmem:[%s0 + $0x400] sm:$0xff]
  %v137 = vld [vmem:[%s0 + $0x408] sm:$0xff]
  %v138 = vld [vmem:[%s0 + $0x410] sm:$0xff]
  %v139 = vld [vmem:[%s0 + $0x418] sm:$0xff]
  %v140 = vld [vmem:[%s0 + $0x420] sm:$0xff]
  %v141 = vld [vmem:[%s0 + $0x428] sm:$0xff]
  %v142 = vld [vmem:[%s0 + $0x430] sm:$0xff]
  %v143 = vld [vmem:[%s0 + $0x438] sm:$0xff]
  %v144 = vld [vmem:[%s0 + $0x440] sm:$0xff]
  %v145 = vld [vmem:[%s0 + $0x448] sm:$0xff]
  %v146 = vld [vmem:[%s0 + $0x450] sm:$0xff]
  %v147 = vld [vmem:[%s0 + $0x458] sm:$0xff]
  %v148 = vld [vmem:[%s0 + $0x460] sm:$0xff]
  %v149 = vld [vmem:[%s0 + $0x468] sm:$0xff]
  %v150 = vld [vmem:[%s0 + $0x470] sm:$0xff]
  %v151 = vld [vmem:[%s0 + $0x478] sm:$0xff]
  %vm152 = vcmask 523264
  %v153 = vsel %vm152, %v8, -inf
  %v154 = vsel %vm152, %v24, -inf
  %v155 = vmax.f32 %v153, %v154
  %v156 = vsel %vm152, %v40, -inf
  %v157 = vmax.f32 %v155, %v156
  %v158 = vsel %vm152, %v56, -inf
  %v159 = vmax.f32 %v157, %v158
  %v160 = vsel %vm152, %v72, -inf
  %v161 = vmax.f32 %v159, %v160
  %v162 = vsel %vm152, %v88, -inf
  %v163 = vmax.f32 %v161, %v162
  %v164 = vsel %vm152, %v104, -inf
  %v165 = vmax.f32 %v163, %v164
  %v166 = vsel %vm152, %v120, -inf
  %v167 = vmax.f32 %v165, %v166
  %v168 = vsel %vm152, %v136, -inf
  %v169 = vmax.f32 %v167, %v168
  %v170 = vsel %vm152, %v9, -inf
  %v171 = vsel %vm152, %v25, -inf
  %v172 = vmax.f32 %v170, %v171
  %v173 = vsel %vm152, %v41, -inf
  %v174 = vmax.f32 %v172, %v173
  %v175 = vsel %vm152, %v57, -inf
  %v176 = vmax.f32 %v174, %v175
  %v177 = vsel %vm152, %v73, -inf
  %v178 = vmax.f32 %v176, %v177
  %v179 = vsel %vm152, %v89, -inf
  %v180 = vmax.f32 %v178, %v179
  %v181 = vsel %vm152, %v105, -inf
  %v182 = vmax.f32 %v180, %v181
  %v183 = vsel %vm152, %v121, -inf
  %v184 = vmax.f32 %v182, %v183
  %v185 = vsel %vm152, %v137, -inf
  %v186 = vmax.f32 %v184, %v185
  %v187 = vsel %vm152, %v10, -inf
  %v188 = vsel %vm152, %v26, -inf
  %v189 = vmax.f32 %v187, %v188
  %v190 = vsel %vm152, %v42, -inf
  %v191 = vmax.f32 %v189, %v190
  %v192 = vsel %vm152, %v58, -inf
  %v193 = vmax.f32 %v191, %v192
  %v194 = vsel %vm152, %v74, -inf
  %v195 = vmax.f32 %v193, %v194
  %v196 = vsel %vm152, %v90, -inf
  %v197 = vmax.f32 %v195, %v196
  %v198 = vsel %vm152, %v106, -inf
  %v199 = vmax.f32 %v197, %v198
  %v200 = vsel %vm152, %v122, -inf
  %v201 = vmax.f32 %v199, %v200
  %v202 = vsel %vm152, %v138, -inf
  %v203 = vmax.f32 %v201, %v202
  %v204 = vsel %vm152, %v11, -inf
  %v205 = vsel %vm152, %v27, -inf
  %v206 = vmax.f32 %v204, %v205
  %v207 = vsel %vm152, %v43, -inf
  %v208 = vmax.f32 %v206, %v207
  %v209 = vsel %vm152, %v59, -inf
  %v210 = vmax.f32 %v208, %v209
  %v211 = vsel %vm152, %v75, -inf
  %v212 = vmax.f32 %v210, %v211
  %v213 = vsel %vm152, %v91, -inf
  %v214 = vmax.f32 %v212, %v213
  %v215 = vsel %vm152, %v107, -inf
  %v216 = vmax.f32 %v214, %v215
  %v217 = vsel %vm152, %v123, -inf
  %v218 = vmax.f32 %v216, %v217
  %v219 = vsel %vm152, %v139, -inf
  %v220 = vmax.f32 %v218, %v219
  %v221 = vsel %vm152, %v12, -inf
  %v222 = vsel %vm152, %v28, -inf
  %v223 = vmax.f32 %v221, %v222
  %v224 = vsel %vm152, %v44, -inf
  %v225 = vmax.f32 %v223, %v224
  %v226 = vsel %vm152, %v60, -inf
  %v227 = vmax.f32 %v225, %v226
  %v228 = vsel %vm152, %v76, -inf
  %v229 = vmax.f32 %v227, %v228
  %v230 = vsel %vm152, %v92, -inf
  %v231 = vmax.f32 %v229, %v230
  %v232 = vsel %vm152, %v108, -inf
  %v233 = vmax.f32 %v231, %v232
  %v234 = vsel %vm152, %v124, -inf
  %v235 = vmax.f32 %v233, %v234
  %v236 = vsel %vm152, %v140, -inf
  %v237 = vmax.f32 %v235, %v236
  %v238 = vsel %vm152, %v13, -inf
  %v239 = vsel %vm152, %v29, -inf
  %v240 = vmax.f32 %v238, %v239
  %v241 = vsel %vm152, %v45, -inf
  %v242 = vmax.f32 %v240, %v241
  %v243 = vsel %vm152, %v61, -inf
  %v244 = vmax.f32 %v242, %v243
  %v245 = vsel %vm152, %v77, -inf
  %v246 = vmax.f32 %v244, %v245
  %v247 = vsel %vm152, %v93, -inf
  %v248 = vmax.f32 %v246, %v247
  %v249 = vsel %vm152, %v109, -inf
  %v250 = vmax.f32 %v248, %v249
  %v251 = vsel %vm152, %v125, -inf
  %v252 = vmax.f32 %v250, %v251
  %v253 = vsel %vm152, %v141, -inf
  %v254 = vmax.f32 %v252, %v253
  %v255 = vsel %vm152, %v14, -inf
  %v256 = vsel %vm152, %v30, -inf
  %v257 = vmax.f32 %v255, %v256
  %v258 = vsel %vm152, %v46, -inf
  %v259 = vmax.f32 %v257, %v258
  %v260 = vsel %vm152, %v62, -inf
  %v261 = vmax.f32 %v259, %v260
  %v262 = vsel %vm152, %v78, -inf
  %v263 = vmax.f32 %v261, %v262
  %v264 = vsel %vm152, %v94, -inf
  %v265 = vmax.f32 %v263, %v264
  %v266 = vsel %vm152, %v110, -inf
  %v267 = vmax.f32 %v265, %v266
  %v268 = vsel %vm152, %v126, -inf
  %v269 = vmax.f32 %v267, %v268
  %v270 = vsel %vm152, %v142, -inf
  %v271 = vmax.f32 %v269, %v270
  %v272 = vsel %vm152, %v15, -inf
  %v273 = vsel %vm152, %v31, -inf
  %v274 = vmax.f32 %v272, %v273
  %v275 = vsel %vm152, %v47, -inf
  %v276 = vmax.f32 %v274, %v275
  %v277 = vsel %vm152, %v63, -inf
  %v278 = vmax.f32 %v276, %v277
  %v279 = vsel %vm152, %v79, -inf
  %v280 = vmax.f32 %v278, %v279
  %v281 = vsel %vm152, %v95, -inf
  %v282 = vmax.f32 %v280, %v281
  %v283 = vsel %vm152, %v111, -inf
  %v284 = vmax.f32 %v282, %v283
  %v285 = vsel %vm152, %v127, -inf
  %v286 = vmax.f32 %v284, %v285
  %v287 = vsel %vm152, %v143, -inf
  %v288 = vmax.f32 %v286, %v287
  %v289 = vsel %vm152, %v16, -inf
  %v290 = vsel %vm152, %v32, -inf
  %v291 = vmax.f32 %v289, %v290
  %v292 = vsel %vm152, %v48, -inf
  %v293 = vmax.f32 %v291, %v292
  %v294 = vsel %vm152, %v64, -inf
  %v295 = vmax.f32 %v293, %v294
  %v296 = vsel %vm152, %v80, -inf
  %v297 = vmax.f32 %v295, %v296
  %v298 = vsel %vm152, %v96, -inf
  %v299 = vmax.f32 %v297, %v298
  %v300 = vsel %vm152, %v112, -inf
  %v301 = vmax.f32 %v299, %v300
  %v302 = vsel %vm152, %v128, -inf
  %v303 = vmax.f32 %v301, %v302
  %v304 = vsel %vm152, %v144, -inf
  %v305 = vmax.f32 %v303, %v304
  %v306 = vsel %vm152, %v17, -inf
  %v307 = vsel %vm152, %v33, -inf
  %v308 = vmax.f32 %v306, %v307
  %v309 = vsel %vm152, %v49, -inf
  %v310 = vmax.f32 %v308, %v309
  %v311 = vsel %vm152, %v65, -inf
  %v312 = vmax.f32 %v310, %v311
  %v313 = vsel %vm152, %v81, -inf
  %v314 = vmax.f32 %v312, %v313
  %v315 = vsel %vm152, %v97, -inf
  %v316 = vmax.f32 %v314, %v315
  %v317 = vsel %vm152, %v113, -inf
  %v318 = vmax.f32 %v316, %v317
  %v319 = vsel %vm152, %v129, -inf
  %v320 = vmax.f32 %v318, %v319
  %v321 = vsel %vm152, %v145, -inf
  %v322 = vmax.f32 %v320, %v321
  %v323 = vsel %vm152, %v18, -inf
  %v324 = vsel %vm152, %v34, -inf
  %v325 = vmax.f32 %v323, %v324
  %v326 = vsel %vm152, %v50, -inf
  %v327 = vmax.f32 %v325, %v326
  %v328 = vsel %vm152, %v66, -inf
  %v329 = vmax.f32 %v327, %v328
  %v330 = vsel %vm152, %v82, -inf
  %v331 = vmax.f32 %v329, %v330
  %v332 = vsel %vm152, %v98, -inf
  %v333 = vmax.f32 %v331, %v332
  %v334 = vsel %vm152, %v114, -inf
  %v335 = vmax.f32 %v333, %v334
  %v336 = vsel %vm152, %v130, -inf
  %v337 = vmax.f32 %v335, %v336
  %v338 = vsel %vm152, %v146, -inf
  %v339 = vmax.f32 %v337, %v338
  %v340 = vsel %vm152, %v19, -inf
  %v341 = vsel %vm152, %v35, -inf
  %v342 = vmax.f32 %v340, %v341
  %v343 = vsel %vm152, %v51, -inf
  %v344 = vmax.f32 %v342, %v343
  %v345 = vsel %vm152, %v67, -inf
  %v346 = vmax.f32 %v344, %v345
  %v347 = vsel %vm152, %v83, -inf
  %v348 = vmax.f32 %v346, %v347
  %v349 = vsel %vm152, %v99, -inf
  %v350 = vmax.f32 %v348, %v349
  %v351 = vsel %vm152, %v115, -inf
  %v352 = vmax.f32 %v350, %v351
  %v353 = vsel %vm152, %v131, -inf
  %v354 = vmax.f32 %v352, %v353
  %v355 = vsel %vm152, %v147, -inf
  %v356 = vmax.f32 %v354, %v355
  %v357 = vsel %vm152, %v20, -inf
  %v358 = vsel %vm152, %v36, -inf
  %v359 = vmax.f32 %v357, %v358
  %v360 = vsel %vm152, %v52, -inf
  %v361 = vmax.f32 %v359, %v360
  %v362 = vsel %vm152, %v68, -inf
  %v363 = vmax.f32 %v361, %v362
  %v364 = vsel %vm152, %v84, -inf
  %v365 = vmax.f32 %v363, %v364
  %v366 = vsel %vm152, %v100, -inf
  %v367 = vmax.f32 %v365, %v366
  %v368 = vsel %vm152, %v116, -inf
  %v369 = vmax.f32 %v367, %v368
  %v370 = vsel %vm152, %v132, -inf
  %v371 = vmax.f32 %v369, %v370
  %v372 = vsel %vm152, %v148, -inf
  %v373 = vmax.f32 %v371, %v372
  %v374 = vsel %vm152, %v21, -inf
  %v375 = vsel %vm152, %v37, -inf
  %v376 = vmax.f32 %v374, %v375
  %v377 = vsel %vm152, %v53, -inf
  %v378 = vmax.f32 %v376, %v377
  %v379 = vsel %vm152, %v69, -inf
  %v380 = vmax.f32 %v378, %v379
  %v381 = vsel %vm152, %v85, -inf
  %v382 = vmax.f32 %v380, %v381
  %v383 = vsel %vm152, %v101, -inf
  %v384 = vmax.f32 %v382, %v383
  %v385 = vsel %vm152, %v117, -inf
  %v386 = vmax.f32 %v384, %v385
  %v387 = vsel %vm152, %v133, -inf
  %v388 = vmax.f32 %v386, %v387
  %v389 = vsel %vm152, %v149, -inf
  %v390 = vmax.f32 %v388, %v389
  %v391 = vsel %vm152, %v22, -inf
  %v392 = vsel %vm152, %v38, -inf
  %v393 = vmax.f32 %v391, %v392
  %v394 = vsel %vm152, %v54, -inf
  %v395 = vmax.f32 %v393, %v394
  %v396 = vsel %vm152, %v70, -inf
  %v397 = vmax.f32 %v395, %v396
  %v398 = vsel %vm152, %v86, -inf
  %v399 = vmax.f32 %v397, %v398
  %v400 = vsel %vm152, %v102, -inf
  %v401 = vmax.f32 %v399, %v400
  %v402 = vsel %vm152, %v118, -inf
  %v403 = vmax.f32 %v401, %v402
  %v404 = vsel %vm152, %v134, -inf
  %v405 = vmax.f32 %v403, %v404
  %v406 = vsel %vm152, %v150, -inf
  %v407 = vmax.f32 %v405, %v406
  %v408 = vsel %vm152, %v23, -inf
  %v409 = vsel %vm152, %v39, -inf
  %v410 = vmax.f32 %v408, %v409
  %v411 = vsel %vm152, %v55, -inf
  %v412 = vmax.f32 %v410, %v411
  %v413 = vsel %vm152, %v71, -inf
  %v414 = vmax.f32 %v412, %v413
  %v415 = vsel %vm152, %v87, -inf
  %v416 = vmax.f32 %v414, %v415
  %v417 = vsel %vm152, %v103, -inf
  %v418 = vmax.f32 %v416, %v417
  %v419 = vsel %vm152, %v119, -inf
  %v420 = vmax.f32 %v418, %v419
  %v421 = vsel %vm152, %v135, -inf
  %v422 = vmax.f32 %v420, %v421
  %v423 = vsel %vm152, %v151, -inf
  %v424 = vmax.f32 %v422, %v423
  %425 = vst.msk [vmem:[%s1] sm:$0xff] %vm152, %v169
  %426 = vst.msk [vmem:[%s1 + $0x8] sm:$0xff] %vm152, %v186
  %427 = vst.msk [vmem:[%s1 + $0x10] sm:$0xff] %vm152, %v203
  %428 = vst.msk [vmem:[%s1 + $0x18] sm:$0xff] %vm152, %v220
  %429 = vst.msk [vmem:[%s1 + $0x20] sm:$0xff] %vm152, %v237
  %430 = vst.msk [vmem:[%s1 + $0x28] sm:$0xff] %vm152, %v254
  %431 = vst.msk [vmem:[%s1 + $0x30] sm:$0xff] %vm152, %v271
  %432 = vst.msk [vmem:[%s1 + $0x38] sm:$0xff] %vm152, %v288
  %433 = vst.msk [vmem:[%s1 + $0x40] sm:$0xff] %vm152, %v305
  %434 = vst.msk [vmem:[%s1 + $0x48] sm:$0xff] %vm152, %v322
  %435 = vst.msk [vmem:[%s1 + $0x50] sm:$0xff] %vm152, %v339
  %436 = vst.msk [vmem:[%s1 + $0x58] sm:$0xff] %vm152, %v356
  %437 = vst.msk [vmem:[%s1 + $0x60] sm:$0xff] %vm152, %v373
  %438 = vst.msk [vmem:[%s1 + $0x68] sm:$0xff] %vm152, %v390
  %439 = vst.msk [vmem:[%s1 + $0x70] sm:$0xff] %vm152, %v407
  %440 = vst.msk [vmem:[%s1 + $0x78] sm:$0xff] %vm152, %v424
  // Predicated region
  $region6: #{custom_resnet_forward.13} parent=0 // pred_check
    _
  $region7: #{custom_resnet_forward.13} parent=0 // pred_check_branch
    %442 = sbr.rel (0) target = $region9
  $region8: #{custom_resnet_forward.13} parent=0 // pred_region
    _
  $region9: #{custom_resnet_forward.13} parent=0 // pred_fallthru
    _
  // Predicated region
  $region10: #{custom_resnet_forward.13} parent=0 // pred_check
    _
  $region11: #{custom_resnet_forward.13} parent=0 // pred_check_branch
    %444 = sbr.rel (0) target = $region13
  $region12: #{custom_resnet_forward.13} parent=0 // pred_region
    _
  $region13: #{custom_resnet_forward.13} parent=0 // pred_fallthru
    _

// kernel: custom_resnet_forward.15
$region0: #{custom_resnet_forward.15}
  #allocation0 [shape = 'u32[]', space=smem, size = 0x4, offset = 0x4, fixed_abs, tag = 'smem constant byte address 0x4 - core index']
  #allocation1 [shape = 'u32[144,128]{1,0:T(1,128)}', space=vmem, size = 0x12000, scoped, tag = 'internal scratch']
  #allocation2 [shape = 'f32[32,128]{1,0:T(8,128)}', space=vmem, size = 0x4000, scoped, tag = 'scratch operand']
  %s0 = inlined_call_operand.vmem [shape: bf16[32,640], index: 0, kind: input, shape index: {}]
  %s1 = inlined_call_operand.vmem [shape: bf16[640,128], index: 1, kind: input, shape index: {}]
  %s2 = inlined_call_operand.vmem [shape: f32[1,128], index: 2, kind: input, shape index: {}]
  %s3 = inlined_call_operand.vmem [shape: f32[1,128], index: 3, kind: input, shape index: {}]
  %s4 = inlined_call_operand.vmem [shape: f32[32,128], index: 4, kind: output, shape index: {}]
  %s5 = sld [smem:[#allocation0]]
  $region98: #{custom_resnet_forward.15} parent=0
    _
  %s7 = ssub.s32 1, %s5
  %s8 = scalar_select 0, %s7, %s5
  $region1: #{custom_resnet_forward.15} parent=0
    #allocation3 [shape = 'u8[16384]{0}', space=vmem, size = 0x4000, scoped, tag = 'input window, operand 0']
    loop: start=0, step=1, limit=7
    $region2: #{custom_resnet_forward.15} parent=1 // loop_pre_header
      _
    $region3: #{custom_resnet_forward.15} parent=1 // loop_header
      %s10 = sphi 0, %s14
      %p11 = scmp.ge.s32.totalorder %s10, 7
      %s17 = sphi 0, %s36
      %s18 = sphi 0, %s32
      %s19 = sphi 0, %s28
      %s20 = sphi 0, %s17
      %s21 = sphi 0, %s18
      %s22 = sphi 0, %s19
      %s23 = sphi 0, %s20
      %s24 = sphi 0, %s21
      %s25 = sphi 0, %s22
      %s41 = sphi 0, %s43
      %s44 = sphi 0, %s41
      %s45 = sphi 0, %s44
      %s61 = sphi 0, %s45
      %s69 = sphi 0, %s71
      %s72 = sphi 0, %s69
      %s73 = sphi 0, %s72
      %s89 = sphi 0, %s73
      %s95 = sphi 0, %s97
      %s98 = sphi 0, %s95
      %s99 = sphi 0, %s98
      %s115 = sphi 0, %s99
      %s121 = sphi 0, %s123
      %s124 = sphi 0, %s121
      %s125 = sphi 0, %s124
      %s141 = sphi 0, %s125
      %s149 = sphi 0, %s151
      %s152 = sphi 0, %s149
      %s153 = sphi 0, %s152
      %s169 = sphi 0, %s153
    $region4: #{custom_resnet_forward.15} parent=1 // loop_header_branch
      %13 = sbr.rel (%p11) target = $region8
    $region5: #{custom_resnet_forward.15} parent=1 // loop_body
      %s15 = ssub.s32 %s10, 1
      %s16 = ssub.s32 %s10, 2
      %s26 = sadd.s32 1, %s19
      %p27 = scmp.ge.s32.totalorder %s26, 5
      %s28 = scalar_select %p27, 0, %s26
      %s29 = sadd.s32 1, %s18
      %s30 = scalar_select %p27, %s29, %s18
      %p31 = scmp.ge.s32.totalorder %s30, 1
      %s32 = scalar_select %p31, 0, %s30
      %s33 = sadd.s32 1, %s17
      %s34 = scalar_select %p31, %s33, %s17
      %p35 = scmp.ge.s32.totalorder %s34, 1
      %s36 = scalar_select %p35, 0, %s34
      %s37 = ssub.s32 %s17, %s36
      %s38 = ssub.s32 %s19, %s28
      %s39 = sor.u32 %s37, %s38
      %p40 = scmp.eq.s32.totalorder %s39, 0
      %s42 = sadd.s32 %s41, 1
      %s43 = scalar_select %p40, %s41, %s42
      %p46 = pneg %p40
      %p47 = scmp.eq.s32.totalorder %s10, 4
      %p48 = por %p46, %p47
      %p49 = scmp.ne.s32.totalorder %s41, %s44
      %p50 = scmp.eq.s32.totalorder %s10, 0
      %p51 = por %p49, %p50
      %p52 = scmp.ne.s32.totalorder %s41, %s44
      %p53 = scmp.eq.s32.totalorder %s15, 4
      %p54 = por %p52, %p53
      %p55 = scmp.ne.s32.totalorder %s44, %s45
      %p56 = scmp.eq.s32.totalorder %s15, 0
      %p57 = por %p55, %p56
      %p58 = scmp.ne.s32.totalorder %s44, %s45
      %p59 = scmp.eq.s32.totalorder %s16, 4
      %p60 = por %p58, %p59
      %p62 = scmp.ne.s32.totalorder %s45, %s61
      %p63 = scmp.eq.s32.totalorder %s16, 0
      %p64 = por %p62, %p63
      %s65 = ssub.s32 %s19, %s28
      %s66 = ssub.s32 %s18, %s32
      %s67 = sor.u32 %s65, %s66
      %p68 = scmp.eq.s32.totalorder %s67, 0
      %s70 = sadd.s32 %s69, 1
      %s71 = scalar_select %p68, %s69, %s70
      %p74 = pneg %p68
      %p75 = scmp.eq.s32.totalorder %s10, 4
      %p76 = por %p74, %p75
      %p77 = scmp.ne.s32.totalorder %s69, %s72
      %p78 = scmp.eq.s32.totalorder %s10, 0
      %p79 = por %p77, %p78
      %p80 = scmp.ne.s32.totalorder %s69, %s72
      %p81 = scmp.eq.s32.totalorder %s15, 4
      %p82 = por %p80, %p81
      %p83 = scmp.ne.s32.totalorder %s72, %s73
      %p84 = scmp.eq.s32.totalorder %s15, 0
      %p85 = por %p83, %p84
      %p86 = scmp.ne.s32.totalorder %s72, %s73
      %p87 = scmp.eq.s32.totalorder %s16, 4
      %p88 = por %p86, %p87
      %p90 = scmp.ne.s32.totalorder %s73, %s89
      %p91 = scmp.eq.s32.totalorder %s16, 0
      %p92 = por %p90, %p91
      %s93 = ssub.s32 %s18, %s32
      %p94 = scmp.eq.s32.totalorder %s93, 0
      %s96 = sadd.s32 %s95, 1
      %s97 = scalar_select %p94, %s95, %s96
      %p100 = pneg %p94
      %p101 = scmp.eq.s32.totalorder %s10, 4
      %p102 = por %p100, %p101
      %p103 = scmp.ne.s32.totalorder %s95, %s98
      %p104 = scmp.eq.s32.totalorder %s10, 0
      %p105 = por %p103, %p104
      %p106 = scmp.ne.s32.totalorder %s95, %s98
      %p107 = scmp.eq.s32.totalorder %s15, 4
      %p108 = por %p106, %p107
      %p109 = scmp.ne.s32.totalorder %s98, %s99
      %p110 = scmp.eq.s32.totalorder %s15, 0
      %p111 = por %p109, %p110
      %p112 = scmp.ne.s32.totalorder %s98, %s99
      %p113 = scmp.eq.s32.totalorder %s16, 4
      %p114 = por %p112, %p113
      %p116 = scmp.ne.s32.totalorder %s99, %s115
      %p117 = scmp.eq.s32.totalorder %s16, 0
      %p118 = por %p116, %p117
      %s119 = ssub.s32 %s18, %s32
      %p120 = scmp.eq.s32.totalorder %s119, 0
      %s122 = sadd.s32 %s121, 1
      %s123 = scalar_select %p120, %s121, %s122
      %p126 = pneg %p120
      %p127 = scmp.eq.s32.totalorder %s10, 4
      %p128 = por %p126, %p127
      %p129 = scmp.ne.s32.totalorder %s121, %s124
      %p130 = scmp.eq.s32.totalorder %s10, 0
      %p131 = por %p129, %p130
      %p132 = scmp.ne.s32.totalorder %s121, %s124
      %p133 = scmp.eq.s32.totalorder %s15, 4
      %p134 = por %p132, %p133
      %p135 = scmp.ne.s32.totalorder %s124, %s125
      %p136 = scmp.eq.s32.totalorder %s15, 0
      %p137 = por %p135, %p136
      %p138 = scmp.ne.s32.totalorder %s124, %s125
      %p139 = scmp.eq.s32.totalorder %s16, 4
      %p140 = por %p138, %p139
      %p142 = scmp.ne.s32.totalorder %s125, %s141
      %p143 = scmp.eq.s32.totalorder %s16, 0
      %p144 = por %p142, %p143
      %s145 = ssub.s32 %s17, %s36
      %s146 = ssub.s32 %s18, %s32
      %s147 = sor.u32 %s145, %s146
      %p148 = scmp.eq.s32.totalorder %s147, 0
      %s150 = sadd.s32 %s149, 1
      %s151 = scalar_select %p148, %s149, %s150
      %p154 = pneg %p148
      %p155 = scmp.eq.s32.totalorder %s10, 4
      %p156 = por %p154, %p155
      %p157 = scmp.ne.s32.totalorder %s149, %s152
      %p158 = scmp.eq.s32.totalorder %s10, 0
      %p159 = por %p157, %p158
      %p160 = scmp.ne.s32.totalorder %s149, %s152
      %p161 = scmp.eq.s32.totalorder %s15, 4
      %p162 = por %p160, %p161
      %p163 = scmp.ne.s32.totalorder %s152, %s153
      %p164 = scmp.eq.s32.totalorder %s15, 0
      %p165 = por %p163, %p164
      %p166 = scmp.ne.s32.totalorder %s152, %s153
      %p167 = scmp.eq.s32.totalorder %s16, 4
      %p168 = por %p166, %p167
      %p170 = scmp.ne.s32.totalorder %s153, %s169
      %p171 = scmp.eq.s32.totalorder %s16, 0
      %p172 = por %p170, %p171
      %p173 = scmp.le.s32.totalorder 1, %s10
      %p174 = scmp.lt.s32.totalorder %s10, 6
      %p175 = pnand %p173, %p174
      %p176 = pneg %p175
      // Predicated region
      $region9: #{custom_resnet_forward.15} parent=5 // pred_check
        _
      $region10: #{custom_resnet_forward.15} parent=5 // pred_check_branch
        %178 = sbr.rel (%p175) target = $region12
      $region11: #{custom_resnet_forward.15} parent=5 // pred_region
        %s179 = ssub.s32 %s10, 1
        // Predicated region
        $region13: #{custom_resnet_forward.15} parent=11 // pred_check
          %p180 = pneg %p111
        $region14: #{custom_resnet_forward.15} parent=11 // pred_check_branch
          %182 = sbr.rel (%p180) target = $region16
        $region15: #{custom_resnet_forward.15} parent=11 // pred_region
          %p183 = scmp.lt.s32.totalorder %s21, 0
          %s184 = scalar_select %p183, %s21, 0
          %s185 = scalar_lea.vmem %s2, %s184
        $region16: #{custom_resnet_forward.15} parent=11 // pred_fallthru
          _
        // Predicated region
        $region17: #{custom_resnet_forward.15} parent=11 // pred_check
          %p186 = pneg %p137
        $region18: #{custom_resnet_forward.15} parent=11 // pred_check_branch
          %188 = sbr.rel (%p186) target = $region20
        $region19: #{custom_resnet_forward.15} parent=11 // pred_region
          %p189 = scmp.lt.s32.totalorder %s21, 0
          %s190 = scalar_select %p189, %s21, 0
          %s191 = scalar_lea.vmem %s3, %s190
        $region20: #{custom_resnet_forward.15} parent=11 // pred_fallthru
          _
      $region12: #{custom_resnet_forward.15} parent=5 // pred_fallthru
        _
      %p192 = scmp.lt.s32.totalorder %s10, 5
      // Predicated region
      $region21: #{custom_resnet_forward.15} parent=5 // pred_check
        %p193 = pneg %p192
      $region22: #{custom_resnet_forward.15} parent=5 // pred_check_branch
        %195 = sbr.rel (%p193) target = $region24
      $region23: #{custom_resnet_forward.15} parent=5 // pred_region
        // Predicated region
        $region25: #{custom_resnet_forward.15} parent=23 // pred_check
          %p196 = pneg %p51
        $region26: #{custom_resnet_forward.15} parent=23 // pred_check_branch
          %198 = sbr.rel (%p196) target = $region28
        $region27: #{custom_resnet_forward.15} parent=23 // pred_region
          %s199 = sand.u32 %s41, 1
          %s200 = sand.u32 %s41, 1
          %s201 = smul.addr %s200, 16
          %s202 = scalar_lea.vmem [#allocation3], %s201
          %s203 = smul.u32 4, %s17
          %s204 = smul.addr %s203, 5
          %s205 = sadd.s32 %s19, %s204
          %s206 = smul.addr %s205, 4
          %s207 = scalar_lea.vmem %s0, %s206
          // Predicated region
          $region29: #{custom_resnet_forward.15} parent=27 // pred_check
            _
          $region30: #{custom_resnet_forward.15} parent=27 // pred_check_branch
            %209 = sbr.rel (0) target = $region32
          $region31: #{custom_resnet_forward.15} parent=27 // pred_region
            // Predicated region
            $region33: #{custom_resnet_forward.15} parent=31 // pred_check
              _
            $region34: #{custom_resnet_forward.15} parent=31 // pred_check_branch
              %211 = sbr.rel target = $region36
            $region35: #{custom_resnet_forward.15} parent=31 // pred_region
              // Predicated region
              $region48: #{custom_resnet_forward.15} parent=35 // pred_check
                _
              $region49: #{custom_resnet_forward.15} parent=35 // pred_check_branch
                %233 = sbr.rel (0) target = $region51
              $region50: #{custom_resnet_forward.15} parent=35 // pred_region
                loop: start=0, step=1, limit=1
                $region52: #{custom_resnet_forward.15} parent=50 // loop_pre_header
                  _
                $region53: #{custom_resnet_forward.15} parent=50 // loop_header
                  %s235 = sphi 0, %s239
                  %p236 = scmp.ge.s32.totalorder %s235, 1
                  %s240 = sphi %s207, %s207
                  %s241 = sphi %s202, %s202
                $region54: #{custom_resnet_forward.15} parent=50 // loop_header_branch
                  %238 = sbr.rel (%p236) target = $region58
                $region55: #{custom_resnet_forward.15} parent=50 // loop_body
                  _
                $region56: #{custom_resnet_forward.15} parent=50 // loop_footer
                  %s239 = sadd.s32 1, %s235
                $region57: #{custom_resnet_forward.15} parent=50 // loop_footer_branch
                  %234 = sbr.rel target = $region53
                $region58: #{custom_resnet_forward.15} parent=50 // loop_exit
                  _
                %s243 = ssub.s32 16, 1
                loop: start=0, step=1, limit=1
                $region59: #{custom_resnet_forward.15} parent=50 // loop_pre_header
                  _
                $region60: #{custom_resnet_forward.15} parent=50 // loop_header
                  %s245 = sphi 0, %s249
                  %p246 = scmp.ge.s32.totalorder %s245, 1
                  %s250 = sphi %s207, %s207
                  %s251 = sphi %s202, %s202
                $region61: #{custom_resnet_forward.15} parent=50 // loop_header_branch
                  %248 = sbr.rel (%p246) target = $region65
                $region62: #{custom_resnet_forward.15} parent=50 // loop_body
                  %v252 = vld [vmem:[%s250] sm:%s243]
                  %253 = vst [vmem:[%s251] sm:%s243] %v252
                  %v254 = vld [vmem:[%s250 + $0x14] sm:%s243]
                  %255 = vst [vmem:[%s251 + $0x4] sm:%s243] %v254
                  %v256 = vld [vmem:[%s250 + $0x28] sm:%s243]
                  %257 = vst [vmem:[%s251 + $0x8] sm:%s243] %v256
                  %v258 = vld [vmem:[%s250 + $0x3c] sm:%s243]
                  %259 = vst [vmem:[%s251 + $0xc] sm:%s243] %v258
                $region63: #{custom_resnet_forward.15} parent=50 // loop_footer
                  %s249 = sadd.s32 1, %s245
                $region64: #{custom_resnet_forward.15} parent=50 // loop_footer_branch
                  %244 = sbr.rel target = $region60
                $region65: #{custom_resnet_forward.15} parent=50 // loop_exit
                  _
              $region51: #{custom_resnet_forward.15} parent=35 // pred_fallthru
                _
            $region36: #{custom_resnet_forward.15} parent=31 // pred_fallthru
              _
            // Predicated region
            $region37: #{custom_resnet_forward.15} parent=31 // pred_check
              _
            $region38: #{custom_resnet_forward.15} parent=31 // pred_check_branch
              %213 = sbr.rel (0) target = $region40
            $region39: #{custom_resnet_forward.15} parent=31 // pred_region
              %s215 = ssub.s32 16, 1
              loop: start=0, step=1, limit=1
              $region41: #{custom_resnet_forward.15} parent=39 // loop_pre_header
                _
              $region42: #{custom_resnet_forward.15} parent=39 // loop_header
                %s217 = sphi 0, %s221
                %p218 = scmp.ge.s32.totalorder %s217, 1
                %s222 = sphi %s207, %s207
                %s223 = sphi %s202, %s202
              $region43: #{custom_resnet_forward.15} parent=39 // loop_header_branch
                %220 = sbr.rel (%p218) target = $region47
              $region44: #{custom_resnet_forward.15} parent=39 // loop_body
                %v224 = vld [vmem:[%s222] sm:%s215]
                %225 = vst [vmem:[%s223] sm:%s215] %v224
                %v226 = vld [vmem:[%s222 + $0x14] sm:%s215]
                %227 = vst [vmem:[%s223 + $0x4] sm:%s215] %v226
                %v228 = vld [vmem:[%s222 + $0x28] sm:%s215]
                %229 = vst [vmem:[%s223 + $0x8] sm:%s215] %v228
                %v230 = vld [vmem:[%s222 + $0x3c] sm:%s215]
                %231 = vst [vmem:[%s223 + $0xc] sm:%s215] %v230
              $region45: #{custom_resnet_forward.15} parent=39 // loop_footer
                %s221 = sadd.s32 1, %s217
              $region46: #{custom_resnet_forward.15} parent=39 // loop_footer_branch
                %216 = sbr.rel target = $region42
              $region47: #{custom_resnet_forward.15} parent=39 // loop_exit
                _
            $region40: #{custom_resnet_forward.15} parent=31 // pred_fallthru
              _
          $region32: #{custom_resnet_forward.15} parent=27 // pred_fallthru
            _
          %260 = vnop
        $region28: #{custom_resnet_forward.15} parent=23 // pred_fallthru
          _
        // Predicated region
        $region66: #{custom_resnet_forward.15} parent=23 // pred_check
          %p261 = pneg %p79
        $region67: #{custom_resnet_forward.15} parent=23 // pred_check_branch
          %263 = sbr.rel (%p261) target = $region69
        $region68: #{custom_resnet_forward.15} parent=23 // pred_region
          %s264 = smul.u32 16, %s19
          %p265 = scmp.lt.s32.totalorder %s264, 79
          %s266 = scalar_select %p265, %s264, 79
          %p267 = scmp.lt.s32.totalorder %s18, 0
          %s268 = scalar_select %p267, %s18, 0
          %s269 = sadd.s32 %s268, %s266
          %s270 = smul.addr %s269, 4
          %s271 = scalar_lea.vmem %s1, %s270
          %s272 = smul.u32 16, %s19
        $region69: #{custom_resnet_forward.15} parent=23 // pred_fallthru
          _
      $region24: #{custom_resnet_forward.15} parent=5 // pred_fallthru
        _
      %p273 = scmp.le.s32.totalorder 1, %s10
      %p274 = scmp.lt.s32.totalorder %s10, 6
      %p275 = pnand %p273, %p274
      %p276 = pneg %p275
      // Predicated region
      $region70: #{custom_resnet_forward.15} parent=5 // pred_check
        _
      $region71: #{custom_resnet_forward.15} parent=5 // pred_check_branch
        %278 = sbr.rel (%p275) target = $region73
      $region72: #{custom_resnet_forward.15} parent=5 // pred_region
        %s279 = ssub.s32 %s10, 1
        %s280 = sand.u32 %s44, 1
        %s281 = sand.u32 %s44, 1
        %s282 = smul.addr %s281, 16
        %s283 = scalar_lea.vmem [#allocation3], %s282
        // Predicated region
        $region74: #{custom_resnet_forward.15} parent=72 // pred_check
          %p284 = pneg %p57
        $region75: #{custom_resnet_forward.15} parent=72 // pred_check_branch
          %286 = sbr.rel (%p284) target = $region77
        $region76: #{custom_resnet_forward.15} parent=72 // pred_region
          _
        $region77: #{custom_resnet_forward.15} parent=72 // pred_fallthru
          _
        %s287 = sand.u32 %s44, 1
        %s288 = sand.u32 %s44, 1
        %s289 = smul.addr %s288, 16
        %s290 = scalar_lea.vmem [#allocation3], %s289
        %p291 = pneg %p57
        %p292 = pneg %p54
        %s293 = smul.u32 16, %s22
        %p294 = scmp.lt.s32.totalorder %s293, 79
        %s295 = scalar_select %p294, %s293, 79
        %p296 = scmp.lt.s32.totalorder %s21, 0
        %s297 = scalar_select %p296, %s21, 0
        %s298 = sadd.s32 %s297, %s295
        %s299 = smul.addr %s298, 4
        %s300 = scalar_lea.vmem %s1, %s299
        %p301 = pneg %p85
        %p302 = pneg %p82
        %p303 = scmp.lt.s32.totalorder %s21, 0
        %s304 = scalar_select %p303, %s21, 0
        %s305 = scalar_lea.vmem %s2, %s304
        %p306 = pneg %p111
        %p307 = pneg %p108
        %p308 = scmp.lt.s32.totalorder %s21, 0
        %s309 = scalar_select %p308, %s21, 0
        %s310 = scalar_lea.vmem %s3, %s309
        %p311 = pneg %p137
        %p312 = pneg %p134
        %p313 = pneg %p165
        %p314 = pneg %p162
        %s315 = smul.u32 4, %s20
        %p316 = scmp.lt.s32.totalorder %s315, 3
        %s317 = scalar_select %p316, %s315, 3
        %p318 = scmp.lt.s32.totalorder %s21, 0
        %s319 = scalar_select %p318, %s21, 0
        %s320 = sadd.s32 %s319, %s317
        %s321 = smul.addr %s320, 8
        %s322 = scalar_lea.vmem %s4, %s321
        %s323 = smul.u32 4, %s20
        %s324 = smul.u32 16, %s22
        %p325 = scmp.lt.s32.totalorder %s324, 79
        %s326 = scalar_select %p325, %s324, 79
        %p327 = scmp.lt.s32.totalorder %s21, 0
        %s328 = scalar_select %p327, %s21, 0
        %s329 = sadd.s32 %s328, %s326
        %s330 = smul.addr %s329, 4
        %s331 = scalar_lea.vmem %s1, %s330
        %s332 = smul.u32 16, %s22
        %p333 = scmp.lt.s32.totalorder %s21, 0
        %s334 = scalar_select %p333, %s21, 0
        %s335 = scalar_lea.vmem %s2, %s334
        %p336 = scmp.lt.s32.totalorder %s21, 0
        %s337 = scalar_select %p336, %s21, 0
        %s338 = scalar_lea.vmem %s3, %s337
        %s339 = smul.u32 4, %s20
        %p340 = scmp.lt.s32.totalorder %s339, 3
        %s341 = scalar_select %p340, %s339, 3
        %p342 = scmp.lt.s32.totalorder %s21, 0
        %s343 = scalar_select %p342, %s21, 0
        %s344 = sadd.s32 %s343, %s341
        %s345 = smul.addr %s344, 8
        %s346 = scalar_lea.vmem %s4, %s345
        %s347 = smul.u32 4, %s20
        %p349 = scmp.eq.s32.totalorder %s22, 0
        // Predicated region
        $region78: #{custom_resnet_forward.15} parent=72 // pred_check
          %p350 = pneg %p349
        $region79: #{custom_resnet_forward.15} parent=72 // pred_check_branch
          %352 = sbr.rel (%p350) target = $region81
        $region80: #{custom_resnet_forward.15} parent=72 // pred_region
          %353 = vst [vmem:[#allocation2] sm:$0xff] 0.0
          %354 = vst [vmem:[#allocation2 + $0x8] sm:$0xff] 0.0
          %355 = vst [vmem:[#allocation2 + $0x10] sm:$0xff] 0.0
          %356 = vst [vmem:[#allocation2 + $0x18] sm:$0xff] 0.0
        $region81: #{custom_resnet_forward.15} parent=72 // pred_fallthru
          _
        %v357 = vld [vmem:[#allocation2] sm:$0xff]
        %v358 = vld [vmem:[#allocation2 + $0x8] sm:$0xff]
        %v359 = vld [vmem:[#allocation2 + $0x10] sm:$0xff]
        %v360 = vld [vmem:[#allocation2 + $0x18] sm:$0xff]
        %v361 = vld [vmem:[%s283] sm:$0xf]
        %v362 = vld [vmem:[%s283 + $0x4] sm:$0xf]
        %v363 = vld [vmem:[%s283 + $0x8] sm:$0xf]
        %v364 = vld [vmem:[%s283 + $0xc] sm:$0xf]
        %v365 = vld [vmem:[%s331] sm:$0xf]
        %v366 = vld [vmem:[%s331 + $0x4] sm:$0xf]
        %v367 = vld [vmem:[%s331 + $0x8] sm:$0xf]
        %v368 = vld [vmem:[%s331 + $0xc] sm:$0xf]
        %v369 = vld [vmem:[%s331 + $0x10] sm:$0xf]
        %v370 = vld [vmem:[%s331 + $0x14] sm:$0xf]
        %v371 = vld [vmem:[%s331 + $0x18] sm:$0xf]
        %v372 = vld [vmem:[%s331 + $0x1c] sm:$0xf]
        %v373 = vld [vmem:[%s331 + $0x20] sm:$0xf]
        %v374 = vld [vmem:[%s331 + $0x24] sm:$0xf]
        %v375 = vld [vmem:[%s331 + $0x28] sm:$0xf]
        %v376 = vld [vmem:[%s331 + $0x2c] sm:$0xf]
        %v377 = vld [vmem:[%s331 + $0x30] sm:$0xf]
        %v378 = vld [vmem:[%s331 + $0x34] sm:$0xf]
        %v379 = vld [vmem:[%s331 + $0x38] sm:$0xf]
        %v380 = vld [vmem:[%s331 + $0x3c] sm:$0xf]
        %v385 = vunpack.c.l.b16 %v361
        %v386 = vunpack.c.l.b16 %v362
        %v387 = vunpack.c.l.b16 %v363
        %v388 = vunpack.c.l.b16 %v364
        %v389 = vpack.c.b16 %v386, %v385
        %v390 = vpack.c.b16 %v388, %v387
        %v409 = vunpack.c.l.b16 %v365
        %v410 = vunpack.c.l.b16 %v366
        %v411 = vunpack.c.l.b16 %v367
        %v412 = vunpack.c.l.b16 %v368
        %v413 = vunpack.c.l.b16 %v369
        %v414 = vunpack.c.l.b16 %v370
        %v415 = vunpack.c.l.b16 %v371
        %v416 = vunpack.c.l.b16 %v372
        %v417 = vunpack.c.l.b16 %v373
        %v418 = vunpack.c.l.b16 %v374
        %v419 = vunpack.c.l.b16 %v375
        %v420 = vunpack.c.l.b16 %v376
        %v421 = vunpack.c.l.b16 %v377
        %v422 = vunpack.c.l.b16 %v378
        %v423 = vunpack.c.l.b16 %v379
        %v424 = vunpack.c.l.b16 %v380
        %v425 = vpack.c.b16 %v410, %v409
        %v426 = vpack.c.b16 %v412, %v411
        %v427 = vpack.c.b16 %v414, %v413
        %v428 = vpack.c.b16 %v416, %v415
        %v429 = vpack.c.b16 %v418, %v417
        %v430 = vpack.c.b16 %v420, %v419
        %v431 = vpack.c.b16 %v422, %v421
        %v432 = vpack.c.b16 %v424, %v423
        %441 = vmatprep.subr.bf16.mxu0 0
        %442 = vmatpush1.bf16.msra.mxu0 %v432
        %443 = vmatprep.subr.bf16.mxu0 0
        %444 = vmatpush1.bf16.msra.mxu0 %v431
        %445 = vmatprep.subr.bf16.mxu0 0
        %446 = vmatpush1.bf16.msra.mxu0 %v430
        %447 = vmatprep.subr.bf16.mxu0 0
        %448 = vmatpush1.bf16.msra.mxu0 %v429
        %449 = vmatprep.subr.bf16.mxu0 0
        %450 = vmatpush1.bf16.msra.mxu0 %v428
        %451 = vmatprep.subr.bf16.mxu0 0
        %452 = vmatpush1.bf16.msra.mxu0 %v427
        %453 = vmatprep.subr.bf16.mxu0 0
        %454 = vmatpush1.bf16.msra.mxu0 %v426
        %455 = vmatprep.subr.bf16.mxu0 0
        %456 = vmatpush1.bf16.msra.mxu0 %v425
        %457 = vmatprep.subr.bf16.mxu0 0
        %458 = vmatpush2.bf16.msra.mxu0 0
        %459 = vmatprep.subr.bf16.mxu0 0
        %460 = vmatpush2.bf16.msra.mxu0 0
        %461 = vmatprep.subr.bf16.mxu0 0
        %462 = vmatpush2.bf16.msra.mxu0 0
        %463 = vmatprep.subr.bf16.mxu0 0
        %464 = vmatpush2.bf16.msra.mxu0 0
        %465 = vmatprep.subr.bf16.mxu0 0
        %466 = vmatpush2.bf16.msra.mxu0 0
        %467 = vmatprep.subr.bf16.mxu0 0
        %468 = vmatpush2.bf16.msra.mxu0 0
        %469 = vmatprep.subr.bf16.mxu0 0
        %470 = vmatpush2.bf16.msra.mxu0 0
        %471 = vmatprep.subr.bf16.mxu0 0
        %472 = vmatpush2.bf16.msra.mxu0 0
        %473 = vmatprep.mubr.bf16.mxu0 0
        %474 = vmatmul.mubr.bf16.gmra.mxu0 %v389
        %v475 = vpop.f32.mrf.mxu0
        %v476 = vadd.f32 0.0, %v475
        %v477 = vpop.f32.mrf.mxu0
        %v478 = vpop.f32.mrf.mxu0
        %v479 = vadd.f32 0.0, %v478
        %v480 = vpop.f32.mrf.mxu0
        %481 = vmatprep.mubr.bf16.mxu0 0
        %482 = vmatmul.mubr.bf16.gmra.mxu0 %v390
        %v483 = vpop.f32.mrf.mxu0
        %v484 = vadd.f32 0.0, %v483
        %v485 = vpop.f32.mrf.mxu0
        %v486 = vpop.f32.mrf.mxu0
        %v487 = vadd.f32 0.0, %v486
        %v488 = vpop.f32.mrf.mxu0
        %489 = vdwg.mxu0
        %v490 = vadd.f32 %v357, %v476
        %v491 = vadd.f32 %v358, %v479
        %v492 = vadd.f32 %v359, %v484
        %v493 = vadd.f32 %v360, %v487
        %494 = vst [vmem:[#allocation2] sm:$0xff] %v490
        %495 = vst [vmem:[#allocation2 + $0x8] sm:$0xff] %v491
        %496 = vst [vmem:[#allocation2 + $0x10] sm:$0xff] %v492
        %497 = vst [vmem:[#allocation2 + $0x18] sm:$0xff] %v493
        %p498 = scmp.eq.s32.totalorder %s22, 4
        // Predicated region
        $region82: #{custom_resnet_forward.15} parent=72 // pred_check
          %p499 = pneg %p498
        $region83: #{custom_resnet_forward.15} parent=72 // pred_check_branch
          %501 = sbr.rel (%p499) target = $region85
        $region84: #{custom_resnet_forward.15} parent=72 // pred_region
          %v502 = vld [vmem:[#allocation2] sm:$0xff]
          %v503 = vld [vmem:[#allocation2 + $0x8] sm:$0xff]
          %v504 = vld [vmem:[#allocation2 + $0x10] sm:$0xff]
          %v505 = vld [vmem:[#allocation2 + $0x18] sm:$0xff]
          %v506 = vld [vmem:[%s335] sm:$0x1]
          %v508 = vlaneseq
          %v509 = vshrl.u32 %v508, 7
          %v510 = vsub.s32 0, %v509
          %v511 = vrot.slane %v506, %v510
          %v513 = vmul.f32 %v502, %v511
          %v514 = vmul.f32 %v503, %v511
          %v515 = vmul.f32 %v504, %v511
          %v516 = vmul.f32 %v505, %v511
          %v517 = vld [vmem:[%s338] sm:$0x1]
          %v519 = vlaneseq
          %v520 = vshrl.u32 %v519, 7
          %v521 = vsub.s32 0, %v520
          %v522 = vrot.slane %v517, %v521
          %v524 = vadd.f32 %v513, %v522
          %v525 = vadd.f32 %v514, %v522
          %v526 = vadd.f32 %v515, %v522
          %v527 = vadd.f32 %v516, %v522
          %v528 = vmax.f32 %v524, 0.0
          %v529 = vmax.f32 %v525, 0.0
          %v530 = vmax.f32 %v526, 0.0
          %v531 = vmax.f32 %v527, 0.0
          %532 = vst [vmem:[%s346] sm:$0xff] %v528
          %533 = vst [vmem:[%s346 + $0x8] sm:$0xff] %v529
          %534 = vst [vmem:[%s346 + $0x10] sm:$0xff] %v530
          %535 = vst [vmem:[%s346 + $0x18] sm:$0xff] %v531
        $region85: #{custom_resnet_forward.15} parent=72 // pred_fallthru
          _
        %s536 = smul.u32 4, %s20
        %p537 = scmp.lt.s32.totalorder %s536, 3
        %s538 = scalar_select %p537, %s536, 3
        %p539 = scmp.lt.s32.totalorder %s21, 0
        %s540 = scalar_select %p539, %s21, 0
        %s541 = sadd.s32 %s540, %s538
        %s542 = smul.addr %s541, 8
        %s543 = scalar_lea.vmem %s4, %s542
        // Predicated region
        $region86: #{custom_resnet_forward.15} parent=72 // pred_check
          %p544 = pneg %p162
        $region87: #{custom_resnet_forward.15} parent=72 // pred_check_branch
          %546 = sbr.rel (%p544) target = $region89
        $region88: #{custom_resnet_forward.15} parent=72 // pred_region
          %s547 = smul.u32 4, %s20
        $region89: #{custom_resnet_forward.15} parent=72 // pred_fallthru
          _
        // Predicated region
        $region90: #{custom_resnet_forward.15} parent=72 // pred_check
          %p548 = pneg %p162
        $region91: #{custom_resnet_forward.15} parent=72 // pred_check_branch
          %550 = sbr.rel (%p548) target = $region93
        $region92: #{custom_resnet_forward.15} parent=72 // pred_region
          %s551 = smul.u32 4, %s20
          %p552 = scmp.lt.s32.totalorder %s551, 3
          %s553 = scalar_select %p552, %s551, 3
          %p554 = scmp.lt.s32.totalorder %s21, 0
          %s555 = scalar_select %p554, %s21, 0
          %s556 = sadd.s32 %s555, %s553
          %s557 = smul.addr %s556, 8
          %s558 = scalar_lea.vmem %s4, %s557
        $region93: #{custom_resnet_forward.15} parent=72 // pred_fallthru
          _
      $region73: #{custom_resnet_forward.15} parent=5 // pred_fallthru
        _
      %p559 = scmp.le.s32.totalorder 2, %s10
      // Predicated region
      $region94: #{custom_resnet_forward.15} parent=5 // pred_check
        %p560 = pneg %p559
      $region95: #{custom_resnet_forward.15} parent=5 // pred_check_branch
        %562 = sbr.rel (%p560) target = $region97
      $region96: #{custom_resnet_forward.15} parent=5 // pred_region
        %s563 = ssub.s32 %s10, 2
      $region97: #{custom_resnet_forward.15} parent=5 // pred_fallthru
        _
    $region6: #{custom_resnet_forward.15} parent=1 // loop_footer
      %s14 = sadd.s32 1, %s10
    $region7: #{custom_resnet_forward.15} parent=1 // loop_footer_branch
      %9 = sbr.rel target = $region3
    $region8: #{custom_resnet_forward.15} parent=1 // loop_exit
      _

// kernel: custom_resnet_forward.14
$region0: #{custom_resnet_forward.14}
  #allocation0 [shape = 'u32[]', space=smem, size = 0x4, offset = 0x4, fixed_abs, tag = 'smem constant byte address 0x4 - core index']
  #allocation1 [shape = 'u32[144,128]{1,0:T(1,128)}', space=vmem, size = 0x12000, scoped, tag = 'internal scratch']
  #allocation2 [shape = 'f32[32,128]{1,0:T(8,128)}', space=vmem, size = 0x4000, scoped, tag = 'scratch operand']
  %s0 = inlined_call_operand.vmem [shape: bf16[32,128], index: 0, kind: input, shape index: {}]
  %s1 = inlined_call_operand.vmem [shape: bf16[128,128], index: 1, kind: input, shape index: {}]
  %s2 = inlined_call_operand.vmem [shape: f32[1,128], index: 2, kind: input, shape index: {}]
  %s3 = inlined_call_operand.vmem [shape: f32[1,128], index: 3, kind: input, shape index: {}]
  %s4 = inlined_call_operand.vmem [shape: f32[32,128], index: 4, kind: output, shape index: {}]
  %s5 = sld [smem:[#allocation0]]
  $region34: #{custom_resnet_forward.14} parent=0
    _
  %s7 = ssub.s32 1, %s5
  %s8 = scalar_select 0, %s7, %s5
  // Predicated region
  $region2: #{custom_resnet_forward.14} parent=0 // pred_check
    _
  $region3: #{custom_resnet_forward.14} parent=0 // pred_check_branch
    %10 = sbr.rel (0) target = $region5
  $region4: #{custom_resnet_forward.14} parent=0 // pred_region
    _
  $region5: #{custom_resnet_forward.14} parent=0 // pred_fallthru
    _
  // Predicated region
  $region6: #{custom_resnet_forward.14} parent=0 // pred_check
    _
  $region7: #{custom_resnet_forward.14} parent=0 // pred_check_branch
    %12 = sbr.rel (0) target = $region9
  $region8: #{custom_resnet_forward.14} parent=0 // pred_region
    _
  $region9: #{custom_resnet_forward.14} parent=0 // pred_fallthru
    _
  // Predicated region
  $region10: #{custom_resnet_forward.14} parent=0 // pred_check
    _
  $region11: #{custom_resnet_forward.14} parent=0 // pred_check_branch
    %14 = sbr.rel (0) target = $region13
  $region12: #{custom_resnet_forward.14} parent=0 // pred_region
    _
  $region13: #{custom_resnet_forward.14} parent=0 // pred_fallthru
    _
  // Predicated region
  $region14: #{custom_resnet_forward.14} parent=0 // pred_check
    _
  $region15: #{custom_resnet_forward.14} parent=0 // pred_check_branch
    %16 = sbr.rel (0) target = $region17
  $region16: #{custom_resnet_forward.14} parent=0 // pred_region
    _
  $region17: #{custom_resnet_forward.14} parent=0 // pred_fallthru
    _
  %p18 = scmp.eq.s32.totalorder 0, 0
  // Predicated region
  $region18: #{custom_resnet_forward.14} parent=0 // pred_check
    %p19 = pneg %p18
  $region19: #{custom_resnet_forward.14} parent=0 // pred_check_branch
    %21 = sbr.rel (%p19) target = $region21
  $region20: #{custom_resnet_forward.14} parent=0 // pred_region
    %22 = vst [vmem:[#allocation2] sm:$0xff] 0.0
    %23 = vst [vmem:[#allocation2 + $0x8] sm:$0xff] 0.0
    %24 = vst [vmem:[#allocation2 + $0x10] sm:$0xff] 0.0
    %25 = vst [vmem:[#allocation2 + $0x18] sm:$0xff] 0.0
  $region21: #{custom_resnet_forward.14} parent=0 // pred_fallthru
    _
  %v26 = vld [vmem:[#allocation2] sm:$0xff]
  %v27 = vld [vmem:[#allocation2 + $0x8] sm:$0xff]
  %v28 = vld [vmem:[#allocation2 + $0x10] sm:$0xff]
  %v29 = vld [vmem:[#allocation2 + $0x18] sm:$0xff]
  %v30 = vld [vmem:[%s0] sm:$0xf]
  %v31 = vld [vmem:[%s0 + $0x4] sm:$0xf]
  %v32 = vld [vmem:[%s0 + $0x8] sm:$0xf]
  %v33 = vld [vmem:[%s0 + $0xc] sm:$0xf]
  %v34 = vld [vmem:[%s1] sm:$0xf]
  %v35 = vld [vmem:[%s1 + $0x4] sm:$0xf]
  %v36 = vld [vmem:[%s1 + $0x8] sm:$0xf]
  %v37 = vld [vmem:[%s1 + $0xc] sm:$0xf]
  %v38 = vld [vmem:[%s1 + $0x10] sm:$0xf]
  %v39 = vld [vmem:[%s1 + $0x14] sm:$0xf]
  %v40 = vld [vmem:[%s1 + $0x18] sm:$0xf]
  %v41 = vld [vmem:[%s1 + $0x1c] sm:$0xf]
  %v42 = vld [vmem:[%s1 + $0x20] sm:$0xf]
  %v43 = vld [vmem:[%s1 + $0x24] sm:$0xf]
  %v44 = vld [vmem:[%s1 + $0x28] sm:$0xf]
  %v45 = vld [vmem:[%s1 + $0x2c] sm:$0xf]
  %v46 = vld [vmem:[%s1 + $0x30] sm:$0xf]
  %v47 = vld [vmem:[%s1 + $0x34] sm:$0xf]
  %v48 = vld [vmem:[%s1 + $0x38] sm:$0xf]
  %v49 = vld [vmem:[%s1 + $0x3c] sm:$0xf]
  %v54 = vunpack.c.l.b16 %v30
  %v55 = vunpack.c.l.b16 %v31
  %v56 = vunpack.c.l.b16 %v32
  %v57 = vunpack.c.l.b16 %v33
  %v58 = vpack.c.b16 %v55, %v54
  %v59 = vpack.c.b16 %v57, %v56
  %v78 = vunpack.c.l.b16 %v34
  %v79 = vunpack.c.l.b16 %v35
  %v80 = vunpack.c.l.b16 %v36
  %v81 = vunpack.c.l.b16 %v37
  %v82 = vunpack.c.l.b16 %v38
  %v83 = vunpack.c.l.b16 %v39
  %v84 = vunpack.c.l.b16 %v40
  %v85 = vunpack.c.l.b16 %v41
  %v86 = vunpack.c.l.b16 %v42
  %v87 = vunpack.c.l.b16 %v43
  %v88 = vunpack.c.l.b16 %v44
  %v89 = vunpack.c.l.b16 %v45
  %v90 = vunpack.c.l.b16 %v46
  %v91 = vunpack.c.l.b16 %v47
  %v92 = vunpack.c.l.b16 %v48
  %v93 = vunpack.c.l.b16 %v49
  %v94 = vpack.c.b16 %v79, %v78
  %v95 = vpack.c.b16 %v81, %v80
  %v96 = vpack.c.b16 %v83, %v82
  %v97 = vpack.c.b16 %v85, %v84
  %v98 = vpack.c.b16 %v87, %v86
  %v99 = vpack.c.b16 %v89, %v88
  %v100 = vpack.c.b16 %v91, %v90
  %v101 = vpack.c.b16 %v93, %v92
  %110 = vmatprep.subr.bf16.mxu0 0
  %111 = vmatpush1.bf16.msra.mxu0 %v101
  %112 = vmatprep.subr.bf16.mxu0 0
  %113 = vmatpush1.bf16.msra.mxu0 %v100
  %114 = vmatprep.subr.bf16.mxu0 0
  %115 = vmatpush1.bf16.msra.mxu0 %v99
  %116 = vmatprep.subr.bf16.mxu0 0
  %117 = vmatpush1.bf16.msra.mxu0 %v98
  %118 = vmatprep.subr.bf16.mxu0 0
  %119 = vmatpush1.bf16.msra.mxu0 %v97
  %120 = vmatprep.subr.bf16.mxu0 0
  %121 = vmatpush1.bf16.msra.mxu0 %v96
  %122 = vmatprep.subr.bf16.mxu0 0
  %123 = vmatpush1.bf16.msra.mxu0 %v95
  %124 = vmatprep.subr.bf16.mxu0 0
  %125 = vmatpush1.bf16.msra.mxu0 %v94
  %126 = vmatprep.subr.bf16.mxu0 0
  %127 = vmatpush2.bf16.msra.mxu0 0
  %128 = vmatprep.subr.bf16.mxu0 0
  %129 = vmatpush2.bf16.msra.mxu0 0
  %130 = vmatprep.subr.bf16.mxu0 0
  %131 = vmatpush2.bf16.msra.mxu0 0
  %132 = vmatprep.subr.bf16.mxu0 0
  %133 = vmatpush2.bf16.msra.mxu0 0
  %134 = vmatprep.subr.bf16.mxu0 0
  %135 = vmatpush2.bf16.msra.mxu0 0
  %136 = vmatprep.subr.bf16.mxu0 0
  %137 = vmatpush2.bf16.msra.mxu0 0
  %138 = vmatprep.subr.bf16.mxu0 0
  %139 = vmatpush2.bf16.msra.mxu0 0
  %140 = vmatprep.subr.bf16.mxu0 0
  %141 = vmatpush2.bf16.msra.mxu0 0
  %142 = vmatprep.mubr.bf16.mxu0 0
  %143 = vmatmul.mubr.bf16.gmra.mxu0 %v58
  %v144 = vpop.f32.mrf.mxu0
  %v145 = vadd.f32 0.0, %v144
  %v146 = vpop.f32.mrf.mxu0
  %v147 = vpop.f32.mrf.mxu0
  %v148 = vadd.f32 0.0, %v147
  %v149 = vpop.f32.mrf.mxu0
  %150 = vmatprep.mubr.bf16.mxu0 0
  %151 = vmatmul.mubr.bf16.gmra.mxu0 %v59
  %v152 = vpop.f32.mrf.mxu0
  %v153 = vadd.f32 0.0, %v152
  %v154 = vpop.f32.mrf.mxu0
  %v155 = vpop.f32.mrf.mxu0
  %v156 = vadd.f32 0.0, %v155
  %v157 = vpop.f32.mrf.mxu0
  %158 = vdwg.mxu0
  %v159 = vadd.f32 %v26, %v145
  %v160 = vadd.f32 %v27, %v148
  %v161 = vadd.f32 %v28, %v153
  %v162 = vadd.f32 %v29, %v156
  %163 = vst [vmem:[#allocation2] sm:$0xff] %v159
  %164 = vst [vmem:[#allocation2 + $0x8] sm:$0xff] %v160
  %165 = vst [vmem:[#allocation2 + $0x10] sm:$0xff] %v161
  %166 = vst [vmem:[#allocation2 + $0x18] sm:$0xff] %v162
  // Predicated region
  $region22: #{custom_resnet_forward.14} parent=0 // pred_check
    %p167 = pneg %p18
  $region23: #{custom_resnet_forward.14} parent=0 // pred_check_branch
    %169 = sbr.rel (%p167) target = $region25
  $region24: #{custom_resnet_forward.14} parent=0 // pred_region
    %v170 = vld [vmem:[#allocation2] sm:$0xff]
    %v171 = vld [vmem:[#allocation2 + $0x8] sm:$0xff]
    %v172 = vld [vmem:[#allocation2 + $0x10] sm:$0xff]
    %v173 = vld [vmem:[#allocation2 + $0x18] sm:$0xff]
    %v174 = vld [vmem:[%s2] sm:$0x1]
    %v176 = vlaneseq
    %v177 = vshrl.u32 %v176, 7
    %v178 = vsub.s32 0, %v177
    %v179 = vrot.slane %v174, %v178
    %v181 = vmul.f32 %v170, %v179
    %v182 = vmul.f32 %v171, %v179
    %v183 = vmul.f32 %v172, %v179
    %v184 = vmul.f32 %v173, %v179
    %v185 = vld [vmem:[%s3] sm:$0x1]
    %v187 = vlaneseq
    %v188 = vshrl.u32 %v187, 7
    %v189 = vsub.s32 0, %v188
    %v190 = vrot.slane %v185, %v189
    %v192 = vadd.f32 %v181, %v190
    %v193 = vadd.f32 %v182, %v190
    %v194 = vadd.f32 %v183, %v190
    %v195 = vadd.f32 %v184, %v190
    %196 = vst [vmem:[%s4] sm:$0xff] %v192
    %197 = vst [vmem:[%s4 + $0x8] sm:$0xff] %v193
    %198 = vst [vmem:[%s4 + $0x10] sm:$0xff] %v194
    %199 = vst [vmem:[%s4 + $0x18] sm:$0xff] %v195
  $region25: #{custom_resnet_forward.14} parent=0 // pred_fallthru
    _
  // Predicated region
  $region26: #{custom_resnet_forward.14} parent=0 // pred_check
    _
  $region27: #{custom_resnet_forward.14} parent=0 // pred_check_branch
    %201 = sbr.rel (0) target = $region29
  $region28: #{custom_resnet_forward.14} parent=0 // pred_region
    _
  $region29: #{custom_resnet_forward.14} parent=0 // pred_fallthru
    _
  // Predicated region
  $region30: #{custom_resnet_forward.14} parent=0 // pred_check
    _
  $region31: #{custom_resnet_forward.14} parent=0 // pred_check_branch
    %203 = sbr.rel (0) target = $region33
  $region32: #{custom_resnet_forward.14} parent=0 // pred_region
    _
  $region33: #{custom_resnet_forward.14} parent=0 // pred_fallthru
    _

// kernel: custom_resnet_forward.16
$region0: #{custom_resnet_forward.16}
  #allocation0 [shape = 'u32[]', space=smem, size = 0x4, offset = 0x4, fixed_abs, tag = 'smem constant byte address 0x4 - core index']
  #allocation1 [shape = 'u32[144,128]{1,0:T(1,128)}', space=vmem, size = 0x12000, scoped, tag = 'internal scratch']
  #allocation2 [shape = 'f32[32,128]{1,0:T(8,128)}', space=vmem, size = 0x4000, scoped, tag = 'scratch operand']
  %s0 = inlined_call_operand.vmem [shape: bf16[32,1152], index: 0, kind: input, shape index: {}]
  %s1 = inlined_call_operand.vmem [shape: bf16[1152,128], index: 1, kind: input, shape index: {}]
  %s2 = inlined_call_operand.vmem [shape: f32[1,128], index: 2, kind: input, shape index: {}]
  %s3 = inlined_call_operand.vmem [shape: f32[1,128], index: 3, kind: input, shape index: {}]
  %s4 = inlined_call_operand.vmem [shape: f32[32,128], index: 4, kind: input, shape index: {}]
  %s5 = inlined_call_operand.vmem [shape: f32[32,128], index: 5, kind: output, shape index: {}]
  %s6 = sld [smem:[#allocation0]]
  $region87: #{custom_resnet_forward.16} parent=0
    _
  %s8 = ssub.s32 1, %s6
  %s9 = scalar_select 0, %s8, %s6
  $region1: #{custom_resnet_forward.16} parent=0
    #allocation3 [shape = 'u8[49152]{0}', space=vmem, size = 0xc000, scoped, tag = 'input window, operand 0']
    loop: start=0, step=1, limit=5
    $region2: #{custom_resnet_forward.16} parent=1 // loop_pre_header
      _
    $region3: #{custom_resnet_forward.16} parent=1 // loop_header
      %s11 = sphi 0, %s15
      %p12 = scmp.ge.s32.totalorder %s11, 5
      %s18 = sphi 0, %s37
      %s19 = sphi 0, %s33
      %s20 = sphi 0, %s29
      %s21 = sphi 0, %s18
      %s22 = sphi 0, %s19
      %s23 = sphi 0, %s20
      %s24 = sphi 0, %s21
      %s25 = sphi 0, %s22
      %s26 = sphi 0, %s23
      %s42 = sphi 0, %s44
      %s45 = sphi 0, %s42
      %s46 = sphi 0, %s45
      %s62 = sphi 0, %s46
      %s70 = sphi 0, %s72
      %s73 = sphi 0, %s70
      %s74 = sphi 0, %s73
      %s90 = sphi 0, %s74
      %s96 = sphi 0, %s98
      %s99 = sphi 0, %s96
      %s100 = sphi 0, %s99
      %s116 = sphi 0, %s100
      %s122 = sphi 0, %s124
      %s125 = sphi 0, %s122
      %s126 = sphi 0, %s125
      %s142 = sphi 0, %s126
      %s150 = sphi 0, %s152
      %s153 = sphi 0, %s150
      %s154 = sphi 0, %s153
      %s170 = sphi 0, %s154
      %s178 = sphi 0, %s180
      %s181 = sphi 0, %s178
      %s182 = sphi 0, %s181
      %s198 = sphi 0, %s182
    $region4: #{custom_resnet_forward.16} parent=1 // loop_header_branch
      %14 = sbr.rel (%p12) target = $region8
    $region5: #{custom_resnet_forward.16} parent=1 // loop_body
      %s16 = ssub.s32 %s11, 1
      %s17 = ssub.s32 %s11, 2
      %s27 = sadd.s32 1, %s20
      %p28 = scmp.ge.s32.totalorder %s27, 3
      %s29 = scalar_select %p28, 0, %s27
      %s30 = sadd.s32 1, %s19
      %s31 = scalar_select %p28, %s30, %s19
      %p32 = scmp.ge.s32.totalorder %s31, 1
      %s33 = scalar_select %p32, 0, %s31
      %s34 = sadd.s32 1, %s18
      %s35 = scalar_select %p32, %s34, %s18
      %p36 = scmp.ge.s32.totalorder %s35, 1
      %s37 = scalar_select %p36, 0, %s35
      %s38 = ssub.s32 %s18, %s37
      %s39 = ssub.s32 %s20, %s29
      %s40 = sor.u32 %s38, %s39
      %p41 = scmp.eq.s32.totalorder %s40, 0
      %s43 = sadd.s32 %s42, 1
      %s44 = scalar_select %p41, %s42, %s43
      %p47 = pneg %p41
      %p48 = scmp.eq.s32.totalorder %s11, 2
      %p49 = por %p47, %p48
      %p50 = scmp.ne.s32.totalorder %s42, %s45
      %p51 = scmp.eq.s32.totalorder %s11, 0
      %p52 = por %p50, %p51
      %p53 = scmp.ne.s32.totalorder %s42, %s45
      %p54 = scmp.eq.s32.totalorder %s16, 2
      %p55 = por %p53, %p54
      %p56 = scmp.ne.s32.totalorder %s45, %s46
      %p57 = scmp.eq.s32.totalorder %s16, 0
      %p58 = por %p56, %p57
      %p59 = scmp.ne.s32.totalorder %s45, %s46
      %p60 = scmp.eq.s32.totalorder %s17, 2
      %p61 = por %p59, %p60
      %p63 = scmp.ne.s32.totalorder %s46, %s62
      %p64 = scmp.eq.s32.totalorder %s17, 0
      %p65 = por %p63, %p64
      %s66 = ssub.s32 %s20, %s29
      %s67 = ssub.s32 %s19, %s33
      %s68 = sor.u32 %s66, %s67
      %p69 = scmp.eq.s32.totalorder %s68, 0
      %s71 = sadd.s32 %s70, 1
      %s72 = scalar_select %p69, %s70, %s71
      %p75 = pneg %p69
      %p76 = scmp.eq.s32.totalorder %s11, 2
      %p77 = por %p75, %p76
      %p78 = scmp.ne.s32.totalorder %s70, %s73
      %p79 = scmp.eq.s32.totalorder %s11, 0
      %p80 = por %p78, %p79
      %p81 = scmp.ne.s32.totalorder %s70, %s73
      %p82 = scmp.eq.s32.totalorder %s16, 2
      %p83 = por %p81, %p82
      %p84 = scmp.ne.s32.totalorder %s73, %s74
      %p85 = scmp.eq.s32.totalorder %s16, 0
      %p86 = por %p84, %p85
      %p87 = scmp.ne.s32.totalorder %s73, %s74
      %p88 = scmp.eq.s32.totalorder %s17, 2
      %p89 = por %p87, %p88
      %p91 = scmp.ne.s32.totalorder %s74, %s90
      %p92 = scmp.eq.s32.totalorder %s17, 0
      %p93 = por %p91, %p92
      %s94 = ssub.s32 %s19, %s33
      %p95 = scmp.eq.s32.totalorder %s94, 0
      %s97 = sadd.s32 %s96, 1
      %s98 = scalar_select %p95, %s96, %s97
      %p101 = pneg %p95
      %p102 = scmp.eq.s32.totalorder %s11, 2
      %p103 = por %p101, %p102
      %p104 = scmp.ne.s32.totalorder %s96, %s99
      %p105 = scmp.eq.s32.totalorder %s11, 0
      %p106 = por %p104, %p105
      %p107 = scmp.ne.s32.totalorder %s96, %s99
      %p108 = scmp.eq.s32.totalorder %s16, 2
      %p109 = por %p107, %p108
      %p110 = scmp.ne.s32.totalorder %s99, %s100
      %p111 = scmp.eq.s32.totalorder %s16, 0
      %p112 = por %p110, %p111
      %p113 = scmp.ne.s32.totalorder %s99, %s100
      %p114 = scmp.eq.s32.totalorder %s17, 2
      %p115 = por %p113, %p114
      %p117 = scmp.ne.s32.totalorder %s100, %s116
      %p118 = scmp.eq.s32.totalorder %s17, 0
      %p119 = por %p117, %p118
      %s120 = ssub.s32 %s19, %s33
      %p121 = scmp.eq.s32.totalorder %s120, 0
      %s123 = sadd.s32 %s122, 1
      %s124 = scalar_select %p121, %s122, %s123
      %p127 = pneg %p121
      %p128 = scmp.eq.s32.totalorder %s11, 2
      %p129 = por %p127, %p128
      %p130 = scmp.ne.s32.totalorder %s122, %s125
      %p131 = scmp.eq.s32.totalorder %s11, 0
      %p132 = por %p130, %p131
      %p133 = scmp.ne.s32.totalorder %s122, %s125
      %p134 = scmp.eq.s32.totalorder %s16, 2
      %p135 = por %p133, %p134
      %p136 = scmp.ne.s32.totalorder %s125, %s126
      %p137 = scmp.eq.s32.totalorder %s16, 0
      %p138 = por %p136, %p137
      %p139 = scmp.ne.s32.totalorder %s125, %s126
      %p140 = scmp.eq.s32.totalorder %s17, 2
      %p141 = por %p139, %p140
      %p143 = scmp.ne.s32.totalorder %s126, %s142
      %p144 = scmp.eq.s32.totalorder %s17, 0
      %p145 = por %p143, %p144
      %s146 = ssub.s32 %s18, %s37
      %s147 = ssub.s32 %s19, %s33
      %s148 = sor.u32 %s146, %s147
      %p149 = scmp.eq.s32.totalorder %s148, 0
      %s151 = sadd.s32 %s150, 1
      %s152 = scalar_select %p149, %s150, %s151
      %p155 = pneg %p149
      %p156 = scmp.eq.s32.totalorder %s11, 2
      %p157 = por %p155, %p156
      %p158 = scmp.ne.s32.totalorder %s150, %s153
      %p159 = scmp.eq.s32.totalorder %s11, 0
      %p160 = por %p158, %p159
      %p161 = scmp.ne.s32.totalorder %s150, %s153
      %p162 = scmp.eq.s32.totalorder %s16, 2
      %p163 = por %p161, %p162
      %p164 = scmp.ne.s32.totalorder %s153, %s154
      %p165 = scmp.eq.s32.totalorder %s16, 0
      %p166 = por %p164, %p165
      %p167 = scmp.ne.s32.totalorder %s153, %s154
      %p168 = scmp.eq.s32.totalorder %s17, 2
      %p169 = por %p167, %p168
      %p171 = scmp.ne.s32.totalorder %s154, %s170
      %p172 = scmp.eq.s32.totalorder %s17, 0
      %p173 = por %p171, %p172
      %s174 = ssub.s32 %s18, %s37
      %s175 = ssub.s32 %s19, %s33
      %s176 = sor.u32 %s174, %s175
      %p177 = scmp.eq.s32.totalorder %s176, 0
      %s179 = sadd.s32 %s178, 1
      %s180 = scalar_select %p177, %s178, %s179
      %p183 = pneg %p177
      %p184 = scmp.eq.s32.totalorder %s11, 2
      %p185 = por %p183, %p184
      %p186 = scmp.ne.s32.totalorder %s178, %s181
      %p187 = scmp.eq.s32.totalorder %s11, 0
      %p188 = por %p186, %p187
      %p189 = scmp.ne.s32.totalorder %s178, %s181
      %p190 = scmp.eq.s32.totalorder %s16, 2
      %p191 = por %p189, %p190
      %p192 = scmp.ne.s32.totalorder %s181, %s182
      %p193 = scmp.eq.s32.totalorder %s16, 0
      %p194 = por %p192, %p193
      %p195 = scmp.ne.s32.totalorder %s181, %s182
      %p196 = scmp.eq.s32.totalorder %s17, 2
      %p197 = por %p195, %p196
      %p199 = scmp.ne.s32.totalorder %s182, %s198
      %p200 = scmp.eq.s32.totalorder %s17, 0
      %p201 = por %p199, %p200
      %p202 = scmp.le.s32.totalorder 1, %s11
      %p203 = scmp.lt.s32.totalorder %s11, 4
      %p204 = pnand %p202, %p203
      %p205 = pneg %p204
      // Predicated region
      $region9: #{custom_resnet_forward.16} parent=5 // pred_check
        _
      $region10: #{custom_resnet_forward.16} parent=5 // pred_check_branch
        %207 = sbr.rel (%p204) target = $region12
      $region11: #{custom_resnet_forward.16} parent=5 // pred_region
        %s208 = ssub.s32 %s11, 1
        // Predicated region
        $region13: #{custom_resnet_forward.16} parent=11 // pred_check
          %p209 = pneg %p112
        $region14: #{custom_resnet_forward.16} parent=11 // pred_check_branch
          %211 = sbr.rel (%p209) target = $region16
        $region15: #{custom_resnet_forward.16} parent=11 // pred_region
          %p212 = scmp.lt.s32.totalorder %s22, 0
          %s213 = scalar_select %p212, %s22, 0
          %s214 = scalar_lea.vmem %s2, %s213
        $region16: #{custom_resnet_forward.16} parent=11 // pred_fallthru
          _
        // Predicated region
        $region17: #{custom_resnet_forward.16} parent=11 // pred_check
          %p215 = pneg %p138
        $region18: #{custom_resnet_forward.16} parent=11 // pred_check_branch
          %217 = sbr.rel (%p215) target = $region20
        $region19: #{custom_resnet_forward.16} parent=11 // pred_region
          %p218 = scmp.lt.s32.totalorder %s22, 0
          %s219 = scalar_select %p218, %s22, 0
          %s220 = scalar_lea.vmem %s3, %s219
        $region20: #{custom_resnet_forward.16} parent=11 // pred_fallthru
          _
        // Predicated region
        $region21: #{custom_resnet_forward.16} parent=11 // pred_check
          %p221 = pneg %p166
        $region22: #{custom_resnet_forward.16} parent=11 // pred_check_branch
          %223 = sbr.rel (%p221) target = $region24
        $region23: #{custom_resnet_forward.16} parent=11 // pred_region
          %s224 = smul.u32 4, %s21
          %p225 = scmp.lt.s32.totalorder %s224, 3
          %s226 = scalar_select %p225, %s224, 3
          %p227 = scmp.lt.s32.totalorder %s22, 0
          %s228 = scalar_select %p227, %s22, 0
          %s229 = sadd.s32 %s228, %s226
          %s230 = smul.addr %s229, 8
          %s231 = scalar_lea.vmem %s4, %s230
          %s232 = smul.u32 4, %s21
        $region24: #{custom_resnet_forward.16} parent=11 // pred_fallthru
          _
      $region12: #{custom_resnet_forward.16} parent=5 // pred_fallthru
        _
      %p233 = scmp.lt.s32.totalorder %s11, 3
      // Predicated region
      $region25: #{custom_resnet_forward.16} parent=5 // pred_check
        %p234 = pneg %p233
      $region26: #{custom_resnet_forward.16} parent=5 // pred_check_branch
        %236 = sbr.rel (%p234) target = $region28
      $region27: #{custom_resnet_forward.16} parent=5 // pred_region
        // Predicated region
        $region29: #{custom_resnet_forward.16} parent=27 // pred_check
          %p237 = pneg %p52
        $region30: #{custom_resnet_forward.16} parent=27 // pred_check_branch
          %239 = sbr.rel (%p237) target = $region32
        $region31: #{custom_resnet_forward.16} parent=27 // pred_region
          %s240 = sand.u32 %s42, 1
          %s241 = sand.u32 %s42, 1
          %s242 = smul.addr %s241, 48
          %s243 = scalar_lea.vmem [#allocation3], %s242
          %s244 = smul.u32 4, %s18
          %s245 = smul.u32 3, %s20
          %s246 = smul.addr %s244, 9
          %s247 = sadd.s32 %s245, %s246
          %s248 = smul.addr %s247, 4
          %s249 = scalar_lea.vmem %s0, %s248
          // Predicated region
          $region33: #{custom_resnet_forward.16} parent=31 // pred_check
            _
          $region34: #{custom_resnet_forward.16} parent=31 // pred_check_branch
            %251 = sbr.rel (0) target = $region36
          $region35: #{custom_resnet_forward.16} parent=31 // pred_region
            // Predicated region
            $region37: #{custom_resnet_forward.16} parent=35 // pred_check
              _
            $region38: #{custom_resnet_forward.16} parent=35 // pred_check_branch
              %253 = sbr.rel (0) target = $region40
            $region39: #{custom_resnet_forward.16} parent=35 // pred_region
              %s254 = scalar_lea.vmem %s249, 8
              %s255 = scalar_lea.vmem %s243, 8 [#allocation3]
              loop: start=0, step=1, limit=1
              $region41: #{custom_resnet_forward.16} parent=39 // loop_pre_header
                _
              $region42: #{custom_resnet_forward.16} parent=39 // loop_header
                %s257 = sphi 0, %s261
                %p258 = scmp.ge.s32.totalorder %s257, 1
                %s262 = sphi %s249, %s249
                %s263 = sphi %s243, %s243
              $region43: #{custom_resnet_forward.16} parent=39 // loop_header_branch
                %260 = sbr.rel (%p258) target = $region47
              $region44: #{custom_resnet_forward.16} parent=39 // loop_body
                %v264 = vld [vmem:[%s262] sm:$0xff]
                %265 = vst [vmem:[%s263] sm:$0xff] %v264
                %v266 = vld [vmem:[%s262 + $0x24] sm:$0xff]
                %267 = vst [vmem:[%s263 + $0xc] sm:$0xff] %v266
                %v268 = vld [vmem:[%s262 + $0x48] sm:$0xff]
                %269 = vst [vmem:[%s263 + $0x18] sm:$0xff] %v268
                %v270 = vld [vmem:[%s262 + $0x6c] sm:$0xff]
                %271 = vst [vmem:[%s263 + $0x24] sm:$0xff] %v270
              $region45: #{custom_resnet_forward.16} parent=39 // loop_footer
                %s261 = sadd.s32 1, %s257
              $region46: #{custom_resnet_forward.16} parent=39 // loop_footer_branch
                %256 = sbr.rel target = $region42
              $region47: #{custom_resnet_forward.16} parent=39 // loop_exit
                _
              %s273 = ssub.s32 16, 1
              loop: start=0, step=1, limit=1
              $region48: #{custom_resnet_forward.16} parent=39 // loop_pre_header
                _
              $region49: #{custom_resnet_forward.16} parent=39 // loop_header
                %s275 = sphi 0, %s279
                %p276 = scmp.ge.s32.totalorder %s275, 1
                %s280 = sphi %s254, %s254
                %s281 = sphi %s255, %s255
              $region50: #{custom_resnet_forward.16} parent=39 // loop_header_branch
                %278 = sbr.rel (%p276) target = $region54
              $region51: #{custom_resnet_forward.16} parent=39 // loop_body
                %v282 = vld [vmem:[%s280] sm:%s273]
                %283 = vst [vmem:[%s281] sm:%s273] %v282
                %v284 = vld [vmem:[%s280 + $0x24] sm:%s273]
                %285 = vst [vmem:[%s281 + $0xc] sm:%s273] %v284
                %v286 = vld [vmem:[%s280 + $0x48] sm:%s273]
                %287 = vst [vmem:[%s281 + $0x18] sm:%s273] %v286
                %v288 = vld [vmem:[%s280 + $0x6c] sm:%s273]
                %289 = vst [vmem:[%s281 + $0x24] sm:%s273] %v288
              $region52: #{custom_resnet_forward.16} parent=39 // loop_footer
                %s279 = sadd.s32 1, %s275
              $region53: #{custom_resnet_forward.16} parent=39 // loop_footer_branch
                %274 = sbr.rel target = $region49
              $region54: #{custom_resnet_forward.16} parent=39 // loop_exit
                _
            $region40: #{custom_resnet_forward.16} parent=35 // pred_fallthru
              _
          $region36: #{custom_resnet_forward.16} parent=31 // pred_fallthru
            _
          %290 = vnop
        $region32: #{custom_resnet_forward.16} parent=27 // pred_fallthru
          _
        // Predicated region
        $region55: #{custom_resnet_forward.16} parent=27 // pred_check
          %p291 = pneg %p80
        $region56: #{custom_resnet_forward.16} parent=27 // pred_check_branch
          %293 = sbr.rel (%p291) target = $region58
        $region57: #{custom_resnet_forward.16} parent=27 // pred_region
          %s294 = smul.u32 48, %s20
          %p295 = scmp.lt.s32.totalorder %s294, 143
          %s296 = scalar_select %p295, %s294, 143
          %p297 = scmp.lt.s32.totalorder %s19, 0
          %s298 = scalar_select %p297, %s19, 0
          %s299 = sadd.s32 %s298, %s296
          %s300 = smul.addr %s299, 4
          %s301 = scalar_lea.vmem %s1, %s300
          %s302 = smul.u32 48, %s20
        $region58: #{custom_resnet_forward.16} parent=27 // pred_fallthru
          _
      $region28: #{custom_resnet_forward.16} parent=5 // pred_fallthru
        _
      %p303 = scmp.le.s32.totalorder 1, %s11
      %p304 = scmp.lt.s32.totalorder %s11, 4
      %p305 = pnand %p303, %p304
      %p306 = pneg %p305
      // Predicated region
      $region59: #{custom_resnet_forward.16} parent=5 // pred_check
        _
      $region60: #{custom_resnet_forward.16} parent=5 // pred_check_branch
        %308 = sbr.rel (%p305) target = $region62
      $region61: #{custom_resnet_forward.16} parent=5 // pred_region
        %s309 = ssub.s32 %s11, 1
        %s310 = sand.u32 %s45, 1
        %s311 = sand.u32 %s45, 1
        %s312 = smul.addr %s311, 48
        %s313 = scalar_lea.vmem [#allocation3], %s312
        // Predicated region
        $region63: #{custom_resnet_forward.16} parent=61 // pred_check
          %p314 = pneg %p58
        $region64: #{custom_resnet_forward.16} parent=61 // pred_check_branch
          %316 = sbr.rel (%p314) target = $region66
        $region65: #{custom_resnet_forward.16} parent=61 // pred_region
          _
        $region66: #{custom_resnet_forward.16} parent=61 // pred_fallthru
          _
        %s317 = sand.u32 %s45, 1
        %s318 = sand.u32 %s45, 1
        %s319 = smul.addr %s318, 48
        %s320 = scalar_lea.vmem [#allocation3], %s319
        %p321 = pneg %p58
        %p322 = pneg %p55
        %s323 = smul.u32 48, %s23
        %p324 = scmp.lt.s32.totalorder %s323, 143
        %s325 = scalar_select %p324, %s323, 143
        %p326 = scmp.lt.s32.totalorder %s22, 0
        %s327 = scalar_select %p326, %s22, 0
        %s328 = sadd.s32 %s327, %s325
        %s329 = smul.addr %s328, 4
        %s330 = scalar_lea.vmem %s1, %s329
        %p331 = pneg %p86
        %p332 = pneg %p83
        %p333 = scmp.lt.s32.totalorder %s22, 0
        %s334 = scalar_select %p333, %s22, 0
        %s335 = scalar_lea.vmem %s2, %s334
        %p336 = pneg %p112
        %p337 = pneg %p109
        %p338 = scmp.lt.s32.totalorder %s22, 0
        %s339 = scalar_select %p338, %s22, 0
        %s340 = scalar_lea.vmem %s3, %s339
        %p341 = pneg %p138
        %p342 = pneg %p135
        %s343 = smul.u32 4, %s21
        %p344 = scmp.lt.s32.totalorder %s343, 3
        %s345 = scalar_select %p344, %s343, 3
        %p346 = scmp.lt.s32.totalorder %s22, 0
        %s347 = scalar_select %p346, %s22, 0
        %s348 = sadd.s32 %s347, %s345
        %s349 = smul.addr %s348, 8
        %s350 = scalar_lea.vmem %s4, %s349
        %p351 = pneg %p166
        %p352 = pneg %p163
        %p353 = pneg %p194
        %p354 = pneg %p191
        %s355 = smul.u32 4, %s21
        %p356 = scmp.lt.s32.totalorder %s355, 3
        %s357 = scalar_select %p356, %s355, 3
        %p358 = scmp.lt.s32.totalorder %s22, 0
        %s359 = scalar_select %p358, %s22, 0
        %s360 = sadd.s32 %s359, %s357
        %s361 = smul.addr %s360, 8
        %s362 = scalar_lea.vmem %s5, %s361
        %s363 = smul.u32 4, %s21
        %s364 = smul.u32 3, %s23
        %s365 = smul.u32 48, %s23
        %p366 = scmp.lt.s32.totalorder %s365, 143
        %s367 = scalar_select %p366, %s365, 143
        %p368 = scmp.lt.s32.totalorder %s22, 0
        %s369 = scalar_select %p368, %s22, 0
        %s370 = sadd.s32 %s369, %s367
        %s371 = smul.addr %s370, 4
        %s372 = scalar_lea.vmem %s1, %s371
        %s373 = smul.u32 48, %s23
        %p374 = scmp.lt.s32.totalorder %s22, 0
        %s375 = scalar_select %p374, %s22, 0
        %s376 = scalar_lea.vmem %s2, %s375
        %p377 = scmp.lt.s32.totalorder %s22, 0
        %s378 = scalar_select %p377, %s22, 0
        %s379 = scalar_lea.vmem %s3, %s378
        %s380 = smul.u32 4, %s21
        %p381 = scmp.lt.s32.totalorder %s380, 3
        %s382 = scalar_select %p381, %s380, 3
        %p383 = scmp.lt.s32.totalorder %s22, 0
        %s384 = scalar_select %p383, %s22, 0
        %s385 = sadd.s32 %s384, %s382
        %s386 = smul.addr %s385, 8
        %s387 = scalar_lea.vmem %s4, %s386
        %s388 = smul.u32 4, %s21
        %s389 = smul.u32 4, %s21
        %p390 = scmp.lt.s32.totalorder %s389, 3
        %s391 = scalar_select %p390, %s389, 3
        %p392 = scmp.lt.s32.totalorder %s22, 0
        %s393 = scalar_select %p392, %s22, 0
        %s394 = sadd.s32 %s393, %s391
        %s395 = smul.addr %s394, 8
        %s396 = scalar_lea.vmem %s5, %s395
        %s397 = smul.u32 4, %s21
        %p399 = scmp.eq.s32.totalorder %s23, 0
        // Predicated region
        $region67: #{custom_resnet_forward.16} parent=61 // pred_check
          %p400 = pneg %p399
        $region68: #{custom_resnet_forward.16} parent=61 // pred_check_branch
          %402 = sbr.rel (%p400) target = $region70
        $region69: #{custom_resnet_forward.16} parent=61 // pred_region
          %403 = vst [vmem:[#allocation2] sm:$0xff] 0.0
          %404 = vst [vmem:[#allocation2 + $0x8] sm:$0xff] 0.0
          %405 = vst [vmem:[#allocation2 + $0x10] sm:$0xff] 0.0
          %406 = vst [vmem:[#allocation2 + $0x18] sm:$0xff] 0.0
        $region70: #{custom_resnet_forward.16} parent=61 // pred_fallthru
          _
        %v407 = vld [vmem:[#allocation2] sm:$0xff]
        %v408 = vld [vmem:[#allocation2 + $0x8] sm:$0xff]
        %v409 = vld [vmem:[#allocation2 + $0x10] sm:$0xff]
        %v410 = vld [vmem:[#allocation2 + $0x18] sm:$0xff]
        %v411 = vld [vmem:[%s313] sm:$0xff]
        %v412 = vld [vmem:[%s313 + $0x8] sm:$0xf]
        %v413 = vld [vmem:[%s313 + $0xc] sm:$0xff]
        %v414 = vld [vmem:[%s313 + $0x14] sm:$0xf]
        %v415 = vld [vmem:[%s313 + $0x18] sm:$0xff]
        %v416 = vld [vmem:[%s313 + $0x20] sm:$0xf]
        %v417 = vld [vmem:[%s313 + $0x24] sm:$0xff]
        %v418 = vld [vmem:[%s313 + $0x2c] sm:$0xf]
        %v419 = vld [vmem:[%s372] sm:$0xf]
        %v420 = vld [vmem:[%s372 + $0x4] sm:$0xf]
        %v421 = vld [vmem:[%s372 + $0x8] sm:$0xf]
        %v422 = vld [vmem:[%s372 + $0xc] sm:$0xf]
        %v423 = vld [vmem:[%s372 + $0x10] sm:$0xf]
        %v424 = vld [vmem:[%s372 + $0x14] sm:$0xf]
        %v425 = vld [vmem:[%s372 + $0x18] sm:$0xf]
        %v426 = vld [vmem:[%s372 + $0x1c] sm:$0xf]
        %v427 = vld [vmem:[%s372 + $0x20] sm:$0xf]
        %v428 = vld [vmem:[%s372 + $0x24] sm:$0xf]
        %v429 = vld [vmem:[%s372 + $0x28] sm:$0xf]
        %v430 = vld [vmem:[%s372 + $0x2c] sm:$0xf]
        %v431 = vld [vmem:[%s372 + $0x30] sm:$0xf]
        %v432 = vld [vmem:[%s372 + $0x34] sm:$0xf]
        %v433 = vld [vmem:[%s372 + $0x38] sm:$0xf]
        %v434 = vld [vmem:[%s372 + $0x3c] sm:$0xf]
        %v435 = vld [vmem:[%s372 + $0x40] sm:$0xf]
        %v436 = vld [vmem:[%s372 + $0x44] sm:$0xf]
        %v437 = vld [vmem:[%s372 + $0x48] sm:$0xf]
        %v438 = vld [vmem:[%s372 + $0x4c] sm:$0xf]
        %v439 = vld [vmem:[%s372 + $0x50] sm:$0xf]
        %v440 = vld [vmem:[%s372 + $0x54] sm:$0xf]
        %v441 = vld [vmem:[%s372 + $0x58] sm:$0xf]
        %v442 = vld [vmem:[%s372 + $0x5c] sm:$0xf]
        %v443 = vld [vmem:[%s372 + $0x60] sm:$0xf]
        %v444 = vld [vmem:[%s372 + $0x64] sm:$0xf]
        %v445 = vld [vmem:[%s372 + $0x68] sm:$0xf]
        %v446 = vld [vmem:[%s372 + $0x6c] sm:$0xf]
        %v447 = vld [vmem:[%s372 + $0x70] sm:$0xf]
        %v448 = vld [vmem:[%s372 + $0x74] sm:$0xf]
        %v449 = vld [vmem:[%s372 + $0x78] sm:$0xf]
        %v450 = vld [vmem:[%s372 + $0x7c] sm:$0xf]
        %v451 = vld [vmem:[%s372 + $0x80] sm:$0xf]
        %v452 = vld [vmem:[%s372 + $0x84] sm:$0xf]
        %v453 = vld [vmem:[%s372 + $0x88] sm:$0xf]
        %v454 = vld [vmem:[%s372 + $0x8c] sm:$0xf]
        %v455 = vld [vmem:[%s372 + $0x90] sm:$0xf]
        %v456 = vld [vmem:[%s372 + $0x94] sm:$0xf]
        %v457 = vld [vmem:[%s372 + $0x98] sm:$0xf]
        %v458 = vld [vmem:[%s372 + $0x9c] sm:$0xf]
        %v459 = vld [vmem:[%s372 + $0xa0] sm:$0xf]
        %v460 = vld [vmem:[%s372 + $0xa4] sm:$0xf]
        %v461 = vld [vmem:[%s372 + $0xa8] sm:$0xf]
        %v462 = vld [vmem:[%s372 + $0xac] sm:$0xf]
        %v463 = vld [vmem:[%s372 + $0xb0] sm:$0xf]
        %v464 = vld [vmem:[%s372 + $0xb4] sm:$0xf]
        %v465 = vld [vmem:[%s372 + $0xb8] sm:$0xf]
        %v466 = vld [vmem:[%s372 + $0xbc] sm:$0xf]
        %v475 = vunpack.c.l.b16 %v411
        %v476 = vunpack.c.h.b16 %v411
        %v477 = vunpack.c.l.b16 %v412
        %v478 = vunpack.c.l.b16 %v413
        %v479 = vunpack.c.h.b16 %v413
        %v480 = vunpack.c.l.b16 %v414
        %v481 = vunpack.c.l.b16 %v415
        %v482 = vunpack.c.h.b16 %v415
        %v483 = vunpack.c.l.b16 %v416
        %v484 = vunpack.c.l.b16 %v417
        %v485 = vunpack.c.h.b16 %v417
        %v486 = vunpack.c.l.b16 %v418
        %v487 = vpack.c.b16 %v478, %v475
        %v488 = vpack.c.b16 %v479, %v476
        %v489 = vpack.c.b16 %v480, %v477
        %v490 = vpack.c.b16 %v484, %v481
        %v491 = vpack.c.b16 %v485, %v482
        %v492 = vpack.c.b16 %v486, %v483
        %v547 = vunpack.c.l.b16 %v419
        %v548 = vunpack.c.l.b16 %v420
        %v549 = vunpack.c.l.b16 %v421
        %v550 = vunpack.c.l.b16 %v422
        %v551 = vunpack.c.l.b16 %v423
        %v552 = vunpack.c.l.b16 %v424
        %v553 = vunpack.c.l.b16 %v425
        %v554 = vunpack.c.l.b16 %v426
        %v555 = vunpack.c.l.b16 %v427
        %v556 = vunpack.c.l.b16 %v428
        %v557 = vunpack.c.l.b16 %v429
        %v558 = vunpack.c.l.b16 %v430
        %v559 = vunpack.c.l.b16 %v431
        %v560 = vunpack.c.l.b16 %v432
        %v561 = vunpack.c.l.b16 %v433
        %v562 = vunpack.c.l.b16 %v434
        %v563 = vunpack.c.l.b16 %v435
        %v564 = vunpack.c.l.b16 %v436
        %v565 = vunpack.c.l.b16 %v437
        %v566 = vunpack.c.l.b16 %v438
        %v567 = vunpack.c.l.b16 %v439
        %v568 = vunpack.c.l.b16 %v440
        %v569 = vunpack.c.l.b16 %v441
        %v570 = vunpack.c.l.b16 %v442
        %v571 = vunpack.c.l.b16 %v443
        %v572 = vunpack.c.l.b16 %v444
        %v573 = vunpack.c.l.b16 %v445
        %v574 = vunpack.c.l.b16 %v446
        %v575 = vunpack.c.l.b16 %v447
        %v576 = vunpack.c.l.b16 %v448
        %v577 = vunpack.c.l.b16 %v449
        %v578 = vunpack.c.l.b16 %v450
        %v579 = vunpack.c.l.b16 %v451
        %v580 = vunpack.c.l.b16 %v452
        %v581 = vunpack.c.l.b16 %v453
        %v582 = vunpack.c.l.b16 %v454
        %v583 = vunpack.c.l.b16 %v455
        %v584 = vunpack.c.l.b16 %v456
        %v585 = vunpack.c.l.b16 %v457
        %v586 = vunpack.c.l.b16 %v458
        %v587 = vunpack.c.l.b16 %v459
        %v588 = vunpack.c.l.b16 %v460
        %v589 = vunpack.c.l.b16 %v461
        %v590 = vunpack.c.l.b16 %v462
        %v591 = vunpack.c.l.b16 %v463
        %v592 = vunpack.c.l.b16 %v464
        %v593 = vunpack.c.l.b16 %v465
        %v594 = vunpack.c.l.b16 %v466
        %v595 = vpack.c.b16 %v548, %v547
        %v596 = vpack.c.b16 %v550, %v549
        %v597 = vpack.c.b16 %v552, %v551
        %v598 = vpack.c.b16 %v554, %v553
        %v599 = vpack.c.b16 %v556, %v555
        %v600 = vpack.c.b16 %v558, %v557
        %v601 = vpack.c.b16 %v560, %v559
        %v602 = vpack.c.b16 %v562, %v561
        %v603 = vpack.c.b16 %v564, %v563
        %v604 = vpack.c.b16 %v566, %v565
        %v605 = vpack.c.b16 %v568, %v567
        %v606 = vpack.c.b16 %v570, %v569
        %v607 = vpack.c.b16 %v572, %v571
        %v608 = vpack.c.b16 %v574, %v573
        %v609 = vpack.c.b16 %v576, %v575
        %v610 = vpack.c.b16 %v578, %v577
        %v611 = vpack.c.b16 %v580, %v579
        %v612 = vpack.c.b16 %v582, %v581
        %v613 = vpack.c.b16 %v584, %v583
        %v614 = vpack.c.b16 %v586, %v585
        %v615 = vpack.c.b16 %v588, %v587
        %v616 = vpack.c.b16 %v590, %v589
        %v617 = vpack.c.b16 %v592, %v591
        %v618 = vpack.c.b16 %v594, %v593
        %643 = vmatprep.subr.bf16.mxu0 0
        %644 = vmatpush1.bf16.msra.mxu0 %v602
        %645 = vmatprep.subr.bf16.mxu0 0
        %646 = vmatpush1.bf16.msra.mxu0 %v601
        %647 = vmatprep.subr.bf16.mxu0 0
        %648 = vmatpush1.bf16.msra.mxu0 %v600
        %649 = vmatprep.subr.bf16.mxu0 0
        %650 = vmatpush1.bf16.msra.mxu0 %v599
        %651 = vmatprep.subr.bf16.mxu0 0
        %652 = vmatpush1.bf16.msra.mxu0 %v598
        %653 = vmatprep.subr.bf16.mxu0 0
        %654 = vmatpush1.bf16.msra.mxu0 %v597
        %655 = vmatprep.subr.bf16.mxu0 0
        %656 = vmatpush1.bf16.msra.mxu0 %v596
        %657 = vmatprep.subr.bf16.mxu0 0
        %658 = vmatpush1.bf16.msra.mxu0 %v595
        %659 = vmatprep.subr.bf16.mxu0 0
        %660 = vmatpush2.bf16.msra.mxu0 %v610
        %661 = vmatprep.subr.bf16.mxu0 0
        %662 = vmatpush2.bf16.msra.mxu0 %v609
        %663 = vmatprep.subr.bf16.mxu0 0
        %664 = vmatpush2.bf16.msra.mxu0 %v608
        %665 = vmatprep.subr.bf16.mxu0 0
        %666 = vmatpush2.bf16.msra.mxu0 %v607
        %667 = vmatprep.subr.bf16.mxu0 0
        %668 = vmatpush2.bf16.msra.mxu0 %v606
        %669 = vmatprep.subr.bf16.mxu0 0
        %670 = vmatpush2.bf16.msra.mxu0 %v605
        %671 = vmatprep.subr.bf16.mxu0 0
        %672 = vmatpush2.bf16.msra.mxu0 %v604
        %673 = vmatprep.subr.bf16.mxu0 0
        %674 = vmatpush2.bf16.msra.mxu0 %v603
        %675 = vmatprep.mubr.bf16.mxu0 %v488
        %676 = vmatmul.mubr.bf16.gmra.mxu0 %v487
        %v677 = vpop.f32.mrf.mxu0
        %v678 = vadd.f32 0.0, %v677
        %v679 = vpop.f32.mrf.mxu0
        %v680 = vpop.f32.mrf.mxu0
        %v681 = vadd.f32 0.0, %v680
        %v682 = vpop.f32.mrf.mxu0
        %683 = vmatprep.mubr.bf16.mxu0 %v491
        %684 = vmatmul.mubr.bf16.gmra.mxu0 %v490
        %v685 = vpop.f32.mrf.mxu0
        %v686 = vadd.f32 0.0, %v685
        %v687 = vpop.f32.mrf.mxu0
        %v688 = vpop.f32.mrf.mxu0
        %v689 = vadd.f32 0.0, %v688
        %v690 = vpop.f32.mrf.mxu0
        %691 = vdwg.mxu0
        %692 = vmatprep.subr.bf16.mxu0 0
        %693 = vmatpush1.bf16.msra.mxu0 %v618
        %694 = vmatprep.subr.bf16.mxu0 0
        %695 = vmatpush1.bf16.msra.mxu0 %v617
        %696 = vmatprep.subr.bf16.mxu0 0
        %697 = vmatpush1.bf16.msra.mxu0 %v616
        %698 = vmatprep.subr.bf16.mxu0 0
        %699 = vmatpush1.bf16.msra.mxu0 %v615
        %700 = vmatprep.subr.bf16.mxu0 0
        %701 = vmatpush1.bf16.msra.mxu0 %v614
        %702 = vmatprep.subr.bf16.mxu0 0
        %703 = vmatpush1.bf16.msra.mxu0 %v613
        %704 = vmatprep.subr.bf16.mxu0 0
        %705 = vmatpush1.bf16.msra.mxu0 %v612
        %706 = vmatprep.subr.bf16.mxu0 0
        %707 = vmatpush1.bf16.msra.mxu0 %v611
        %708 = vmatprep.subr.bf16.mxu0 0
        %709 = vmatpush2.bf16.msra.mxu0 0
        %710 = vmatprep.subr.bf16.mxu0 0
        %711 = vmatpush2.bf16.msra.mxu0 0
        %712 = vmatprep.subr.bf16.mxu0 0
        %713 = vmatpush2.bf16.msra.mxu0 0
        %714 = vmatprep.subr.bf16.mxu0 0
        %715 = vmatpush2.bf16.msra.mxu0 0
        %716 = vmatprep.subr.bf16.mxu0 0
        %717 = vmatpush2.bf16.msra.mxu0 0
        %718 = vmatprep.subr.bf16.mxu0 0
        %719 = vmatpush2.bf16.msra.mxu0 0
        %720 = vmatprep.subr.bf16.mxu0 0
        %721 = vmatpush2.bf16.msra.mxu0 0
        %722 = vmatprep.subr.bf16.mxu0 0
        %723 = vmatpush2.bf16.msra.mxu0 0
        %724 = vmatprep.mubr.bf16.mxu0 0
        %725 = vmatmul.mubr.bf16.gmra.mxu0 %v489
        %v726 = vpop.f32.mrf.mxu0
        %v727 = vadd.f32 %v678, %v726
        %v728 = vpop.f32.mrf.mxu0
        %v729 = vpop.f32.mrf.mxu0
        %v730 = vadd.f32 %v681, %v729
        %v731 = vpop.f32.mrf.mxu0
        %732 = vmatprep.mubr.bf16.mxu0 0
        %733 = vmatmul.mubr.bf16.gmra.mxu0 %v492
        %v734 = vpop.f32.mrf.mxu0
        %v735 = vadd.f32 %v686, %v734
        %v736 = vpop.f32.mrf.mxu0
        %v737 = vpop.f32.mrf.mxu0
        %v738 = vadd.f32 %v689, %v737
        %v739 = vpop.f32.mrf.mxu0
        %740 = vdwg.mxu0
        %v741 = vadd.f32 %v407, %v727
        %v742 = vadd.f32 %v408, %v730
        %v743 = vadd.f32 %v409, %v735
        %v744 = vadd.f32 %v410, %v738
        %745 = vst [vmem:[#allocation2] sm:$0xff] %v741
        %746 = vst [vmem:[#allocation2 + $0x8] sm:$0xff] %v742
        %747 = vst [vmem:[#allocation2 + $0x10] sm:$0xff] %v743
        %748 = vst [vmem:[#allocation2 + $0x18] sm:$0xff] %v744
        %p749 = scmp.eq.s32.totalorder %s23, 2
        // Predicated region
        $region71: #{custom_resnet_forward.16} parent=61 // pred_check
          %p750 = pneg %p749
        $region72: #{custom_resnet_forward.16} parent=61 // pred_check_branch
          %752 = sbr.rel (%p750) target = $region74
        $region73: #{custom_resnet_forward.16} parent=61 // pred_region
          %v753 = vld [vmem:[#allocation2] sm:$0xff]
          %v754 = vld [vmem:[#allocation2 + $0x8] sm:$0xff]
          %v755 = vld [vmem:[#allocation2 + $0x10] sm:$0xff]
          %v756 = vld [vmem:[#allocation2 + $0x18] sm:$0xff]
          %v757 = vld [vmem:[%s376] sm:$0x1]
          %v759 = vlaneseq
          %v760 = vshrl.u32 %v759, 7
          %v761 = vsub.s32 0, %v760
          %v762 = vrot.slane %v757, %v761
          %v764 = vmul.f32 %v753, %v762
          %v765 = vmul.f32 %v754, %v762
          %v766 = vmul.f32 %v755, %v762
          %v767 = vmul.f32 %v756, %v762
          %v768 = vld [vmem:[%s379] sm:$0x1]
          %v770 = vlaneseq
          %v771 = vshrl.u32 %v770, 7
          %v772 = vsub.s32 0, %v771
          %v773 = vrot.slane %v768, %v772
          %v775 = vadd.f32 %v764, %v773
          %v776 = vadd.f32 %v765, %v773
          %v777 = vadd.f32 %v766, %v773
          %v778 = vadd.f32 %v767, %v773
          %v779 = vld [vmem:[%s387] sm:$0xff]
          %v780 = vld [vmem:[%s387 + $0x8] sm:$0xff]
          %v781 = vld [vmem:[%s387 + $0x10] sm:$0xff]
          %v782 = vld [vmem:[%s387 + $0x18] sm:$0xff]
          %v783 = vadd.f32 %v775, %v779
          %v784 = vadd.f32 %v776, %v780
          %v785 = vadd.f32 %v777, %v781
          %v786 = vadd.f32 %v778, %v782
          %v787 = vmax.f32 %v783, 0.0
          %v788 = vmax.f32 %v784, 0.0
          %v789 = vmax.f32 %v785, 0.0
          %v790 = vmax.f32 %v786, 0.0
          %791 = vst [vmem:[%s396] sm:$0xff] %v787
          %792 = vst [vmem:[%s396 + $0x8] sm:$0xff] %v788
          %793 = vst [vmem:[%s396 + $0x10] sm:$0xff] %v789
          %794 = vst [vmem:[%s396 + $0x18] sm:$0xff] %v790
        $region74: #{custom_resnet_forward.16} parent=61 // pred_fallthru
          _
        %s795 = smul.u32 4, %s21
        %p796 = scmp.lt.s32.totalorder %s795, 3
        %s797 = scalar_select %p796, %s795, 3
        %p798 = scmp.lt.s32.totalorder %s22, 0
        %s799 = scalar_select %p798, %s22, 0
        %s800 = sadd.s32 %s799, %s797
        %s801 = smul.addr %s800, 8
        %s802 = scalar_lea.vmem %s5, %s801
        // Predicated region
        $region75: #{custom_resnet_forward.16} parent=61 // pred_check
          %p803 = pneg %p191
        $region76: #{custom_resnet_forward.16} parent=61 // pred_check_branch
          %805 = sbr.rel (%p803) target = $region78
        $region77: #{custom_resnet_forward.16} parent=61 // pred_region
          %s806 = smul.u32 4, %s21
        $region78: #{custom_resnet_forward.16} parent=61 // pred_fallthru
          _
        // Predicated region
        $region79: #{custom_resnet_forward.16} parent=61 // pred_check
          %p807 = pneg %p191
        $region80: #{custom_resnet_forward.16} parent=61 // pred_check_branch
          %809 = sbr.rel (%p807) target = $region82
        $region81: #{custom_resnet_forward.16} parent=61 // pred_region
          %s810 = smul.u32 4, %s21
          %p811 = scmp.lt.s32.totalorder %s810, 3
          %s812 = scalar_select %p811, %s810, 3
          %p813 = scmp.lt.s32.totalorder %s22, 0
          %s814 = scalar_select %p813, %s22, 0
          %s815 = sadd.s32 %s814, %s812
          %s816 = smul.addr %s815, 8
          %s817 = scalar_lea.vmem %s5, %s816
        $region82: #{custom_resnet_forward.16} parent=61 // pred_fallthru
          _
      $region62: #{custom_resnet_forward.16} parent=5 // pred_fallthru
        _
      %p818 = scmp.le.s32.totalorder 2, %s11
      // Predicated region
      $region83: #{custom_resnet_forward.16} parent=5 // pred_check
        %p819 = pneg %p818
      $region84: #{custom_resnet_forward.16} parent=5 // pred_check_branch
        %821 = sbr.rel (%p819) target = $region86
      $region85: #{custom_resnet_forward.16} parent=5 // pred_region
        %s822 = ssub.s32 %s11, 2
      $region86: #{custom_resnet_forward.16} parent=5 // pred_fallthru
        _
    $region6: #{custom_resnet_forward.16} parent=1 // loop_footer
      %s15 = sadd.s32 1, %s11
    $region7: #{custom_resnet_forward.16} parent=1 // loop_footer_branch
      %10 = sbr.rel target = $region3
    $region8: #{custom_resnet_forward.16} parent=1 // loop_exit
      _

// kernel: custom_resnet_forward.18
$region0: #{custom_resnet_forward.18}
  #allocation0 [shape = 'u32[]', space=smem, size = 0x4, offset = 0x4, fixed_abs, tag = 'smem constant byte address 0x4 - core index']
  #allocation1 [shape = 'u32[144,128]{1,0:T(1,128)}', space=vmem, size = 0x12000, scoped, tag = 'internal scratch']
  #allocation2 [shape = 'f32[8,256]{1,0:T(8,128)}', space=vmem, size = 0x2000, scoped, tag = 'scratch operand']
  %s0 = inlined_call_operand.vmem [shape: bf16[8,1152], index: 0, kind: input, shape index: {}]
  %s1 = inlined_call_operand.vmem [shape: bf16[1152,256], index: 1, kind: input, shape index: {}]
  %s2 = inlined_call_operand.vmem [shape: f32[1,256], index: 2, kind: input, shape index: {}]
  %s3 = inlined_call_operand.vmem [shape: f32[1,256], index: 3, kind: input, shape index: {}]
  %s4 = inlined_call_operand.vmem [shape: f32[8,256], index: 4, kind: output, shape index: {}]
  %s5 = sld [smem:[#allocation0]]
  $region57: #{custom_resnet_forward.18} parent=0
    _
  %s7 = ssub.s32 1, %s5
  %s8 = scalar_select 0, %s7, %s5
  loop: start=0, step=1, limit=5
  $region2: #{custom_resnet_forward.18} parent=0 // loop_pre_header
    _
  $region3: #{custom_resnet_forward.18} parent=0 // loop_header
    %s10 = sphi 0, %s14
    %p11 = scmp.ge.s32.totalorder %s10, 5
    %s17 = sphi 0, %s36
    %s18 = sphi 0, %s32
    %s19 = sphi 0, %s28
    %s20 = sphi 0, %s17
    %s21 = sphi 0, %s18
    %s22 = sphi 0, %s19
    %s23 = sphi 0, %s20
    %s24 = sphi 0, %s21
    %s25 = sphi 0, %s22
    %s41 = sphi 0, %s43
    %s44 = sphi 0, %s41
    %s45 = sphi 0, %s44
    %s61 = sphi 0, %s45
    %s69 = sphi 0, %s71
    %s72 = sphi 0, %s69
    %s73 = sphi 0, %s72
    %s89 = sphi 0, %s73
    %s95 = sphi 0, %s97
    %s98 = sphi 0, %s95
    %s99 = sphi 0, %s98
    %s115 = sphi 0, %s99
    %s121 = sphi 0, %s123
    %s124 = sphi 0, %s121
    %s125 = sphi 0, %s124
    %s141 = sphi 0, %s125
    %s149 = sphi 0, %s151
    %s152 = sphi 0, %s149
    %s153 = sphi 0, %s152
    %s169 = sphi 0, %s153
  $region4: #{custom_resnet_forward.18} parent=0 // loop_header_branch
    %13 = sbr.rel (%p11) target = $region8
  $region5: #{custom_resnet_forward.18} parent=0 // loop_body
    %s15 = ssub.s32 %s10, 1
    %s16 = ssub.s32 %s10, 2
    %s26 = sadd.s32 1, %s19
    %p27 = scmp.ge.s32.totalorder %s26, 3
    %s28 = scalar_select %p27, 0, %s26
    %s29 = sadd.s32 1, %s18
    %s30 = scalar_select %p27, %s29, %s18
    %p31 = scmp.ge.s32.totalorder %s30, 1
    %s32 = scalar_select %p31, 0, %s30
    %s33 = sadd.s32 1, %s17
    %s34 = scalar_select %p31, %s33, %s17
    %p35 = scmp.ge.s32.totalorder %s34, 1
    %s36 = scalar_select %p35, 0, %s34
    %s37 = ssub.s32 %s17, %s36
    %s38 = ssub.s32 %s19, %s28
    %s39 = sor.u32 %s37, %s38
    %p40 = scmp.eq.s32.totalorder %s39, 0
    %s42 = sadd.s32 %s41, 1
    %s43 = scalar_select %p40, %s41, %s42
    %p46 = pneg %p40
    %p47 = scmp.eq.s32.totalorder %s10, 2
    %p48 = por %p46, %p47
    %p49 = scmp.ne.s32.totalorder %s41, %s44
    %p50 = scmp.eq.s32.totalorder %s10, 0
    %p51 = por %p49, %p50
    %p52 = scmp.ne.s32.totalorder %s41, %s44
    %p53 = scmp.eq.s32.totalorder %s15, 2
    %p54 = por %p52, %p53
    %p55 = scmp.ne.s32.totalorder %s44, %s45
    %p56 = scmp.eq.s32.totalorder %s15, 0
    %p57 = por %p55, %p56
    %p58 = scmp.ne.s32.totalorder %s44, %s45
    %p59 = scmp.eq.s32.totalorder %s16, 2
    %p60 = por %p58, %p59
    %p62 = scmp.ne.s32.totalorder %s45, %s61
    %p63 = scmp.eq.s32.totalorder %s16, 0
    %p64 = por %p62, %p63
    %s65 = ssub.s32 %s19, %s28
    %s66 = ssub.s32 %s18, %s32
    %s67 = sor.u32 %s65, %s66
    %p68 = scmp.eq.s32.totalorder %s67, 0
    %s70 = sadd.s32 %s69, 1
    %s71 = scalar_select %p68, %s69, %s70
    %p74 = pneg %p68
    %p75 = scmp.eq.s32.totalorder %s10, 2
    %p76 = por %p74, %p75
    %p77 = scmp.ne.s32.totalorder %s69, %s72
    %p78 = scmp.eq.s32.totalorder %s10, 0
    %p79 = por %p77, %p78
    %p80 = scmp.ne.s32.totalorder %s69, %s72
    %p81 = scmp.eq.s32.totalorder %s15, 2
    %p82 = por %p80, %p81
    %p83 = scmp.ne.s32.totalorder %s72, %s73
    %p84 = scmp.eq.s32.totalorder %s15, 0
    %p85 = por %p83, %p84
    %p86 = scmp.ne.s32.totalorder %s72, %s73
    %p87 = scmp.eq.s32.totalorder %s16, 2
    %p88 = por %p86, %p87
    %p90 = scmp.ne.s32.totalorder %s73, %s89
    %p91 = scmp.eq.s32.totalorder %s16, 0
    %p92 = por %p90, %p91
    %s93 = ssub.s32 %s18, %s32
    %p94 = scmp.eq.s32.totalorder %s93, 0
    %s96 = sadd.s32 %s95, 1
    %s97 = scalar_select %p94, %s95, %s96
    %p100 = pneg %p94
    %p101 = scmp.eq.s32.totalorder %s10, 2
    %p102 = por %p100, %p101
    %p103 = scmp.ne.s32.totalorder %s95, %s98
    %p104 = scmp.eq.s32.totalorder %s10, 0
    %p105 = por %p103, %p104
    %p106 = scmp.ne.s32.totalorder %s95, %s98
    %p107 = scmp.eq.s32.totalorder %s15, 2
    %p108 = por %p106, %p107
    %p109 = scmp.ne.s32.totalorder %s98, %s99
    %p110 = scmp.eq.s32.totalorder %s15, 0
    %p111 = por %p109, %p110
    %p112 = scmp.ne.s32.totalorder %s98, %s99
    %p113 = scmp.eq.s32.totalorder %s16, 2
    %p114 = por %p112, %p113
    %p116 = scmp.ne.s32.totalorder %s99, %s115
    %p117 = scmp.eq.s32.totalorder %s16, 0
    %p118 = por %p116, %p117
    %s119 = ssub.s32 %s18, %s32
    %p120 = scmp.eq.s32.totalorder %s119, 0
    %s122 = sadd.s32 %s121, 1
    %s123 = scalar_select %p120, %s121, %s122
    %p126 = pneg %p120
    %p127 = scmp.eq.s32.totalorder %s10, 2
    %p128 = por %p126, %p127
    %p129 = scmp.ne.s32.totalorder %s121, %s124
    %p130 = scmp.eq.s32.totalorder %s10, 0
    %p131 = por %p129, %p130
    %p132 = scmp.ne.s32.totalorder %s121, %s124
    %p133 = scmp.eq.s32.totalorder %s15, 2
    %p134 = por %p132, %p133
    %p135 = scmp.ne.s32.totalorder %s124, %s125
    %p136 = scmp.eq.s32.totalorder %s15, 0
    %p137 = por %p135, %p136
    %p138 = scmp.ne.s32.totalorder %s124, %s125
    %p139 = scmp.eq.s32.totalorder %s16, 2
    %p140 = por %p138, %p139
    %p142 = scmp.ne.s32.totalorder %s125, %s141
    %p143 = scmp.eq.s32.totalorder %s16, 0
    %p144 = por %p142, %p143
    %s145 = ssub.s32 %s17, %s36
    %s146 = ssub.s32 %s18, %s32
    %s147 = sor.u32 %s145, %s146
    %p148 = scmp.eq.s32.totalorder %s147, 0
    %s150 = sadd.s32 %s149, 1
    %s151 = scalar_select %p148, %s149, %s150
    %p154 = pneg %p148
    %p155 = scmp.eq.s32.totalorder %s10, 2
    %p156 = por %p154, %p155
    %p157 = scmp.ne.s32.totalorder %s149, %s152
    %p158 = scmp.eq.s32.totalorder %s10, 0
    %p159 = por %p157, %p158
    %p160 = scmp.ne.s32.totalorder %s149, %s152
    %p161 = scmp.eq.s32.totalorder %s15, 2
    %p162 = por %p160, %p161
    %p163 = scmp.ne.s32.totalorder %s152, %s153
    %p164 = scmp.eq.s32.totalorder %s15, 0
    %p165 = por %p163, %p164
    %p166 = scmp.ne.s32.totalorder %s152, %s153
    %p167 = scmp.eq.s32.totalorder %s16, 2
    %p168 = por %p166, %p167
    %p170 = scmp.ne.s32.totalorder %s153, %s169
    %p171 = scmp.eq.s32.totalorder %s16, 0
    %p172 = por %p170, %p171
    %p173 = scmp.le.s32.totalorder 1, %s10
    %p174 = scmp.lt.s32.totalorder %s10, 4
    %p175 = pnand %p173, %p174
    %p176 = pneg %p175
    // Predicated region
    $region9: #{custom_resnet_forward.18} parent=5 // pred_check
      _
    $region10: #{custom_resnet_forward.18} parent=5 // pred_check_branch
      %178 = sbr.rel (%p175) target = $region12
    $region11: #{custom_resnet_forward.18} parent=5 // pred_region
      %s179 = ssub.s32 %s10, 1
      // Predicated region
      $region13: #{custom_resnet_forward.18} parent=11 // pred_check
        %p180 = pneg %p111
      $region14: #{custom_resnet_forward.18} parent=11 // pred_check_branch
        %182 = sbr.rel (%p180) target = $region16
      $region15: #{custom_resnet_forward.18} parent=11 // pred_region
        %s183 = smul.u32 2, %s21
        %p184 = scmp.lt.s32.totalorder %s183, 1
        %s185 = scalar_select %p184, %s183, 1
        %s186 = scalar_lea.vmem %s2, %s185
        %s187 = smul.u32 2, %s21
      $region16: #{custom_resnet_forward.18} parent=11 // pred_fallthru
        _
      // Predicated region
      $region17: #{custom_resnet_forward.18} parent=11 // pred_check
        %p188 = pneg %p137
      $region18: #{custom_resnet_forward.18} parent=11 // pred_check_branch
        %190 = sbr.rel (%p188) target = $region20
      $region19: #{custom_resnet_forward.18} parent=11 // pred_region
        %s191 = smul.u32 2, %s21
        %p192 = scmp.lt.s32.totalorder %s191, 1
        %s193 = scalar_select %p192, %s191, 1
        %s194 = scalar_lea.vmem %s3, %s193
        %s195 = smul.u32 2, %s21
      $region20: #{custom_resnet_forward.18} parent=11 // pred_fallthru
        _
    $region12: #{custom_resnet_forward.18} parent=5 // pred_fallthru
      _
    %p196 = scmp.lt.s32.totalorder %s10, 3
    // Predicated region
    $region21: #{custom_resnet_forward.18} parent=5 // pred_check
      %p197 = pneg %p196
    $region22: #{custom_resnet_forward.18} parent=5 // pred_check_branch
      %199 = sbr.rel (%p197) target = $region24
    $region23: #{custom_resnet_forward.18} parent=5 // pred_region
      // Predicated region
      $region25: #{custom_resnet_forward.18} parent=23 // pred_check
        %p200 = pneg %p51
      $region26: #{custom_resnet_forward.18} parent=23 // pred_check_branch
        %202 = sbr.rel (%p200) target = $region28
      $region27: #{custom_resnet_forward.18} parent=23 // pred_region
        %s203 = smul.u32 3, %s19
        %p204 = scmp.lt.s32.totalorder %s17, 0
        %s205 = scalar_select %p204, %s17, 0
        %p206 = scmp.lt.s32.totalorder %s203, 8
        %s207 = scalar_select %p206, %s203, 8
        %s208 = smul.addr %s205, 9
        %s209 = sadd.s32 %s207, %s208
        %s210 = smul.addr %s209, 4
        %s211 = scalar_lea.vmem %s0, %s210
        %s212 = smul.u32 3, %s19
      $region28: #{custom_resnet_forward.18} parent=23 // pred_fallthru
        _
      // Predicated region
      $region29: #{custom_resnet_forward.18} parent=23 // pred_check
        %p213 = pneg %p79
      $region30: #{custom_resnet_forward.18} parent=23 // pred_check_branch
        %215 = sbr.rel (%p213) target = $region32
      $region31: #{custom_resnet_forward.18} parent=23 // pred_region
        %s216 = smul.u32 48, %s19
        %s217 = smul.u32 2, %s18
        %p218 = scmp.lt.s32.totalorder %s216, 143
        %s219 = scalar_select %p218, %s216, 143
        %p220 = scmp.lt.s32.totalorder %s217, 1
        %s221 = scalar_select %p220, %s217, 1
        %s222 = smul.addr %s219, 2
        %s223 = sadd.s32 %s221, %s222
        %s224 = smul.addr %s223, 4
        %s225 = scalar_lea.vmem %s1, %s224
        %s226 = smul.u32 48, %s19
        %s227 = smul.u32 2, %s18
      $region32: #{custom_resnet_forward.18} parent=23 // pred_fallthru
        _
    $region24: #{custom_resnet_forward.18} parent=5 // pred_fallthru
      _
    %p228 = scmp.le.s32.totalorder 1, %s10
    %p229 = scmp.lt.s32.totalorder %s10, 4
    %p230 = pnand %p228, %p229
    %p231 = pneg %p230
    // Predicated region
    $region33: #{custom_resnet_forward.18} parent=5 // pred_check
      _
    $region34: #{custom_resnet_forward.18} parent=5 // pred_check_branch
      %233 = sbr.rel (%p230) target = $region36
    $region35: #{custom_resnet_forward.18} parent=5 // pred_region
      %s234 = ssub.s32 %s10, 1
      %s235 = smul.u32 3, %s22
      %p236 = scmp.lt.s32.totalorder %s20, 0
      %s237 = scalar_select %p236, %s20, 0
      %p238 = scmp.lt.s32.totalorder %s235, 8
      %s239 = scalar_select %p238, %s235, 8
      %s240 = smul.addr %s237, 9
      %s241 = sadd.s32 %s239, %s240
      %s242 = smul.addr %s241, 4
      %s243 = scalar_lea.vmem %s0, %s242
      %p244 = pneg %p57
      %p245 = pneg %p54
      %s246 = smul.u32 48, %s22
      %s247 = smul.u32 2, %s21
      %p248 = scmp.lt.s32.totalorder %s246, 143
      %s249 = scalar_select %p248, %s246, 143
      %p250 = scmp.lt.s32.totalorder %s247, 1
      %s251 = scalar_select %p250, %s247, 1
      %s252 = smul.addr %s249, 2
      %s253 = sadd.s32 %s251, %s252
      %s254 = smul.addr %s253, 4
      %s255 = scalar_lea.vmem %s1, %s254
      %p256 = pneg %p85
      %p257 = pneg %p82
      %s258 = smul.u32 2, %s21
      %p259 = scmp.lt.s32.totalorder %s258, 1
      %s260 = scalar_select %p259, %s258, 1
      %s261 = scalar_lea.vmem %s2, %s260
      %p262 = pneg %p111
      %p263 = pneg %p108
      %s264 = smul.u32 2, %s21
      %p265 = scmp.lt.s32.totalorder %s264, 1
      %s266 = scalar_select %p265, %s264, 1
      %s267 = scalar_lea.vmem %s3, %s266
      %p268 = pneg %p137
      %p269 = pneg %p134
      %p270 = pneg %p165
      %p271 = pneg %p162
      %s272 = smul.u32 2, %s21
      %p273 = scmp.lt.s32.totalorder %s20, 0
      %s274 = scalar_select %p273, %s20, 0
      %p275 = scmp.lt.s32.totalorder %s272, 1
      %s276 = scalar_select %p275, %s272, 1
      %s277 = smul.addr %s274, 2
      %s278 = sadd.s32 %s276, %s277
      %s279 = smul.addr %s278, 8
      %s280 = scalar_lea.vmem %s4, %s279
      %s281 = smul.u32 3, %s22
      %p282 = scmp.lt.s32.totalorder %s20, 0
      %s283 = scalar_select %p282, %s20, 0
      %p284 = scmp.lt.s32.totalorder %s281, 8
      %s285 = scalar_select %p284, %s281, 8
      %s286 = smul.addr %s283, 9
      %s287 = sadd.s32 %s285, %s286
      %s288 = smul.addr %s287, 4
      %s289 = scalar_lea.vmem %s0, %s288
      %s290 = smul.u32 3, %s22
      %s291 = smul.u32 48, %s22
      %s292 = smul.u32 2, %s21
      %p293 = scmp.lt.s32.totalorder %s291, 143
      %s294 = scalar_select %p293, %s291, 143
      %p295 = scmp.lt.s32.totalorder %s292, 1
      %s296 = scalar_select %p295, %s292, 1
      %s297 = smul.addr %s294, 2
      %s298 = sadd.s32 %s296, %s297
      %s299 = smul.addr %s298, 4
      %s300 = scalar_lea.vmem %s1, %s299
      %s301 = smul.u32 48, %s22
      %s302 = smul.u32 2, %s21
      %s303 = smul.u32 2, %s21
      %p304 = scmp.lt.s32.totalorder %s303, 1
      %s305 = scalar_select %p304, %s303, 1
      %s306 = scalar_lea.vmem %s2, %s305
      %s307 = smul.u32 2, %s21
      %s308 = smul.u32 2, %s21
      %p309 = scmp.lt.s32.totalorder %s308, 1
      %s310 = scalar_select %p309, %s308, 1
      %s311 = scalar_lea.vmem %s3, %s310
      %s312 = smul.u32 2, %s21
      %s313 = smul.u32 2, %s21
      %p314 = scmp.lt.s32.totalorder %s20, 0
      %s315 = scalar_select %p314, %s20, 0
      %p316 = scmp.lt.s32.totalorder %s313, 1
      %s317 = scalar_select %p316, %s313, 1
      %s318 = smul.addr %s315, 2
      %s319 = sadd.s32 %s317, %s318
      %s320 = smul.addr %s319, 8
      %s321 = scalar_lea.vmem %s4, %s320
      %s322 = smul.u32 2, %s21
      %p324 = scmp.eq.s32.totalorder %s22, 0
      // Predicated region
      $region37: #{custom_resnet_forward.18} parent=35 // pred_check
        %p325 = pneg %p324
      $region38: #{custom_resnet_forward.18} parent=35 // pred_check_branch
        %327 = sbr.rel (%p325) target = $region40
      $region39: #{custom_resnet_forward.18} parent=35 // pred_region
        %328 = vst [vmem:[#allocation2] sm:$0xff] 0.0
        %329 = vst [vmem:[#allocation2 + $0x8] sm:$0xff] 0.0
      $region40: #{custom_resnet_forward.18} parent=35 // pred_fallthru
        _
      %v330 = vld [vmem:[#allocation2] sm:$0xff]
      %v331 = vld [vmem:[#allocation2 + $0x8] sm:$0xff]
      %v332 = vld [vmem:[%s289] sm:$0xff]
      %v333 = vld [vmem:[%s289 + $0x8] sm:$0xf]
      %v334 = vld [vmem:[%s300] sm:$0xff]
      %v335 = vld [vmem:[%s300 + $0x8] sm:$0xff]
      %v336 = vld [vmem:[%s300 + $0x10] sm:$0xff]
      %v337 = vld [vmem:[%s300 + $0x18] sm:$0xff]
      %v338 = vld [vmem:[%s300 + $0x20] sm:$0xff]
      %v339 = vld [vmem:[%s300 + $0x28] sm:$0xff]
      %v340 = vld [vmem:[%s300 + $0x30] sm:$0xff]
      %v341 = vld [vmem:[%s300 + $0x38] sm:$0xff]
      %v342 = vld [vmem:[%s300 + $0x40] sm:$0xff]
      %v343 = vld [vmem:[%s300 + $0x48] sm:$0xff]
      %v344 = vld [vmem:[%s300 + $0x50] sm:$0xff]
      %v345 = vld [vmem:[%s300 + $0x58] sm:$0xff]
      %v346 = vld [vmem:[%s300 + $0x60] sm:$0xff]
      %v347 = vld [vmem:[%s300 + $0x68] sm:$0xff]
      %v348 = vld [vmem:[%s300 + $0x70] sm:$0xff]
      %v349 = vld [vmem:[%s300 + $0x78] sm:$0xff]
      %v350 = vld [vmem:[%s300 + $0x80] sm:$0xff]
      %v351 = vld [vmem:[%s300 + $0x88] sm:$0xff]
      %v352 = vld [vmem:[%s300 + $0x90] sm:$0xff]
      %v353 = vld [vmem:[%s300 + $0x98] sm:$0xff]
      %v354 = vld [vmem:[%s300 + $0xa0] sm:$0xff]
      %v355 = vld [vmem:[%s300 + $0xa8] sm:$0xff]
      %v356 = vld [vmem:[%s300 + $0xb0] sm:$0xff]
      %v357 = vld [vmem:[%s300 + $0xb8] sm:$0xff]
      %v358 = vld [vmem:[%s300 + $0xc0] sm:$0xff]
      %v359 = vld [vmem:[%s300 + $0xc8] sm:$0xff]
      %v360 = vld [vmem:[%s300 + $0xd0] sm:$0xff]
      %v361 = vld [vmem:[%s300 + $0xd8] sm:$0xff]
      %v362 = vld [vmem:[%s300 + $0xe0] sm:$0xff]
      %v363 = vld [vmem:[%s300 + $0xe8] sm:$0xff]
      %v364 = vld [vmem:[%s300 + $0xf0] sm:$0xff]
      %v365 = vld [vmem:[%s300 + $0xf8] sm:$0xff]
      %v366 = vld [vmem:[%s300 + $0x100] sm:$0xff]
      %v367 = vld [vmem:[%s300 + $0x108] sm:$0xff]
      %v368 = vld [vmem:[%s300 + $0x110] sm:$0xff]
      %v369 = vld [vmem:[%s300 + $0x118] sm:$0xff]
      %v370 = vld [vmem:[%s300 + $0x120] sm:$0xff]
      %v371 = vld [vmem:[%s300 + $0x128] sm:$0xff]
      %v372 = vld [vmem:[%s300 + $0x130] sm:$0xff]
      %v373 = vld [vmem:[%s300 + $0x138] sm:$0xff]
      %v374 = vld [vmem:[%s300 + $0x140] sm:$0xff]
      %v375 = vld [vmem:[%s300 + $0x148] sm:$0xff]
      %v376 = vld [vmem:[%s300 + $0x150] sm:$0xff]
      %v377 = vld [vmem:[%s300 + $0x158] sm:$0xff]
      %v378 = vld [vmem:[%s300 + $0x160] sm:$0xff]
      %v379 = vld [vmem:[%s300 + $0x168] sm:$0xff]
      %v380 = vld [vmem:[%s300 + $0x170] sm:$0xff]
      %v381 = vld [vmem:[%s300 + $0x178] sm:$0xff]
      %v384 = vunpack.c.l.b16 %v332
      %v385 = vunpack.c.h.b16 %v332
      %v386 = vunpack.c.l.b16 %v333
      %v387 = vpack.c.b16 %v384, %v384
      %v388 = vpack.c.b16 %v385, %v385
      %v389 = vpack.c.b16 %v386, %v386
      %v441 = vunpack.c.l.b16 %v334
      %v442 = vunpack.c.h.b16 %v334
      %v443 = vunpack.c.l.b16 %v335
      %v444 = vunpack.c.h.b16 %v335
      %v445 = vunpack.c.l.b16 %v336
      %v446 = vunpack.c.h.b16 %v336
      %v447 = vunpack.c.l.b16 %v337
      %v448 = vunpack.c.h.b16 %v337
      %v449 = vunpack.c.l.b16 %v338
      %v450 = vunpack.c.h.b16 %v338
      %v451 = vunpack.c.l.b16 %v339
      %v452 = vunpack.c.h.b16 %v339
      %v453 = vunpack.c.l.b16 %v340
      %v454 = vunpack.c.h.b16 %v340
      %v455 = vunpack.c.l.b16 %v341
      %v456 = vunpack.c.h.b16 %v341
      %v457 = vunpack.c.l.b16 %v342
      %v458 = vunpack.c.h.b16 %v342
      %v459 = vunpack.c.l.b16 %v343
      %v460 = vunpack.c.h.b16 %v343
      %v461 = vunpack.c.l.b16 %v344
      %v462 = vunpack.c.h.b16 %v344
      %v463 = vunpack.c.l.b16 %v345
      %v464 = vunpack.c.h.b16 %v345
      %v465 = vunpack.c.l.b16 %v346
      %v466 = vunpack.c.h.b16 %v346
      %v467 = vunpack.c.l.b16 %v347
      %v468 = vunpack.c.h.b16 %v347
      %v469 = vunpack.c.l.b16 %v348
      %v470 = vunpack.c.h.b16 %v348
      %v471 = vunpack.c.l.b16 %v349
      %v472 = vunpack.c.h.b16 %v349
      %v473 = vunpack.c.l.b16 %v350
      %v474 = vunpack.c.h.b16 %v350
      %v475 = vunpack.c.l.b16 %v351
      %v476 = vunpack.c.h.b16 %v351
      %v477 = vunpack.c.l.b16 %v352
      %v478 = vunpack.c.h.b16 %v352
      %v479 = vunpack.c.l.b16 %v353
      %v480 = vunpack.c.h.b16 %v353
      %v481 = vunpack.c.l.b16 %v354
      %v482 = vunpack.c.h.b16 %v354
      %v483 = vunpack.c.l.b16 %v355
      %v484 = vunpack.c.h.b16 %v355
      %v485 = vunpack.c.l.b16 %v356
      %v486 = vunpack.c.h.b16 %v356
      %v487 = vunpack.c.l.b16 %v357
      %v488 = vunpack.c.h.b16 %v357
      %v489 = vunpack.c.l.b16 %v358
      %v490 = vunpack.c.h.b16 %v358
      %v491 = vunpack.c.l.b16 %v359
      %v492 = vunpack.c.h.b16 %v359
      %v493 = vunpack.c.l.b16 %v360
      %v494 = vunpack.c.h.b16 %v360
      %v495 = vunpack.c.l.b16 %v361
      %v496 = vunpack.c.h.b16 %v361
      %v497 = vunpack.c.l.b16 %v362
      %v498 = vunpack.c.h.b16 %v362
      %v499 = vunpack.c.l.b16 %v363
      %v500 = vunpack.c.h.b16 %v363
      %v501 = vunpack.c.l.b16 %v364
      %v502 = vunpack.c.h.b16 %v364
      %v503 = vunpack.c.l.b16 %v365
      %v504 = vunpack.c.h.b16 %v365
      %v505 = vunpack.c.l.b16 %v366
      %v506 = vunpack.c.h.b16 %v366
      %v507 = vunpack.c.l.b16 %v367
      %v508 = vunpack.c.h.b16 %v367
      %v509 = vunpack.c.l.b16 %v368
      %v510 = vunpack.c.h.b16 %v368
      %v511 = vunpack.c.l.b16 %v369
      %v512 = vunpack.c.h.b16 %v369
      %v513 = vunpack.c.l.b16 %v370
      %v514 = vunpack.c.h.b16 %v370
      %v515 = vunpack.c.l.b16 %v371
      %v516 = vunpack.c.h.b16 %v371
      %v517 = vunpack.c.l.b16 %v372
      %v518 = vunpack.c.h.b16 %v372
      %v519 = vunpack.c.l.b16 %v373
      %v520 = vunpack.c.h.b16 %v373
      %v521 = vunpack.c.l.b16 %v374
      %v522 = vunpack.c.h.b16 %v374
      %v523 = vunpack.c.l.b16 %v375
      %v524 = vunpack.c.h.b16 %v375
      %v525 = vunpack.c.l.b16 %v376
      %v526 = vunpack.c.h.b16 %v376
      %v527 = vunpack.c.l.b16 %v377
      %v528 = vunpack.c.h.b16 %v377
      %v529 = vunpack.c.l.b16 %v378
      %v530 = vunpack.c.h.b16 %v378
      %v531 = vunpack.c.l.b16 %v379
      %v532 = vunpack.c.h.b16 %v379
      %v533 = vunpack.c.l.b16 %v380
      %v534 = vunpack.c.h.b16 %v380
      %v535 = vunpack.c.l.b16 %v381
      %v536 = vunpack.c.h.b16 %v381
      %v537 = vpack.c.b16 %v443, %v441
      %v538 = vpack.c.b16 %v444, %v442
      %v539 = vpack.c.b16 %v447, %v445
      %v540 = vpack.c.b16 %v448, %v446
      %v541 = vpack.c.b16 %v451, %v449
      %v542 = vpack.c.b16 %v452, %v450
      %v543 = vpack.c.b16 %v455, %v453
      %v544 = vpack.c.b16 %v456, %v454
      %v545 = vpack.c.b16 %v459, %v457
      %v546 = vpack.c.b16 %v460, %v458
      %v547 = vpack.c.b16 %v463, %v461
      %v548 = vpack.c.b16 %v464, %v462
      %v549 = vpack.c.b16 %v467, %v465
      %v550 = vpack.c.b16 %v468, %v466
      %v551 = vpack.c.b16 %v471, %v469
      %v552 = vpack.c.b16 %v472, %v470
      %v553 = vpack.c.b16 %v475, %v473
      %v554 = vpack.c.b16 %v476, %v474
      %v555 = vpack.c.b16 %v479, %v477
      %v556 = vpack.c.b16 %v480, %v478
      %v557 = vpack.c.b16 %v483, %v481
      %v558 = vpack.c.b16 %v484, %v482
      %v559 = vpack.c.b16 %v487, %v485
      %v560 = vpack.c.b16 %v488, %v486
      %v561 = vpack.c.b16 %v491, %v489
      %v562 = vpack.c.b16 %v492, %v490
      %v563 = vpack.c.b16 %v495, %v493
      %v564 = vpack.c.b16 %v496, %v494
      %v565 = vpack.c.b16 %v499, %v497
      %v566 = vpack.c.b16 %v500, %v498
      %v567 = vpack.c.b16 %v503, %v501
      %v568 = vpack.c.b16 %v504, %v502
      %v569 = vpack.c.b16 %v507, %v505
      %v570 = vpack.c.b16 %v508, %v506
      %v571 = vpack.c.b16 %v511, %v509
      %v572 = vpack.c.b16 %v512, %v510
      %v573 = vpack.c.b16 %v515, %v513
      %v574 = vpack.c.b16 %v516, %v514
      %v575 = vpack.c.b16 %v519, %v517
      %v576 = vpack.c.b16 %v520, %v518
      %v577 = vpack.c.b16 %v523, %v521
      %v578 = vpack.c.b16 %v524, %v522
      %v579 = vpack.c.b16 %v527, %v525
      %v580 = vpack.c.b16 %v528, %v526
      %v581 = vpack.c.b16 %v531, %v529
      %v582 = vpack.c.b16 %v532, %v530
      %v583 = vpack.c.b16 %v535, %v533
      %v584 = vpack.c.b16 %v536, %v534
      %633 = vmatprep.subr.bf16.mxu0 %v552
      %634 = vmatpush1.bf16.msra.mxu0 %v551
      %635 = vmatprep.subr.bf16.mxu0 %v550
      %636 = vmatpush1.bf16.msra.mxu0 %v549
      %637 = vmatprep.subr.bf16.mxu0 %v548
      %638 = vmatpush1.bf16.msra.mxu0 %v547
      %639 = vmatprep.subr.bf16.mxu0 %v546
      %640 = vmatpush1.bf16.msra.mxu0 %v545
      %641 = vmatprep.subr.bf16.mxu0 %v544
      %642 = vmatpush1.bf16.msra.mxu0 %v543
      %643 = vmatprep.subr.bf16.mxu0 %v542
      %644 = vmatpush1.bf16.msra.mxu0 %v541
      %645 = vmatprep.subr.bf16.mxu0 %v540
      %646 = vmatpush1.bf16.msra.mxu0 %v539
      %647 = vmatprep.subr.bf16.mxu0 %v538
      %648 = vmatpush1.bf16.msra.mxu0 %v537
      %649 = vmatprep.subr.bf16.mxu0 %v568
      %650 = vmatpush2.bf16.msra.mxu0 %v567
      %651 = vmatprep.subr.bf16.mxu0 %v566
      %652 = vmatpush2.bf16.msra.mxu0 %v565
      %653 = vmatprep.subr.bf16.mxu0 %v564
      %654 = vmatpush2.bf16.msra.mxu0 %v563
      %655 = vmatprep.subr.bf16.mxu0 %v562
      %656 = vmatpush2.bf16.msra.mxu0 %v561
      %657 = vmatprep.subr.bf16.mxu0 %v560
      %658 = vmatpush2.bf16.msra.mxu0 %v559
      %659 = vmatprep.subr.bf16.mxu0 %v558
      %660 = vmatpush2.bf16.msra.mxu0 %v557
      %661 = vmatprep.subr.bf16.mxu0 %v556
      %662 = vmatpush2.bf16.msra.mxu0 %v555
      %663 = vmatprep.subr.bf16.mxu0 %v554
      %664 = vmatpush2.bf16.msra.mxu0 %v553
      %665 = vmatprep.mubr.bf16.mxu0 %v388
      %666 = vmatmul.mubr.bf16.gmra.mxu0 %v387
      %v667 = vpop.f32.mrf.mxu0
      %v668 = vadd.f32 0.0, %v667
      %v669 = vpop.f32.mrf.mxu0
      %v670 = vadd.f32 0.0, %v669
      %v671 = vpop.f32.mrf.mxu0
      %v672 = vpop.f32.mrf.mxu0
      %673 = vdwg.mxu0
      %674 = vmatprep.subr.bf16.mxu0 %v584
      %675 = vmatpush1.bf16.msra.mxu0 %v583
      %676 = vmatprep.subr.bf16.mxu0 %v582
      %677 = vmatpush1.bf16.msra.mxu0 %v581
      %678 = vmatprep.subr.bf16.mxu0 %v580
      %679 = vmatpush1.bf16.msra.mxu0 %v579
      %680 = vmatprep.subr.bf16.mxu0 %v578
      %681 = vmatpush1.bf16.msra.mxu0 %v577
      %682 = vmatprep.subr.bf16.mxu0 %v576
      %683 = vmatpush1.bf16.msra.mxu0 %v575
      %684 = vmatprep.subr.bf16.mxu0 %v574
      %685 = vmatpush1.bf16.msra.mxu0 %v573
      %686 = vmatprep.subr.bf16.mxu0 %v572
      %687 = vmatpush1.bf16.msra.mxu0 %v571
      %688 = vmatprep.subr.bf16.mxu0 %v570
      %689 = vmatpush1.bf16.msra.mxu0 %v569
      %690 = vmatprep.subr.bf16.mxu0 0
      %691 = vmatpush2.bf16.msra.mxu0 0
      %692 = vmatprep.subr.bf16.mxu0 0
      %693 = vmatpush2.bf16.msra.mxu0 0
      %694 = vmatprep.subr.bf16.mxu0 0
      %695 = vmatpush2.bf16.msra.mxu0 0
      %696 = vmatprep.subr.bf16.mxu0 0
      %697 = vmatpush2.bf16.msra.mxu0 0
      %698 = vmatprep.subr.bf16.mxu0 0
      %699 = vmatpush2.bf16.msra.mxu0 0
      %700 = vmatprep.subr.bf16.mxu0 0
      %701 = vmatpush2.bf16.msra.mxu0 0
      %702 = vmatprep.subr.bf16.mxu0 0
      %703 = vmatpush2.bf16.msra.mxu0 0
      %704 = vmatprep.subr.bf16.mxu0 0
      %705 = vmatpush2.bf16.msra.mxu0 0
      %706 = vmatprep.mubr.bf16.mxu0 0
      %707 = vmatmul.mubr.bf16.gmra.mxu0 %v389
      %v708 = vpop.f32.mrf.mxu0
      %v709 = vadd.f32 %v668, %v708
      %v710 = vpop.f32.mrf.mxu0
      %v711 = vadd.f32 %v670, %v710
      %v712 = vpop.f32.mrf.mxu0
      %v713 = vpop.f32.mrf.mxu0
      %714 = vdwg.mxu0
      %v715 = vadd.f32 %v330, %v709
      %v716 = vadd.f32 %v331, %v711
      %717 = vst [vmem:[#allocation2] sm:$0xff] %v715
      %718 = vst [vmem:[#allocation2 + $0x8] sm:$0xff] %v716
      %p719 = scmp.eq.s32.totalorder %s22, 2
      // Predicated region
      $region41: #{custom_resnet_forward.18} parent=35 // pred_check
        %p720 = pneg %p719
      $region42: #{custom_resnet_forward.18} parent=35 // pred_check_branch
        %722 = sbr.rel (%p720) target = $region44
      $region43: #{custom_resnet_forward.18} parent=35 // pred_region
        %v723 = vld [vmem:[#allocation2] sm:$0xff]
        %v724 = vld [vmem:[#allocation2 + $0x8] sm:$0xff]
        %v725 = vld [vmem:[%s306] sm:$0x3]
        %v727 = vlaneseq
        %v728 = vshrl.u32 %v727, 7
        %v729 = vsub.s32 0, %v728
        %v730 = vrot.slane %v725, %v729
        %v731 = vlaneseq
        %v732 = vshrl.u32 %v731, 7
        %v733 = vsub.s32 1, %v732
        %v734 = vrot.slane %v725, %v733
        %v737 = vmul.f32 %v723, %v730
        %v738 = vmul.f32 %v724, %v734
        %v739 = vld [vmem:[%s311] sm:$0x3]
        %v741 = vlaneseq
        %v742 = vshrl.u32 %v741, 7
        %v743 = vsub.s32 0, %v742
        %v744 = vrot.slane %v739, %v743
        %v745 = vlaneseq
        %v746 = vshrl.u32 %v745, 7
        %v747 = vsub.s32 1, %v746
        %v748 = vrot.slane %v739, %v747
        %v751 = vadd.f32 %v737, %v744
        %v752 = vadd.f32 %v738, %v748
        %v753 = vmax.f32 %v751, 0.0
        %v754 = vmax.f32 %v752, 0.0
        %755 = vst [vmem:[%s321] sm:$0xff] %v753
        %756 = vst [vmem:[%s321 + $0x8] sm:$0xff] %v754
      $region44: #{custom_resnet_forward.18} parent=35 // pred_fallthru
        _
      %s757 = smul.u32 2, %s21
      %p758 = scmp.lt.s32.totalorder %s20, 0
      %s759 = scalar_select %p758, %s20, 0
      %p760 = scmp.lt.s32.totalorder %s757, 1
      %s761 = scalar_select %p760, %s757, 1
      %s762 = smul.addr %s759, 2
      %s763 = sadd.s32 %s761, %s762
      %s764 = smul.addr %s763, 8
      %s765 = scalar_lea.vmem %s4, %s764
      // Predicated region
      $region45: #{custom_resnet_forward.18} parent=35 // pred_check
        %p766 = pneg %p162
      $region46: #{custom_resnet_forward.18} parent=35 // pred_check_branch
        %768 = sbr.rel (%p766) target = $region48
      $region47: #{custom_resnet_forward.18} parent=35 // pred_region
        %s769 = smul.u32 2, %s21
      $region48: #{custom_resnet_forward.18} parent=35 // pred_fallthru
        _
      // Predicated region
      $region49: #{custom_resnet_forward.18} parent=35 // pred_check
        %p770 = pneg %p162
      $region50: #{custom_resnet_forward.18} parent=35 // pred_check_branch
        %772 = sbr.rel (%p770) target = $region52
      $region51: #{custom_resnet_forward.18} parent=35 // pred_region
        %s773 = smul.u32 2, %s21
        %p774 = scmp.lt.s32.totalorder %s20, 0
        %s775 = scalar_select %p774, %s20, 0
        %p776 = scmp.lt.s32.totalorder %s773, 1
        %s777 = scalar_select %p776, %s773, 1
        %s778 = smul.addr %s775, 2
        %s779 = sadd.s32 %s777, %s778
        %s780 = smul.addr %s779, 8
        %s781 = scalar_lea.vmem %s4, %s780
      $region52: #{custom_resnet_forward.18} parent=35 // pred_fallthru
        _
    $region36: #{custom_resnet_forward.18} parent=5 // pred_fallthru
      _
    %p782 = scmp.le.s32.totalorder 2, %s10
    // Predicated region
    $region53: #{custom_resnet_forward.18} parent=5 // pred_check
      %p783 = pneg %p782
    $region54: #{custom_resnet_forward.18} parent=5 // pred_check_branch
      %785 = sbr.rel (%p783) target = $region56
    $region55: #{custom_resnet_forward.18} parent=5 // pred_region
      %s786 = ssub.s32 %s10, 2
    $region56: #{custom_resnet_forward.18} parent=5 // pred_fallthru
      _
  $region6: #{custom_resnet_forward.18} parent=0 // loop_footer
    %s14 = sadd.s32 1, %s10
  $region7: #{custom_resnet_forward.18} parent=0 // loop_footer_branch
    %9 = sbr.rel target = $region3
  $region8: #{custom_resnet_forward.18} parent=0 // loop_exit
    _

// kernel: custom_resnet_forward.17
$region0: #{custom_resnet_forward.17}
  #allocation0 [shape = 'u32[]', space=smem, size = 0x4, offset = 0x4, fixed_abs, tag = 'smem constant byte address 0x4 - core index']
  #allocation1 [shape = 'u32[144,128]{1,0:T(1,128)}', space=vmem, size = 0x12000, scoped, tag = 'internal scratch']
  #allocation2 [shape = 'f32[8,256]{1,0:T(8,128)}', space=vmem, size = 0x2000, scoped, tag = 'scratch operand']
  %s0 = inlined_call_operand.vmem [shape: bf16[8,128], index: 0, kind: input, shape index: {}]
  %s1 = inlined_call_operand.vmem [shape: bf16[128,256], index: 1, kind: input, shape index: {}]
  %s2 = inlined_call_operand.vmem [shape: f32[1,256], index: 2, kind: input, shape index: {}]
  %s3 = inlined_call_operand.vmem [shape: f32[1,256], index: 3, kind: input, shape index: {}]
  %s4 = inlined_call_operand.vmem [shape: f32[8,256], index: 4, kind: output, shape index: {}]
  %s5 = sld [smem:[#allocation0]]
  $region34: #{custom_resnet_forward.17} parent=0
    _
  %s7 = ssub.s32 1, %s5
  %s8 = scalar_select 0, %s7, %s5
  // Predicated region
  $region2: #{custom_resnet_forward.17} parent=0 // pred_check
    _
  $region3: #{custom_resnet_forward.17} parent=0 // pred_check_branch
    %10 = sbr.rel (0) target = $region5
  $region4: #{custom_resnet_forward.17} parent=0 // pred_region
    _
  $region5: #{custom_resnet_forward.17} parent=0 // pred_fallthru
    _
  // Predicated region
  $region6: #{custom_resnet_forward.17} parent=0 // pred_check
    _
  $region7: #{custom_resnet_forward.17} parent=0 // pred_check_branch
    %12 = sbr.rel (0) target = $region9
  $region8: #{custom_resnet_forward.17} parent=0 // pred_region
    _
  $region9: #{custom_resnet_forward.17} parent=0 // pred_fallthru
    _
  // Predicated region
  $region10: #{custom_resnet_forward.17} parent=0 // pred_check
    _
  $region11: #{custom_resnet_forward.17} parent=0 // pred_check_branch
    %14 = sbr.rel (0) target = $region13
  $region12: #{custom_resnet_forward.17} parent=0 // pred_region
    _
  $region13: #{custom_resnet_forward.17} parent=0 // pred_fallthru
    _
  // Predicated region
  $region14: #{custom_resnet_forward.17} parent=0 // pred_check
    _
  $region15: #{custom_resnet_forward.17} parent=0 // pred_check_branch
    %16 = sbr.rel (0) target = $region17
  $region16: #{custom_resnet_forward.17} parent=0 // pred_region
    _
  $region17: #{custom_resnet_forward.17} parent=0 // pred_fallthru
    _
  %p18 = scmp.eq.s32.totalorder 0, 0
  // Predicated region
  $region18: #{custom_resnet_forward.17} parent=0 // pred_check
    %p19 = pneg %p18
  $region19: #{custom_resnet_forward.17} parent=0 // pred_check_branch
    %21 = sbr.rel (%p19) target = $region21
  $region20: #{custom_resnet_forward.17} parent=0 // pred_region
    %22 = vst [vmem:[#allocation2] sm:$0xff] 0.0
    %23 = vst [vmem:[#allocation2 + $0x8] sm:$0xff] 0.0
  $region21: #{custom_resnet_forward.17} parent=0 // pred_fallthru
    _
  %v24 = vld [vmem:[#allocation2] sm:$0xff]
  %v25 = vld [vmem:[#allocation2 + $0x8] sm:$0xff]
  %v26 = vld [vmem:[%s0] sm:$0xf]
  %v27 = vld [vmem:[%s1] sm:$0xff]
  %v28 = vld [vmem:[%s1 + $0x8] sm:$0xff]
  %v29 = vld [vmem:[%s1 + $0x10] sm:$0xff]
  %v30 = vld [vmem:[%s1 + $0x18] sm:$0xff]
  %v31 = vld [vmem:[%s1 + $0x20] sm:$0xff]
  %v32 = vld [vmem:[%s1 + $0x28] sm:$0xff]
  %v33 = vld [vmem:[%s1 + $0x30] sm:$0xff]
  %v34 = vld [vmem:[%s1 + $0x38] sm:$0xff]
  %v35 = vld [vmem:[%s1 + $0x40] sm:$0xff]
  %v36 = vld [vmem:[%s1 + $0x48] sm:$0xff]
  %v37 = vld [vmem:[%s1 + $0x50] sm:$0xff]
  %v38 = vld [vmem:[%s1 + $0x58] sm:$0xff]
  %v39 = vld [vmem:[%s1 + $0x60] sm:$0xff]
  %v40 = vld [vmem:[%s1 + $0x68] sm:$0xff]
  %v41 = vld [vmem:[%s1 + $0x70] sm:$0xff]
  %v42 = vld [vmem:[%s1 + $0x78] sm:$0xff]
  %v59 = vunpack.c.l.b16 %v27
  %v60 = vunpack.c.h.b16 %v27
  %v61 = vunpack.c.l.b16 %v28
  %v62 = vunpack.c.h.b16 %v28
  %v63 = vunpack.c.l.b16 %v29
  %v64 = vunpack.c.h.b16 %v29
  %v65 = vunpack.c.l.b16 %v30
  %v66 = vunpack.c.h.b16 %v30
  %v67 = vunpack.c.l.b16 %v31
  %v68 = vunpack.c.h.b16 %v31
  %v69 = vunpack.c.l.b16 %v32
  %v70 = vunpack.c.h.b16 %v32
  %v71 = vunpack.c.l.b16 %v33
  %v72 = vunpack.c.h.b16 %v33
  %v73 = vunpack.c.l.b16 %v34
  %v74 = vunpack.c.h.b16 %v34
  %v75 = vunpack.c.l.b16 %v35
  %v76 = vunpack.c.h.b16 %v35
  %v77 = vunpack.c.l.b16 %v36
  %v78 = vunpack.c.h.b16 %v36
  %v79 = vunpack.c.l.b16 %v37
  %v80 = vunpack.c.h.b16 %v37
  %v81 = vunpack.c.l.b16 %v38
  %v82 = vunpack.c.h.b16 %v38
  %v83 = vunpack.c.l.b16 %v39
  %v84 = vunpack.c.h.b16 %v39
  %v85 = vunpack.c.l.b16 %v40
  %v86 = vunpack.c.h.b16 %v40
  %v87 = vunpack.c.l.b16 %v41
  %v88 = vunpack.c.h.b16 %v41
  %v89 = vunpack.c.l.b16 %v42
  %v90 = vunpack.c.h.b16 %v42
  %v91 = vpack.c.b16 %v61, %v59
  %v92 = vpack.c.b16 %v62, %v60
  %v93 = vpack.c.b16 %v65, %v63
  %v94 = vpack.c.b16 %v66, %v64
  %v95 = vpack.c.b16 %v69, %v67
  %v96 = vpack.c.b16 %v70, %v68
  %v97 = vpack.c.b16 %v73, %v71
  %v98 = vpack.c.b16 %v74, %v72
  %v99 = vpack.c.b16 %v77, %v75
  %v100 = vpack.c.b16 %v78, %v76
  %v101 = vpack.c.b16 %v81, %v79
  %v102 = vpack.c.b16 %v82, %v80
  %v103 = vpack.c.b16 %v85, %v83
  %v104 = vpack.c.b16 %v86, %v84
  %v105 = vpack.c.b16 %v89, %v87
  %v106 = vpack.c.b16 %v90, %v88
  %123 = vmatprep.subr.bf16.mxu0 %v106
  %124 = vmatpush1.bf16.msra.mxu0 %v105
  %125 = vmatprep.subr.bf16.mxu0 %v104
  %126 = vmatpush1.bf16.msra.mxu0 %v103
  %127 = vmatprep.subr.bf16.mxu0 %v102
  %128 = vmatpush1.bf16.msra.mxu0 %v101
  %129 = vmatprep.subr.bf16.mxu0 %v100
  %130 = vmatpush1.bf16.msra.mxu0 %v99
  %131 = vmatprep.subr.bf16.mxu0 %v98
  %132 = vmatpush1.bf16.msra.mxu0 %v97
  %133 = vmatprep.subr.bf16.mxu0 %v96
  %134 = vmatpush1.bf16.msra.mxu0 %v95
  %135 = vmatprep.subr.bf16.mxu0 %v94
  %136 = vmatpush1.bf16.msra.mxu0 %v93
  %137 = vmatprep.subr.bf16.mxu0 %v92
  %138 = vmatpush1.bf16.msra.mxu0 %v91
  %139 = vmatprep.subr.bf16.mxu0 0
  %140 = vmatpush2.bf16.msra.mxu0 0
  %141 = vmatprep.subr.bf16.mxu0 0
  %142 = vmatpush2.bf16.msra.mxu0 0
  %143 = vmatprep.subr.bf16.mxu0 0
  %144 = vmatpush2.bf16.msra.mxu0 0
  %145 = vmatprep.subr.bf16.mxu0 0
  %146 = vmatpush2.bf16.msra.mxu0 0
  %147 = vmatprep.subr.bf16.mxu0 0
  %148 = vmatpush2.bf16.msra.mxu0 0
  %149 = vmatprep.subr.bf16.mxu0 0
  %150 = vmatpush2.bf16.msra.mxu0 0
  %151 = vmatprep.subr.bf16.mxu0 0
  %152 = vmatpush2.bf16.msra.mxu0 0
  %153 = vmatprep.subr.bf16.mxu0 0
  %154 = vmatpush2.bf16.msra.mxu0 0
  %155 = vmatprep.mubr.bf16.mxu0 0
  %156 = vmatmul.mubr.bf16.gmra.mxu0 %v26
  %v157 = vpop.f32.mrf.mxu0
  %v158 = vadd.f32 0.0, %v157
  %v159 = vpop.f32.mrf.mxu0
  %v160 = vadd.f32 0.0, %v159
  %v161 = vpop.f32.mrf.mxu0
  %v162 = vpop.f32.mrf.mxu0
  %163 = vdwg.mxu0
  %v164 = vadd.f32 %v24, %v158
  %v165 = vadd.f32 %v25, %v160
  %166 = vst [vmem:[#allocation2] sm:$0xff] %v164
  %167 = vst [vmem:[#allocation2 + $0x8] sm:$0xff] %v165
  // Predicated region
  $region22: #{custom_resnet_forward.17} parent=0 // pred_check
    %p168 = pneg %p18
  $region23: #{custom_resnet_forward.17} parent=0 // pred_check_branch
    %170 = sbr.rel (%p168) target = $region25
  $region24: #{custom_resnet_forward.17} parent=0 // pred_region
    %v171 = vld [vmem:[#allocation2] sm:$0xff]
    %v172 = vld [vmem:[#allocation2 + $0x8] sm:$0xff]
    %v173 = vld [vmem:[%s2] sm:$0x3]
    %v175 = vlaneseq
    %v176 = vshrl.u32 %v175, 7
    %v177 = vsub.s32 0, %v176
    %v178 = vrot.slane %v173, %v177
    %v179 = vlaneseq
    %v180 = vshrl.u32 %v179, 7
    %v181 = vsub.s32 1, %v180
    %v182 = vrot.slane %v173, %v181
    %v185 = vmul.f32 %v171, %v178
    %v186 = vmul.f32 %v172, %v182
    %v187 = vld [vmem:[%s3] sm:$0x3]
    %v189 = vlaneseq
    %v190 = vshrl.u32 %v189, 7
    %v191 = vsub.s32 0, %v190
    %v192 = vrot.slane %v187, %v191
    %v193 = vlaneseq
    %v194 = vshrl.u32 %v193, 7
    %v195 = vsub.s32 1, %v194
    %v196 = vrot.slane %v187, %v195
    %v199 = vadd.f32 %v185, %v192
    %v200 = vadd.f32 %v186, %v196
    %201 = vst [vmem:[%s4] sm:$0xff] %v199
    %202 = vst [vmem:[%s4 + $0x8] sm:$0xff] %v200
  $region25: #{custom_resnet_forward.17} parent=0 // pred_fallthru
    _
  // Predicated region
  $region26: #{custom_resnet_forward.17} parent=0 // pred_check
    _
  $region27: #{custom_resnet_forward.17} parent=0 // pred_check_branch
    %204 = sbr.rel (0) target = $region29
  $region28: #{custom_resnet_forward.17} parent=0 // pred_region
    _
  $region29: #{custom_resnet_forward.17} parent=0 // pred_fallthru
    _
  // Predicated region
  $region30: #{custom_resnet_forward.17} parent=0 // pred_check
    _
  $region31: #{custom_resnet_forward.17} parent=0 // pred_check_branch
    %206 = sbr.rel (0) target = $region33
  $region32: #{custom_resnet_forward.17} parent=0 // pred_region
    _
  $region33: #{custom_resnet_forward.17} parent=0 // pred_fallthru
    _

// kernel: custom_resnet_forward.19
$region0: #{custom_resnet_forward.19}
  #allocation0 [shape = 'u32[]', space=smem, size = 0x4, offset = 0x4, fixed_abs, tag = 'smem constant byte address 0x4 - core index']
  #allocation1 [shape = 'u32[144,128]{1,0:T(1,128)}', space=vmem, size = 0x12000, scoped, tag = 'internal scratch']
  #allocation2 [shape = 'f32[8,256]{1,0:T(8,128)}', space=vmem, size = 0x2000, scoped, tag = 'scratch operand']
  %s0 = inlined_call_operand.vmem [shape: bf16[8,2304], index: 0, kind: input, shape index: {}]
  %s1 = inlined_call_operand.vmem [shape: bf16[2304,256], index: 1, kind: input, shape index: {}]
  %s2 = inlined_call_operand.vmem [shape: f32[1,256], index: 2, kind: input, shape index: {}]
  %s3 = inlined_call_operand.vmem [shape: f32[1,256], index: 3, kind: input, shape index: {}]
  %s4 = inlined_call_operand.vmem [shape: f32[8,256], index: 4, kind: input, shape index: {}]
  %s5 = inlined_call_operand.vmem [shape: f32[8,256], index: 5, kind: output, shape index: {}]
  %s6 = sld [smem:[#allocation0]]
  $region61: #{custom_resnet_forward.19} parent=0
    _
  %s8 = ssub.s32 1, %s6
  %s9 = scalar_select 0, %s8, %s6
  loop: start=0, step=1, limit=8
  $region2: #{custom_resnet_forward.19} parent=0 // loop_pre_header
    _
  $region3: #{custom_resnet_forward.19} parent=0 // loop_header
    %s11 = sphi 0, %s15
    %p12 = scmp.ge.s32.totalorder %s11, 8
    %s18 = sphi 0, %s37
    %s19 = sphi 0, %s33
    %s20 = sphi 0, %s29
    %s21 = sphi 0, %s18
    %s22 = sphi 0, %s19
    %s23 = sphi 0, %s20
    %s24 = sphi 0, %s21
    %s25 = sphi 0, %s22
    %s26 = sphi 0, %s23
    %s42 = sphi 0, %s44
    %s45 = sphi 0, %s42
    %s46 = sphi 0, %s45
    %s62 = sphi 0, %s46
    %s70 = sphi 0, %s72
    %s73 = sphi 0, %s70
    %s74 = sphi 0, %s73
    %s90 = sphi 0, %s74
    %s96 = sphi 0, %s98
    %s99 = sphi 0, %s96
    %s100 = sphi 0, %s99
    %s116 = sphi 0, %s100
    %s122 = sphi 0, %s124
    %s125 = sphi 0, %s122
    %s126 = sphi 0, %s125
    %s142 = sphi 0, %s126
    %s150 = sphi 0, %s152
    %s153 = sphi 0, %s150
    %s154 = sphi 0, %s153
    %s170 = sphi 0, %s154
    %s178 = sphi 0, %s180
    %s181 = sphi 0, %s178
    %s182 = sphi 0, %s181
    %s198 = sphi 0, %s182
  $region4: #{custom_resnet_forward.19} parent=0 // loop_header_branch
    %14 = sbr.rel (%p12) target = $region8
  $region5: #{custom_resnet_forward.19} parent=0 // loop_body
    %s16 = ssub.s32 %s11, 1
    %s17 = ssub.s32 %s11, 2
    %s27 = sadd.s32 1, %s20
    %p28 = scmp.ge.s32.totalorder %s27, 6
    %s29 = scalar_select %p28, 0, %s27
    %s30 = sadd.s32 1, %s19
    %s31 = scalar_select %p28, %s30, %s19
    %p32 = scmp.ge.s32.totalorder %s31, 1
    %s33 = scalar_select %p32, 0, %s31
    %s34 = sadd.s32 1, %s18
    %s35 = scalar_select %p32, %s34, %s18
    %p36 = scmp.ge.s32.totalorder %s35, 1
    %s37 = scalar_select %p36, 0, %s35
    %s38 = ssub.s32 %s18, %s37
    %s39 = ssub.s32 %s20, %s29
    %s40 = sor.u32 %s38, %s39
    %p41 = scmp.eq.s32.totalorder %s40, 0
    %s43 = sadd.s32 %s42, 1
    %s44 = scalar_select %p41, %s42, %s43
    %p47 = pneg %p41
    %p48 = scmp.eq.s32.totalorder %s11, 5
    %p49 = por %p47, %p48
    %p50 = scmp.ne.s32.totalorder %s42, %s45
    %p51 = scmp.eq.s32.totalorder %s11, 0
    %p52 = por %p50, %p51
    %p53 = scmp.ne.s32.totalorder %s42, %s45
    %p54 = scmp.eq.s32.totalorder %s16, 5
    %p55 = por %p53, %p54
    %p56 = scmp.ne.s32.totalorder %s45, %s46
    %p57 = scmp.eq.s32.totalorder %s16, 0
    %p58 = por %p56, %p57
    %p59 = scmp.ne.s32.totalorder %s45, %s46
    %p60 = scmp.eq.s32.totalorder %s17, 5
    %p61 = por %p59, %p60
    %p63 = scmp.ne.s32.totalorder %s46, %s62
    %p64 = scmp.eq.s32.totalorder %s17, 0
    %p65 = por %p63, %p64
    %s66 = ssub.s32 %s20, %s29
    %s67 = ssub.s32 %s19, %s33
    %s68 = sor.u32 %s66, %s67
    %p69 = scmp.eq.s32.totalorder %s68, 0
    %s71 = sadd.s32 %s70, 1
    %s72 = scalar_select %p69, %s70, %s71
    %p75 = pneg %p69
    %p76 = scmp.eq.s32.totalorder %s11, 5
    %p77 = por %p75, %p76
    %p78 = scmp.ne.s32.totalorder %s70, %s73
    %p79 = scmp.eq.s32.totalorder %s11, 0
    %p80 = por %p78, %p79
    %p81 = scmp.ne.s32.totalorder %s70, %s73
    %p82 = scmp.eq.s32.totalorder %s16, 5
    %p83 = por %p81, %p82
    %p84 = scmp.ne.s32.totalorder %s73, %s74
    %p85 = scmp.eq.s32.totalorder %s16, 0
    %p86 = por %p84, %p85
    %p87 = scmp.ne.s32.totalorder %s73, %s74
    %p88 = scmp.eq.s32.totalorder %s17, 5
    %p89 = por %p87, %p88
    %p91 = scmp.ne.s32.totalorder %s74, %s90
    %p92 = scmp.eq.s32.totalorder %s17, 0
    %p93 = por %p91, %p92
    %s94 = ssub.s32 %s19, %s33
    %p95 = scmp.eq.s32.totalorder %s94, 0
    %s97 = sadd.s32 %s96, 1
    %s98 = scalar_select %p95, %s96, %s97
    %p101 = pneg %p95
    %p102 = scmp.eq.s32.totalorder %s11, 5
    %p103 = por %p101, %p102
    %p104 = scmp.ne.s32.totalorder %s96, %s99
    %p105 = scmp.eq.s32.totalorder %s11, 0
    %p106 = por %p104, %p105
    %p107 = scmp.ne.s32.totalorder %s96, %s99
    %p108 = scmp.eq.s32.totalorder %s16, 5
    %p109 = por %p107, %p108
    %p110 = scmp.ne.s32.totalorder %s99, %s100
    %p111 = scmp.eq.s32.totalorder %s16, 0
    %p112 = por %p110, %p111
    %p113 = scmp.ne.s32.totalorder %s99, %s100
    %p114 = scmp.eq.s32.totalorder %s17, 5
    %p115 = por %p113, %p114
    %p117 = scmp.ne.s32.totalorder %s100, %s116
    %p118 = scmp.eq.s32.totalorder %s17, 0
    %p119 = por %p117, %p118
    %s120 = ssub.s32 %s19, %s33
    %p121 = scmp.eq.s32.totalorder %s120, 0
    %s123 = sadd.s32 %s122, 1
    %s124 = scalar_select %p121, %s122, %s123
    %p127 = pneg %p121
    %p128 = scmp.eq.s32.totalorder %s11, 5
    %p129 = por %p127, %p128
    %p130 = scmp.ne.s32.totalorder %s122, %s125
    %p131 = scmp.eq.s32.totalorder %s11, 0
    %p132 = por %p130, %p131
    %p133 = scmp.ne.s32.totalorder %s122, %s125
    %p134 = scmp.eq.s32.totalorder %s16, 5
    %p135 = por %p133, %p134
    %p136 = scmp.ne.s32.totalorder %s125, %s126
    %p137 = scmp.eq.s32.totalorder %s16, 0
    %p138 = por %p136, %p137
    %p139 = scmp.ne.s32.totalorder %s125, %s126
    %p140 = scmp.eq.s32.totalorder %s17, 5
    %p141 = por %p139, %p140
    %p143 = scmp.ne.s32.totalorder %s126, %s142
    %p144 = scmp.eq.s32.totalorder %s17, 0
    %p145 = por %p143, %p144
    %s146 = ssub.s32 %s18, %s37
    %s147 = ssub.s32 %s19, %s33
    %s148 = sor.u32 %s146, %s147
    %p149 = scmp.eq.s32.totalorder %s148, 0
    %s151 = sadd.s32 %s150, 1
    %s152 = scalar_select %p149, %s150, %s151
    %p155 = pneg %p149
    %p156 = scmp.eq.s32.totalorder %s11, 5
    %p157 = por %p155, %p156
    %p158 = scmp.ne.s32.totalorder %s150, %s153
    %p159 = scmp.eq.s32.totalorder %s11, 0
    %p160 = por %p158, %p159
    %p161 = scmp.ne.s32.totalorder %s150, %s153
    %p162 = scmp.eq.s32.totalorder %s16, 5
    %p163 = por %p161, %p162
    %p164 = scmp.ne.s32.totalorder %s153, %s154
    %p165 = scmp.eq.s32.totalorder %s16, 0
    %p166 = por %p164, %p165
    %p167 = scmp.ne.s32.totalorder %s153, %s154
    %p168 = scmp.eq.s32.totalorder %s17, 5
    %p169 = por %p167, %p168
    %p171 = scmp.ne.s32.totalorder %s154, %s170
    %p172 = scmp.eq.s32.totalorder %s17, 0
    %p173 = por %p171, %p172
    %s174 = ssub.s32 %s18, %s37
    %s175 = ssub.s32 %s19, %s33
    %s176 = sor.u32 %s174, %s175
    %p177 = scmp.eq.s32.totalorder %s176, 0
    %s179 = sadd.s32 %s178, 1
    %s180 = scalar_select %p177, %s178, %s179
    %p183 = pneg %p177
    %p184 = scmp.eq.s32.totalorder %s11, 5
    %p185 = por %p183, %p184
    %p186 = scmp.ne.s32.totalorder %s178, %s181
    %p187 = scmp.eq.s32.totalorder %s11, 0
    %p188 = por %p186, %p187
    %p189 = scmp.ne.s32.totalorder %s178, %s181
    %p190 = scmp.eq.s32.totalorder %s16, 5
    %p191 = por %p189, %p190
    %p192 = scmp.ne.s32.totalorder %s181, %s182
    %p193 = scmp.eq.s32.totalorder %s16, 0
    %p194 = por %p192, %p193
    %p195 = scmp.ne.s32.totalorder %s181, %s182
    %p196 = scmp.eq.s32.totalorder %s17, 5
    %p197 = por %p195, %p196
    %p199 = scmp.ne.s32.totalorder %s182, %s198
    %p200 = scmp.eq.s32.totalorder %s17, 0
    %p201 = por %p199, %p200
    %p202 = scmp.le.s32.totalorder 1, %s11
    %p203 = scmp.lt.s32.totalorder %s11, 7
    %p204 = pnand %p202, %p203
    %p205 = pneg %p204
    // Predicated region
    $region9: #{custom_resnet_forward.19} parent=5 // pred_check
      _
    $region10: #{custom_resnet_forward.19} parent=5 // pred_check_branch
      %207 = sbr.rel (%p204) target = $region12
    $region11: #{custom_resnet_forward.19} parent=5 // pred_region
      %s208 = ssub.s32 %s11, 1
      // Predicated region
      $region13: #{custom_resnet_forward.19} parent=11 // pred_check
        %p209 = pneg %p112
      $region14: #{custom_resnet_forward.19} parent=11 // pred_check_branch
        %211 = sbr.rel (%p209) target = $region16
      $region15: #{custom_resnet_forward.19} parent=11 // pred_region
        %s212 = smul.u32 2, %s22
        %p213 = scmp.lt.s32.totalorder %s212, 1
        %s214 = scalar_select %p213, %s212, 1
        %s215 = scalar_lea.vmem %s2, %s214
        %s216 = smul.u32 2, %s22
      $region16: #{custom_resnet_forward.19} parent=11 // pred_fallthru
        _
      // Predicated region
      $region17: #{custom_resnet_forward.19} parent=11 // pred_check
        %p217 = pneg %p138
      $region18: #{custom_resnet_forward.19} parent=11 // pred_check_branch
        %219 = sbr.rel (%p217) target = $region20
      $region19: #{custom_resnet_forward.19} parent=11 // pred_region
        %s220 = smul.u32 2, %s22
        %p221 = scmp.lt.s32.totalorder %s220, 1
        %s222 = scalar_select %p221, %s220, 1
        %s223 = scalar_lea.vmem %s3, %s222
        %s224 = smul.u32 2, %s22
      $region20: #{custom_resnet_forward.19} parent=11 // pred_fallthru
        _
      // Predicated region
      $region21: #{custom_resnet_forward.19} parent=11 // pred_check
        %p225 = pneg %p166
      $region22: #{custom_resnet_forward.19} parent=11 // pred_check_branch
        %227 = sbr.rel (%p225) target = $region24
      $region23: #{custom_resnet_forward.19} parent=11 // pred_region
        %s228 = smul.u32 2, %s22
        %p229 = scmp.lt.s32.totalorder %s21, 0
        %s230 = scalar_select %p229, %s21, 0
        %p231 = scmp.lt.s32.totalorder %s228, 1
        %s232 = scalar_select %p231, %s228, 1
        %s233 = smul.addr %s230, 2
        %s234 = sadd.s32 %s232, %s233
        %s235 = smul.addr %s234, 8
        %s236 = scalar_lea.vmem %s4, %s235
        %s237 = smul.u32 2, %s22
      $region24: #{custom_resnet_forward.19} parent=11 // pred_fallthru
        _
    $region12: #{custom_resnet_forward.19} parent=5 // pred_fallthru
      _
    %p238 = scmp.lt.s32.totalorder %s11, 6
    // Predicated region
    $region25: #{custom_resnet_forward.19} parent=5 // pred_check
      %p239 = pneg %p238
    $region26: #{custom_resnet_forward.19} parent=5 // pred_check_branch
      %241 = sbr.rel (%p239) target = $region28
    $region27: #{custom_resnet_forward.19} parent=5 // pred_region
      // Predicated region
      $region29: #{custom_resnet_forward.19} parent=27 // pred_check
        %p242 = pneg %p52
      $region30: #{custom_resnet_forward.19} parent=27 // pred_check_branch
        %244 = sbr.rel (%p242) target = $region32
      $region31: #{custom_resnet_forward.19} parent=27 // pred_region
        %s245 = smul.u32 3, %s20
        %p246 = scmp.lt.s32.totalorder %s18, 0
        %s247 = scalar_select %p246, %s18, 0
        %p248 = scmp.lt.s32.totalorder %s245, 17
        %s249 = scalar_select %p248, %s245, 17
        %s250 = smul.addr %s247, 18
        %s251 = sadd.s32 %s249, %s250
        %s252 = smul.addr %s251, 4
        %s253 = scalar_lea.vmem %s0, %s252
        %s254 = smul.u32 3, %s20
      $region32: #{custom_resnet_forward.19} parent=27 // pred_fallthru
        _
      // Predicated region
      $region33: #{custom_resnet_forward.19} parent=27 // pred_check
        %p255 = pneg %p80
      $region34: #{custom_resnet_forward.19} parent=27 // pred_check_branch
        %257 = sbr.rel (%p255) target = $region36
      $region35: #{custom_resnet_forward.19} parent=27 // pred_region
        %s258 = smul.u32 48, %s20
        %s259 = smul.u32 2, %s19
        %p260 = scmp.lt.s32.totalorder %s258, 287
        %s261 = scalar_select %p260, %s258, 287
        %p262 = scmp.lt.s32.totalorder %s259, 1
        %s263 = scalar_select %p262, %s259, 1
        %s264 = smul.addr %s261, 2
        %s265 = sadd.s32 %s263, %s264
        %s266 = smul.addr %s265, 4
        %s267 = scalar_lea.vmem %s1, %s266
        %s268 = smul.u32 48, %s20
        %s269 = smul.u32 2, %s19
      $region36: #{custom_resnet_forward.19} parent=27 // pred_fallthru
        _
    $region28: #{custom_resnet_forward.19} parent=5 // pred_fallthru
      _
    %p270 = scmp.le.s32.totalorder 1, %s11
    %p271 = scmp.lt.s32.totalorder %s11, 7
    %p272 = pnand %p270, %p271
    %p273 = pneg %p272
    // Predicated region
    $region37: #{custom_resnet_forward.19} parent=5 // pred_check
      _
    $region38: #{custom_resnet_forward.19} parent=5 // pred_check_branch
      %275 = sbr.rel (%p272) target = $region40
    $region39: #{custom_resnet_forward.19} parent=5 // pred_region
      %s276 = ssub.s32 %s11, 1
      %s277 = smul.u32 3, %s23
      %p278 = scmp.lt.s32.totalorder %s21, 0
      %s279 = scalar_select %p278, %s21, 0
      %p280 = scmp.lt.s32.totalorder %s277, 17
      %s281 = scalar_select %p280, %s277, 17
      %s282 = smul.addr %s279, 18
      %s283 = sadd.s32 %s281, %s282
      %s284 = smul.addr %s283, 4
      %s285 = scalar_lea.vmem %s0, %s284
      %p286 = pneg %p58
      %p287 = pneg %p55
      %s288 = smul.u32 48, %s23
      %s289 = smul.u32 2, %s22
      %p290 = scmp.lt.s32.totalorder %s288, 287
      %s291 = scalar_select %p290, %s288, 287
      %p292 = scmp.lt.s32.totalorder %s289, 1
      %s293 = scalar_select %p292, %s289, 1
      %s294 = smul.addr %s291, 2
      %s295 = sadd.s32 %s293, %s294
      %s296 = smul.addr %s295, 4
      %s297 = scalar_lea.vmem %s1, %s296
      %p298 = pneg %p86
      %p299 = pneg %p83
      %s300 = smul.u32 2, %s22
      %p301 = scmp.lt.s32.totalorder %s300, 1
      %s302 = scalar_select %p301, %s300, 1
      %s303 = scalar_lea.vmem %s2, %s302
      %p304 = pneg %p112
      %p305 = pneg %p109
      %s306 = smul.u32 2, %s22
      %p307 = scmp.lt.s32.totalorder %s306, 1
      %s308 = scalar_select %p307, %s306, 1
      %s309 = scalar_lea.vmem %s3, %s308
      %p310 = pneg %p138
      %p311 = pneg %p135
      %s312 = smul.u32 2, %s22
      %p313 = scmp.lt.s32.totalorder %s21, 0
      %s314 = scalar_select %p313, %s21, 0
      %p315 = scmp.lt.s32.totalorder %s312, 1
      %s316 = scalar_select %p315, %s312, 1
      %s317 = smul.addr %s314, 2
      %s318 = sadd.s32 %s316, %s317
      %s319 = smul.addr %s318, 8
      %s320 = scalar_lea.vmem %s4, %s319
      %p321 = pneg %p166
      %p322 = pneg %p163
      %p323 = pneg %p194
      %p324 = pneg %p191
      %s325 = smul.u32 2, %s22
      %p326 = scmp.lt.s32.totalorder %s21, 0
      %s327 = scalar_select %p326, %s21, 0
      %p328 = scmp.lt.s32.totalorder %s325, 1
      %s329 = scalar_select %p328, %s325, 1
      %s330 = smul.addr %s327, 2
      %s331 = sadd.s32 %s329, %s330
      %s332 = smul.addr %s331, 8
      %s333 = scalar_lea.vmem %s5, %s332
      %s334 = smul.u32 3, %s23
      %p335 = scmp.lt.s32.totalorder %s21, 0
      %s336 = scalar_select %p335, %s21, 0
      %p337 = scmp.lt.s32.totalorder %s334, 17
      %s338 = scalar_select %p337, %s334, 17
      %s339 = smul.addr %s336, 18
      %s340 = sadd.s32 %s338, %s339
      %s341 = smul.addr %s340, 4
      %s342 = scalar_lea.vmem %s0, %s341
      %s343 = smul.u32 3, %s23
      %s344 = smul.u32 48, %s23
      %s345 = smul.u32 2, %s22
      %p346 = scmp.lt.s32.totalorder %s344, 287
      %s347 = scalar_select %p346, %s344, 287
      %p348 = scmp.lt.s32.totalorder %s345, 1
      %s349 = scalar_select %p348, %s345, 1
      %s350 = smul.addr %s347, 2
      %s351 = sadd.s32 %s349, %s350
      %s352 = smul.addr %s351, 4
      %s353 = scalar_lea.vmem %s1, %s352
      %s354 = smul.u32 48, %s23
      %s355 = smul.u32 2, %s22
      %s356 = smul.u32 2, %s22
      %p357 = scmp.lt.s32.totalorder %s356, 1
      %s358 = scalar_select %p357, %s356, 1
      %s359 = scalar_lea.vmem %s2, %s358
      %s360 = smul.u32 2, %s22
      %s361 = smul.u32 2, %s22
      %p362 = scmp.lt.s32.totalorder %s361, 1
      %s363 = scalar_select %p362, %s361, 1
      %s364 = scalar_lea.vmem %s3, %s363
      %s365 = smul.u32 2, %s22
      %s366 = smul.u32 2, %s22
      %p367 = scmp.lt.s32.totalorder %s21, 0
      %s368 = scalar_select %p367, %s21, 0
      %p369 = scmp.lt.s32.totalorder %s366, 1
      %s370 = scalar_select %p369, %s366, 1
      %s371 = smul.addr %s368, 2
      %s372 = sadd.s32 %s370, %s371
      %s373 = smul.addr %s372, 8
      %s374 = scalar_lea.vmem %s4, %s373
      %s375 = smul.u32 2, %s22
      %s376 = smul.u32 2, %s22
      %p377 = scmp.lt.s32.totalorder %s21, 0
      %s378 = scalar_select %p377, %s21, 0
      %p379 = scmp.lt.s32.totalorder %s376, 1
      %s380 = scalar_select %p379, %s376, 1
      %s381 = smul.addr %s378, 2
      %s382 = sadd.s32 %s380, %s381
      %s383 = smul.addr %s382, 8
      %s384 = scalar_lea.vmem %s5, %s383
      %s385 = smul.u32 2, %s22
      %p387 = scmp.eq.s32.totalorder %s23, 0
      // Predicated region
      $region41: #{custom_resnet_forward.19} parent=39 // pred_check
        %p388 = pneg %p387
      $region42: #{custom_resnet_forward.19} parent=39 // pred_check_branch
        %390 = sbr.rel (%p388) target = $region44
      $region43: #{custom_resnet_forward.19} parent=39 // pred_region
        %391 = vst [vmem:[#allocation2] sm:$0xff] 0.0
        %392 = vst [vmem:[#allocation2 + $0x8] sm:$0xff] 0.0
      $region44: #{custom_resnet_forward.19} parent=39 // pred_fallthru
        _
      %v393 = vld [vmem:[#allocation2] sm:$0xff]
      %v394 = vld [vmem:[#allocation2 + $0x8] sm:$0xff]
      %v395 = vld [vmem:[%s342] sm:$0xff]
      %v396 = vld [vmem:[%s342 + $0x8] sm:$0xf]
      %v397 = vld [vmem:[%s353] sm:$0xff]
      %v398 = vld [vmem:[%s353 + $0x8] sm:$0xff]
      %v399 = vld [vmem:[%s353 + $0x10] sm:$0xff]
      %v400 = vld [vmem:[%s353 + $0x18] sm:$0xff]
      %v401 = vld [vmem:[%s353 + $0x20] sm:$0xff]
      %v402 = vld [vmem:[%s353 + $0x28] sm:$0xff]
      %v403 = vld [vmem:[%s353 + $0x30] sm:$0xff]
      %v404 = vld [vmem:[%s353 + $0x38] sm:$0xff]
      %v405 = vld [vmem:[%s353 + $0x40] sm:$0xff]
      %v406 = vld [vmem:[%s353 + $0x48] sm:$0xff]
      %v407 = vld [vmem:[%s353 + $0x50] sm:$0xff]
      %v408 = vld [vmem:[%s353 + $0x58] sm:$0xff]
      %v409 = vld [vmem:[%s353 + $0x60] sm:$0xff]
      %v410 = vld [vmem:[%s353 + $0x68] sm:$0xff]
      %v411 = vld [vmem:[%s353 + $0x70] sm:$0xff]
      %v412 = vld [vmem:[%s353 + $0x78] sm:$0xff]
      %v413 = vld [vmem:[%s353 + $0x80] sm:$0xff]
      %v414 = vld [vmem:[%s353 + $0x88] sm:$0xff]
      %v415 = vld [vmem:[%s353 + $0x90] sm:$0xff]
      %v416 = vld [vmem:[%s353 + $0x98] sm:$0xff]
      %v417 = vld [vmem:[%s353 + $0xa0] sm:$0xff]
      %v418 = vld [vmem:[%s353 + $0xa8] sm:$0xff]
      %v419 = vld [vmem:[%s353 + $0xb0] sm:$0xff]
      %v420 = vld [vmem:[%s353 + $0xb8] sm:$0xff]
      %v421 = vld [vmem:[%s353 + $0xc0] sm:$0xff]
      %v422 = vld [vmem:[%s353 + $0xc8] sm:$0xff]
      %v423 = vld [vmem:[%s353 + $0xd0] sm:$0xff]
      %v424 = vld [vmem:[%s353 + $0xd8] sm:$0xff]
      %v425 = vld [vmem:[%s353 + $0xe0] sm:$0xff]
      %v426 = vld [vmem:[%s353 + $0xe8] sm:$0xff]
      %v427 = vld [vmem:[%s353 + $0xf0] sm:$0xff]
      %v428 = vld [vmem:[%s353 + $0xf8] sm:$0xff]
      %v429 = vld [vmem:[%s353 + $0x100] sm:$0xff]
      %v430 = vld [vmem:[%s353 + $0x108] sm:$0xff]
      %v431 = vld [vmem:[%s353 + $0x110] sm:$0xff]
      %v432 = vld [vmem:[%s353 + $0x118] sm:$0xff]
      %v433 = vld [vmem:[%s353 + $0x120] sm:$0xff]
      %v434 = vld [vmem:[%s353 + $0x128] sm:$0xff]
      %v435 = vld [vmem:[%s353 + $0x130] sm:$0xff]
      %v436 = vld [vmem:[%s353 + $0x138] sm:$0xff]
      %v437 = vld [vmem:[%s353 + $0x140] sm:$0xff]
      %v438 = vld [vmem:[%s353 + $0x148] sm:$0xff]
      %v439 = vld [vmem:[%s353 + $0x150] sm:$0xff]
      %v440 = vld [vmem:[%s353 + $0x158] sm:$0xff]
      %v441 = vld [vmem:[%s353 + $0x160] sm:$0xff]
      %v442 = vld [vmem:[%s353 + $0x168] sm:$0xff]
      %v443 = vld [vmem:[%s353 + $0x170] sm:$0xff]
      %v444 = vld [vmem:[%s353 + $0x178] sm:$0xff]
      %v447 = vunpack.c.l.b16 %v395
      %v448 = vunpack.c.h.b16 %v395
      %v449 = vunpack.c.l.b16 %v396
      %v450 = vpack.c.b16 %v447, %v447
      %v451 = vpack.c.b16 %v448, %v448
      %v452 = vpack.c.b16 %v449, %v449
      %v504 = vunpack.c.l.b16 %v397
      %v505 = vunpack.c.h.b16 %v397
      %v506 = vunpack.c.l.b16 %v398
      %v507 = vunpack.c.h.b16 %v398
      %v508 = vunpack.c.l.b16 %v399
      %v509 = vunpack.c.h.b16 %v399
      %v510 = vunpack.c.l.b16 %v400
      %v511 = vunpack.c.h.b16 %v400
      %v512 = vunpack.c.l.b16 %v401
      %v513 = vunpack.c.h.b16 %v401
      %v514 = vunpack.c.l.b16 %v402
      %v515 = vunpack.c.h.b16 %v402
      %v516 = vunpack.c.l.b16 %v403
      %v517 = vunpack.c.h.b16 %v403
      %v518 = vunpack.c.l.b16 %v404
      %v519 = vunpack.c.h.b16 %v404
      %v520 = vunpack.c.l.b16 %v405
      %v521 = vunpack.c.h.b16 %v405
      %v522 = vunpack.c.l.b16 %v406
      %v523 = vunpack.c.h.b16 %v406
      %v524 = vunpack.c.l.b16 %v407
      %v525 = vunpack.c.h.b16 %v407
      %v526 = vunpack.c.l.b16 %v408
      %v527 = vunpack.c.h.b16 %v408
      %v528 = vunpack.c.l.b16 %v409
      %v529 = vunpack.c.h.b16 %v409
      %v530 = vunpack.c.l.b16 %v410
      %v531 = vunpack.c.h.b16 %v410
      %v532 = vunpack.c.l.b16 %v411
      %v533 = vunpack.c.h.b16 %v411
      %v534 = vunpack.c.l.b16 %v412
      %v535 = vunpack.c.h.b16 %v412
      %v536 = vunpack.c.l.b16 %v413
      %v537 = vunpack.c.h.b16 %v413
      %v538 = vunpack.c.l.b16 %v414
      %v539 = vunpack.c.h.b16 %v414
      %v540 = vunpack.c.l.b16 %v415
      %v541 = vunpack.c.h.b16 %v415
      %v542 = vunpack.c.l.b16 %v416
      %v543 = vunpack.c.h.b16 %v416
      %v544 = vunpack.c.l.b16 %v417
      %v545 = vunpack.c.h.b16 %v417
      %v546 = vunpack.c.l.b16 %v418
      %v547 = vunpack.c.h.b16 %v418
      %v548 = vunpack.c.l.b16 %v419
      %v549 = vunpack.c.h.b16 %v419
      %v550 = vunpack.c.l.b16 %v420
      %v551 = vunpack.c.h.b16 %v420
      %v552 = vunpack.c.l.b16 %v421
      %v553 = vunpack.c.h.b16 %v421
      %v554 = vunpack.c.l.b16 %v422
      %v555 = vunpack.c.h.b16 %v422
      %v556 = vunpack.c.l.b16 %v423
      %v557 = vunpack.c.h.b16 %v423
      %v558 = vunpack.c.l.b16 %v424
      %v559 = vunpack.c.h.b16 %v424
      %v560 = vunpack.c.l.b16 %v425
      %v561 = vunpack.c.h.b16 %v425
      %v562 = vunpack.c.l.b16 %v426
      %v563 = vunpack.c.h.b16 %v426
      %v564 = vunpack.c.l.b16 %v427
      %v565 = vunpack.c.h.b16 %v427
      %v566 = vunpack.c.l.b16 %v428
      %v567 = vunpack.c.h.b16 %v428
      %v568 = vunpack.c.l.b16 %v429
      %v569 = vunpack.c.h.b16 %v429
      %v570 = vunpack.c.l.b16 %v430
      %v571 = vunpack.c.h.b16 %v430
      %v572 = vunpack.c.l.b16 %v431
      %v573 = vunpack.c.h.b16 %v431
      %v574 = vunpack.c.l.b16 %v432
      %v575 = vunpack.c.h.b16 %v432
      %v576 = vunpack.c.l.b16 %v433
      %v577 = vunpack.c.h.b16 %v433
      %v578 = vunpack.c.l.b16 %v434
      %v579 = vunpack.c.h.b16 %v434
      %v580 = vunpack.c.l.b16 %v435
      %v581 = vunpack.c.h.b16 %v435
      %v582 = vunpack.c.l.b16 %v436
      %v583 = vunpack.c.h.b16 %v436
      %v584 = vunpack.c.l.b16 %v437
      %v585 = vunpack.c.h.b16 %v437
      %v586 = vunpack.c.l.b16 %v438
      %v587 = vunpack.c.h.b16 %v438
      %v588 = vunpack.c.l.b16 %v439
      %v589 = vunpack.c.h.b16 %v439
      %v590 = vunpack.c.l.b16 %v440
      %v591 = vunpack.c.h.b16 %v440
      %v592 = vunpack.c.l.b16 %v441
      %v593 = vunpack.c.h.b16 %v441
      %v594 = vunpack.c.l.b16 %v442
      %v595 = vunpack.c.h.b16 %v442
      %v596 = vunpack.c.l.b16 %v443
      %v597 = vunpack.c.h.b16 %v443
      %v598 = vunpack.c.l.b16 %v444
      %v599 = vunpack.c.h.b16 %v444
      %v600 = vpack.c.b16 %v506, %v504
      %v601 = vpack.c.b16 %v507, %v505
      %v602 = vpack.c.b16 %v510, %v508
      %v603 = vpack.c.b16 %v511, %v509
      %v604 = vpack.c.b16 %v514, %v512
      %v605 = vpack.c.b16 %v515, %v513
      %v606 = vpack.c.b16 %v518, %v516
      %v607 = vpack.c.b16 %v519, %v517
      %v608 = vpack.c.b16 %v522, %v520
      %v609 = vpack.c.b16 %v523, %v521
      %v610 = vpack.c.b16 %v526, %v524
      %v611 = vpack.c.b16 %v527, %v525
      %v612 = vpack.c.b16 %v530, %v528
      %v613 = vpack.c.b16 %v531, %v529
      %v614 = vpack.c.b16 %v534, %v532
      %v615 = vpack.c.b16 %v535, %v533
      %v616 = vpack.c.b16 %v538, %v536
      %v617 = vpack.c.b16 %v539, %v537
      %v618 = vpack.c.b16 %v542, %v540
      %v619 = vpack.c.b16 %v543, %v541
      %v620 = vpack.c.b16 %v546, %v544
      %v621 = vpack.c.b16 %v547, %v545
      %v622 = vpack.c.b16 %v550, %v548
      %v623 = vpack.c.b16 %v551, %v549
      %v624 = vpack.c.b16 %v554, %v552
      %v625 = vpack.c.b16 %v555, %v553
      %v626 = vpack.c.b16 %v558, %v556
      %v627 = vpack.c.b16 %v559, %v557
      %v628 = vpack.c.b16 %v562, %v560
      %v629 = vpack.c.b16 %v563, %v561
      %v630 = vpack.c.b16 %v566, %v564
      %v631 = vpack.c.b16 %v567, %v565
      %v632 = vpack.c.b16 %v570, %v568
      %v633 = vpack.c.b16 %v571, %v569
      %v634 = vpack.c.b16 %v574, %v572
      %v635 = vpack.c.b16 %v575, %v573
      %v636 = vpack.c.b16 %v578, %v576
      %v637 = vpack.c.b16 %v579, %v577
      %v638 = vpack.c.b16 %v582, %v580
      %v639 = vpack.c.b16 %v583, %v581
      %v640 = vpack.c.b16 %v586, %v584
      %v641 = vpack.c.b16 %v587, %v585
      %v642 = vpack.c.b16 %v590, %v588
      %v643 = vpack.c.b16 %v591, %v589
      %v644 = vpack.c.b16 %v594, %v592
      %v645 = vpack.c.b16 %v595, %v593
      %v646 = vpack.c.b16 %v598, %v596
      %v647 = vpack.c.b16 %v599, %v597
      %696 = vmatprep.subr.bf16.mxu0 %v615
      %697 = vmatpush1.bf16.msra.mxu0 %v614
      %698 = vmatprep.subr.bf16.mxu0 %v613
      %699 = vmatpush1.bf16.msra.mxu0 %v612
      %700 = vmatprep.subr.bf16.mxu0 %v611
      %701 = vmatpush1.bf16.msra.mxu0 %v610
      %702 = vmatprep.subr.bf16.mxu0 %v609
      %703 = vmatpush1.bf16.msra.mxu0 %v608
      %704 = vmatprep.subr.bf16.mxu0 %v607
      %705 = vmatpush1.bf16.msra.mxu0 %v606
      %706 = vmatprep.subr.bf16.mxu0 %v605
      %707 = vmatpush1.bf16.msra.mxu0 %v604
      %708 = vmatprep.subr.bf16.mxu0 %v603
      %709 = vmatpush1.bf16.msra.mxu0 %v602
      %710 = vmatprep.subr.bf16.mxu0 %v601
      %711 = vmatpush1.bf16.msra.mxu0 %v600
      %712 = vmatprep.subr.bf16.mxu0 %v631
      %713 = vmatpush2.bf16.msra.mxu0 %v630
      %714 = vmatprep.subr.bf16.mxu0 %v629
      %715 = vmatpush2.bf16.msra.mxu0 %v628
      %716 = vmatprep.subr.bf16.mxu0 %v627
      %717 = vmatpush2.bf16.msra.mxu0 %v626
      %718 = vmatprep.subr.bf16.mxu0 %v625
      %719 = vmatpush2.bf16.msra.mxu0 %v624
      %720 = vmatprep.subr.bf16.mxu0 %v623
      %721 = vmatpush2.bf16.msra.mxu0 %v622
      %722 = vmatprep.subr.bf16.mxu0 %v621
      %723 = vmatpush2.bf16.msra.mxu0 %v620
      %724 = vmatprep.subr.bf16.mxu0 %v619
      %725 = vmatpush2.bf16.msra.mxu0 %v618
      %726 = vmatprep.subr.bf16.mxu0 %v617
      %727 = vmatpush2.bf16.msra.mxu0 %v616
      %728 = vmatprep.mubr.bf16.mxu0 %v451
      %729 = vmatmul.mubr.bf16.gmra.mxu0 %v450
      %v730 = vpop.f32.mrf.mxu0
      %v731 = vadd.f32 0.0, %v730
      %v732 = vpop.f32.mrf.mxu0
      %v733 = vadd.f32 0.0, %v732
      %v734 = vpop.f32.mrf.mxu0
      %v735 = vpop.f32.mrf.mxu0
      %736 = vdwg.mxu0
      %737 = vmatprep.subr.bf16.mxu0 %v647
      %738 = vmatpush1.bf16.msra.mxu0 %v646
      %739 = vmatprep.subr.bf16.mxu0 %v645
      %740 = vmatpush1.bf16.msra.mxu0 %v644
      %741 = vmatprep.subr.bf16.mxu0 %v643
      %742 = vmatpush1.bf16.msra.mxu0 %v642
      %743 = vmatprep.subr.bf16.mxu0 %v641
      %744 = vmatpush1.bf16.msra.mxu0 %v640
      %745 = vmatprep.subr.bf16.mxu0 %v639
      %746 = vmatpush1.bf16.msra.mxu0 %v638
      %747 = vmatprep.subr.bf16.mxu0 %v637
      %748 = vmatpush1.bf16.msra.mxu0 %v636
      %749 = vmatprep.subr.bf16.mxu0 %v635
      %750 = vmatpush1.bf16.msra.mxu0 %v634
      %751 = vmatprep.subr.bf16.mxu0 %v633
      %752 = vmatpush1.bf16.msra.mxu0 %v632
      %753 = vmatprep.subr.bf16.mxu0 0
      %754 = vmatpush2.bf16.msra.mxu0 0
      %755 = vmatprep.subr.bf16.mxu0 0
      %756 = vmatpush2.bf16.msra.mxu0 0
      %757 = vmatprep.subr.bf16.mxu0 0
      %758 = vmatpush2.bf16.msra.mxu0 0
      %759 = vmatprep.subr.bf16.mxu0 0
      %760 = vmatpush2.bf16.msra.mxu0 0
      %761 = vmatprep.subr.bf16.mxu0 0
      %762 = vmatpush2.bf16.msra.mxu0 0
      %763 = vmatprep.subr.bf16.mxu0 0
      %764 = vmatpush2.bf16.msra.mxu0 0
      %765 = vmatprep.subr.bf16.mxu0 0
      %766 = vmatpush2.bf16.msra.mxu0 0
      %767 = vmatprep.subr.bf16.mxu0 0
      %768 = vmatpush2.bf16.msra.mxu0 0
      %769 = vmatprep.mubr.bf16.mxu0 0
      %770 = vmatmul.mubr.bf16.gmra.mxu0 %v452
      %v771 = vpop.f32.mrf.mxu0
      %v772 = vadd.f32 %v731, %v771
      %v773 = vpop.f32.mrf.mxu0
      %v774 = vadd.f32 %v733, %v773
      %v775 = vpop.f32.mrf.mxu0
      %v776 = vpop.f32.mrf.mxu0
      %777 = vdwg.mxu0
      %v778 = vadd.f32 %v393, %v772
      %v779 = vadd.f32 %v394, %v774
      %780 = vst [vmem:[#allocation2] sm:$0xff] %v778
      %781 = vst [vmem:[#allocation2 + $0x8] sm:$0xff] %v779
      %p782 = scmp.eq.s32.totalorder %s23, 5
      // Predicated region
      $region45: #{custom_resnet_forward.19} parent=39 // pred_check
        %p783 = pneg %p782
      $region46: #{custom_resnet_forward.19} parent=39 // pred_check_branch
        %785 = sbr.rel (%p783) target = $region48
      $region47: #{custom_resnet_forward.19} parent=39 // pred_region
        %v786 = vld [vmem:[#allocation2] sm:$0xff]
        %v787 = vld [vmem:[#allocation2 + $0x8] sm:$0xff]
        %v788 = vld [vmem:[%s359] sm:$0x3]
        %v790 = vlaneseq
        %v791 = vshrl.u32 %v790, 7
        %v792 = vsub.s32 0, %v791
        %v793 = vrot.slane %v788, %v792
        %v794 = vlaneseq
        %v795 = vshrl.u32 %v794, 7
        %v796 = vsub.s32 1, %v795
        %v797 = vrot.slane %v788, %v796
        %v800 = vmul.f32 %v786, %v793
        %v801 = vmul.f32 %v787, %v797
        %v802 = vld [vmem:[%s364] sm:$0x3]
        %v804 = vlaneseq
        %v805 = vshrl.u32 %v804, 7
        %v806 = vsub.s32 0, %v805
        %v807 = vrot.slane %v802, %v806
        %v808 = vlaneseq
        %v809 = vshrl.u32 %v808, 7
        %v810 = vsub.s32 1, %v809
        %v811 = vrot.slane %v802, %v810
        %v814 = vadd.f32 %v800, %v807
        %v815 = vadd.f32 %v801, %v811
        %v816 = vld [vmem:[%s374] sm:$0xff]
        %v817 = vld [vmem:[%s374 + $0x8] sm:$0xff]
        %v818 = vadd.f32 %v814, %v816
        %v819 = vadd.f32 %v815, %v817
        %v820 = vmax.f32 %v818, 0.0
        %v821 = vmax.f32 %v819, 0.0
        %822 = vst [vmem:[%s384] sm:$0xff] %v820
        %823 = vst [vmem:[%s384 + $0x8] sm:$0xff] %v821
      $region48: #{custom_resnet_forward.19} parent=39 // pred_fallthru
        _
      %s824 = smul.u32 2, %s22
      %p825 = scmp.lt.s32.totalorder %s21, 0
      %s826 = scalar_select %p825, %s21, 0
      %p827 = scmp.lt.s32.totalorder %s824, 1
      %s828 = scalar_select %p827, %s824, 1
      %s829 = smul.addr %s826, 2
      %s830 = sadd.s32 %s828, %s829
      %s831 = smul.addr %s830, 8
      %s832 = scalar_lea.vmem %s5, %s831
      // Predicated region
      $region49: #{custom_resnet_forward.19} parent=39 // pred_check
        %p833 = pneg %p191
      $region50: #{custom_resnet_forward.19} parent=39 // pred_check_branch
        %835 = sbr.rel (%p833) target = $region52
      $region51: #{custom_resnet_forward.19} parent=39 // pred_region
        %s836 = smul.u32 2, %s22
      $region52: #{custom_resnet_forward.19} parent=39 // pred_fallthru
        _
      // Predicated region
      $region53: #{custom_resnet_forward.19} parent=39 // pred_check
        %p837 = pneg %p191
      $region54: #{custom_resnet_forward.19} parent=39 // pred_check_branch
        %839 = sbr.rel (%p837) target = $region56
      $region55: #{custom_resnet_forward.19} parent=39 // pred_region
        %s840 = smul.u32 2, %s22
        %p841 = scmp.lt.s32.totalorder %s21, 0
        %s842 = scalar_select %p841, %s21, 0
        %p843 = scmp.lt.s32.totalorder %s840, 1
        %s844 = scalar_select %p843, %s840, 1
        %s845 = smul.addr %s842, 2
        %s846 = sadd.s32 %s844, %s845
        %s847 = smul.addr %s846, 8
        %s848 = scalar_lea.vmem %s5, %s847
      $region56: #{custom_resnet_forward.19} parent=39 // pred_fallthru
        _
    $region40: #{custom_resnet_forward.19} parent=5 // pred_fallthru
      _
    %p849 = scmp.le.s32.totalorder 2, %s11
    // Predicated region
    $region57: #{custom_resnet_forward.19} parent=5 // pred_check
      %p850 = pneg %p849
    $region58: #{custom_resnet_forward.19} parent=5 // pred_check_branch
      %852 = sbr.rel (%p850) target = $region60
    $region59: #{custom_resnet_forward.19} parent=5 // pred_region
      %s853 = ssub.s32 %s11, 2
    $region60: #{custom_resnet_forward.19} parent=5 // pred_fallthru
      _
  $region6: #{custom_resnet_forward.19} parent=0 // loop_footer
    %s15 = sadd.s32 1, %s11
  $region7: #{custom_resnet_forward.19} parent=0 // loop_footer_branch
    %10 = sbr.rel target = $region3
  $region8: #{custom_resnet_forward.19} parent=0 // loop_exit
    _

// kernel: custom_resnet_forward.21
$region0: #{custom_resnet_forward.21}
  #allocation0 [shape = 'u32[]', space=smem, size = 0x4, offset = 0x4, fixed_abs, tag = 'smem constant byte address 0x4 - core index']
  #allocation1 [shape = 'u32[144,128]{1,0:T(1,128)}', space=vmem, size = 0x12000, scoped, tag = 'internal scratch']
  #allocation2 [shape = 'f32[8,256]{1,0:T(8,128)}', space=vmem, size = 0x2000, scoped, tag = 'scratch operand']
  %s0 = inlined_call_operand.vmem [shape: bf16[8,2304], index: 0, kind: input, shape index: {}]
  %s1 = inlined_call_operand.vmem [shape: bf16[2304,512], index: 1, kind: input, shape index: {}]
  %s2 = inlined_call_operand.vmem [shape: f32[1,512], index: 2, kind: input, shape index: {}]
  %s3 = inlined_call_operand.vmem [shape: f32[1,512], index: 3, kind: input, shape index: {}]
  %s4 = inlined_call_operand.vmem [shape: f32[8,512], index: 4, kind: output, shape index: {}]
  %s5 = sld [smem:[#allocation0]]
  $region95: #{custom_resnet_forward.21} parent=0
    _
  %s7 = ssub.s32 1, %s5
  %s8 = scalar_select 0, %s7, %s5
  $region1: #{custom_resnet_forward.21} parent=0
    #allocation3 [shape = 'u8[393216]{0}', space=vmem, size = 0x60000, scoped, tag = 'input window, operand 1']
    loop: start=0, step=1, limit=14
    $region2: #{custom_resnet_forward.21} parent=1 // loop_pre_header
      _
    $region3: #{custom_resnet_forward.21} parent=1 // loop_header
      %s10 = sphi 0, %s14
      %p11 = scmp.ge.s32.totalorder %s10, 14
      %s17 = sphi 0, %s36
      %s18 = sphi 0, %s32
      %s19 = sphi 0, %s28
      %s20 = sphi 0, %s17
      %s21 = sphi 0, %s18
      %s22 = sphi 0, %s19
      %s23 = sphi 0, %s20
      %s24 = sphi 0, %s21
      %s25 = sphi 0, %s22
      %s41 = sphi 0, %s43
      %s44 = sphi 0, %s41
      %s45 = sphi 0, %s44
      %s61 = sphi 0, %s45
      %s69 = sphi 0, %s71
      %s72 = sphi 0, %s69
      %s73 = sphi 0, %s72
      %s89 = sphi 0, %s73
      %s95 = sphi 0, %s97
      %s98 = sphi 0, %s95
      %s99 = sphi 0, %s98
      %s115 = sphi 0, %s99
      %s121 = sphi 0, %s123
      %s124 = sphi 0, %s121
      %s125 = sphi 0, %s124
      %s141 = sphi 0, %s125
      %s149 = sphi 0, %s151
      %s152 = sphi 0, %s149
      %s153 = sphi 0, %s152
      %s169 = sphi 0, %s153
    $region4: #{custom_resnet_forward.21} parent=1 // loop_header_branch
      %13 = sbr.rel (%p11) target = $region8
    $region5: #{custom_resnet_forward.21} parent=1 // loop_body
      %s15 = ssub.s32 %s10, 1
      %s16 = ssub.s32 %s10, 2
      %s26 = sadd.s32 1, %s19
      %p27 = scmp.ge.s32.totalorder %s26, 6
      %s28 = scalar_select %p27, 0, %s26
      %s29 = sadd.s32 1, %s18
      %s30 = scalar_select %p27, %s29, %s18
      %p31 = scmp.ge.s32.totalorder %s30, 2
      %s32 = scalar_select %p31, 0, %s30
      %s33 = sadd.s32 1, %s17
      %s34 = scalar_select %p31, %s33, %s17
      %p35 = scmp.ge.s32.totalorder %s34, 1
      %s36 = scalar_select %p35, 0, %s34
      %s37 = ssub.s32 %s17, %s36
      %s38 = ssub.s32 %s19, %s28
      %s39 = sor.u32 %s37, %s38
      %p40 = scmp.eq.s32.totalorder %s39, 0
      %s42 = sadd.s32 %s41, 1
      %s43 = scalar_select %p40, %s41, %s42
      %p46 = pneg %p40
      %p47 = scmp.eq.s32.totalorder %s10, 11
      %p48 = por %p46, %p47
      %p49 = scmp.ne.s32.totalorder %s41, %s44
      %p50 = scmp.eq.s32.totalorder %s10, 0
      %p51 = por %p49, %p50
      %p52 = scmp.ne.s32.totalorder %s41, %s44
      %p53 = scmp.eq.s32.totalorder %s15, 11
      %p54 = por %p52, %p53
      %p55 = scmp.ne.s32.totalorder %s44, %s45
      %p56 = scmp.eq.s32.totalorder %s15, 0
      %p57 = por %p55, %p56
      %p58 = scmp.ne.s32.totalorder %s44, %s45
      %p59 = scmp.eq.s32.totalorder %s16, 11
      %p60 = por %p58, %p59
      %p62 = scmp.ne.s32.totalorder %s45, %s61
      %p63 = scmp.eq.s32.totalorder %s16, 0
      %p64 = por %p62, %p63
      %s65 = ssub.s32 %s19, %s28
      %s66 = ssub.s32 %s18, %s32
      %s67 = sor.u32 %s65, %s66
      %p68 = scmp.eq.s32.totalorder %s67, 0
      %s70 = sadd.s32 %s69, 1
      %s71 = scalar_select %p68, %s69, %s70
      %p74 = pneg %p68
      %p75 = scmp.eq.s32.totalorder %s10, 11
      %p76 = por %p74, %p75
      %p77 = scmp.ne.s32.totalorder %s69, %s72
      %p78 = scmp.eq.s32.totalorder %s10, 0
      %p79 = por %p77, %p78
      %p80 = scmp.ne.s32.totalorder %s69, %s72
      %p81 = scmp.eq.s32.totalorder %s15, 11
      %p82 = por %p80, %p81
      %p83 = scmp.ne.s32.totalorder %s72, %s73
      %p84 = scmp.eq.s32.totalorder %s15, 0
      %p85 = por %p83, %p84
      %p86 = scmp.ne.s32.totalorder %s72, %s73
      %p87 = scmp.eq.s32.totalorder %s16, 11
      %p88 = por %p86, %p87
      %p90 = scmp.ne.s32.totalorder %s73, %s89
      %p91 = scmp.eq.s32.totalorder %s16, 0
      %p92 = por %p90, %p91
      %s93 = ssub.s32 %s18, %s32
      %p94 = scmp.eq.s32.totalorder %s93, 0
      %s96 = sadd.s32 %s95, 1
      %s97 = scalar_select %p94, %s95, %s96
      %p100 = pneg %p94
      %p101 = scmp.eq.s32.totalorder %s10, 11
      %p102 = por %p100, %p101
      %p103 = scmp.ne.s32.totalorder %s95, %s98
      %p104 = scmp.eq.s32.totalorder %s10, 0
      %p105 = por %p103, %p104
      %p106 = scmp.ne.s32.totalorder %s95, %s98
      %p107 = scmp.eq.s32.totalorder %s15, 11
      %p108 = por %p106, %p107
      %p109 = scmp.ne.s32.totalorder %s98, %s99
      %p110 = scmp.eq.s32.totalorder %s15, 0
      %p111 = por %p109, %p110
      %p112 = scmp.ne.s32.totalorder %s98, %s99
      %p113 = scmp.eq.s32.totalorder %s16, 11
      %p114 = por %p112, %p113
      %p116 = scmp.ne.s32.totalorder %s99, %s115
      %p117 = scmp.eq.s32.totalorder %s16, 0
      %p118 = por %p116, %p117
      %s119 = ssub.s32 %s18, %s32
      %p120 = scmp.eq.s32.totalorder %s119, 0
      %s122 = sadd.s32 %s121, 1
      %s123 = scalar_select %p120, %s121, %s122
      %p126 = pneg %p120
      %p127 = scmp.eq.s32.totalorder %s10, 11
      %p128 = por %p126, %p127
      %p129 = scmp.ne.s32.totalorder %s121, %s124
      %p130 = scmp.eq.s32.totalorder %s10, 0
      %p131 = por %p129, %p130
      %p132 = scmp.ne.s32.totalorder %s121, %s124
      %p133 = scmp.eq.s32.totalorder %s15, 11
      %p134 = por %p132, %p133
      %p135 = scmp.ne.s32.totalorder %s124, %s125
      %p136 = scmp.eq.s32.totalorder %s15, 0
      %p137 = por %p135, %p136
      %p138 = scmp.ne.s32.totalorder %s124, %s125
      %p139 = scmp.eq.s32.totalorder %s16, 11
      %p140 = por %p138, %p139
      %p142 = scmp.ne.s32.totalorder %s125, %s141
      %p143 = scmp.eq.s32.totalorder %s16, 0
      %p144 = por %p142, %p143
      %s145 = ssub.s32 %s17, %s36
      %s146 = ssub.s32 %s18, %s32
      %s147 = sor.u32 %s145, %s146
      %p148 = scmp.eq.s32.totalorder %s147, 0
      %s150 = sadd.s32 %s149, 1
      %s151 = scalar_select %p148, %s149, %s150
      %p154 = pneg %p148
      %p155 = scmp.eq.s32.totalorder %s10, 11
      %p156 = por %p154, %p155
      %p157 = scmp.ne.s32.totalorder %s149, %s152
      %p158 = scmp.eq.s32.totalorder %s10, 0
      %p159 = por %p157, %p158
      %p160 = scmp.ne.s32.totalorder %s149, %s152
      %p161 = scmp.eq.s32.totalorder %s15, 11
      %p162 = por %p160, %p161
      %p163 = scmp.ne.s32.totalorder %s152, %s153
      %p164 = scmp.eq.s32.totalorder %s15, 0
      %p165 = por %p163, %p164
      %p166 = scmp.ne.s32.totalorder %s152, %s153
      %p167 = scmp.eq.s32.totalorder %s16, 11
      %p168 = por %p166, %p167
      %p170 = scmp.ne.s32.totalorder %s153, %s169
      %p171 = scmp.eq.s32.totalorder %s16, 0
      %p172 = por %p170, %p171
      %p173 = scmp.le.s32.totalorder 1, %s10
      %p174 = scmp.lt.s32.totalorder %s10, 13
      %p175 = pnand %p173, %p174
      %p176 = pneg %p175
      // Predicated region
      $region9: #{custom_resnet_forward.21} parent=5 // pred_check
        _
      $region10: #{custom_resnet_forward.21} parent=5 // pred_check_branch
        %178 = sbr.rel (%p175) target = $region12
      $region11: #{custom_resnet_forward.21} parent=5 // pred_region
        %s179 = ssub.s32 %s10, 1
      $region12: #{custom_resnet_forward.21} parent=5 // pred_fallthru
        _
      %p180 = scmp.lt.s32.totalorder %s10, 12
      // Predicated region
      $region13: #{custom_resnet_forward.21} parent=5 // pred_check
        %p181 = pneg %p180
      $region14: #{custom_resnet_forward.21} parent=5 // pred_check_branch
        %183 = sbr.rel (%p181) target = $region16
      $region15: #{custom_resnet_forward.21} parent=5 // pred_region
        // Predicated region
        $region17: #{custom_resnet_forward.21} parent=15 // pred_check
          %p184 = pneg %p51
        $region18: #{custom_resnet_forward.21} parent=15 // pred_check_branch
          %186 = sbr.rel (%p184) target = $region20
        $region19: #{custom_resnet_forward.21} parent=15 // pred_region
          %s187 = smul.u32 3, %s19
          %p188 = scmp.lt.s32.totalorder %s17, 0
          %s189 = scalar_select %p188, %s17, 0
          %p190 = scmp.lt.s32.totalorder %s187, 17
          %s191 = scalar_select %p190, %s187, 17
          %s192 = smul.addr %s189, 18
          %s193 = sadd.s32 %s191, %s192
          %s194 = smul.addr %s193, 4
          %s195 = scalar_lea.vmem %s0, %s194
          %s196 = smul.u32 3, %s19
        $region20: #{custom_resnet_forward.21} parent=15 // pred_fallthru
          _
        // Predicated region
        $region21: #{custom_resnet_forward.21} parent=15 // pred_check
          %p197 = pneg %p79
        $region22: #{custom_resnet_forward.21} parent=15 // pred_check_branch
          %199 = sbr.rel (%p197) target = $region24
        $region23: #{custom_resnet_forward.21} parent=15 // pred_region
          %s200 = sand.u32 %s69, 1
          %s201 = sand.u32 %s69, 1
          %s202 = smul.addr %s201, 384
          %s203 = scalar_lea.vmem [#allocation3], %s202
          %s204 = smul.u32 48, %s19
          %s205 = smul.u32 2, %s18
          %s206 = smul.addr %s204, 4
          %s207 = sadd.s32 %s205, %s206
          %s208 = smul.addr %s207, 4
          %s209 = scalar_lea.vmem %s1, %s208
          // Predicated region
          $region25: #{custom_resnet_forward.21} parent=23 // pred_check
            _
          $region26: #{custom_resnet_forward.21} parent=23 // pred_check_branch
            %211 = sbr.rel (0) target = $region28
          $region27: #{custom_resnet_forward.21} parent=23 // pred_region
            // Predicated region
            $region29: #{custom_resnet_forward.21} parent=27 // pred_check
              _
            $region30: #{custom_resnet_forward.21} parent=27 // pred_check_branch
              %213 = sbr.rel (0) target = $region32
            $region31: #{custom_resnet_forward.21} parent=27 // pred_region
              // Predicated region
              $region44: #{custom_resnet_forward.21} parent=31 // pred_check
                _
              $region45: #{custom_resnet_forward.21} parent=31 // pred_check_branch
                %323 = sbr.rel (0) target = $region47
              $region46: #{custom_resnet_forward.21} parent=31 // pred_region
                loop: start=0, step=1, limit=1
                $region48: #{custom_resnet_forward.21} parent=46 // loop_pre_header
                  _
                $region49: #{custom_resnet_forward.21} parent=46 // loop_header
                  %s325 = sphi 0, %s329
                  %p326 = scmp.ge.s32.totalorder %s325, 1
                  %s330 = sphi %s209, %s209
                  %s331 = sphi %s203, %s203
                $region50: #{custom_resnet_forward.21} parent=46 // loop_header_branch
                  %328 = sbr.rel (%p326) target = $region54
                $region51: #{custom_resnet_forward.21} parent=46 // loop_body
                  %v332 = vld [vmem:[%s330] sm:$0xff]
                  %333 = vst [vmem:[%s331] sm:$0xff] %v332
                  %v334 = vld [vmem:[%s330 + $0x10] sm:$0xff]
                  %335 = vst [vmem:[%s331 + $0x8] sm:$0xff] %v334
                  %v336 = vld [vmem:[%s330 + $0x20] sm:$0xff]
                  %337 = vst [vmem:[%s331 + $0x10] sm:$0xff] %v336
                  %v338 = vld [vmem:[%s330 + $0x30] sm:$0xff]
                  %339 = vst [vmem:[%s331 + $0x18] sm:$0xff] %v338
                  %v340 = vld [vmem:[%s330 + $0x40] sm:$0xff]
                  %341 = vst [vmem:[%s331 + $0x20] sm:$0xff] %v340
                  %v342 = vld [vmem:[%s330 + $0x50] sm:$0xff]
                  %343 = vst [vmem:[%s331 + $0x28] sm:$0xff] %v342
                  %v344 = vld [vmem:[%s330 + $0x60] sm:$0xff]
                  %345 = vst [vmem:[%s331 + $0x30] sm:$0xff] %v344
                  %v346 = vld [vmem:[%s330 + $0x70] sm:$0xff]
                  %347 = vst [vmem:[%s331 + $0x38] sm:$0xff] %v346
                  %v348 = vld [vmem:[%s330 + $0x80] sm:$0xff]
                  %349 = vst [vmem:[%s331 + $0x40] sm:$0xff] %v348
                  %v350 = vld [vmem:[%s330 + $0x90] sm:$0xff]
                  %351 = vst [vmem:[%s331 + $0x48] sm:$0xff] %v350
                  %v352 = vld [vmem:[%s330 + $0xa0] sm:$0xff]
                  %353 = vst [vmem:[%s331 + $0x50] sm:$0xff] %v352
                  %v354 = vld [vmem:[%s330 + $0xb0] sm:$0xff]
                  %355 = vst [vmem:[%s331 + $0x58] sm:$0xff] %v354
                  %v356 = vld [vmem:[%s330 + $0xc0] sm:$0xff]
                  %357 = vst [vmem:[%s331 + $0x60] sm:$0xff] %v356
                  %v358 = vld [vmem:[%s330 + $0xd0] sm:$0xff]
                  %359 = vst [vmem:[%s331 + $0x68] sm:$0xff] %v358
                  %v360 = vld [vmem:[%s330 + $0xe0] sm:$0xff]
                  %361 = vst [vmem:[%s331 + $0x70] sm:$0xff] %v360
                  %v362 = vld [vmem:[%s330 + $0xf0] sm:$0xff]
                  %363 = vst [vmem:[%s331 + $0x78] sm:$0xff] %v362
                  %v364 = vld [vmem:[%s330 + $0x100] sm:$0xff]
                  %365 = vst [vmem:[%s331 + $0x80] sm:$0xff] %v364
                  %v366 = vld [vmem:[%s330 + $0x110] sm:$0xff]
                  %367 = vst [vmem:[%s331 + $0x88] sm:$0xff] %v366
                  %v368 = vld [vmem:[%s330 + $0x120] sm:$0xff]
                  %369 = vst [vmem:[%s331 + $0x90] sm:$0xff] %v368
                  %v370 = vld [vmem:[%s330 + $0x130] sm:$0xff]
                  %371 = vst [vmem:[%s331 + $0x98] sm:$0xff] %v370
                  %v372 = vld [vmem:[%s330 + $0x140] sm:$0xff]
                  %373 = vst [vmem:[%s331 + $0xa0] sm:$0xff] %v372
                  %v374 = vld [vmem:[%s330 + $0x150] sm:$0xff]
                  %375 = vst [vmem:[%s331 + $0xa8] sm:$0xff] %v374
                  %v376 = vld [vmem:[%s330 + $0x160] sm:$0xff]
                  %377 = vst [vmem:[%s331 + $0xb0] sm:$0xff] %v376
                  %v378 = vld [vmem:[%s330 + $0x170] sm:$0xff]
                  %379 = vst [vmem:[%s331 + $0xb8] sm:$0xff] %v378
                  %v380 = vld [vmem:[%s330 + $0x180] sm:$0xff]
                  %381 = vst [vmem:[%s331 + $0xc0] sm:$0xff] %v380
                  %v382 = vld [vmem:[%s330 + $0x190] sm:$0xff]
                  %383 = vst [vmem:[%s331 + $0xc8] sm:$0xff] %v382
                  %v384 = vld [vmem:[%s330 + $0x1a0] sm:$0xff]
                  %385 = vst [vmem:[%s331 + $0xd0] sm:$0xff] %v384
                  %v386 = vld [vmem:[%s330 + $0x1b0] sm:$0xff]
                  %387 = vst [vmem:[%s331 + $0xd8] sm:$0xff] %v386
                  %v388 = vld [vmem:[%s330 + $0x1c0] sm:$0xff]
                  %389 = vst [vmem:[%s331 + $0xe0] sm:$0xff] %v388
                  %v390 = vld [vmem:[%s330 + $0x1d0] sm:$0xff]
                  %391 = vst [vmem:[%s331 + $0xe8] sm:$0xff] %v390
                  %v392 = vld [vmem:[%s330 + $0x1e0] sm:$0xff]
                  %393 = vst [vmem:[%s331 + $0xf0] sm:$0xff] %v392
                  %v394 = vld [vmem:[%s330 + $0x1f0] sm:$0xff]
                  %395 = vst [vmem:[%s331 + $0xf8] sm:$0xff] %v394
                  %v396 = vld [vmem:[%s330 + $0x200] sm:$0xff]
                  %397 = vst [vmem:[%s331 + $0x100] sm:$0xff] %v396
                  %v398 = vld [vmem:[%s330 + $0x210] sm:$0xff]
                  %399 = vst [vmem:[%s331 + $0x108] sm:$0xff] %v398
                  %v400 = vld [vmem:[%s330 + $0x220] sm:$0xff]
                  %401 = vst [vmem:[%s331 + $0x110] sm:$0xff] %v400
                  %v402 = vld [vmem:[%s330 + $0x230] sm:$0xff]
                  %403 = vst [vmem:[%s331 + $0x118] sm:$0xff] %v402
                  %v404 = vld [vmem:[%s330 + $0x240] sm:$0xff]
                  %405 = vst [vmem:[%s331 + $0x120] sm:$0xff] %v404
                  %v406 = vld [vmem:[%s330 + $0x250] sm:$0xff]
                  %407 = vst [vmem:[%s331 + $0x128] sm:$0xff] %v406
                  %v408 = vld [vmem:[%s330 + $0x260] sm:$0xff]
                  %409 = vst [vmem:[%s331 + $0x130] sm:$0xff] %v408
                  %v410 = vld [vmem:[%s330 + $0x270] sm:$0xff]
                  %411 = vst [vmem:[%s331 + $0x138] sm:$0xff] %v410
                  %v412 = vld [vmem:[%s330 + $0x280] sm:$0xff]
                  %413 = vst [vmem:[%s331 + $0x140] sm:$0xff] %v412
                  %v414 = vld [vmem:[%s330 + $0x290] sm:$0xff]
                  %415 = vst [vmem:[%s331 + $0x148] sm:$0xff] %v414
                  %v416 = vld [vmem:[%s330 + $0x2a0] sm:$0xff]
                  %417 = vst [vmem:[%s331 + $0x150] sm:$0xff] %v416
                  %v418 = vld [vmem:[%s330 + $0x2b0] sm:$0xff]
                  %419 = vst [vmem:[%s331 + $0x158] sm:$0xff] %v418
                  %v420 = vld [vmem:[%s330 + $0x2c0] sm:$0xff]
                  %421 = vst [vmem:[%s331 + $0x160] sm:$0xff] %v420
                  %v422 = vld [vmem:[%s330 + $0x2d0] sm:$0xff]
                  %423 = vst [vmem:[%s331 + $0x168] sm:$0xff] %v422
                  %v424 = vld [vmem:[%s330 + $0x2e0] sm:$0xff]
                  %425 = vst [vmem:[%s331 + $0x170] sm:$0xff] %v424
                  %v426 = vld [vmem:[%s330 + $0x2f0] sm:$0xff]
                  %427 = vst [vmem:[%s331 + $0x178] sm:$0xff] %v426
                $region52: #{custom_resnet_forward.21} parent=46 // loop_footer
                  %s329 = sadd.s32 1, %s325
                $region53: #{custom_resnet_forward.21} parent=46 // loop_footer_branch
                  %324 = sbr.rel target = $region49
                $region54: #{custom_resnet_forward.21} parent=46 // loop_exit
                  _
              $region47: #{custom_resnet_forward.21} parent=31 // pred_fallthru
                _
              // Predicated region
              $region55: #{custom_resnet_forward.21} parent=31 // pred_check
                _
              $region56: #{custom_resnet_forward.21} parent=31 // pred_check_branch
                %429 = sbr.rel target = $region58
              $region57: #{custom_resnet_forward.21} parent=31 // pred_region
                _
              $region58: #{custom_resnet_forward.21} parent=31 // pred_fallthru
                _
            $region32: #{custom_resnet_forward.21} parent=27 // pred_fallthru
              _
            // Predicated region
            $region33: #{custom_resnet_forward.21} parent=27 // pred_check
              _
            $region34: #{custom_resnet_forward.21} parent=27 // pred_check_branch
              %215 = sbr.rel target = $region36
            $region35: #{custom_resnet_forward.21} parent=27 // pred_region
              %s217 = ssub.s32 256, 1
              loop: start=0, step=1, limit=1
              $region37: #{custom_resnet_forward.21} parent=35 // loop_pre_header
                _
              $region38: #{custom_resnet_forward.21} parent=35 // loop_header
                %s219 = sphi 0, %s223
                %p220 = scmp.ge.s32.totalorder %s219, 1
                %s224 = sphi %s209, %s209
                %s225 = sphi %s203, %s203
              $region39: #{custom_resnet_forward.21} parent=35 // loop_header_branch
                %222 = sbr.rel (%p220) target = $region43
              $region40: #{custom_resnet_forward.21} parent=35 // loop_body
                %v226 = vld [vmem:[%s224] sm:%s217]
                %227 = vst [vmem:[%s225] sm:%s217] %v226
                %v228 = vld [vmem:[%s224 + $0x10] sm:%s217]
                %229 = vst [vmem:[%s225 + $0x8] sm:%s217] %v228
                %v230 = vld [vmem:[%s224 + $0x20] sm:%s217]
                %231 = vst [vmem:[%s225 + $0x10] sm:%s217] %v230
                %v232 = vld [vmem:[%s224 + $0x30] sm:%s217]
                %233 = vst [vmem:[%s225 + $0x18] sm:%s217] %v232
                %v234 = vld [vmem:[%s224 + $0x40] sm:%s217]
                %235 = vst [vmem:[%s225 + $0x20] sm:%s217] %v234
                %v236 = vld [vmem:[%s224 + $0x50] sm:%s217]
                %237 = vst [vmem:[%s225 + $0x28] sm:%s217] %v236
                %v238 = vld [vmem:[%s224 + $0x60] sm:%s217]
                %239 = vst [vmem:[%s225 + $0x30] sm:%s217] %v238
                %v240 = vld [vmem:[%s224 + $0x70] sm:%s217]
                %241 = vst [vmem:[%s225 + $0x38] sm:%s217] %v240
                %v242 = vld [vmem:[%s224 + $0x80] sm:%s217]
                %243 = vst [vmem:[%s225 + $0x40] sm:%s217] %v242
                %v244 = vld [vmem:[%s224 + $0x90] sm:%s217]
                %245 = vst [vmem:[%s225 + $0x48] sm:%s217] %v244
                %v246 = vld [vmem:[%s224 + $0xa0] sm:%s217]
                %247 = vst [vmem:[%s225 + $0x50] sm:%s217] %v246
                %v248 = vld [vmem:[%s224 + $0xb0] sm:%s217]
                %249 = vst [vmem:[%s225 + $0x58] sm:%s217] %v248
                %v250 = vld [vmem:[%s224 + $0xc0] sm:%s217]
                %251 = vst [vmem:[%s225 + $0x60] sm:%s217] %v250
                %v252 = vld [vmem:[%s224 + $0xd0] sm:%s217]
                %253 = vst [vmem:[%s225 + $0x68] sm:%s217] %v252
                %v254 = vld [vmem:[%s224 + $0xe0] sm:%s217]
                %255 = vst [vmem:[%s225 + $0x70] sm:%s217] %v254
                %v256 = vld [vmem:[%s224 + $0xf0] sm:%s217]
                %257 = vst [vmem:[%s225 + $0x78] sm:%s217] %v256
                %v258 = vld [vmem:[%s224 + $0x100] sm:%s217]
                %259 = vst [vmem:[%s225 + $0x80] sm:%s217] %v258
                %v260 = vld [vmem:[%s224 + $0x110] sm:%s217]
                %261 = vst [vmem:[%s225 + $0x88] sm:%s217] %v260
                %v262 = vld [vmem:[%s224 + $0x120] sm:%s217]
                %263 = vst [vmem:[%s225 + $0x90] sm:%s217] %v262
                %v264 = vld [vmem:[%s224 + $0x130] sm:%s217]
                %265 = vst [vmem:[%s225 + $0x98] sm:%s217] %v264
                %v266 = vld [vmem:[%s224 + $0x140] sm:%s217]
                %267 = vst [vmem:[%s225 + $0xa0] sm:%s217] %v266
                %v268 = vld [vmem:[%s224 + $0x150] sm:%s217]
                %269 = vst [vmem:[%s225 + $0xa8] sm:%s217] %v268
                %v270 = vld [vmem:[%s224 + $0x160] sm:%s217]
                %271 = vst [vmem:[%s225 + $0xb0] sm:%s217] %v270
                %v272 = vld [vmem:[%s224 + $0x170] sm:%s217]
                %273 = vst [vmem:[%s225 + $0xb8] sm:%s217] %v272
                %v274 = vld [vmem:[%s224 + $0x180] sm:%s217]
                %275 = vst [vmem:[%s225 + $0xc0] sm:%s217] %v274
                %v276 = vld [vmem:[%s224 + $0x190] sm:%s217]
                %277 = vst [vmem:[%s225 + $0xc8] sm:%s217] %v276
                %v278 = vld [vmem:[%s224 + $0x1a0] sm:%s217]
                %279 = vst [vmem:[%s225 + $0xd0] sm:%s217] %v278
                %v280 = vld [vmem:[%s224 + $0x1b0] sm:%s217]
                %281 = vst [vmem:[%s225 + $0xd8] sm:%s217] %v280
                %v282 = vld [vmem:[%s224 + $0x1c0] sm:%s217]
                %283 = vst [vmem:[%s225 + $0xe0] sm:%s217] %v282
                %v284 = vld [vmem:[%s224 + $0x1d0] sm:%s217]
                %285 = vst [vmem:[%s225 + $0xe8] sm:%s217] %v284
                %v286 = vld [vmem:[%s224 + $0x1e0] sm:%s217]
                %287 = vst [vmem:[%s225 + $0xf0] sm:%s217] %v286
                %v288 = vld [vmem:[%s224 + $0x1f0] sm:%s217]
                %289 = vst [vmem:[%s225 + $0xf8] sm:%s217] %v288
                %v290 = vld [vmem:[%s224 + $0x200] sm:%s217]
                %291 = vst [vmem:[%s225 + $0x100] sm:%s217] %v290
                %v292 = vld [vmem:[%s224 + $0x210] sm:%s217]
                %293 = vst [vmem:[%s225 + $0x108] sm:%s217] %v292
                %v294 = vld [vmem:[%s224 + $0x220] sm:%s217]
                %295 = vst [vmem:[%s225 + $0x110] sm:%s217] %v294
                %v296 = vld [vmem:[%s224 + $0x230] sm:%s217]
                %297 = vst [vmem:[%s225 + $0x118] sm:%s217] %v296
                %v298 = vld [vmem:[%s224 + $0x240] sm:%s217]
                %299 = vst [vmem:[%s225 + $0x120] sm:%s217] %v298
                %v300 = vld [vmem:[%s224 + $0x250] sm:%s217]
                %301 = vst [vmem:[%s225 + $0x128] sm:%s217] %v300
                %v302 = vld [vmem:[%s224 + $0x260] sm:%s217]
                %303 = vst [vmem:[%s225 + $0x130] sm:%s217] %v302
                %v304 = vld [vmem:[%s224 + $0x270] sm:%s217]
                %305 = vst [vmem:[%s225 + $0x138] sm:%s217] %v304
                %v306 = vld [vmem:[%s224 + $0x280] sm:%s217]
                %307 = vst [vmem:[%s225 + $0x140] sm:%s217] %v306
                %v308 = vld [vmem:[%s224 + $0x290] sm:%s217]
                %309 = vst [vmem:[%s225 + $0x148] sm:%s217] %v308
                %v310 = vld [vmem:[%s224 + $0x2a0] sm:%s217]
                %311 = vst [vmem:[%s225 + $0x150] sm:%s217] %v310
                %v312 = vld [vmem:[%s224 + $0x2b0] sm:%s217]
                %313 = vst [vmem:[%s225 + $0x158] sm:%s217] %v312
                %v314 = vld [vmem:[%s224 + $0x2c0] sm:%s217]
                %315 = vst [vmem:[%s225 + $0x160] sm:%s217] %v314
                %v316 = vld [vmem:[%s224 + $0x2d0] sm:%s217]
                %317 = vst [vmem:[%s225 + $0x168] sm:%s217] %v316
                %v318 = vld [vmem:[%s224 + $0x2e0] sm:%s217]
                %319 = vst [vmem:[%s225 + $0x170] sm:%s217] %v318
                %v320 = vld [vmem:[%s224 + $0x2f0] sm:%s217]
                %321 = vst [vmem:[%s225 + $0x178] sm:%s217] %v320
              $region41: #{custom_resnet_forward.21} parent=35 // loop_footer
                %s223 = sadd.s32 1, %s219
              $region42: #{custom_resnet_forward.21} parent=35 // loop_footer_branch
                %218 = sbr.rel target = $region38
              $region43: #{custom_resnet_forward.21} parent=35 // loop_exit
                _
            $region36: #{custom_resnet_forward.21} parent=27 // pred_fallthru
              _
          $region28: #{custom_resnet_forward.21} parent=23 // pred_fallthru
            _
          %430 = vnop
        $region24: #{custom_resnet_forward.21} parent=15 // pred_fallthru
          _
        // Predicated region
        $region59: #{custom_resnet_forward.21} parent=15 // pred_check
          %p431 = pneg %p105
        $region60: #{custom_resnet_forward.21} parent=15 // pred_check_branch
          %433 = sbr.rel (%p431) target = $region62
        $region61: #{custom_resnet_forward.21} parent=15 // pred_region
          %s434 = smul.u32 2, %s18
          %p435 = scmp.lt.s32.totalorder %s434, 3
          %s436 = scalar_select %p435, %s434, 3
          %s437 = scalar_lea.vmem %s2, %s436
          %s438 = smul.u32 2, %s18
        $region62: #{custom_resnet_forward.21} parent=15 // pred_fallthru
          _
        // Predicated region
        $region63: #{custom_resnet_forward.21} parent=15 // pred_check
          %p439 = pneg %p131
        $region64: #{custom_resnet_forward.21} parent=15 // pred_check_branch
          %441 = sbr.rel (%p439) target = $region66
        $region65: #{custom_resnet_forward.21} parent=15 // pred_region
          %s442 = smul.u32 2, %s18
          %p443 = scmp.lt.s32.totalorder %s442, 3
          %s444 = scalar_select %p443, %s442, 3
          %s445 = scalar_lea.vmem %s3, %s444
          %s446 = smul.u32 2, %s18
        $region66: #{custom_resnet_forward.21} parent=15 // pred_fallthru
          _
      $region16: #{custom_resnet_forward.21} parent=5 // pred_fallthru
        _
      %p447 = scmp.le.s32.totalorder 1, %s10
      %p448 = scmp.lt.s32.totalorder %s10, 13
      %p449 = pnand %p447, %p448
      %p450 = pneg %p449
      // Predicated region
      $region67: #{custom_resnet_forward.21} parent=5 // pred_check
        _
      $region68: #{custom_resnet_forward.21} parent=5 // pred_check_branch
        %452 = sbr.rel (%p449) target = $region70
      $region69: #{custom_resnet_forward.21} parent=5 // pred_region
        %s453 = ssub.s32 %s10, 1
        %s454 = sand.u32 %s72, 1
        %s455 = sand.u32 %s72, 1
        %s456 = smul.addr %s455, 384
        %s457 = scalar_lea.vmem [#allocation3], %s456
        // Predicated region
        $region71: #{custom_resnet_forward.21} parent=69 // pred_check
          %p458 = pneg %p85
        $region72: #{custom_resnet_forward.21} parent=69 // pred_check_branch
          %460 = sbr.rel (%p458) target = $region74
        $region73: #{custom_resnet_forward.21} parent=69 // pred_region
          _
        $region74: #{custom_resnet_forward.21} parent=69 // pred_fallthru
          _
        %s461 = smul.u32 3, %s22
        %p462 = scmp.lt.s32.totalorder %s20, 0
        %s463 = scalar_select %p462, %s20, 0
        %p464 = scmp.lt.s32.totalorder %s461, 17
        %s465 = scalar_select %p464, %s461, 17
        %s466 = smul.addr %s463, 18
        %s467 = sadd.s32 %s465, %s466
        %s468 = smul.addr %s467, 4
        %s469 = scalar_lea.vmem %s0, %s468
        %p470 = pneg %p57
        %p471 = pneg %p54
        %s472 = sand.u32 %s72, 1
        %s473 = sand.u32 %s72, 1
        %s474 = smul.addr %s473, 384
        %s475 = scalar_lea.vmem [#allocation3], %s474
        %p476 = pneg %p85
        %p477 = pneg %p82
        %s478 = smul.u32 2, %s21
        %p479 = scmp.lt.s32.totalorder %s478, 3
        %s480 = scalar_select %p479, %s478, 3
        %s481 = scalar_lea.vmem %s2, %s480
        %p482 = pneg %p111
        %p483 = pneg %p108
        %s484 = smul.u32 2, %s21
        %p485 = scmp.lt.s32.totalorder %s484, 3
        %s486 = scalar_select %p485, %s484, 3
        %s487 = scalar_lea.vmem %s3, %s486
        %p488 = pneg %p137
        %p489 = pneg %p134
        %p490 = pneg %p165
        %p491 = pneg %p162
        %s492 = smul.u32 2, %s21
        %p493 = scmp.lt.s32.totalorder %s20, 0
        %s494 = scalar_select %p493, %s20, 0
        %p495 = scmp.lt.s32.totalorder %s492, 3
        %s496 = scalar_select %p495, %s492, 3
        %s497 = smul.addr %s494, 4
        %s498 = sadd.s32 %s496, %s497
        %s499 = smul.addr %s498, 8
        %s500 = scalar_lea.vmem %s4, %s499
        %s501 = smul.u32 3, %s22
        %p502 = scmp.lt.s32.totalorder %s20, 0
        %s503 = scalar_select %p502, %s20, 0
        %p504 = scmp.lt.s32.totalorder %s501, 17
        %s505 = scalar_select %p504, %s501, 17
        %s506 = smul.addr %s503, 18
        %s507 = sadd.s32 %s505, %s506
        %s508 = smul.addr %s507, 4
        %s509 = scalar_lea.vmem %s0, %s508
        %s510 = smul.u32 3, %s22
        %s511 = smul.u32 48, %s22
        %s512 = smul.u32 2, %s21
        %s513 = smul.u32 2, %s21
        %p514 = scmp.lt.s32.totalorder %s513, 3
        %s515 = scalar_select %p514, %s513, 3
        %s516 = scalar_lea.vmem %s2, %s515
        %s517 = smul.u32 2, %s21
        %s518 = smul.u32 2, %s21
        %p519 = scmp.lt.s32.totalorder %s518, 3
        %s520 = scalar_select %p519, %s518, 3
        %s521 = scalar_lea.vmem %s3, %s520
        %s522 = smul.u32 2, %s21
        %s523 = smul.u32 2, %s21
        %p524 = scmp.lt.s32.totalorder %s20, 0
        %s525 = scalar_select %p524, %s20, 0
        %p526 = scmp.lt.s32.totalorder %s523, 3
        %s527 = scalar_select %p526, %s523, 3
        %s528 = smul.addr %s525, 4
        %s529 = sadd.s32 %s527, %s528
        %s530 = smul.addr %s529, 8
        %s531 = scalar_lea.vmem %s4, %s530
        %s532 = smul.u32 2, %s21
        %p534 = scmp.eq.s32.totalorder %s22, 0
        // Predicated region
        $region75: #{custom_resnet_forward.21} parent=69 // pred_check
          %p535 = pneg %p534
        $region76: #{custom_resnet_forward.21} parent=69 // pred_check_branch
          %537 = sbr.rel (%p535) target = $region78
        $region77: #{custom_resnet_forward.21} parent=69 // pred_region
          %538 = vst [vmem:[#allocation2] sm:$0xff] 0.0
          %539 = vst [vmem:[#allocation2 + $0x8] sm:$0xff] 0.0
        $region78: #{custom_resnet_forward.21} parent=69 // pred_fallthru
          _
        %v540 = vld [vmem:[#allocation2] sm:$0xff]
        %v541 = vld [vmem:[#allocation2 + $0x8] sm:$0xff]
        %v542 = vld [vmem:[%s509] sm:$0xff]
        %v543 = vld [vmem:[%s509 + $0x8] sm:$0xf]
        %v544 = vld [vmem:[%s457] sm:$0xff]
        %v545 = vld [vmem:[%s457 + $0x8] sm:$0xff]
        %v546 = vld [vmem:[%s457 + $0x10] sm:$0xff]
        %v547 = vld [vmem:[%s457 + $0x18] sm:$0xff]
        %v548 = vld [vmem:[%s457 + $0x20] sm:$0xff]
        %v549 = vld [vmem:[%s457 + $0x28] sm:$0xff]
        %v550 = vld [vmem:[%s457 + $0x30] sm:$0xff]
        %v551 = vld [vmem:[%s457 + $0x38] sm:$0xff]
        %v552 = vld [vmem:[%s457 + $0x40] sm:$0xff]
        %v553 = vld [vmem:[%s457 + $0x48] sm:$0xff]
        %v554 = vld [vmem:[%s457 + $0x50] sm:$0xff]
        %v555 = vld [vmem:[%s457 + $0x58] sm:$0xff]
        %v556 = vld [vmem:[%s457 + $0x60] sm:$0xff]
        %v557 = vld [vmem:[%s457 + $0x68] sm:$0xff]
        %v558 = vld [vmem:[%s457 + $0x70] sm:$0xff]
        %v559 = vld [vmem:[%s457 + $0x78] sm:$0xff]
        %v560 = vld [vmem:[%s457 + $0x80] sm:$0xff]
        %v561 = vld [vmem:[%s457 + $0x88] sm:$0xff]
        %v562 = vld [vmem:[%s457 + $0x90] sm:$0xff]
        %v563 = vld [vmem:[%s457 + $0x98] sm:$0xff]
        %v564 = vld [vmem:[%s457 + $0xa0] sm:$0xff]
        %v565 = vld [vmem:[%s457 + $0xa8] sm:$0xff]
        %v566 = vld [vmem:[%s457 + $0xb0] sm:$0xff]
        %v567 = vld [vmem:[%s457 + $0xb8] sm:$0xff]
        %v568 = vld [vmem:[%s457 + $0xc0] sm:$0xff]
        %v569 = vld [vmem:[%s457 + $0xc8] sm:$0xff]
        %v570 = vld [vmem:[%s457 + $0xd0] sm:$0xff]
        %v571 = vld [vmem:[%s457 + $0xd8] sm:$0xff]
        %v572 = vld [vmem:[%s457 + $0xe0] sm:$0xff]
        %v573 = vld [vmem:[%s457 + $0xe8] sm:$0xff]
        %v574 = vld [vmem:[%s457 + $0xf0] sm:$0xff]
        %v575 = vld [vmem:[%s457 + $0xf8] sm:$0xff]
        %v576 = vld [vmem:[%s457 + $0x100] sm:$0xff]
        %v577 = vld [vmem:[%s457 + $0x108] sm:$0xff]
        %v578 = vld [vmem:[%s457 + $0x110] sm:$0xff]
        %v579 = vld [vmem:[%s457 + $0x118] sm:$0xff]
        %v580 = vld [vmem:[%s457 + $0x120] sm:$0xff]
        %v581 = vld [vmem:[%s457 + $0x128] sm:$0xff]
        %v582 = vld [vmem:[%s457 + $0x130] sm:$0xff]
        %v583 = vld [vmem:[%s457 + $0x138] sm:$0xff]
        %v584 = vld [vmem:[%s457 + $0x140] sm:$0xff]
        %v585 = vld [vmem:[%s457 + $0x148] sm:$0xff]
        %v586 = vld [vmem:[%s457 + $0x150] sm:$0xff]
        %v587 = vld [vmem:[%s457 + $0x158] sm:$0xff]
        %v588 = vld [vmem:[%s457 + $0x160] sm:$0xff]
        %v589 = vld [vmem:[%s457 + $0x168] sm:$0xff]
        %v590 = vld [vmem:[%s457 + $0x170] sm:$0xff]
        %v591 = vld [vmem:[%s457 + $0x178] sm:$0xff]
        %v594 = vunpack.c.l.b16 %v542
        %v595 = vunpack.c.h.b16 %v542
        %v596 = vunpack.c.l.b16 %v543
        %v597 = vpack.c.b16 %v594, %v594
        %v598 = vpack.c.b16 %v595, %v595
        %v599 = vpack.c.b16 %v596, %v596
        %v651 = vunpack.c.l.b16 %v544
        %v652 = vunpack.c.h.b16 %v544
        %v653 = vunpack.c.l.b16 %v545
        %v654 = vunpack.c.h.b16 %v545
        %v655 = vunpack.c.l.b16 %v546
        %v656 = vunpack.c.h.b16 %v546
        %v657 = vunpack.c.l.b16 %v547
        %v658 = vunpack.c.h.b16 %v547
        %v659 = vunpack.c.l.b16 %v548
        %v660 = vunpack.c.h.b16 %v548
        %v661 = vunpack.c.l.b16 %v549
        %v662 = vunpack.c.h.b16 %v549
        %v663 = vunpack.c.l.b16 %v550
        %v664 = vunpack.c.h.b16 %v550
        %v665 = vunpack.c.l.b16 %v551
        %v666 = vunpack.c.h.b16 %v551
        %v667 = vunpack.c.l.b16 %v552
        %v668 = vunpack.c.h.b16 %v552
        %v669 = vunpack.c.l.b16 %v553
        %v670 = vunpack.c.h.b16 %v553
        %v671 = vunpack.c.l.b16 %v554
        %v672 = vunpack.c.h.b16 %v554
        %v673 = vunpack.c.l.b16 %v555
        %v674 = vunpack.c.h.b16 %v555
        %v675 = vunpack.c.l.b16 %v556
        %v676 = vunpack.c.h.b16 %v556
        %v677 = vunpack.c.l.b16 %v557
        %v678 = vunpack.c.h.b16 %v557
        %v679 = vunpack.c.l.b16 %v558
        %v680 = vunpack.c.h.b16 %v558
        %v681 = vunpack.c.l.b16 %v559
        %v682 = vunpack.c.h.b16 %v559
        %v683 = vunpack.c.l.b16 %v560
        %v684 = vunpack.c.h.b16 %v560
        %v685 = vunpack.c.l.b16 %v561
        %v686 = vunpack.c.h.b16 %v561
        %v687 = vunpack.c.l.b16 %v562
        %v688 = vunpack.c.h.b16 %v562
        %v689 = vunpack.c.l.b16 %v563
        %v690 = vunpack.c.h.b16 %v563
        %v691 = vunpack.c.l.b16 %v564
        %v692 = vunpack.c.h.b16 %v564
        %v693 = vunpack.c.l.b16 %v565
        %v694 = vunpack.c.h.b16 %v565
        %v695 = vunpack.c.l.b16 %v566
        %v696 = vunpack.c.h.b16 %v566
        %v697 = vunpack.c.l.b16 %v567
        %v698 = vunpack.c.h.b16 %v567
        %v699 = vunpack.c.l.b16 %v568
        %v700 = vunpack.c.h.b16 %v568
        %v701 = vunpack.c.l.b16 %v569
        %v702 = vunpack.c.h.b16 %v569
        %v703 = vunpack.c.l.b16 %v570
        %v704 = vunpack.c.h.b16 %v570
        %v705 = vunpack.c.l.b16 %v571
        %v706 = vunpack.c.h.b16 %v571
        %v707 = vunpack.c.l.b16 %v572
        %v708 = vunpack.c.h.b16 %v572
        %v709 = vunpack.c.l.b16 %v573
        %v710 = vunpack.c.h.b16 %v573
        %v711 = vunpack.c.l.b16 %v574
        %v712 = vunpack.c.h.b16 %v574
        %v713 = vunpack.c.l.b16 %v575
        %v714 = vunpack.c.h.b16 %v575
        %v715 = vunpack.c.l.b16 %v576
        %v716 = vunpack.c.h.b16 %v576
        %v717 = vunpack.c.l.b16 %v577
        %v718 = vunpack.c.h.b16 %v577
        %v719 = vunpack.c.l.b16 %v578
        %v720 = vunpack.c.h.b16 %v578
        %v721 = vunpack.c.l.b16 %v579
        %v722 = vunpack.c.h.b16 %v579
        %v723 = vunpack.c.l.b16 %v580
        %v724 = vunpack.c.h.b16 %v580
        %v725 = vunpack.c.l.b16 %v581
        %v726 = vunpack.c.h.b16 %v581
        %v727 = vunpack.c.l.b16 %v582
        %v728 = vunpack.c.h.b16 %v582
        %v729 = vunpack.c.l.b16 %v583
        %v730 = vunpack.c.h.b16 %v583
        %v731 = vunpack.c.l.b16 %v584
        %v732 = vunpack.c.h.b16 %v584
        %v733 = vunpack.c.l.b16 %v585
        %v734 = vunpack.c.h.b16 %v585
        %v735 = vunpack.c.l.b16 %v586
        %v736 = vunpack.c.h.b16 %v586
        %v737 = vunpack.c.l.b16 %v587
        %v738 = vunpack.c.h.b16 %v587
        %v739 = vunpack.c.l.b16 %v588
        %v740 = vunpack.c.h.b16 %v588
        %v741 = vunpack.c.l.b16 %v589
        %v742 = vunpack.c.h.b16 %v589
        %v743 = vunpack.c.l.b16 %v590
        %v744 = vunpack.c.h.b16 %v590
        %v745 = vunpack.c.l.b16 %v591
        %v746 = vunpack.c.h.b16 %v591
        %v747 = vpack.c.b16 %v653, %v651
        %v748 = vpack.c.b16 %v654, %v652
        %v749 = vpack.c.b16 %v657, %v655
        %v750 = vpack.c.b16 %v658, %v656
        %v751 = vpack.c.b16 %v661, %v659
        %v752 = vpack.c.b16 %v662, %v660
        %v753 = vpack.c.b16 %v665, %v663
        %v754 = vpack.c.b16 %v666, %v664
        %v755 = vpack.c.b16 %v669, %v667
        %v756 = vpack.c.b16 %v670, %v668
        %v757 = vpack.c.b16 %v673, %v671
        %v758 = vpack.c.b16 %v674, %v672
        %v759 = vpack.c.b16 %v677, %v675
        %v760 = vpack.c.b16 %v678, %v676
        %v761 = vpack.c.b16 %v681, %v679
        %v762 = vpack.c.b16 %v682, %v680
        %v763 = vpack.c.b16 %v685, %v683
        %v764 = vpack.c.b16 %v686, %v684
        %v765 = vpack.c.b16 %v689, %v687
        %v766 = vpack.c.b16 %v690, %v688
        %v767 = vpack.c.b16 %v693, %v691
        %v768 = vpack.c.b16 %v694, %v692
        %v769 = vpack.c.b16 %v697, %v695
        %v770 = vpack.c.b16 %v698, %v696
        %v771 = vpack.c.b16 %v701, %v699
        %v772 = vpack.c.b16 %v702, %v700
        %v773 = vpack.c.b16 %v705, %v703
        %v774 = vpack.c.b16 %v706, %v704
        %v775 = vpack.c.b16 %v709, %v707
        %v776 = vpack.c.b16 %v710, %v708
        %v777 = vpack.c.b16 %v713, %v711
        %v778 = vpack.c.b16 %v714, %v712
        %v779 = vpack.c.b16 %v717, %v715
        %v780 = vpack.c.b16 %v718, %v716
        %v781 = vpack.c.b16 %v721, %v719
        %v782 = vpack.c.b16 %v722, %v720
        %v783 = vpack.c.b16 %v725, %v723
        %v784 = vpack.c.b16 %v726, %v724
        %v785 = vpack.c.b16 %v729, %v727
        %v786 = vpack.c.b16 %v730, %v728
        %v787 = vpack.c.b16 %v733, %v731
        %v788 = vpack.c.b16 %v734, %v732
        %v789 = vpack.c.b16 %v737, %v735
        %v790 = vpack.c.b16 %v738, %v736
        %v791 = vpack.c.b16 %v741, %v739
        %v792 = vpack.c.b16 %v742, %v740
        %v793 = vpack.c.b16 %v745, %v743
        %v794 = vpack.c.b16 %v746, %v744
        %843 = vmatprep.subr.bf16.mxu0 %v762
        %844 = vmatpush1.bf16.msra.mxu0 %v761
        %845 = vmatprep.subr.bf16.mxu0 %v760
        %846 = vmatpush1.bf16.msra.mxu0 %v759
        %847 = vmatprep.subr.bf16.mxu0 %v758
        %848 = vmatpush1.bf16.msra.mxu0 %v757
        %849 = vmatprep.subr.bf16.mxu0 %v756
        %850 = vmatpush1.bf16.msra.mxu0 %v755
        %851 = vmatprep.subr.bf16.mxu0 %v754
        %852 = vmatpush1.bf16.msra.mxu0 %v753
        %853 = vmatprep.subr.bf16.mxu0 %v752
        %854 = vmatpush1.bf16.msra.mxu0 %v751
        %855 = vmatprep.subr.bf16.mxu0 %v750
        %856 = vmatpush1.bf16.msra.mxu0 %v749
        %857 = vmatprep.subr.bf16.mxu0 %v748
        %858 = vmatpush1.bf16.msra.mxu0 %v747
        %859 = vmatprep.subr.bf16.mxu0 %v778
        %860 = vmatpush2.bf16.msra.mxu0 %v777
        %861 = vmatprep.subr.bf16.mxu0 %v776
        %862 = vmatpush2.bf16.msra.mxu0 %v775
        %863 = vmatprep.subr.bf16.mxu0 %v774
        %864 = vmatpush2.bf16.msra.mxu0 %v773
        %865 = vmatprep.subr.bf16.mxu0 %v772
        %866 = vmatpush2.bf16.msra.mxu0 %v771
        %867 = vmatprep.subr.bf16.mxu0 %v770
        %868 = vmatpush2.bf16.msra.mxu0 %v769
        %869 = vmatprep.subr.bf16.mxu0 %v768
        %870 = vmatpush2.bf16.msra.mxu0 %v767
        %871 = vmatprep.subr.bf16.mxu0 %v766
        %872 = vmatpush2.bf16.msra.mxu0 %v765
        %873 = vmatprep.subr.bf16.mxu0 %v764
        %874 = vmatpush2.bf16.msra.mxu0 %v763
        %875 = vmatprep.mubr.bf16.mxu0 %v598
        %876 = vmatmul.mubr.bf16.gmra.mxu0 %v597
        %v877 = vpop.f32.mrf.mxu0
        %v878 = vadd.f32 0.0, %v877
        %v879 = vpop.f32.mrf.mxu0
        %v880 = vadd.f32 0.0, %v879
        %v881 = vpop.f32.mrf.mxu0
        %v882 = vpop.f32.mrf.mxu0
        %883 = vdwg.mxu0
        %884 = vmatprep.subr.bf16.mxu0 %v794
        %885 = vmatpush1.bf16.msra.mxu0 %v793
        %886 = vmatprep.subr.bf16.mxu0 %v792
        %887 = vmatpush1.bf16.msra.mxu0 %v791
        %888 = vmatprep.subr.bf16.mxu0 %v790
        %889 = vmatpush1.bf16.msra.mxu0 %v789
        %890 = vmatprep.subr.bf16.mxu0 %v788
        %891 = vmatpush1.bf16.msra.mxu0 %v787
        %892 = vmatprep.subr.bf16.mxu0 %v786
        %893 = vmatpush1.bf16.msra.mxu0 %v785
        %894 = vmatprep.subr.bf16.mxu0 %v784
        %895 = vmatpush1.bf16.msra.mxu0 %v783
        %896 = vmatprep.subr.bf16.mxu0 %v782
        %897 = vmatpush1.bf16.msra.mxu0 %v781
        %898 = vmatprep.subr.bf16.mxu0 %v780
        %899 = vmatpush1.bf16.msra.mxu0 %v779
        %900 = vmatprep.subr.bf16.mxu0 0
        %901 = vmatpush2.bf16.msra.mxu0 0
        %902 = vmatprep.subr.bf16.mxu0 0
        %903 = vmatpush2.bf16.msra.mxu0 0
        %904 = vmatprep.subr.bf16.mxu0 0
        %905 = vmatpush2.bf16.msra.mxu0 0
        %906 = vmatprep.subr.bf16.mxu0 0
        %907 = vmatpush2.bf16.msra.mxu0 0
        %908 = vmatprep.subr.bf16.mxu0 0
        %909 = vmatpush2.bf16.msra.mxu0 0
        %910 = vmatprep.subr.bf16.mxu0 0
        %911 = vmatpush2.bf16.msra.mxu0 0
        %912 = vmatprep.subr.bf16.mxu0 0
        %913 = vmatpush2.bf16.msra.mxu0 0
        %914 = vmatprep.subr.bf16.mxu0 0
        %915 = vmatpush2.bf16.msra.mxu0 0
        %916 = vmatprep.mubr.bf16.mxu0 0
        %917 = vmatmul.mubr.bf16.gmra.mxu0 %v599
        %v918 = vpop.f32.mrf.mxu0
        %v919 = vadd.f32 %v878, %v918
        %v920 = vpop.f32.mrf.mxu0
        %v921 = vadd.f32 %v880, %v920
        %v922 = vpop.f32.mrf.mxu0
        %v923 = vpop.f32.mrf.mxu0
        %924 = vdwg.mxu0
        %v925 = vadd.f32 %v540, %v919
        %v926 = vadd.f32 %v541, %v921
        %927 = vst [vmem:[#allocation2] sm:$0xff] %v925
        %928 = vst [vmem:[#allocation2 + $0x8] sm:$0xff] %v926
        %p929 = scmp.eq.s32.totalorder %s22, 5
        // Predicated region
        $region79: #{custom_resnet_forward.21} parent=69 // pred_check
          %p930 = pneg %p929
        $region80: #{custom_resnet_forward.21} parent=69 // pred_check_branch
          %932 = sbr.rel (%p930) target = $region82
        $region81: #{custom_resnet_forward.21} parent=69 // pred_region
          %v933 = vld [vmem:[#allocation2] sm:$0xff]
          %v934 = vld [vmem:[#allocation2 + $0x8] sm:$0xff]
          %v935 = vld [vmem:[%s516] sm:$0x3]
          %v937 = vlaneseq
          %v938 = vshrl.u32 %v937, 7
          %v939 = vsub.s32 0, %v938
          %v940 = vrot.slane %v935, %v939
          %v941 = vlaneseq
          %v942 = vshrl.u32 %v941, 7
          %v943 = vsub.s32 1, %v942
          %v944 = vrot.slane %v935, %v943
          %v947 = vmul.f32 %v933, %v940
          %v948 = vmul.f32 %v934, %v944
          %v949 = vld [vmem:[%s521] sm:$0x3]
          %v951 = vlaneseq
          %v952 = vshrl.u32 %v951, 7
          %v953 = vsub.s32 0, %v952
          %v954 = vrot.slane %v949, %v953
          %v955 = vlaneseq
          %v956 = vshrl.u32 %v955, 7
          %v957 = vsub.s32 1, %v956
          %v958 = vrot.slane %v949, %v957
          %v961 = vadd.f32 %v947, %v954
          %v962 = vadd.f32 %v948, %v958
          %v963 = vmax.f32 %v961, 0.0
          %v964 = vmax.f32 %v962, 0.0
          %965 = vst [vmem:[%s531] sm:$0xff] %v963
          %966 = vst [vmem:[%s531 + $0x8] sm:$0xff] %v964
        $region82: #{custom_resnet_forward.21} parent=69 // pred_fallthru
          _
        %s967 = smul.u32 2, %s21
        %p968 = scmp.lt.s32.totalorder %s20, 0
        %s969 = scalar_select %p968, %s20, 0
        %p970 = scmp.lt.s32.totalorder %s967, 3
        %s971 = scalar_select %p970, %s967, 3
        %s972 = smul.addr %s969, 4
        %s973 = sadd.s32 %s971, %s972
        %s974 = smul.addr %s973, 8
        %s975 = scalar_lea.vmem %s4, %s974
        // Predicated region
        $region83: #{custom_resnet_forward.21} parent=69 // pred_check
          %p976 = pneg %p162
        $region84: #{custom_resnet_forward.21} parent=69 // pred_check_branch
          %978 = sbr.rel (%p976) target = $region86
        $region85: #{custom_resnet_forward.21} parent=69 // pred_region
          %s979 = smul.u32 2, %s21
        $region86: #{custom_resnet_forward.21} parent=69 // pred_fallthru
          _
      $region70: #{custom_resnet_forward.21} parent=5 // pred_fallthru
        _
      %p980 = scmp.le.s32.totalorder 2, %s10
      // Predicated region
      $region87: #{custom_resnet_forward.21} parent=5 // pred_check
        %p981 = pneg %p980
      $region88: #{custom_resnet_forward.21} parent=5 // pred_check_branch
        %983 = sbr.rel (%p981) target = $region90
      $region89: #{custom_resnet_forward.21} parent=5 // pred_region
        %s984 = ssub.s32 %s10, 2
        // Predicated region
        $region91: #{custom_resnet_forward.21} parent=89 // pred_check
          %p985 = pneg %p168
        $region92: #{custom_resnet_forward.21} parent=89 // pred_check_branch
          %987 = sbr.rel (%p985) target = $region94
        $region93: #{custom_resnet_forward.21} parent=89 // pred_region
          %s988 = smul.u32 2, %s24
          %p989 = scmp.lt.s32.totalorder %s23, 0
          %s990 = scalar_select %p989, %s23, 0
          %p991 = scmp.lt.s32.totalorder %s988, 3
          %s992 = scalar_select %p991, %s988, 3
          %s993 = smul.addr %s990, 4
          %s994 = sadd.s32 %s992, %s993
          %s995 = smul.addr %s994, 8
          %s996 = scalar_lea.vmem %s4, %s995
        $region94: #{custom_resnet_forward.21} parent=89 // pred_fallthru
          _
      $region90: #{custom_resnet_forward.21} parent=5 // pred_fallthru
        _
    $region6: #{custom_resnet_forward.21} parent=1 // loop_footer
      %s14 = sadd.s32 1, %s10
    $region7: #{custom_resnet_forward.21} parent=1 // loop_footer_branch
      %9 = sbr.rel target = $region3
    $region8: #{custom_resnet_forward.21} parent=1 // loop_exit
      _

// kernel: custom_resnet_forward.20
$region0: #{custom_resnet_forward.20}
  #allocation0 [shape = 'u32[]', space=smem, size = 0x4, offset = 0x4, fixed_abs, tag = 'smem constant byte address 0x4 - core index']
  #allocation1 [shape = 'u32[144,128]{1,0:T(1,128)}', space=vmem, size = 0x12000, scoped, tag = 'internal scratch']
  #allocation2 [shape = 'f32[8,256]{1,0:T(8,128)}', space=vmem, size = 0x2000, scoped, tag = 'scratch operand']
  %s0 = inlined_call_operand.vmem [shape: bf16[8,256], index: 0, kind: input, shape index: {}]
  %s1 = inlined_call_operand.vmem [shape: bf16[256,512], index: 1, kind: input, shape index: {}]
  %s2 = inlined_call_operand.vmem [shape: f32[1,512], index: 2, kind: input, shape index: {}]
  %s3 = inlined_call_operand.vmem [shape: f32[1,512], index: 3, kind: input, shape index: {}]
  %s4 = inlined_call_operand.vmem [shape: f32[8,512], index: 4, kind: output, shape index: {}]
  %s5 = sld [smem:[#allocation0]]
  $region95: #{custom_resnet_forward.20} parent=0
    _
  %s7 = ssub.s32 1, %s5
  %s8 = scalar_select 0, %s7, %s5
  $region1: #{custom_resnet_forward.20} parent=0
    #allocation3 [shape = 'u8[262144]{0}', space=vmem, size = 0x40000, scoped, tag = 'input window, operand 1']
    loop: start=0, step=1, limit=4
    $region2: #{custom_resnet_forward.20} parent=1 // loop_pre_header
      _
    $region3: #{custom_resnet_forward.20} parent=1 // loop_header
      %s10 = sphi 0, %s14
      %p11 = scmp.ge.s32.totalorder %s10, 4
      %s17 = sphi 0, %s36
      %s18 = sphi 0, %s32
      %s19 = sphi 0, %s28
      %s20 = sphi 0, %s17
      %s21 = sphi 0, %s18
      %s22 = sphi 0, %s19
      %s23 = sphi 0, %s20
      %s24 = sphi 0, %s21
      %s25 = sphi 0, %s22
      %s41 = sphi 0, %s43
      %s44 = sphi 0, %s41
      %s45 = sphi 0, %s44
      %s61 = sphi 0, %s45
      %s69 = sphi 0, %s71
      %s72 = sphi 0, %s69
      %s73 = sphi 0, %s72
      %s89 = sphi 0, %s73
      %s95 = sphi 0, %s97
      %s98 = sphi 0, %s95
      %s99 = sphi 0, %s98
      %s115 = sphi 0, %s99
      %s121 = sphi 0, %s123
      %s124 = sphi 0, %s121
      %s125 = sphi 0, %s124
      %s141 = sphi 0, %s125
      %s149 = sphi 0, %s151
      %s152 = sphi 0, %s149
      %s153 = sphi 0, %s152
      %s169 = sphi 0, %s153
    $region4: #{custom_resnet_forward.20} parent=1 // loop_header_branch
      %13 = sbr.rel (%p11) target = $region8
    $region5: #{custom_resnet_forward.20} parent=1 // loop_body
      %s15 = ssub.s32 %s10, 1
      %s16 = ssub.s32 %s10, 2
      %s26 = sadd.s32 1, %s19
      %p27 = scmp.ge.s32.totalorder %s26, 1
      %s28 = scalar_select %p27, 0, %s26
      %s29 = sadd.s32 1, %s18
      %s30 = scalar_select %p27, %s29, %s18
      %p31 = scmp.ge.s32.totalorder %s30, 2
      %s32 = scalar_select %p31, 0, %s30
      %s33 = sadd.s32 1, %s17
      %s34 = scalar_select %p31, %s33, %s17
      %p35 = scmp.ge.s32.totalorder %s34, 1
      %s36 = scalar_select %p35, 0, %s34
      %s37 = ssub.s32 %s17, %s36
      %s38 = ssub.s32 %s19, %s28
      %s39 = sor.u32 %s37, %s38
      %p40 = scmp.eq.s32.totalorder %s39, 0
      %s42 = sadd.s32 %s41, 1
      %s43 = scalar_select %p40, %s41, %s42
      %p46 = pneg %p40
      %p47 = scmp.eq.s32.totalorder %s10, 1
      %p48 = por %p46, %p47
      %p49 = scmp.ne.s32.totalorder %s41, %s44
      %p50 = scmp.eq.s32.totalorder %s10, 0
      %p51 = por %p49, %p50
      %p52 = scmp.ne.s32.totalorder %s41, %s44
      %p53 = scmp.eq.s32.totalorder %s15, 1
      %p54 = por %p52, %p53
      %p55 = scmp.ne.s32.totalorder %s44, %s45
      %p56 = scmp.eq.s32.totalorder %s15, 0
      %p57 = por %p55, %p56
      %p58 = scmp.ne.s32.totalorder %s44, %s45
      %p59 = scmp.eq.s32.totalorder %s16, 1
      %p60 = por %p58, %p59
      %p62 = scmp.ne.s32.totalorder %s45, %s61
      %p63 = scmp.eq.s32.totalorder %s16, 0
      %p64 = por %p62, %p63
      %s65 = ssub.s32 %s19, %s28
      %s66 = ssub.s32 %s18, %s32
      %s67 = sor.u32 %s65, %s66
      %p68 = scmp.eq.s32.totalorder %s67, 0
      %s70 = sadd.s32 %s69, 1
      %s71 = scalar_select %p68, %s69, %s70
      %p74 = pneg %p68
      %p75 = scmp.eq.s32.totalorder %s10, 1
      %p76 = por %p74, %p75
      %p77 = scmp.ne.s32.totalorder %s69, %s72
      %p78 = scmp.eq.s32.totalorder %s10, 0
      %p79 = por %p77, %p78
      %p80 = scmp.ne.s32.totalorder %s69, %s72
      %p81 = scmp.eq.s32.totalorder %s15, 1
      %p82 = por %p80, %p81
      %p83 = scmp.ne.s32.totalorder %s72, %s73
      %p84 = scmp.eq.s32.totalorder %s15, 0
      %p85 = por %p83, %p84
      %p86 = scmp.ne.s32.totalorder %s72, %s73
      %p87 = scmp.eq.s32.totalorder %s16, 1
      %p88 = por %p86, %p87
      %p90 = scmp.ne.s32.totalorder %s73, %s89
      %p91 = scmp.eq.s32.totalorder %s16, 0
      %p92 = por %p90, %p91
      %s93 = ssub.s32 %s18, %s32
      %p94 = scmp.eq.s32.totalorder %s93, 0
      %s96 = sadd.s32 %s95, 1
      %s97 = scalar_select %p94, %s95, %s96
      %p100 = pneg %p94
      %p101 = scmp.eq.s32.totalorder %s10, 1
      %p102 = por %p100, %p101
      %p103 = scmp.ne.s32.totalorder %s95, %s98
      %p104 = scmp.eq.s32.totalorder %s10, 0
      %p105 = por %p103, %p104
      %p106 = scmp.ne.s32.totalorder %s95, %s98
      %p107 = scmp.eq.s32.totalorder %s15, 1
      %p108 = por %p106, %p107
      %p109 = scmp.ne.s32.totalorder %s98, %s99
      %p110 = scmp.eq.s32.totalorder %s15, 0
      %p111 = por %p109, %p110
      %p112 = scmp.ne.s32.totalorder %s98, %s99
      %p113 = scmp.eq.s32.totalorder %s16, 1
      %p114 = por %p112, %p113
      %p116 = scmp.ne.s32.totalorder %s99, %s115
      %p117 = scmp.eq.s32.totalorder %s16, 0
      %p118 = por %p116, %p117
      %s119 = ssub.s32 %s18, %s32
      %p120 = scmp.eq.s32.totalorder %s119, 0
      %s122 = sadd.s32 %s121, 1
      %s123 = scalar_select %p120, %s121, %s122
      %p126 = pneg %p120
      %p127 = scmp.eq.s32.totalorder %s10, 1
      %p128 = por %p126, %p127
      %p129 = scmp.ne.s32.totalorder %s121, %s124
      %p130 = scmp.eq.s32.totalorder %s10, 0
      %p131 = por %p129, %p130
      %p132 = scmp.ne.s32.totalorder %s121, %s124
      %p133 = scmp.eq.s32.totalorder %s15, 1
      %p134 = por %p132, %p133
      %p135 = scmp.ne.s32.totalorder %s124, %s125
      %p136 = scmp.eq.s32.totalorder %s15, 0
      %p137 = por %p135, %p136
      %p138 = scmp.ne.s32.totalorder %s124, %s125
      %p139 = scmp.eq.s32.totalorder %s16, 1
      %p140 = por %p138, %p139
      %p142 = scmp.ne.s32.totalorder %s125, %s141
      %p143 = scmp.eq.s32.totalorder %s16, 0
      %p144 = por %p142, %p143
      %s145 = ssub.s32 %s17, %s36
      %s146 = ssub.s32 %s18, %s32
      %s147 = sor.u32 %s145, %s146
      %p148 = scmp.eq.s32.totalorder %s147, 0
      %s150 = sadd.s32 %s149, 1
      %s151 = scalar_select %p148, %s149, %s150
      %p154 = pneg %p148
      %p155 = scmp.eq.s32.totalorder %s10, 1
      %p156 = por %p154, %p155
      %p157 = scmp.ne.s32.totalorder %s149, %s152
      %p158 = scmp.eq.s32.totalorder %s10, 0
      %p159 = por %p157, %p158
      %p160 = scmp.ne.s32.totalorder %s149, %s152
      %p161 = scmp.eq.s32.totalorder %s15, 1
      %p162 = por %p160, %p161
      %p163 = scmp.ne.s32.totalorder %s152, %s153
      %p164 = scmp.eq.s32.totalorder %s15, 0
      %p165 = por %p163, %p164
      %p166 = scmp.ne.s32.totalorder %s152, %s153
      %p167 = scmp.eq.s32.totalorder %s16, 1
      %p168 = por %p166, %p167
      %p170 = scmp.ne.s32.totalorder %s153, %s169
      %p171 = scmp.eq.s32.totalorder %s16, 0
      %p172 = por %p170, %p171
      %p173 = scmp.le.s32.totalorder 1, %s10
      %p174 = scmp.lt.s32.totalorder %s10, 3
      %p175 = pnand %p173, %p174
      %p176 = pneg %p175
      // Predicated region
      $region9: #{custom_resnet_forward.20} parent=5 // pred_check
        _
      $region10: #{custom_resnet_forward.20} parent=5 // pred_check_branch
        %178 = sbr.rel (%p175) target = $region12
      $region11: #{custom_resnet_forward.20} parent=5 // pred_region
        %s179 = ssub.s32 %s10, 1
        // Predicated region
        $region13: #{custom_resnet_forward.20} parent=11 // pred_check
          %p180 = pneg %p57
        $region14: #{custom_resnet_forward.20} parent=11 // pred_check_branch
          %182 = sbr.rel (%p180) target = $region16
        $region15: #{custom_resnet_forward.20} parent=11 // pred_region
          %s183 = smul.u32 2, %s22
          %p184 = scmp.lt.s32.totalorder %s20, 0
          %s185 = scalar_select %p184, %s20, 0
          %p186 = scmp.lt.s32.totalorder %s183, 1
          %s187 = scalar_select %p186, %s183, 1
          %s188 = smul.addr %s185, 2
          %s189 = sadd.s32 %s187, %s188
          %s190 = smul.addr %s189, 4
          %s191 = scalar_lea.vmem %s0, %s190
          %s192 = smul.u32 2, %s22
        $region16: #{custom_resnet_forward.20} parent=11 // pred_fallthru
          _
      $region12: #{custom_resnet_forward.20} parent=5 // pred_fallthru
        _
      %p193 = scmp.lt.s32.totalorder %s10, 2
      // Predicated region
      $region17: #{custom_resnet_forward.20} parent=5 // pred_check
        %p194 = pneg %p193
      $region18: #{custom_resnet_forward.20} parent=5 // pred_check_branch
        %196 = sbr.rel (%p194) target = $region20
      $region19: #{custom_resnet_forward.20} parent=5 // pred_region
        // Predicated region
        $region21: #{custom_resnet_forward.20} parent=19 // pred_check
          %p197 = pneg %p79
        $region22: #{custom_resnet_forward.20} parent=19 // pred_check_branch
          %199 = sbr.rel (%p197) target = $region24
        $region23: #{custom_resnet_forward.20} parent=19 // pred_region
          %s200 = sand.u32 %s69, 1
          %s201 = sand.u32 %s69, 1
          %s202 = smul.addr %s201, 256
          %s203 = scalar_lea.vmem [#allocation3], %s202
          %s204 = smul.u32 32, %s19
          %s205 = smul.u32 2, %s18
          %s206 = smul.addr %s204, 4
          %s207 = sadd.s32 %s205, %s206
          %s208 = smul.addr %s207, 4
          %s209 = scalar_lea.vmem %s1, %s208
          // Predicated region
          $region25: #{custom_resnet_forward.20} parent=23 // pred_check
            _
          $region26: #{custom_resnet_forward.20} parent=23 // pred_check_branch
            %211 = sbr.rel (0) target = $region28
          $region27: #{custom_resnet_forward.20} parent=23 // pred_region
            // Predicated region
            $region29: #{custom_resnet_forward.20} parent=27 // pred_check
              _
            $region30: #{custom_resnet_forward.20} parent=27 // pred_check_branch
              %213 = sbr.rel (0) target = $region32
            $region31: #{custom_resnet_forward.20} parent=27 // pred_region
              // Predicated region
              $region44: #{custom_resnet_forward.20} parent=31 // pred_check
                _
              $region45: #{custom_resnet_forward.20} parent=31 // pred_check_branch
                %291 = sbr.rel (0) target = $region47
              $region46: #{custom_resnet_forward.20} parent=31 // pred_region
                loop: start=0, step=1, limit=1
                $region48: #{custom_resnet_forward.20} parent=46 // loop_pre_header
                  _
                $region49: #{custom_resnet_forward.20} parent=46 // loop_header
                  %s293 = sphi 0, %s297
                  %p294 = scmp.ge.s32.totalorder %s293, 1
                  %s298 = sphi %s209, %s209
                  %s299 = sphi %s203, %s203
                $region50: #{custom_resnet_forward.20} parent=46 // loop_header_branch
                  %296 = sbr.rel (%p294) target = $region54
                $region51: #{custom_resnet_forward.20} parent=46 // loop_body
                  %v300 = vld [vmem:[%s298] sm:$0xff]
                  %301 = vst [vmem:[%s299] sm:$0xff] %v300
                  %v302 = vld [vmem:[%s298 + $0x10] sm:$0xff]
                  %303 = vst [vmem:[%s299 + $0x8] sm:$0xff] %v302
                  %v304 = vld [vmem:[%s298 + $0x20] sm:$0xff]
                  %305 = vst [vmem:[%s299 + $0x10] sm:$0xff] %v304
                  %v306 = vld [vmem:[%s298 + $0x30] sm:$0xff]
                  %307 = vst [vmem:[%s299 + $0x18] sm:$0xff] %v306
                  %v308 = vld [vmem:[%s298 + $0x40] sm:$0xff]
                  %309 = vst [vmem:[%s299 + $0x20] sm:$0xff] %v308
                  %v310 = vld [vmem:[%s298 + $0x50] sm:$0xff]
                  %311 = vst [vmem:[%s299 + $0x28] sm:$0xff] %v310
                  %v312 = vld [vmem:[%s298 + $0x60] sm:$0xff]
                  %313 = vst [vmem:[%s299 + $0x30] sm:$0xff] %v312
                  %v314 = vld [vmem:[%s298 + $0x70] sm:$0xff]
                  %315 = vst [vmem:[%s299 + $0x38] sm:$0xff] %v314
                  %v316 = vld [vmem:[%s298 + $0x80] sm:$0xff]
                  %317 = vst [vmem:[%s299 + $0x40] sm:$0xff] %v316
                  %v318 = vld [vmem:[%s298 + $0x90] sm:$0xff]
                  %319 = vst [vmem:[%s299 + $0x48] sm:$0xff] %v318
                  %v320 = vld [vmem:[%s298 + $0xa0] sm:$0xff]
                  %321 = vst [vmem:[%s299 + $0x50] sm:$0xff] %v320
                  %v322 = vld [vmem:[%s298 + $0xb0] sm:$0xff]
                  %323 = vst [vmem:[%s299 + $0x58] sm:$0xff] %v322
                  %v324 = vld [vmem:[%s298 + $0xc0] sm:$0xff]
                  %325 = vst [vmem:[%s299 + $0x60] sm:$0xff] %v324
                  %v326 = vld [vmem:[%s298 + $0xd0] sm:$0xff]
                  %327 = vst [vmem:[%s299 + $0x68] sm:$0xff] %v326
                  %v328 = vld [vmem:[%s298 + $0xe0] sm:$0xff]
                  %329 = vst [vmem:[%s299 + $0x70] sm:$0xff] %v328
                  %v330 = vld [vmem:[%s298 + $0xf0] sm:$0xff]
                  %331 = vst [vmem:[%s299 + $0x78] sm:$0xff] %v330
                  %v332 = vld [vmem:[%s298 + $0x100] sm:$0xff]
                  %333 = vst [vmem:[%s299 + $0x80] sm:$0xff] %v332
                  %v334 = vld [vmem:[%s298 + $0x110] sm:$0xff]
                  %335 = vst [vmem:[%s299 + $0x88] sm:$0xff] %v334
                  %v336 = vld [vmem:[%s298 + $0x120] sm:$0xff]
                  %337 = vst [vmem:[%s299 + $0x90] sm:$0xff] %v336
                  %v338 = vld [vmem:[%s298 + $0x130] sm:$0xff]
                  %339 = vst [vmem:[%s299 + $0x98] sm:$0xff] %v338
                  %v340 = vld [vmem:[%s298 + $0x140] sm:$0xff]
                  %341 = vst [vmem:[%s299 + $0xa0] sm:$0xff] %v340
                  %v342 = vld [vmem:[%s298 + $0x150] sm:$0xff]
                  %343 = vst [vmem:[%s299 + $0xa8] sm:$0xff] %v342
                  %v344 = vld [vmem:[%s298 + $0x160] sm:$0xff]
                  %345 = vst [vmem:[%s299 + $0xb0] sm:$0xff] %v344
                  %v346 = vld [vmem:[%s298 + $0x170] sm:$0xff]
                  %347 = vst [vmem:[%s299 + $0xb8] sm:$0xff] %v346
                  %v348 = vld [vmem:[%s298 + $0x180] sm:$0xff]
                  %349 = vst [vmem:[%s299 + $0xc0] sm:$0xff] %v348
                  %v350 = vld [vmem:[%s298 + $0x190] sm:$0xff]
                  %351 = vst [vmem:[%s299 + $0xc8] sm:$0xff] %v350
                  %v352 = vld [vmem:[%s298 + $0x1a0] sm:$0xff]
                  %353 = vst [vmem:[%s299 + $0xd0] sm:$0xff] %v352
                  %v354 = vld [vmem:[%s298 + $0x1b0] sm:$0xff]
                  %355 = vst [vmem:[%s299 + $0xd8] sm:$0xff] %v354
                  %v356 = vld [vmem:[%s298 + $0x1c0] sm:$0xff]
                  %357 = vst [vmem:[%s299 + $0xe0] sm:$0xff] %v356
                  %v358 = vld [vmem:[%s298 + $0x1d0] sm:$0xff]
                  %359 = vst [vmem:[%s299 + $0xe8] sm:$0xff] %v358
                  %v360 = vld [vmem:[%s298 + $0x1e0] sm:$0xff]
                  %361 = vst [vmem:[%s299 + $0xf0] sm:$0xff] %v360
                  %v362 = vld [vmem:[%s298 + $0x1f0] sm:$0xff]
                  %363 = vst [vmem:[%s299 + $0xf8] sm:$0xff] %v362
                $region52: #{custom_resnet_forward.20} parent=46 // loop_footer
                  %s297 = sadd.s32 1, %s293
                $region53: #{custom_resnet_forward.20} parent=46 // loop_footer_branch
                  %292 = sbr.rel target = $region49
                $region54: #{custom_resnet_forward.20} parent=46 // loop_exit
                  _
              $region47: #{custom_resnet_forward.20} parent=31 // pred_fallthru
                _
              // Predicated region
              $region55: #{custom_resnet_forward.20} parent=31 // pred_check
                _
              $region56: #{custom_resnet_forward.20} parent=31 // pred_check_branch
                %365 = sbr.rel target = $region58
              $region57: #{custom_resnet_forward.20} parent=31 // pred_region
                _
              $region58: #{custom_resnet_forward.20} parent=31 // pred_fallthru
                _
            $region32: #{custom_resnet_forward.20} parent=27 // pred_fallthru
              _
            // Predicated region
            $region33: #{custom_resnet_forward.20} parent=27 // pred_check
              _
            $region34: #{custom_resnet_forward.20} parent=27 // pred_check_branch
              %215 = sbr.rel target = $region36
            $region35: #{custom_resnet_forward.20} parent=27 // pred_region
              %s217 = ssub.s32 256, 1
              loop: start=0, step=1, limit=1
              $region37: #{custom_resnet_forward.20} parent=35 // loop_pre_header
                _
              $region38: #{custom_resnet_forward.20} parent=35 // loop_header
                %s219 = sphi 0, %s223
                %p220 = scmp.ge.s32.totalorder %s219, 1
                %s224 = sphi %s209, %s209
                %s225 = sphi %s203, %s203
              $region39: #{custom_resnet_forward.20} parent=35 // loop_header_branch
                %222 = sbr.rel (%p220) target = $region43
              $region40: #{custom_resnet_forward.20} parent=35 // loop_body
                %v226 = vld [vmem:[%s224] sm:%s217]
                %227 = vst [vmem:[%s225] sm:%s217] %v226
                %v228 = vld [vmem:[%s224 + $0x10] sm:%s217]
                %229 = vst [vmem:[%s225 + $0x8] sm:%s217] %v228
                %v230 = vld [vmem:[%s224 + $0x20] sm:%s217]
                %231 = vst [vmem:[%s225 + $0x10] sm:%s217] %v230
                %v232 = vld [vmem:[%s224 + $0x30] sm:%s217]
                %233 = vst [vmem:[%s225 + $0x18] sm:%s217] %v232
                %v234 = vld [vmem:[%s224 + $0x40] sm:%s217]
                %235 = vst [vmem:[%s225 + $0x20] sm:%s217] %v234
                %v236 = vld [vmem:[%s224 + $0x50] sm:%s217]
                %237 = vst [vmem:[%s225 + $0x28] sm:%s217] %v236
                %v238 = vld [vmem:[%s224 + $0x60] sm:%s217]
                %239 = vst [vmem:[%s225 + $0x30] sm:%s217] %v238
                %v240 = vld [vmem:[%s224 + $0x70] sm:%s217]
                %241 = vst [vmem:[%s225 + $0x38] sm:%s217] %v240
                %v242 = vld [vmem:[%s224 + $0x80] sm:%s217]
                %243 = vst [vmem:[%s225 + $0x40] sm:%s217] %v242
                %v244 = vld [vmem:[%s224 + $0x90] sm:%s217]
                %245 = vst [vmem:[%s225 + $0x48] sm:%s217] %v244
                %v246 = vld [vmem:[%s224 + $0xa0] sm:%s217]
                %247 = vst [vmem:[%s225 + $0x50] sm:%s217] %v246
                %v248 = vld [vmem:[%s224 + $0xb0] sm:%s217]
                %249 = vst [vmem:[%s225 + $0x58] sm:%s217] %v248
                %v250 = vld [vmem:[%s224 + $0xc0] sm:%s217]
                %251 = vst [vmem:[%s225 + $0x60] sm:%s217] %v250
                %v252 = vld [vmem:[%s224 + $0xd0] sm:%s217]
                %253 = vst [vmem:[%s225 + $0x68] sm:%s217] %v252
                %v254 = vld [vmem:[%s224 + $0xe0] sm:%s217]
                %255 = vst [vmem:[%s225 + $0x70] sm:%s217] %v254
                %v256 = vld [vmem:[%s224 + $0xf0] sm:%s217]
                %257 = vst [vmem:[%s225 + $0x78] sm:%s217] %v256
                %v258 = vld [vmem:[%s224 + $0x100] sm:%s217]
                %259 = vst [vmem:[%s225 + $0x80] sm:%s217] %v258
                %v260 = vld [vmem:[%s224 + $0x110] sm:%s217]
                %261 = vst [vmem:[%s225 + $0x88] sm:%s217] %v260
                %v262 = vld [vmem:[%s224 + $0x120] sm:%s217]
                %263 = vst [vmem:[%s225 + $0x90] sm:%s217] %v262
                %v264 = vld [vmem:[%s224 + $0x130] sm:%s217]
                %265 = vst [vmem:[%s225 + $0x98] sm:%s217] %v264
                %v266 = vld [vmem:[%s224 + $0x140] sm:%s217]
                %267 = vst [vmem:[%s225 + $0xa0] sm:%s217] %v266
                %v268 = vld [vmem:[%s224 + $0x150] sm:%s217]
                %269 = vst [vmem:[%s225 + $0xa8] sm:%s217] %v268
                %v270 = vld [vmem:[%s224 + $0x160] sm:%s217]
                %271 = vst [vmem:[%s225 + $0xb0] sm:%s217] %v270
                %v272 = vld [vmem:[%s224 + $0x170] sm:%s217]
                %273 = vst [vmem:[%s225 + $0xb8] sm:%s217] %v272
                %v274 = vld [vmem:[%s224 + $0x180] sm:%s217]
                %275 = vst [vmem:[%s225 + $0xc0] sm:%s217] %v274
                %v276 = vld [vmem:[%s224 + $0x190] sm:%s217]
                %277 = vst [vmem:[%s225 + $0xc8] sm:%s217] %v276
                %v278 = vld [vmem:[%s224 + $0x1a0] sm:%s217]
                %279 = vst [vmem:[%s225 + $0xd0] sm:%s217] %v278
                %v280 = vld [vmem:[%s224 + $0x1b0] sm:%s217]
                %281 = vst [vmem:[%s225 + $0xd8] sm:%s217] %v280
                %v282 = vld [vmem:[%s224 + $0x1c0] sm:%s217]
                %283 = vst [vmem:[%s225 + $0xe0] sm:%s217] %v282
                %v284 = vld [vmem:[%s224 + $0x1d0] sm:%s217]
                %285 = vst [vmem:[%s225 + $0xe8] sm:%s217] %v284
                %v286 = vld [vmem:[%s224 + $0x1e0] sm:%s217]
                %287 = vst [vmem:[%s225 + $0xf0] sm:%s217] %v286
                %v288 = vld [vmem:[%s224 + $0x1f0] sm:%s217]
                %289 = vst [vmem:[%s225 + $0xf8] sm:%s217] %v288
              $region41: #{custom_resnet_forward.20} parent=35 // loop_footer
                %s223 = sadd.s32 1, %s219
              $region42: #{custom_resnet_forward.20} parent=35 // loop_footer_branch
                %218 = sbr.rel target = $region38
              $region43: #{custom_resnet_forward.20} parent=35 // loop_exit
                _
            $region36: #{custom_resnet_forward.20} parent=27 // pred_fallthru
              _
          $region28: #{custom_resnet_forward.20} parent=23 // pred_fallthru
            _
          %366 = vnop
        $region24: #{custom_resnet_forward.20} parent=19 // pred_fallthru
          _
        // Predicated region
        $region59: #{custom_resnet_forward.20} parent=19 // pred_check
          %p367 = pneg %p105
        $region60: #{custom_resnet_forward.20} parent=19 // pred_check_branch
          %369 = sbr.rel (%p367) target = $region62
        $region61: #{custom_resnet_forward.20} parent=19 // pred_region
          %s370 = smul.u32 2, %s18
          %p371 = scmp.lt.s32.totalorder %s370, 3
          %s372 = scalar_select %p371, %s370, 3
          %s373 = scalar_lea.vmem %s2, %s372
          %s374 = smul.u32 2, %s18
        $region62: #{custom_resnet_forward.20} parent=19 // pred_fallthru
          _
        // Predicated region
        $region63: #{custom_resnet_forward.20} parent=19 // pred_check
          %p375 = pneg %p131
        $region64: #{custom_resnet_forward.20} parent=19 // pred_check_branch
          %377 = sbr.rel (%p375) target = $region66
        $region65: #{custom_resnet_forward.20} parent=19 // pred_region
          %s378 = smul.u32 2, %s18
          %p379 = scmp.lt.s32.totalorder %s378, 3
          %s380 = scalar_select %p379, %s378, 3
          %s381 = scalar_lea.vmem %s3, %s380
          %s382 = smul.u32 2, %s18
        $region66: #{custom_resnet_forward.20} parent=19 // pred_fallthru
          _
      $region20: #{custom_resnet_forward.20} parent=5 // pred_fallthru
        _
      %p383 = scmp.le.s32.totalorder 1, %s10
      %p384 = scmp.lt.s32.totalorder %s10, 3
      %p385 = pnand %p383, %p384
      %p386 = pneg %p385
      // Predicated region
      $region67: #{custom_resnet_forward.20} parent=5 // pred_check
        _
      $region68: #{custom_resnet_forward.20} parent=5 // pred_check_branch
        %388 = sbr.rel (%p385) target = $region70
      $region69: #{custom_resnet_forward.20} parent=5 // pred_region
        %s389 = ssub.s32 %s10, 1
        %s390 = sand.u32 %s72, 1
        %s391 = sand.u32 %s72, 1
        %s392 = smul.addr %s391, 256
        %s393 = scalar_lea.vmem [#allocation3], %s392
        // Predicated region
        $region71: #{custom_resnet_forward.20} parent=69 // pred_check
          %p394 = pneg %p85
        $region72: #{custom_resnet_forward.20} parent=69 // pred_check_branch
          %396 = sbr.rel (%p394) target = $region74
        $region73: #{custom_resnet_forward.20} parent=69 // pred_region
          _
        $region74: #{custom_resnet_forward.20} parent=69 // pred_fallthru
          _
        %s397 = smul.u32 2, %s22
        %p398 = scmp.lt.s32.totalorder %s20, 0
        %s399 = scalar_select %p398, %s20, 0
        %p400 = scmp.lt.s32.totalorder %s397, 1
        %s401 = scalar_select %p400, %s397, 1
        %s402 = smul.addr %s399, 2
        %s403 = sadd.s32 %s401, %s402
        %s404 = smul.addr %s403, 4
        %s405 = scalar_lea.vmem %s0, %s404
        %p406 = pneg %p57
        %p407 = pneg %p54
        %s408 = sand.u32 %s72, 1
        %s409 = sand.u32 %s72, 1
        %s410 = smul.addr %s409, 256
        %s411 = scalar_lea.vmem [#allocation3], %s410
        %p412 = pneg %p85
        %p413 = pneg %p82
        %s414 = smul.u32 2, %s21
        %p415 = scmp.lt.s32.totalorder %s414, 3
        %s416 = scalar_select %p415, %s414, 3
        %s417 = scalar_lea.vmem %s2, %s416
        %p418 = pneg %p111
        %p419 = pneg %p108
        %s420 = smul.u32 2, %s21
        %p421 = scmp.lt.s32.totalorder %s420, 3
        %s422 = scalar_select %p421, %s420, 3
        %s423 = scalar_lea.vmem %s3, %s422
        %p424 = pneg %p137
        %p425 = pneg %p134
        %p426 = pneg %p165
        %p427 = pneg %p162
        %s428 = smul.u32 2, %s21
        %p429 = scmp.lt.s32.totalorder %s20, 0
        %s430 = scalar_select %p429, %s20, 0
        %p431 = scmp.lt.s32.totalorder %s428, 3
        %s432 = scalar_select %p431, %s428, 3
        %s433 = smul.addr %s430, 4
        %s434 = sadd.s32 %s432, %s433
        %s435 = smul.addr %s434, 8
        %s436 = scalar_lea.vmem %s4, %s435
        %s437 = smul.u32 2, %s22
        %p438 = scmp.lt.s32.totalorder %s20, 0
        %s439 = scalar_select %p438, %s20, 0
        %p440 = scmp.lt.s32.totalorder %s437, 1
        %s441 = scalar_select %p440, %s437, 1
        %s442 = smul.addr %s439, 2
        %s443 = sadd.s32 %s441, %s442
        %s444 = smul.addr %s443, 4
        %s445 = scalar_lea.vmem %s0, %s444
        %s446 = smul.u32 2, %s22
        %s447 = smul.u32 32, %s22
        %s448 = smul.u32 2, %s21
        %s449 = smul.u32 2, %s21
        %p450 = scmp.lt.s32.totalorder %s449, 3
        %s451 = scalar_select %p450, %s449, 3
        %s452 = scalar_lea.vmem %s2, %s451
        %s453 = smul.u32 2, %s21
        %s454 = smul.u32 2, %s21
        %p455 = scmp.lt.s32.totalorder %s454, 3
        %s456 = scalar_select %p455, %s454, 3
        %s457 = scalar_lea.vmem %s3, %s456
        %s458 = smul.u32 2, %s21
        %s459 = smul.u32 2, %s21
        %p460 = scmp.lt.s32.totalorder %s20, 0
        %s461 = scalar_select %p460, %s20, 0
        %p462 = scmp.lt.s32.totalorder %s459, 3
        %s463 = scalar_select %p462, %s459, 3
        %s464 = smul.addr %s461, 4
        %s465 = sadd.s32 %s463, %s464
        %s466 = smul.addr %s465, 8
        %s467 = scalar_lea.vmem %s4, %s466
        %s468 = smul.u32 2, %s21
        %p469 = scmp.eq.s32.totalorder %s22, 0
        // Predicated region
        $region75: #{custom_resnet_forward.20} parent=69 // pred_check
          %p470 = pneg %p469
        $region76: #{custom_resnet_forward.20} parent=69 // pred_check_branch
          %472 = sbr.rel (%p470) target = $region78
        $region77: #{custom_resnet_forward.20} parent=69 // pred_region
          %473 = vst [vmem:[#allocation2] sm:$0xff] 0.0
          %474 = vst [vmem:[#allocation2 + $0x8] sm:$0xff] 0.0
        $region78: #{custom_resnet_forward.20} parent=69 // pred_fallthru
          _
        %v475 = vld [vmem:[#allocation2] sm:$0xff]
        %v476 = vld [vmem:[#allocation2 + $0x8] sm:$0xff]
        %v477 = vld [vmem:[%s445] sm:$0xff]
        %v478 = vld [vmem:[%s393] sm:$0xff]
        %v479 = vld [vmem:[%s393 + $0x8] sm:$0xff]
        %v480 = vld [vmem:[%s393 + $0x10] sm:$0xff]
        %v481 = vld [vmem:[%s393 + $0x18] sm:$0xff]
        %v482 = vld [vmem:[%s393 + $0x20] sm:$0xff]
        %v483 = vld [vmem:[%s393 + $0x28] sm:$0xff]
        %v484 = vld [vmem:[%s393 + $0x30] sm:$0xff]
        %v485 = vld [vmem:[%s393 + $0x38] sm:$0xff]
        %v486 = vld [vmem:[%s393 + $0x40] sm:$0xff]
        %v487 = vld [vmem:[%s393 + $0x48] sm:$0xff]
        %v488 = vld [vmem:[%s393 + $0x50] sm:$0xff]
        %v489 = vld [vmem:[%s393 + $0x58] sm:$0xff]
        %v490 = vld [vmem:[%s393 + $0x60] sm:$0xff]
        %v491 = vld [vmem:[%s393 + $0x68] sm:$0xff]
        %v492 = vld [vmem:[%s393 + $0x70] sm:$0xff]
        %v493 = vld [vmem:[%s393 + $0x78] sm:$0xff]
        %v494 = vld [vmem:[%s393 + $0x80] sm:$0xff]
        %v495 = vld [vmem:[%s393 + $0x88] sm:$0xff]
        %v496 = vld [vmem:[%s393 + $0x90] sm:$0xff]
        %v497 = vld [vmem:[%s393 + $0x98] sm:$0xff]
        %v498 = vld [vmem:[%s393 + $0xa0] sm:$0xff]
        %v499 = vld [vmem:[%s393 + $0xa8] sm:$0xff]
        %v500 = vld [vmem:[%s393 + $0xb0] sm:$0xff]
        %v501 = vld [vmem:[%s393 + $0xb8] sm:$0xff]
        %v502 = vld [vmem:[%s393 + $0xc0] sm:$0xff]
        %v503 = vld [vmem:[%s393 + $0xc8] sm:$0xff]
        %v504 = vld [vmem:[%s393 + $0xd0] sm:$0xff]
        %v505 = vld [vmem:[%s393 + $0xd8] sm:$0xff]
        %v506 = vld [vmem:[%s393 + $0xe0] sm:$0xff]
        %v507 = vld [vmem:[%s393 + $0xe8] sm:$0xff]
        %v508 = vld [vmem:[%s393 + $0xf0] sm:$0xff]
        %v509 = vld [vmem:[%s393 + $0xf8] sm:$0xff]
        %v511 = vunpack.c.l.b16 %v477
        %v512 = vunpack.c.h.b16 %v477
        %v513 = vpack.c.b16 %v511, %v511
        %v514 = vpack.c.b16 %v512, %v512
        %v549 = vunpack.c.l.b16 %v478
        %v550 = vunpack.c.h.b16 %v478
        %v551 = vunpack.c.l.b16 %v479
        %v552 = vunpack.c.h.b16 %v479
        %v553 = vunpack.c.l.b16 %v480
        %v554 = vunpack.c.h.b16 %v480
        %v555 = vunpack.c.l.b16 %v481
        %v556 = vunpack.c.h.b16 %v481
        %v557 = vunpack.c.l.b16 %v482
        %v558 = vunpack.c.h.b16 %v482
        %v559 = vunpack.c.l.b16 %v483
        %v560 = vunpack.c.h.b16 %v483
        %v561 = vunpack.c.l.b16 %v484
        %v562 = vunpack.c.h.b16 %v484
        %v563 = vunpack.c.l.b16 %v485
        %v564 = vunpack.c.h.b16 %v485
        %v565 = vunpack.c.l.b16 %v486
        %v566 = vunpack.c.h.b16 %v486
        %v567 = vunpack.c.l.b16 %v487
        %v568 = vunpack.c.h.b16 %v487
        %v569 = vunpack.c.l.b16 %v488
        %v570 = vunpack.c.h.b16 %v488
        %v571 = vunpack.c.l.b16 %v489
        %v572 = vunpack.c.h.b16 %v489
        %v573 = vunpack.c.l.b16 %v490
        %v574 = vunpack.c.h.b16 %v490
        %v575 = vunpack.c.l.b16 %v491
        %v576 = vunpack.c.h.b16 %v491
        %v577 = vunpack.c.l.b16 %v492
        %v578 = vunpack.c.h.b16 %v492
        %v579 = vunpack.c.l.b16 %v493
        %v580 = vunpack.c.h.b16 %v493
        %v581 = vunpack.c.l.b16 %v494
        %v582 = vunpack.c.h.b16 %v494
        %v583 = vunpack.c.l.b16 %v495
        %v584 = vunpack.c.h.b16 %v495
        %v585 = vunpack.c.l.b16 %v496
        %v586 = vunpack.c.h.b16 %v496
        %v587 = vunpack.c.l.b16 %v497
        %v588 = vunpack.c.h.b16 %v497
        %v589 = vunpack.c.l.b16 %v498
        %v590 = vunpack.c.h.b16 %v498
        %v591 = vunpack.c.l.b16 %v499
        %v592 = vunpack.c.h.b16 %v499
        %v593 = vunpack.c.l.b16 %v500
        %v594 = vunpack.c.h.b16 %v500
        %v595 = vunpack.c.l.b16 %v501
        %v596 = vunpack.c.h.b16 %v501
        %v597 = vunpack.c.l.b16 %v502
        %v598 = vunpack.c.h.b16 %v502
        %v599 = vunpack.c.l.b16 %v503
        %v600 = vunpack.c.h.b16 %v503
        %v601 = vunpack.c.l.b16 %v504
        %v602 = vunpack.c.h.b16 %v504
        %v603 = vunpack.c.l.b16 %v505
        %v604 = vunpack.c.h.b16 %v505
        %v605 = vunpack.c.l.b16 %v506
        %v606 = vunpack.c.h.b16 %v506
        %v607 = vunpack.c.l.b16 %v507
        %v608 = vunpack.c.h.b16 %v507
        %v609 = vunpack.c.l.b16 %v508
        %v610 = vunpack.c.h.b16 %v508
        %v611 = vunpack.c.l.b16 %v509
        %v612 = vunpack.c.h.b16 %v509
        %v613 = vpack.c.b16 %v551, %v549
        %v614 = vpack.c.b16 %v552, %v550
        %v615 = vpack.c.b16 %v555, %v553
        %v616 = vpack.c.b16 %v556, %v554
        %v617 = vpack.c.b16 %v559, %v557
        %v618 = vpack.c.b16 %v560, %v558
        %v619 = vpack.c.b16 %v563, %v561
        %v620 = vpack.c.b16 %v564, %v562
        %v621 = vpack.c.b16 %v567, %v565
        %v622 = vpack.c.b16 %v568, %v566
        %v623 = vpack.c.b16 %v571, %v569
        %v624 = vpack.c.b16 %v572, %v570
        %v625 = vpack.c.b16 %v575, %v573
        %v626 = vpack.c.b16 %v576, %v574
        %v627 = vpack.c.b16 %v579, %v577
        %v628 = vpack.c.b16 %v580, %v578
        %v629 = vpack.c.b16 %v583, %v581
        %v630 = vpack.c.b16 %v584, %v582
        %v631 = vpack.c.b16 %v587, %v585
        %v632 = vpack.c.b16 %v588, %v586
        %v633 = vpack.c.b16 %v591, %v589
        %v634 = vpack.c.b16 %v592, %v590
        %v635 = vpack.c.b16 %v595, %v593
        %v636 = vpack.c.b16 %v596, %v594
        %v637 = vpack.c.b16 %v599, %v597
        %v638 = vpack.c.b16 %v600, %v598
        %v639 = vpack.c.b16 %v603, %v601
        %v640 = vpack.c.b16 %v604, %v602
        %v641 = vpack.c.b16 %v607, %v605
        %v642 = vpack.c.b16 %v608, %v606
        %v643 = vpack.c.b16 %v611, %v609
        %v644 = vpack.c.b16 %v612, %v610
        %677 = vmatprep.subr.bf16.mxu0 %v628
        %678 = vmatpush1.bf16.msra.mxu0 %v627
        %679 = vmatprep.subr.bf16.mxu0 %v626
        %680 = vmatpush1.bf16.msra.mxu0 %v625
        %681 = vmatprep.subr.bf16.mxu0 %v624
        %682 = vmatpush1.bf16.msra.mxu0 %v623
        %683 = vmatprep.subr.bf16.mxu0 %v622
        %684 = vmatpush1.bf16.msra.mxu0 %v621
        %685 = vmatprep.subr.bf16.mxu0 %v620
        %686 = vmatpush1.bf16.msra.mxu0 %v619
        %687 = vmatprep.subr.bf16.mxu0 %v618
        %688 = vmatpush1.bf16.msra.mxu0 %v617
        %689 = vmatprep.subr.bf16.mxu0 %v616
        %690 = vmatpush1.bf16.msra.mxu0 %v615
        %691 = vmatprep.subr.bf16.mxu0 %v614
        %692 = vmatpush1.bf16.msra.mxu0 %v613
        %693 = vmatprep.subr.bf16.mxu0 %v644
        %694 = vmatpush2.bf16.msra.mxu0 %v643
        %695 = vmatprep.subr.bf16.mxu0 %v642
        %696 = vmatpush2.bf16.msra.mxu0 %v641
        %697 = vmatprep.subr.bf16.mxu0 %v640
        %698 = vmatpush2.bf16.msra.mxu0 %v639
        %699 = vmatprep.subr.bf16.mxu0 %v638
        %700 = vmatpush2.bf16.msra.mxu0 %v637
        %701 = vmatprep.subr.bf16.mxu0 %v636
        %702 = vmatpush2.bf16.msra.mxu0 %v635
        %703 = vmatprep.subr.bf16.mxu0 %v634
        %704 = vmatpush2.bf16.msra.mxu0 %v633
        %705 = vmatprep.subr.bf16.mxu0 %v632
        %706 = vmatpush2.bf16.msra.mxu0 %v631
        %707 = vmatprep.subr.bf16.mxu0 %v630
        %708 = vmatpush2.bf16.msra.mxu0 %v629
        %709 = vmatprep.mubr.bf16.mxu0 %v514
        %710 = vmatmul.mubr.bf16.gmra.mxu0 %v513
        %v711 = vpop.f32.mrf.mxu0
        %v712 = vadd.f32 0.0, %v711
        %v713 = vpop.f32.mrf.mxu0
        %v714 = vadd.f32 0.0, %v713
        %v715 = vpop.f32.mrf.mxu0
        %v716 = vpop.f32.mrf.mxu0
        %717 = vdwg.mxu0
        %v718 = vadd.f32 %v475, %v712
        %v719 = vadd.f32 %v476, %v714
        %720 = vst [vmem:[#allocation2] sm:$0xff] %v718
        %721 = vst [vmem:[#allocation2 + $0x8] sm:$0xff] %v719
        // Predicated region
        $region79: #{custom_resnet_forward.20} parent=69 // pred_check
          %p722 = pneg %p469
        $region80: #{custom_resnet_forward.20} parent=69 // pred_check_branch
          %724 = sbr.rel (%p722) target = $region82
        $region81: #{custom_resnet_forward.20} parent=69 // pred_region
          %v725 = vld [vmem:[#allocation2] sm:$0xff]
          %v726 = vld [vmem:[#allocation2 + $0x8] sm:$0xff]
          %v727 = vld [vmem:[%s452] sm:$0x3]
          %v729 = vlaneseq
          %v730 = vshrl.u32 %v729, 7
          %v731 = vsub.s32 0, %v730
          %v732 = vrot.slane %v727, %v731
          %v733 = vlaneseq
          %v734 = vshrl.u32 %v733, 7
          %v735 = vsub.s32 1, %v734
          %v736 = vrot.slane %v727, %v735
          %v739 = vmul.f32 %v725, %v732
          %v740 = vmul.f32 %v726, %v736
          %v741 = vld [vmem:[%s457] sm:$0x3]
          %v743 = vlaneseq
          %v744 = vshrl.u32 %v743, 7
          %v745 = vsub.s32 0, %v744
          %v746 = vrot.slane %v741, %v745
          %v747 = vlaneseq
          %v748 = vshrl.u32 %v747, 7
          %v749 = vsub.s32 1, %v748
          %v750 = vrot.slane %v741, %v749
          %v753 = vadd.f32 %v739, %v746
          %v754 = vadd.f32 %v740, %v750
          %755 = vst [vmem:[%s467] sm:$0xff] %v753
          %756 = vst [vmem:[%s467 + $0x8] sm:$0xff] %v754
        $region82: #{custom_resnet_forward.20} parent=69 // pred_fallthru
          _
        %s757 = smul.u32 2, %s21
        %p758 = scmp.lt.s32.totalorder %s20, 0
        %s759 = scalar_select %p758, %s20, 0
        %p760 = scmp.lt.s32.totalorder %s757, 3
        %s761 = scalar_select %p760, %s757, 3
        %s762 = smul.addr %s759, 4
        %s763 = sadd.s32 %s761, %s762
        %s764 = smul.addr %s763, 8
        %s765 = scalar_lea.vmem %s4, %s764
        // Predicated region
        $region83: #{custom_resnet_forward.20} parent=69 // pred_check
          %p766 = pneg %p162
        $region84: #{custom_resnet_forward.20} parent=69 // pred_check_branch
          %768 = sbr.rel (%p766) target = $region86
        $region85: #{custom_resnet_forward.20} parent=69 // pred_region
          %s769 = smul.u32 2, %s21
        $region86: #{custom_resnet_forward.20} parent=69 // pred_fallthru
          _
      $region70: #{custom_resnet_forward.20} parent=5 // pred_fallthru
        _
      %p770 = scmp.le.s32.totalorder 2, %s10
      // Predicated region
      $region87: #{custom_resnet_forward.20} parent=5 // pred_check
        %p771 = pneg %p770
      $region88: #{custom_resnet_forward.20} parent=5 // pred_check_branch
        %773 = sbr.rel (%p771) target = $region90
      $region89: #{custom_resnet_forward.20} parent=5 // pred_region
        %s774 = ssub.s32 %s10, 2
        // Predicated region
        $region91: #{custom_resnet_forward.20} parent=89 // pred_check
          %p775 = pneg %p168
        $region92: #{custom_resnet_forward.20} parent=89 // pred_check_branch
          %777 = sbr.rel (%p775) target = $region94
        $region93: #{custom_resnet_forward.20} parent=89 // pred_region
          %s778 = smul.u32 2, %s24
          %p779 = scmp.lt.s32.totalorder %s23, 0
          %s780 = scalar_select %p779, %s23, 0
          %p781 = scmp.lt.s32.totalorder %s778, 3
          %s782 = scalar_select %p781, %s778, 3
          %s783 = smul.addr %s780, 4
          %s784 = sadd.s32 %s782, %s783
          %s785 = smul.addr %s784, 8
          %s786 = scalar_lea.vmem %s4, %s785
        $region94: #{custom_resnet_forward.20} parent=89 // pred_fallthru
          _
      $region90: #{custom_resnet_forward.20} parent=5 // pred_fallthru
        _
    $region6: #{custom_resnet_forward.20} parent=1 // loop_footer
      %s14 = sadd.s32 1, %s10
    $region7: #{custom_resnet_forward.20} parent=1 // loop_footer_branch
      %9 = sbr.rel target = $region3
    $region8: #{custom_resnet_forward.20} parent=1 // loop_exit
      _

// kernel: custom_resnet_forward.22
$region0: #{custom_resnet_forward.22}
  #allocation0 [shape = 'u32[]', space=smem, size = 0x4, offset = 0x4, fixed_abs, tag = 'smem constant byte address 0x4 - core index']
  #allocation1 [shape = 'u32[144,128]{1,0:T(1,128)}', space=vmem, size = 0x12000, scoped, tag = 'internal scratch']
  #allocation2 [shape = 'f32[8,256]{1,0:T(8,128)}', space=vmem, size = 0x2000, scoped, tag = 'scratch operand']
  %s0 = inlined_call_operand.vmem [shape: bf16[8,4608], index: 0, kind: input, shape index: {}]
  %s1 = inlined_call_operand.vmem [shape: bf16[4608,512], index: 1, kind: input, shape index: {}]
  %s2 = inlined_call_operand.vmem [shape: f32[1,512], index: 2, kind: input, shape index: {}]
  %s3 = inlined_call_operand.vmem [shape: f32[1,512], index: 3, kind: input, shape index: {}]
  %s4 = inlined_call_operand.vmem [shape: f32[8,512], index: 4, kind: input, shape index: {}]
  %s5 = inlined_call_operand.vmem [shape: f32[8,512], index: 5, kind: output, shape index: {}]
  %s6 = sld [smem:[#allocation0]]
  $region99: #{custom_resnet_forward.22} parent=0
    _
  %s8 = ssub.s32 1, %s6
  %s9 = scalar_select 0, %s8, %s6
  $region1: #{custom_resnet_forward.22} parent=0
    #allocation3 [shape = 'u8[524288]{0}', space=vmem, size = 0x80000, scoped, tag = 'input window, operand 1']
    loop: start=0, step=1, limit=20
    $region2: #{custom_resnet_forward.22} parent=1 // loop_pre_header
      _
    $region3: #{custom_resnet_forward.22} parent=1 // loop_header
      %s11 = sphi 0, %s15
      %p12 = scmp.ge.s32.totalorder %s11, 20
      %s18 = sphi 0, %s37
      %s19 = sphi 0, %s33
      %s20 = sphi 0, %s29
      %s21 = sphi 0, %s18
      %s22 = sphi 0, %s19
      %s23 = sphi 0, %s20
      %s24 = sphi 0, %s21
      %s25 = sphi 0, %s22
      %s26 = sphi 0, %s23
      %s42 = sphi 0, %s44
      %s45 = sphi 0, %s42
      %s46 = sphi 0, %s45
      %s62 = sphi 0, %s46
      %s70 = sphi 0, %s72
      %s73 = sphi 0, %s70
      %s74 = sphi 0, %s73
      %s90 = sphi 0, %s74
      %s96 = sphi 0, %s98
      %s99 = sphi 0, %s96
      %s100 = sphi 0, %s99
      %s116 = sphi 0, %s100
      %s122 = sphi 0, %s124
      %s125 = sphi 0, %s122
      %s126 = sphi 0, %s125
      %s142 = sphi 0, %s126
      %s150 = sphi 0, %s152
      %s153 = sphi 0, %s150
      %s154 = sphi 0, %s153
      %s170 = sphi 0, %s154
      %s178 = sphi 0, %s180
      %s181 = sphi 0, %s178
      %s182 = sphi 0, %s181
      %s198 = sphi 0, %s182
    $region4: #{custom_resnet_forward.22} parent=1 // loop_header_branch
      %14 = sbr.rel (%p12) target = $region8
    $region5: #{custom_resnet_forward.22} parent=1 // loop_body
      %s16 = ssub.s32 %s11, 1
      %s17 = ssub.s32 %s11, 2
      %s27 = sadd.s32 1, %s20
      %p28 = scmp.ge.s32.totalorder %s27, 9
      %s29 = scalar_select %p28, 0, %s27
      %s30 = sadd.s32 1, %s19
      %s31 = scalar_select %p28, %s30, %s19
      %p32 = scmp.ge.s32.totalorder %s31, 2
      %s33 = scalar_select %p32, 0, %s31
      %s34 = sadd.s32 1, %s18
      %s35 = scalar_select %p32, %s34, %s18
      %p36 = scmp.ge.s32.totalorder %s35, 1
      %s37 = scalar_select %p36, 0, %s35
      %s38 = ssub.s32 %s18, %s37
      %s39 = ssub.s32 %s20, %s29
      %s40 = sor.u32 %s38, %s39
      %p41 = scmp.eq.s32.totalorder %s40, 0
      %s43 = sadd.s32 %s42, 1
      %s44 = scalar_select %p41, %s42, %s43
      %p47 = pneg %p41
      %p48 = scmp.eq.s32.totalorder %s11, 17
      %p49 = por %p47, %p48
      %p50 = scmp.ne.s32.totalorder %s42, %s45
      %p51 = scmp.eq.s32.totalorder %s11, 0
      %p52 = por %p50, %p51
      %p53 = scmp.ne.s32.totalorder %s42, %s45
      %p54 = scmp.eq.s32.totalorder %s16, 17
      %p55 = por %p53, %p54
      %p56 = scmp.ne.s32.totalorder %s45, %s46
      %p57 = scmp.eq.s32.totalorder %s16, 0
      %p58 = por %p56, %p57
      %p59 = scmp.ne.s32.totalorder %s45, %s46
      %p60 = scmp.eq.s32.totalorder %s17, 17
      %p61 = por %p59, %p60
      %p63 = scmp.ne.s32.totalorder %s46, %s62
      %p64 = scmp.eq.s32.totalorder %s17, 0
      %p65 = por %p63, %p64
      %s66 = ssub.s32 %s20, %s29
      %s67 = ssub.s32 %s19, %s33
      %s68 = sor.u32 %s66, %s67
      %p69 = scmp.eq.s32.totalorder %s68, 0
      %s71 = sadd.s32 %s70, 1
      %s72 = scalar_select %p69, %s70, %s71
      %p75 = pneg %p69
      %p76 = scmp.eq.s32.totalorder %s11, 17
      %p77 = por %p75, %p76
      %p78 = scmp.ne.s32.totalorder %s70, %s73
      %p79 = scmp.eq.s32.totalorder %s11, 0
      %p80 = por %p78, %p79
      %p81 = scmp.ne.s32.totalorder %s70, %s73
      %p82 = scmp.eq.s32.totalorder %s16, 17
      %p83 = por %p81, %p82
      %p84 = scmp.ne.s32.totalorder %s73, %s74
      %p85 = scmp.eq.s32.totalorder %s16, 0
      %p86 = por %p84, %p85
      %p87 = scmp.ne.s32.totalorder %s73, %s74
      %p88 = scmp.eq.s32.totalorder %s17, 17
      %p89 = por %p87, %p88
      %p91 = scmp.ne.s32.totalorder %s74, %s90
      %p92 = scmp.eq.s32.totalorder %s17, 0
      %p93 = por %p91, %p92
      %s94 = ssub.s32 %s19, %s33
      %p95 = scmp.eq.s32.totalorder %s94, 0
      %s97 = sadd.s32 %s96, 1
      %s98 = scalar_select %p95, %s96, %s97
      %p101 = pneg %p95
      %p102 = scmp.eq.s32.totalorder %s11, 17
      %p103 = por %p101, %p102
      %p104 = scmp.ne.s32.totalorder %s96, %s99
      %p105 = scmp.eq.s32.totalorder %s11, 0
      %p106 = por %p104, %p105
      %p107 = scmp.ne.s32.totalorder %s96, %s99
      %p108 = scmp.eq.s32.totalorder %s16, 17
      %p109 = por %p107, %p108
      %p110 = scmp.ne.s32.totalorder %s99, %s100
      %p111 = scmp.eq.s32.totalorder %s16, 0
      %p112 = por %p110, %p111
      %p113 = scmp.ne.s32.totalorder %s99, %s100
      %p114 = scmp.eq.s32.totalorder %s17, 17
      %p115 = por %p113, %p114
      %p117 = scmp.ne.s32.totalorder %s100, %s116
      %p118 = scmp.eq.s32.totalorder %s17, 0
      %p119 = por %p117, %p118
      %s120 = ssub.s32 %s19, %s33
      %p121 = scmp.eq.s32.totalorder %s120, 0
      %s123 = sadd.s32 %s122, 1
      %s124 = scalar_select %p121, %s122, %s123
      %p127 = pneg %p121
      %p128 = scmp.eq.s32.totalorder %s11, 17
      %p129 = por %p127, %p128
      %p130 = scmp.ne.s32.totalorder %s122, %s125
      %p131 = scmp.eq.s32.totalorder %s11, 0
      %p132 = por %p130, %p131
      %p133 = scmp.ne.s32.totalorder %s122, %s125
      %p134 = scmp.eq.s32.totalorder %s16, 17
      %p135 = por %p133, %p134
      %p136 = scmp.ne.s32.totalorder %s125, %s126
      %p137 = scmp.eq.s32.totalorder %s16, 0
      %p138 = por %p136, %p137
      %p139 = scmp.ne.s32.totalorder %s125, %s126
      %p140 = scmp.eq.s32.totalorder %s17, 17
      %p141 = por %p139, %p140
      %p143 = scmp.ne.s32.totalorder %s126, %s142
      %p144 = scmp.eq.s32.totalorder %s17, 0
      %p145 = por %p143, %p144
      %s146 = ssub.s32 %s18, %s37
      %s147 = ssub.s32 %s19, %s33
      %s148 = sor.u32 %s146, %s147
      %p149 = scmp.eq.s32.totalorder %s148, 0
      %s151 = sadd.s32 %s150, 1
      %s152 = scalar_select %p149, %s150, %s151
      %p155 = pneg %p149
      %p156 = scmp.eq.s32.totalorder %s11, 17
      %p157 = por %p155, %p156
      %p158 = scmp.ne.s32.totalorder %s150, %s153
      %p159 = scmp.eq.s32.totalorder %s11, 0
      %p160 = por %p158, %p159
      %p161 = scmp.ne.s32.totalorder %s150, %s153
      %p162 = scmp.eq.s32.totalorder %s16, 17
      %p163 = por %p161, %p162
      %p164 = scmp.ne.s32.totalorder %s153, %s154
      %p165 = scmp.eq.s32.totalorder %s16, 0
      %p166 = por %p164, %p165
      %p167 = scmp.ne.s32.totalorder %s153, %s154
      %p168 = scmp.eq.s32.totalorder %s17, 17
      %p169 = por %p167, %p168
      %p171 = scmp.ne.s32.totalorder %s154, %s170
      %p172 = scmp.eq.s32.totalorder %s17, 0
      %p173 = por %p171, %p172
      %s174 = ssub.s32 %s18, %s37
      %s175 = ssub.s32 %s19, %s33
      %s176 = sor.u32 %s174, %s175
      %p177 = scmp.eq.s32.totalorder %s176, 0
      %s179 = sadd.s32 %s178, 1
      %s180 = scalar_select %p177, %s178, %s179
      %p183 = pneg %p177
      %p184 = scmp.eq.s32.totalorder %s11, 17
      %p185 = por %p183, %p184
      %p186 = scmp.ne.s32.totalorder %s178, %s181
      %p187 = scmp.eq.s32.totalorder %s11, 0
      %p188 = por %p186, %p187
      %p189 = scmp.ne.s32.totalorder %s178, %s181
      %p190 = scmp.eq.s32.totalorder %s16, 17
      %p191 = por %p189, %p190
      %p192 = scmp.ne.s32.totalorder %s181, %s182
      %p193 = scmp.eq.s32.totalorder %s16, 0
      %p194 = por %p192, %p193
      %p195 = scmp.ne.s32.totalorder %s181, %s182
      %p196 = scmp.eq.s32.totalorder %s17, 17
      %p197 = por %p195, %p196
      %p199 = scmp.ne.s32.totalorder %s182, %s198
      %p200 = scmp.eq.s32.totalorder %s17, 0
      %p201 = por %p199, %p200
      %p202 = scmp.le.s32.totalorder 1, %s11
      %p203 = scmp.lt.s32.totalorder %s11, 19
      %p204 = pnand %p202, %p203
      %p205 = pneg %p204
      // Predicated region
      $region9: #{custom_resnet_forward.22} parent=5 // pred_check
        _
      $region10: #{custom_resnet_forward.22} parent=5 // pred_check_branch
        %207 = sbr.rel (%p204) target = $region12
      $region11: #{custom_resnet_forward.22} parent=5 // pred_region
        %s208 = ssub.s32 %s11, 1
      $region12: #{custom_resnet_forward.22} parent=5 // pred_fallthru
        _
      %p209 = scmp.lt.s32.totalorder %s11, 18
      // Predicated region
      $region13: #{custom_resnet_forward.22} parent=5 // pred_check
        %p210 = pneg %p209
      $region14: #{custom_resnet_forward.22} parent=5 // pred_check_branch
        %212 = sbr.rel (%p210) target = $region16
      $region15: #{custom_resnet_forward.22} parent=5 // pred_region
        // Predicated region
        $region17: #{custom_resnet_forward.22} parent=15 // pred_check
          %p213 = pneg %p52
        $region18: #{custom_resnet_forward.22} parent=15 // pred_check_branch
          %215 = sbr.rel (%p213) target = $region20
        $region19: #{custom_resnet_forward.22} parent=15 // pred_region
          %s216 = smul.u32 4, %s20
          %p217 = scmp.lt.s32.totalorder %s18, 0
          %s218 = scalar_select %p217, %s18, 0
          %p219 = scmp.lt.s32.totalorder %s216, 35
          %s220 = scalar_select %p219, %s216, 35
          %s221 = smul.addr %s218, 36
          %s222 = sadd.s32 %s220, %s221
          %s223 = smul.addr %s222, 4
          %s224 = scalar_lea.vmem %s0, %s223
          %s225 = smul.u32 4, %s20
        $region20: #{custom_resnet_forward.22} parent=15 // pred_fallthru
          _
        // Predicated region
        $region21: #{custom_resnet_forward.22} parent=15 // pred_check
          %p226 = pneg %p80
        $region22: #{custom_resnet_forward.22} parent=15 // pred_check_branch
          %228 = sbr.rel (%p226) target = $region24
        $region23: #{custom_resnet_forward.22} parent=15 // pred_region
          %s229 = sand.u32 %s70, 1
          %s230 = sand.u32 %s70, 1
          %s231 = smul.addr %s230, 512
          %s232 = scalar_lea.vmem [#allocation3], %s231
          %s233 = smul.u32 64, %s20
          %s234 = smul.u32 2, %s19
          %s235 = smul.addr %s233, 4
          %s236 = sadd.s32 %s234, %s235
          %s237 = smul.addr %s236, 4
          %s238 = scalar_lea.vmem %s1, %s237
          // Predicated region
          $region25: #{custom_resnet_forward.22} parent=23 // pred_check
            _
          $region26: #{custom_resnet_forward.22} parent=23 // pred_check_branch
            %240 = sbr.rel (0) target = $region28
          $region27: #{custom_resnet_forward.22} parent=23 // pred_region
            // Predicated region
            $region29: #{custom_resnet_forward.22} parent=27 // pred_check
              _
            $region30: #{custom_resnet_forward.22} parent=27 // pred_check_branch
              %242 = sbr.rel (0) target = $region32
            $region31: #{custom_resnet_forward.22} parent=27 // pred_region
              // Predicated region
              $region44: #{custom_resnet_forward.22} parent=31 // pred_check
                _
              $region45: #{custom_resnet_forward.22} parent=31 // pred_check_branch
                %384 = sbr.rel (0) target = $region47
              $region46: #{custom_resnet_forward.22} parent=31 // pred_region
                loop: start=0, step=1, limit=1
                $region48: #{custom_resnet_forward.22} parent=46 // loop_pre_header
                  _
                $region49: #{custom_resnet_forward.22} parent=46 // loop_header
                  %s386 = sphi 0, %s390
                  %p387 = scmp.ge.s32.totalorder %s386, 1
                  %s391 = sphi %s238, %s238
                  %s392 = sphi %s232, %s232
                $region50: #{custom_resnet_forward.22} parent=46 // loop_header_branch
                  %389 = sbr.rel (%p387) target = $region54
                $region51: #{custom_resnet_forward.22} parent=46 // loop_body
                  %v393 = vld [vmem:[%s391] sm:$0xff]
                  %394 = vst [vmem:[%s392] sm:$0xff] %v393
                  %v395 = vld [vmem:[%s391 + $0x10] sm:$0xff]
                  %396 = vst [vmem:[%s392 + $0x8] sm:$0xff] %v395
                  %v397 = vld [vmem:[%s391 + $0x20] sm:$0xff]
                  %398 = vst [vmem:[%s392 + $0x10] sm:$0xff] %v397
                  %v399 = vld [vmem:[%s391 + $0x30] sm:$0xff]
                  %400 = vst [vmem:[%s392 + $0x18] sm:$0xff] %v399
                  %v401 = vld [vmem:[%s391 + $0x40] sm:$0xff]
                  %402 = vst [vmem:[%s392 + $0x20] sm:$0xff] %v401
                  %v403 = vld [vmem:[%s391 + $0x50] sm:$0xff]
                  %404 = vst [vmem:[%s392 + $0x28] sm:$0xff] %v403
                  %v405 = vld [vmem:[%s391 + $0x60] sm:$0xff]
                  %406 = vst [vmem:[%s392 + $0x30] sm:$0xff] %v405
                  %v407 = vld [vmem:[%s391 + $0x70] sm:$0xff]
                  %408 = vst [vmem:[%s392 + $0x38] sm:$0xff] %v407
                  %v409 = vld [vmem:[%s391 + $0x80] sm:$0xff]
                  %410 = vst [vmem:[%s392 + $0x40] sm:$0xff] %v409
                  %v411 = vld [vmem:[%s391 + $0x90] sm:$0xff]
                  %412 = vst [vmem:[%s392 + $0x48] sm:$0xff] %v411
                  %v413 = vld [vmem:[%s391 + $0xa0] sm:$0xff]
                  %414 = vst [vmem:[%s392 + $0x50] sm:$0xff] %v413
                  %v415 = vld [vmem:[%s391 + $0xb0] sm:$0xff]
                  %416 = vst [vmem:[%s392 + $0x58] sm:$0xff] %v415
                  %v417 = vld [vmem:[%s391 + $0xc0] sm:$0xff]
                  %418 = vst [vmem:[%s392 + $0x60] sm:$0xff] %v417
                  %v419 = vld [vmem:[%s391 + $0xd0] sm:$0xff]
                  %420 = vst [vmem:[%s392 + $0x68] sm:$0xff] %v419
                  %v421 = vld [vmem:[%s391 + $0xe0] sm:$0xff]
                  %422 = vst [vmem:[%s392 + $0x70] sm:$0xff] %v421
                  %v423 = vld [vmem:[%s391 + $0xf0] sm:$0xff]
                  %424 = vst [vmem:[%s392 + $0x78] sm:$0xff] %v423
                  %v425 = vld [vmem:[%s391 + $0x100] sm:$0xff]
                  %426 = vst [vmem:[%s392 + $0x80] sm:$0xff] %v425
                  %v427 = vld [vmem:[%s391 + $0x110] sm:$0xff]
                  %428 = vst [vmem:[%s392 + $0x88] sm:$0xff] %v427
                  %v429 = vld [vmem:[%s391 + $0x120] sm:$0xff]
                  %430 = vst [vmem:[%s392 + $0x90] sm:$0xff] %v429
                  %v431 = vld [vmem:[%s391 + $0x130] sm:$0xff]
                  %432 = vst [vmem:[%s392 + $0x98] sm:$0xff] %v431
                  %v433 = vld [vmem:[%s391 + $0x140] sm:$0xff]
                  %434 = vst [vmem:[%s392 + $0xa0] sm:$0xff] %v433
                  %v435 = vld [vmem:[%s391 + $0x150] sm:$0xff]
                  %436 = vst [vmem:[%s392 + $0xa8] sm:$0xff] %v435
                  %v437 = vld [vmem:[%s391 + $0x160] sm:$0xff]
                  %438 = vst [vmem:[%s392 + $0xb0] sm:$0xff] %v437
                  %v439 = vld [vmem:[%s391 + $0x170] sm:$0xff]
                  %440 = vst [vmem:[%s392 + $0xb8] sm:$0xff] %v439
                  %v441 = vld [vmem:[%s391 + $0x180] sm:$0xff]
                  %442 = vst [vmem:[%s392 + $0xc0] sm:$0xff] %v441
                  %v443 = vld [vmem:[%s391 + $0x190] sm:$0xff]
                  %444 = vst [vmem:[%s392 + $0xc8] sm:$0xff] %v443
                  %v445 = vld [vmem:[%s391 + $0x1a0] sm:$0xff]
                  %446 = vst [vmem:[%s392 + $0xd0] sm:$0xff] %v445
                  %v447 = vld [vmem:[%s391 + $0x1b0] sm:$0xff]
                  %448 = vst [vmem:[%s392 + $0xd8] sm:$0xff] %v447
                  %v449 = vld [vmem:[%s391 + $0x1c0] sm:$0xff]
                  %450 = vst [vmem:[%s392 + $0xe0] sm:$0xff] %v449
                  %v451 = vld [vmem:[%s391 + $0x1d0] sm:$0xff]
                  %452 = vst [vmem:[%s392 + $0xe8] sm:$0xff] %v451
                  %v453 = vld [vmem:[%s391 + $0x1e0] sm:$0xff]
                  %454 = vst [vmem:[%s392 + $0xf0] sm:$0xff] %v453
                  %v455 = vld [vmem:[%s391 + $0x1f0] sm:$0xff]
                  %456 = vst [vmem:[%s392 + $0xf8] sm:$0xff] %v455
                  %v457 = vld [vmem:[%s391 + $0x200] sm:$0xff]
                  %458 = vst [vmem:[%s392 + $0x100] sm:$0xff] %v457
                  %v459 = vld [vmem:[%s391 + $0x210] sm:$0xff]
                  %460 = vst [vmem:[%s392 + $0x108] sm:$0xff] %v459
                  %v461 = vld [vmem:[%s391 + $0x220] sm:$0xff]
                  %462 = vst [vmem:[%s392 + $0x110] sm:$0xff] %v461
                  %v463 = vld [vmem:[%s391 + $0x230] sm:$0xff]
                  %464 = vst [vmem:[%s392 + $0x118] sm:$0xff] %v463
                  %v465 = vld [vmem:[%s391 + $0x240] sm:$0xff]
                  %466 = vst [vmem:[%s392 + $0x120] sm:$0xff] %v465
                  %v467 = vld [vmem:[%s391 + $0x250] sm:$0xff]
                  %468 = vst [vmem:[%s392 + $0x128] sm:$0xff] %v467
                  %v469 = vld [vmem:[%s391 + $0x260] sm:$0xff]
                  %470 = vst [vmem:[%s392 + $0x130] sm:$0xff] %v469
                  %v471 = vld [vmem:[%s391 + $0x270] sm:$0xff]
                  %472 = vst [vmem:[%s392 + $0x138] sm:$0xff] %v471
                  %v473 = vld [vmem:[%s391 + $0x280] sm:$0xff]
                  %474 = vst [vmem:[%s392 + $0x140] sm:$0xff] %v473
                  %v475 = vld [vmem:[%s391 + $0x290] sm:$0xff]
                  %476 = vst [vmem:[%s392 + $0x148] sm:$0xff] %v475
                  %v477 = vld [vmem:[%s391 + $0x2a0] sm:$0xff]
                  %478 = vst [vmem:[%s392 + $0x150] sm:$0xff] %v477
                  %v479 = vld [vmem:[%s391 + $0x2b0] sm:$0xff]
                  %480 = vst [vmem:[%s392 + $0x158] sm:$0xff] %v479
                  %v481 = vld [vmem:[%s391 + $0x2c0] sm:$0xff]
                  %482 = vst [vmem:[%s392 + $0x160] sm:$0xff] %v481
                  %v483 = vld [vmem:[%s391 + $0x2d0] sm:$0xff]
                  %484 = vst [vmem:[%s392 + $0x168] sm:$0xff] %v483
                  %v485 = vld [vmem:[%s391 + $0x2e0] sm:$0xff]
                  %486 = vst [vmem:[%s392 + $0x170] sm:$0xff] %v485
                  %v487 = vld [vmem:[%s391 + $0x2f0] sm:$0xff]
                  %488 = vst [vmem:[%s392 + $0x178] sm:$0xff] %v487
                  %v489 = vld [vmem:[%s391 + $0x300] sm:$0xff]
                  %490 = vst [vmem:[%s392 + $0x180] sm:$0xff] %v489
                  %v491 = vld [vmem:[%s391 + $0x310] sm:$0xff]
                  %492 = vst [vmem:[%s392 + $0x188] sm:$0xff] %v491
                  %v493 = vld [vmem:[%s391 + $0x320] sm:$0xff]
                  %494 = vst [vmem:[%s392 + $0x190] sm:$0xff] %v493
                  %v495 = vld [vmem:[%s391 + $0x330] sm:$0xff]
                  %496 = vst [vmem:[%s392 + $0x198] sm:$0xff] %v495
                  %v497 = vld [vmem:[%s391 + $0x340] sm:$0xff]
                  %498 = vst [vmem:[%s392 + $0x1a0] sm:$0xff] %v497
                  %v499 = vld [vmem:[%s391 + $0x350] sm:$0xff]
                  %500 = vst [vmem:[%s392 + $0x1a8] sm:$0xff] %v499
                  %v501 = vld [vmem:[%s391 + $0x360] sm:$0xff]
                  %502 = vst [vmem:[%s392 + $0x1b0] sm:$0xff] %v501
                  %v503 = vld [vmem:[%s391 + $0x370] sm:$0xff]
                  %504 = vst [vmem:[%s392 + $0x1b8] sm:$0xff] %v503
                  %v505 = vld [vmem:[%s391 + $0x380] sm:$0xff]
                  %506 = vst [vmem:[%s392 + $0x1c0] sm:$0xff] %v505
                  %v507 = vld [vmem:[%s391 + $0x390] sm:$0xff]
                  %508 = vst [vmem:[%s392 + $0x1c8] sm:$0xff] %v507
                  %v509 = vld [vmem:[%s391 + $0x3a0] sm:$0xff]
                  %510 = vst [vmem:[%s392 + $0x1d0] sm:$0xff] %v509
                  %v511 = vld [vmem:[%s391 + $0x3b0] sm:$0xff]
                  %512 = vst [vmem:[%s392 + $0x1d8] sm:$0xff] %v511
                  %v513 = vld [vmem:[%s391 + $0x3c0] sm:$0xff]
                  %514 = vst [vmem:[%s392 + $0x1e0] sm:$0xff] %v513
                  %v515 = vld [vmem:[%s391 + $0x3d0] sm:$0xff]
                  %516 = vst [vmem:[%s392 + $0x1e8] sm:$0xff] %v515
                  %v517 = vld [vmem:[%s391 + $0x3e0] sm:$0xff]
                  %518 = vst [vmem:[%s392 + $0x1f0] sm:$0xff] %v517
                  %v519 = vld [vmem:[%s391 + $0x3f0] sm:$0xff]
                  %520 = vst [vmem:[%s392 + $0x1f8] sm:$0xff] %v519
                $region52: #{custom_resnet_forward.22} parent=46 // loop_footer
                  %s390 = sadd.s32 1, %s386
                $region53: #{custom_resnet_forward.22} parent=46 // loop_footer_branch
                  %385 = sbr.rel target = $region49
                $region54: #{custom_resnet_forward.22} parent=46 // loop_exit
                  _
              $region47: #{custom_resnet_forward.22} parent=31 // pred_fallthru
                _
              // Predicated region
              $region55: #{custom_resnet_forward.22} parent=31 // pred_check
                _
              $region56: #{custom_resnet_forward.22} parent=31 // pred_check_branch
                %522 = sbr.rel target = $region58
              $region57: #{custom_resnet_forward.22} parent=31 // pred_region
                _
              $region58: #{custom_resnet_forward.22} parent=31 // pred_fallthru
                _
            $region32: #{custom_resnet_forward.22} parent=27 // pred_fallthru
              _
            // Predicated region
            $region33: #{custom_resnet_forward.22} parent=27 // pred_check
              _
            $region34: #{custom_resnet_forward.22} parent=27 // pred_check_branch
              %244 = sbr.rel target = $region36
            $region35: #{custom_resnet_forward.22} parent=27 // pred_region
              %s246 = ssub.s32 256, 1
              loop: start=0, step=1, limit=1
              $region37: #{custom_resnet_forward.22} parent=35 // loop_pre_header
                _
              $region38: #{custom_resnet_forward.22} parent=35 // loop_header
                %s248 = sphi 0, %s252
                %p249 = scmp.ge.s32.totalorder %s248, 1
                %s253 = sphi %s238, %s238
                %s254 = sphi %s232, %s232
              $region39: #{custom_resnet_forward.22} parent=35 // loop_header_branch
                %251 = sbr.rel (%p249) target = $region43
              $region40: #{custom_resnet_forward.22} parent=35 // loop_body
                %v255 = vld [vmem:[%s253] sm:%s246]
                %256 = vst [vmem:[%s254] sm:%s246] %v255
                %v257 = vld [vmem:[%s253 + $0x10] sm:%s246]
                %258 = vst [vmem:[%s254 + $0x8] sm:%s246] %v257
                %v259 = vld [vmem:[%s253 + $0x20] sm:%s246]
                %260 = vst [vmem:[%s254 + $0x10] sm:%s246] %v259
                %v261 = vld [vmem:[%s253 + $0x30] sm:%s246]
                %262 = vst [vmem:[%s254 + $0x18] sm:%s246] %v261
                %v263 = vld [vmem:[%s253 + $0x40] sm:%s246]
                %264 = vst [vmem:[%s254 + $0x20] sm:%s246] %v263
                %v265 = vld [vmem:[%s253 + $0x50] sm:%s246]
                %266 = vst [vmem:[%s254 + $0x28] sm:%s246] %v265
                %v267 = vld [vmem:[%s253 + $0x60] sm:%s246]
                %268 = vst [vmem:[%s254 + $0x30] sm:%s246] %v267
                %v269 = vld [vmem:[%s253 + $0x70] sm:%s246]
                %270 = vst [vmem:[%s254 + $0x38] sm:%s246] %v269
                %v271 = vld [vmem:[%s253 + $0x80] sm:%s246]
                %272 = vst [vmem:[%s254 + $0x40] sm:%s246] %v271
                %v273 = vld [vmem:[%s253 + $0x90] sm:%s246]
                %274 = vst [vmem:[%s254 + $0x48] sm:%s246] %v273
                %v275 = vld [vmem:[%s253 + $0xa0] sm:%s246]
                %276 = vst [vmem:[%s254 + $0x50] sm:%s246] %v275
                %v277 = vld [vmem:[%s253 + $0xb0] sm:%s246]
                %278 = vst [vmem:[%s254 + $0x58] sm:%s246] %v277
                %v279 = vld [vmem:[%s253 + $0xc0] sm:%s246]
                %280 = vst [vmem:[%s254 + $0x60] sm:%s246] %v279
                %v281 = vld [vmem:[%s253 + $0xd0] sm:%s246]
                %282 = vst [vmem:[%s254 + $0x68] sm:%s246] %v281
                %v283 = vld [vmem:[%s253 + $0xe0] sm:%s246]
                %284 = vst [vmem:[%s254 + $0x70] sm:%s246] %v283
                %v285 = vld [vmem:[%s253 + $0xf0] sm:%s246]
                %286 = vst [vmem:[%s254 + $0x78] sm:%s246] %v285
                %v287 = vld [vmem:[%s253 + $0x100] sm:%s246]
                %288 = vst [vmem:[%s254 + $0x80] sm:%s246] %v287
                %v289 = vld [vmem:[%s253 + $0x110] sm:%s246]
                %290 = vst [vmem:[%s254 + $0x88] sm:%s246] %v289
                %v291 = vld [vmem:[%s253 + $0x120] sm:%s246]
                %292 = vst [vmem:[%s254 + $0x90] sm:%s246] %v291
                %v293 = vld [vmem:[%s253 + $0x130] sm:%s246]
                %294 = vst [vmem:[%s254 + $0x98] sm:%s246] %v293
                %v295 = vld [vmem:[%s253 + $0x140] sm:%s246]
                %296 = vst [vmem:[%s254 + $0xa0] sm:%s246] %v295
                %v297 = vld [vmem:[%s253 + $0x150] sm:%s246]
                %298 = vst [vmem:[%s254 + $0xa8] sm:%s246] %v297
                %v299 = vld [vmem:[%s253 + $0x160] sm:%s246]
                %300 = vst [vmem:[%s254 + $0xb0] sm:%s246] %v299
                %v301 = vld [vmem:[%s253 + $0x170] sm:%s246]
                %302 = vst [vmem:[%s254 + $0xb8] sm:%s246] %v301
                %v303 = vld [vmem:[%s253 + $0x180] sm:%s246]
                %304 = vst [vmem:[%s254 + $0xc0] sm:%s246] %v303
                %v305 = vld [vmem:[%s253 + $0x190] sm:%s246]
                %306 = vst [vmem:[%s254 + $0xc8] sm:%s246] %v305
                %v307 = vld [vmem:[%s253 + $0x1a0] sm:%s246]
                %308 = vst [vmem:[%s254 + $0xd0] sm:%s246] %v307
                %v309 = vld [vmem:[%s253 + $0x1b0] sm:%s246]
                %310 = vst [vmem:[%s254 + $0xd8] sm:%s246] %v309
                %v311 = vld [vmem:[%s253 + $0x1c0] sm:%s246]
                %312 = vst [vmem:[%s254 + $0xe0] sm:%s246] %v311
                %v313 = vld [vmem:[%s253 + $0x1d0] sm:%s246]
                %314 = vst [vmem:[%s254 + $0xe8] sm:%s246] %v313
                %v315 = vld [vmem:[%s253 + $0x1e0] sm:%s246]
                %316 = vst [vmem:[%s254 + $0xf0] sm:%s246] %v315
                %v317 = vld [vmem:[%s253 + $0x1f0] sm:%s246]
                %318 = vst [vmem:[%s254 + $0xf8] sm:%s246] %v317
                %v319 = vld [vmem:[%s253 + $0x200] sm:%s246]
                %320 = vst [vmem:[%s254 + $0x100] sm:%s246] %v319
                %v321 = vld [vmem:[%s253 + $0x210] sm:%s246]
                %322 = vst [vmem:[%s254 + $0x108] sm:%s246] %v321
                %v323 = vld [vmem:[%s253 + $0x220] sm:%s246]
                %324 = vst [vmem:[%s254 + $0x110] sm:%s246] %v323
                %v325 = vld [vmem:[%s253 + $0x230] sm:%s246]
                %326 = vst [vmem:[%s254 + $0x118] sm:%s246] %v325
                %v327 = vld [vmem:[%s253 + $0x240] sm:%s246]
                %328 = vst [vmem:[%s254 + $0x120] sm:%s246] %v327
                %v329 = vld [vmem:[%s253 + $0x250] sm:%s246]
                %330 = vst [vmem:[%s254 + $0x128] sm:%s246] %v329
                %v331 = vld [vmem:[%s253 + $0x260] sm:%s246]
                %332 = vst [vmem:[%s254 + $0x130] sm:%s246] %v331
                %v333 = vld [vmem:[%s253 + $0x270] sm:%s246]
                %334 = vst [vmem:[%s254 + $0x138] sm:%s246] %v333
                %v335 = vld [vmem:[%s253 + $0x280] sm:%s246]
                %336 = vst [vmem:[%s254 + $0x140] sm:%s246] %v335
                %v337 = vld [vmem:[%s253 + $0x290] sm:%s246]
                %338 = vst [vmem:[%s254 + $0x148] sm:%s246] %v337
                %v339 = vld [vmem:[%s253 + $0x2a0] sm:%s246]
                %340 = vst [vmem:[%s254 + $0x150] sm:%s246] %v339
                %v341 = vld [vmem:[%s253 + $0x2b0] sm:%s246]
                %342 = vst [vmem:[%s254 + $0x158] sm:%s246] %v341
                %v343 = vld [vmem:[%s253 + $0x2c0] sm:%s246]
                %344 = vst [vmem:[%s254 + $0x160] sm:%s246] %v343
                %v345 = vld [vmem:[%s253 + $0x2d0] sm:%s246]
                %346 = vst [vmem:[%s254 + $0x168] sm:%s246] %v345
                %v347 = vld [vmem:[%s253 + $0x2e0] sm:%s246]
                %348 = vst [vmem:[%s254 + $0x170] sm:%s246] %v347
                %v349 = vld [vmem:[%s253 + $0x2f0] sm:%s246]
                %350 = vst [vmem:[%s254 + $0x178] sm:%s246] %v349
                %v351 = vld [vmem:[%s253 + $0x300] sm:%s246]
                %352 = vst [vmem:[%s254 + $0x180] sm:%s246] %v351
                %v353 = vld [vmem:[%s253 + $0x310] sm:%s246]
                %354 = vst [vmem:[%s254 + $0x188] sm:%s246] %v353
                %v355 = vld [vmem:[%s253 + $0x320] sm:%s246]
                %356 = vst [vmem:[%s254 + $0x190] sm:%s246] %v355
                %v357 = vld [vmem:[%s253 + $0x330] sm:%s246]
                %358 = vst [vmem:[%s254 + $0x198] sm:%s246] %v357
                %v359 = vld [vmem:[%s253 + $0x340] sm:%s246]
                %360 = vst [vmem:[%s254 + $0x1a0] sm:%s246] %v359
                %v361 = vld [vmem:[%s253 + $0x350] sm:%s246]
                %362 = vst [vmem:[%s254 + $0x1a8] sm:%s246] %v361
                %v363 = vld [vmem:[%s253 + $0x360] sm:%s246]
                %364 = vst [vmem:[%s254 + $0x1b0] sm:%s246] %v363
                %v365 = vld [vmem:[%s253 + $0x370] sm:%s246]
                %366 = vst [vmem:[%s254 + $0x1b8] sm:%s246] %v365
                %v367 = vld [vmem:[%s253 + $0x380] sm:%s246]
                %368 = vst [vmem:[%s254 + $0x1c0] sm:%s246] %v367
                %v369 = vld [vmem:[%s253 + $0x390] sm:%s246]
                %370 = vst [vmem:[%s254 + $0x1c8] sm:%s246] %v369
                %v371 = vld [vmem:[%s253 + $0x3a0] sm:%s246]
                %372 = vst [vmem:[%s254 + $0x1d0] sm:%s246] %v371
                %v373 = vld [vmem:[%s253 + $0x3b0] sm:%s246]
                %374 = vst [vmem:[%s254 + $0x1d8] sm:%s246] %v373
                %v375 = vld [vmem:[%s253 + $0x3c0] sm:%s246]
                %376 = vst [vmem:[%s254 + $0x1e0] sm:%s246] %v375
                %v377 = vld [vmem:[%s253 + $0x3d0] sm:%s246]
                %378 = vst [vmem:[%s254 + $0x1e8] sm:%s246] %v377
                %v379 = vld [vmem:[%s253 + $0x3e0] sm:%s246]
                %380 = vst [vmem:[%s254 + $0x1f0] sm:%s246] %v379
                %v381 = vld [vmem:[%s253 + $0x3f0] sm:%s246]
                %382 = vst [vmem:[%s254 + $0x1f8] sm:%s246] %v381
              $region41: #{custom_resnet_forward.22} parent=35 // loop_footer
                %s252 = sadd.s32 1, %s248
              $region42: #{custom_resnet_forward.22} parent=35 // loop_footer_branch
                %247 = sbr.rel target = $region38
              $region43: #{custom_resnet_forward.22} parent=35 // loop_exit
                _
            $region36: #{custom_resnet_forward.22} parent=27 // pred_fallthru
              _
          $region28: #{custom_resnet_forward.22} parent=23 // pred_fallthru
            _
          %523 = vnop
        $region24: #{custom_resnet_forward.22} parent=15 // pred_fallthru
          _
        // Predicated region
        $region59: #{custom_resnet_forward.22} parent=15 // pred_check
          %p524 = pneg %p106
        $region60: #{custom_resnet_forward.22} parent=15 // pred_check_branch
          %526 = sbr.rel (%p524) target = $region62
        $region61: #{custom_resnet_forward.22} parent=15 // pred_region
          %s527 = smul.u32 2, %s19
          %p528 = scmp.lt.s32.totalorder %s527, 3
          %s529 = scalar_select %p528, %s527, 3
          %s530 = scalar_lea.vmem %s2, %s529
          %s531 = smul.u32 2, %s19
        $region62: #{custom_resnet_forward.22} parent=15 // pred_fallthru
          _
        // Predicated region
        $region63: #{custom_resnet_forward.22} parent=15 // pred_check
          %p532 = pneg %p132
        $region64: #{custom_resnet_forward.22} parent=15 // pred_check_branch
          %534 = sbr.rel (%p532) target = $region66
        $region65: #{custom_resnet_forward.22} parent=15 // pred_region
          %s535 = smul.u32 2, %s19
          %p536 = scmp.lt.s32.totalorder %s535, 3
          %s537 = scalar_select %p536, %s535, 3
          %s538 = scalar_lea.vmem %s3, %s537
          %s539 = smul.u32 2, %s19
        $region66: #{custom_resnet_forward.22} parent=15 // pred_fallthru
          _
        // Predicated region
        $region67: #{custom_resnet_forward.22} parent=15 // pred_check
          %p540 = pneg %p160
        $region68: #{custom_resnet_forward.22} parent=15 // pred_check_branch
          %542 = sbr.rel (%p540) target = $region70
        $region69: #{custom_resnet_forward.22} parent=15 // pred_region
          %s543 = smul.u32 2, %s19
          %p544 = scmp.lt.s32.totalorder %s18, 0
          %s545 = scalar_select %p544, %s18, 0
          %p546 = scmp.lt.s32.totalorder %s543, 3
          %s547 = scalar_select %p546, %s543, 3
          %s548 = smul.addr %s545, 4
          %s549 = sadd.s32 %s547, %s548
          %s550 = smul.addr %s549, 8
          %s551 = scalar_lea.vmem %s4, %s550
          %s552 = smul.u32 2, %s19
        $region70: #{custom_resnet_forward.22} parent=15 // pred_fallthru
          _
      $region16: #{custom_resnet_forward.22} parent=5 // pred_fallthru
        _
      %p553 = scmp.le.s32.totalorder 1, %s11
      %p554 = scmp.lt.s32.totalorder %s11, 19
      %p555 = pnand %p553, %p554
      %p556 = pneg %p555
      // Predicated region
      $region71: #{custom_resnet_forward.22} parent=5 // pred_check
        _
      $region72: #{custom_resnet_forward.22} parent=5 // pred_check_branch
        %558 = sbr.rel (%p555) target = $region74
      $region73: #{custom_resnet_forward.22} parent=5 // pred_region
        %s559 = ssub.s32 %s11, 1
        %s560 = sand.u32 %s73, 1
        %s561 = sand.u32 %s73, 1
        %s562 = smul.addr %s561, 512
        %s563 = scalar_lea.vmem [#allocation3], %s562
        // Predicated region
        $region75: #{custom_resnet_forward.22} parent=73 // pred_check
          %p564 = pneg %p86
        $region76: #{custom_resnet_forward.22} parent=73 // pred_check_branch
          %566 = sbr.rel (%p564) target = $region78
        $region77: #{custom_resnet_forward.22} parent=73 // pred_region
          _
        $region78: #{custom_resnet_forward.22} parent=73 // pred_fallthru
          _
        %s567 = smul.u32 4, %s23
        %p568 = scmp.lt.s32.totalorder %s21, 0
        %s569 = scalar_select %p568, %s21, 0
        %p570 = scmp.lt.s32.totalorder %s567, 35
        %s571 = scalar_select %p570, %s567, 35
        %s572 = smul.addr %s569, 36
        %s573 = sadd.s32 %s571, %s572
        %s574 = smul.addr %s573, 4
        %s575 = scalar_lea.vmem %s0, %s574
        %p576 = pneg %p58
        %p577 = pneg %p55
        %s578 = sand.u32 %s73, 1
        %s579 = sand.u32 %s73, 1
        %s580 = smul.addr %s579, 512
        %s581 = scalar_lea.vmem [#allocation3], %s580
        %p582 = pneg %p86
        %p583 = pneg %p83
        %s584 = smul.u32 2, %s22
        %p585 = scmp.lt.s32.totalorder %s584, 3
        %s586 = scalar_select %p585, %s584, 3
        %s587 = scalar_lea.vmem %s2, %s586
        %p588 = pneg %p112
        %p589 = pneg %p109
        %s590 = smul.u32 2, %s22
        %p591 = scmp.lt.s32.totalorder %s590, 3
        %s592 = scalar_select %p591, %s590, 3
        %s593 = scalar_lea.vmem %s3, %s592
        %p594 = pneg %p138
        %p595 = pneg %p135
        %s596 = smul.u32 2, %s22
        %p597 = scmp.lt.s32.totalorder %s21, 0
        %s598 = scalar_select %p597, %s21, 0
        %p599 = scmp.lt.s32.totalorder %s596, 3
        %s600 = scalar_select %p599, %s596, 3
        %s601 = smul.addr %s598, 4
        %s602 = sadd.s32 %s600, %s601
        %s603 = smul.addr %s602, 8
        %s604 = scalar_lea.vmem %s4, %s603
        %p605 = pneg %p166
        %p606 = pneg %p163
        %p607 = pneg %p194
        %p608 = pneg %p191
        %s609 = smul.u32 2, %s22
        %p610 = scmp.lt.s32.totalorder %s21, 0
        %s611 = scalar_select %p610, %s21, 0
        %p612 = scmp.lt.s32.totalorder %s609, 3
        %s613 = scalar_select %p612, %s609, 3
        %s614 = smul.addr %s611, 4
        %s615 = sadd.s32 %s613, %s614
        %s616 = smul.addr %s615, 8
        %s617 = scalar_lea.vmem %s5, %s616
        %s618 = smul.u32 4, %s23
        %p619 = scmp.lt.s32.totalorder %s21, 0
        %s620 = scalar_select %p619, %s21, 0
        %p621 = scmp.lt.s32.totalorder %s618, 35
        %s622 = scalar_select %p621, %s618, 35
        %s623 = smul.addr %s620, 36
        %s624 = sadd.s32 %s622, %s623
        %s625 = smul.addr %s624, 4
        %s626 = scalar_lea.vmem %s0, %s625
        %s627 = smul.u32 4, %s23
        %s628 = smul.u32 64, %s23
        %s629 = smul.u32 2, %s22
        %s630 = smul.u32 2, %s22
        %p631 = scmp.lt.s32.totalorder %s630, 3
        %s632 = scalar_select %p631, %s630, 3
        %s633 = scalar_lea.vmem %s2, %s632
        %s634 = smul.u32 2, %s22
        %s635 = smul.u32 2, %s22
        %p636 = scmp.lt.s32.totalorder %s635, 3
        %s637 = scalar_select %p636, %s635, 3
        %s638 = scalar_lea.vmem %s3, %s637
        %s639 = smul.u32 2, %s22
        %s640 = smul.u32 2, %s22
        %p641 = scmp.lt.s32.totalorder %s21, 0
        %s642 = scalar_select %p641, %s21, 0
        %p643 = scmp.lt.s32.totalorder %s640, 3
        %s644 = scalar_select %p643, %s640, 3
        %s645 = smul.addr %s642, 4
        %s646 = sadd.s32 %s644, %s645
        %s647 = smul.addr %s646, 8
        %s648 = scalar_lea.vmem %s4, %s647
        %s649 = smul.u32 2, %s22
        %s650 = smul.u32 2, %s22
        %p651 = scmp.lt.s32.totalorder %s21, 0
        %s652 = scalar_select %p651, %s21, 0
        %p653 = scmp.lt.s32.totalorder %s650, 3
        %s654 = scalar_select %p653, %s650, 3
        %s655 = smul.addr %s652, 4
        %s656 = sadd.s32 %s654, %s655
        %s657 = smul.addr %s656, 8
        %s658 = scalar_lea.vmem %s5, %s657
        %s659 = smul.u32 2, %s22
        %p660 = scmp.eq.s32.totalorder %s23, 0
        // Predicated region
        $region79: #{custom_resnet_forward.22} parent=73 // pred_check
          %p661 = pneg %p660
        $region80: #{custom_resnet_forward.22} parent=73 // pred_check_branch
          %663 = sbr.rel (%p661) target = $region82
        $region81: #{custom_resnet_forward.22} parent=73 // pred_region
          %664 = vst [vmem:[#allocation2] sm:$0xff] 0.0
          %665 = vst [vmem:[#allocation2 + $0x8] sm:$0xff] 0.0
        $region82: #{custom_resnet_forward.22} parent=73 // pred_fallthru
          _
        %v666 = vld [vmem:[#allocation2] sm:$0xff]
        %v667 = vld [vmem:[#allocation2 + $0x8] sm:$0xff]
        %v668 = vld [vmem:[%s626] sm:$0xff]
        %v669 = vld [vmem:[%s626 + $0x8] sm:$0xff]
        %v670 = vld [vmem:[%s563] sm:$0xff]
        %v671 = vld [vmem:[%s563 + $0x8] sm:$0xff]
        %v672 = vld [vmem:[%s563 + $0x10] sm:$0xff]
        %v673 = vld [vmem:[%s563 + $0x18] sm:$0xff]
        %v674 = vld [vmem:[%s563 + $0x20] sm:$0xff]
        %v675 = vld [vmem:[%s563 + $0x28] sm:$0xff]
        %v676 = vld [vmem:[%s563 + $0x30] sm:$0xff]
        %v677 = vld [vmem:[%s563 + $0x38] sm:$0xff]
        %v678 = vld [vmem:[%s563 + $0x40] sm:$0xff]
        %v679 = vld [vmem:[%s563 + $0x48] sm:$0xff]
        %v680 = vld [vmem:[%s563 + $0x50] sm:$0xff]
        %v681 = vld [vmem:[%s563 + $0x58] sm:$0xff]
        %v682 = vld [vmem:[%s563 + $0x60] sm:$0xff]
        %v683 = vld [vmem:[%s563 + $0x68] sm:$0xff]
        %v684 = vld [vmem:[%s563 + $0x70] sm:$0xff]
        %v685 = vld [vmem:[%s563 + $0x78] sm:$0xff]
        %v686 = vld [vmem:[%s563 + $0x80] sm:$0xff]
        %v687 = vld [vmem:[%s563 + $0x88] sm:$0xff]
        %v688 = vld [vmem:[%s563 + $0x90] sm:$0xff]
        %v689 = vld [vmem:[%s563 + $0x98] sm:$0xff]
        %v690 = vld [vmem:[%s563 + $0xa0] sm:$0xff]
        %v691 = vld [vmem:[%s563 + $0xa8] sm:$0xff]
        %v692 = vld [vmem:[%s563 + $0xb0] sm:$0xff]
        %v693 = vld [vmem:[%s563 + $0xb8] sm:$0xff]
        %v694 = vld [vmem:[%s563 + $0xc0] sm:$0xff]
        %v695 = vld [vmem:[%s563 + $0xc8] sm:$0xff]
        %v696 = vld [vmem:[%s563 + $0xd0] sm:$0xff]
        %v697 = vld [vmem:[%s563 + $0xd8] sm:$0xff]
        %v698 = vld [vmem:[%s563 + $0xe0] sm:$0xff]
        %v699 = vld [vmem:[%s563 + $0xe8] sm:$0xff]
        %v700 = vld [vmem:[%s563 + $0xf0] sm:$0xff]
        %v701 = vld [vmem:[%s563 + $0xf8] sm:$0xff]
        %v702 = vld [vmem:[%s563 + $0x100] sm:$0xff]
        %v703 = vld [vmem:[%s563 + $0x108] sm:$0xff]
        %v704 = vld [vmem:[%s563 + $0x110] sm:$0xff]
        %v705 = vld [vmem:[%s563 + $0x118] sm:$0xff]
        %v706 = vld [vmem:[%s563 + $0x120] sm:$0xff]
        %v707 = vld [vmem:[%s563 + $0x128] sm:$0xff]
        %v708 = vld [vmem:[%s563 + $0x130] sm:$0xff]
        %v709 = vld [vmem:[%s563 + $0x138] sm:$0xff]
        %v710 = vld [vmem:[%s563 + $0x140] sm:$0xff]
        %v711 = vld [vmem:[%s563 + $0x148] sm:$0xff]
        %v712 = vld [vmem:[%s563 + $0x150] sm:$0xff]
        %v713 = vld [vmem:[%s563 + $0x158] sm:$0xff]
        %v714 = vld [vmem:[%s563 + $0x160] sm:$0xff]
        %v715 = vld [vmem:[%s563 + $0x168] sm:$0xff]
        %v716 = vld [vmem:[%s563 + $0x170] sm:$0xff]
        %v717 = vld [vmem:[%s563 + $0x178] sm:$0xff]
        %v718 = vld [vmem:[%s563 + $0x180] sm:$0xff]
        %v719 = vld [vmem:[%s563 + $0x188] sm:$0xff]
        %v720 = vld [vmem:[%s563 + $0x190] sm:$0xff]
        %v721 = vld [vmem:[%s563 + $0x198] sm:$0xff]
        %v722 = vld [vmem:[%s563 + $0x1a0] sm:$0xff]
        %v723 = vld [vmem:[%s563 + $0x1a8] sm:$0xff]
        %v724 = vld [vmem:[%s563 + $0x1b0] sm:$0xff]
        %v725 = vld [vmem:[%s563 + $0x1b8] sm:$0xff]
        %v726 = vld [vmem:[%s563 + $0x1c0] sm:$0xff]
        %v727 = vld [vmem:[%s563 + $0x1c8] sm:$0xff]
        %v728 = vld [vmem:[%s563 + $0x1d0] sm:$0xff]
        %v729 = vld [vmem:[%s563 + $0x1d8] sm:$0xff]
        %v730 = vld [vmem:[%s563 + $0x1e0] sm:$0xff]
        %v731 = vld [vmem:[%s563 + $0x1e8] sm:$0xff]
        %v732 = vld [vmem:[%s563 + $0x1f0] sm:$0xff]
        %v733 = vld [vmem:[%s563 + $0x1f8] sm:$0xff]
        %v736 = vunpack.c.l.b16 %v668
        %v737 = vunpack.c.h.b16 %v668
        %v738 = vunpack.c.l.b16 %v669
        %v739 = vunpack.c.h.b16 %v669
        %v740 = vpack.c.b16 %v736, %v736
        %v741 = vpack.c.b16 %v737, %v737
        %v742 = vpack.c.b16 %v738, %v738
        %v743 = vpack.c.b16 %v739, %v739
        %v812 = vunpack.c.l.b16 %v670
        %v813 = vunpack.c.h.b16 %v670
        %v814 = vunpack.c.l.b16 %v671
        %v815 = vunpack.c.h.b16 %v671
        %v816 = vunpack.c.l.b16 %v672
        %v817 = vunpack.c.h.b16 %v672
        %v818 = vunpack.c.l.b16 %v673
        %v819 = vunpack.c.h.b16 %v673
        %v820 = vunpack.c.l.b16 %v674
        %v821 = vunpack.c.h.b16 %v674
        %v822 = vunpack.c.l.b16 %v675
        %v823 = vunpack.c.h.b16 %v675
        %v824 = vunpack.c.l.b16 %v676
        %v825 = vunpack.c.h.b16 %v676
        %v826 = vunpack.c.l.b16 %v677
        %v827 = vunpack.c.h.b16 %v677
        %v828 = vunpack.c.l.b16 %v678
        %v829 = vunpack.c.h.b16 %v678
        %v830 = vunpack.c.l.b16 %v679
        %v831 = vunpack.c.h.b16 %v679
        %v832 = vunpack.c.l.b16 %v680
        %v833 = vunpack.c.h.b16 %v680
        %v834 = vunpack.c.l.b16 %v681
        %v835 = vunpack.c.h.b16 %v681
        %v836 = vunpack.c.l.b16 %v682
        %v837 = vunpack.c.h.b16 %v682
        %v838 = vunpack.c.l.b16 %v683
        %v839 = vunpack.c.h.b16 %v683
        %v840 = vunpack.c.l.b16 %v684
        %v841 = vunpack.c.h.b16 %v684
        %v842 = vunpack.c.l.b16 %v685
        %v843 = vunpack.c.h.b16 %v685
        %v844 = vunpack.c.l.b16 %v686
        %v845 = vunpack.c.h.b16 %v686
        %v846 = vunpack.c.l.b16 %v687
        %v847 = vunpack.c.h.b16 %v687
        %v848 = vunpack.c.l.b16 %v688
        %v849 = vunpack.c.h.b16 %v688
        %v850 = vunpack.c.l.b16 %v689
        %v851 = vunpack.c.h.b16 %v689
        %v852 = vunpack.c.l.b16 %v690
        %v853 = vunpack.c.h.b16 %v690
        %v854 = vunpack.c.l.b16 %v691
        %v855 = vunpack.c.h.b16 %v691
        %v856 = vunpack.c.l.b16 %v692
        %v857 = vunpack.c.h.b16 %v692
        %v858 = vunpack.c.l.b16 %v693
        %v859 = vunpack.c.h.b16 %v693
        %v860 = vunpack.c.l.b16 %v694
        %v861 = vunpack.c.h.b16 %v694
        %v862 = vunpack.c.l.b16 %v695
        %v863 = vunpack.c.h.b16 %v695
        %v864 = vunpack.c.l.b16 %v696
        %v865 = vunpack.c.h.b16 %v696
        %v866 = vunpack.c.l.b16 %v697
        %v867 = vunpack.c.h.b16 %v697
        %v868 = vunpack.c.l.b16 %v698
        %v869 = vunpack.c.h.b16 %v698
        %v870 = vunpack.c.l.b16 %v699
        %v871 = vunpack.c.h.b16 %v699
        %v872 = vunpack.c.l.b16 %v700
        %v873 = vunpack.c.h.b16 %v700
        %v874 = vunpack.c.l.b16 %v701
        %v875 = vunpack.c.h.b16 %v701
        %v876 = vunpack.c.l.b16 %v702
        %v877 = vunpack.c.h.b16 %v702
        %v878 = vunpack.c.l.b16 %v703
        %v879 = vunpack.c.h.b16 %v703
        %v880 = vunpack.c.l.b16 %v704
        %v881 = vunpack.c.h.b16 %v704
        %v882 = vunpack.c.l.b16 %v705
        %v883 = vunpack.c.h.b16 %v705
        %v884 = vunpack.c.l.b16 %v706
        %v885 = vunpack.c.h.b16 %v706
        %v886 = vunpack.c.l.b16 %v707
        %v887 = vunpack.c.h.b16 %v707
        %v888 = vunpack.c.l.b16 %v708
        %v889 = vunpack.c.h.b16 %v708
        %v890 = vunpack.c.l.b16 %v709
        %v891 = vunpack.c.h.b16 %v709
        %v892 = vunpack.c.l.b16 %v710
        %v893 = vunpack.c.h.b16 %v710
        %v894 = vunpack.c.l.b16 %v711
        %v895 = vunpack.c.h.b16 %v711
        %v896 = vunpack.c.l.b16 %v712
        %v897 = vunpack.c.h.b16 %v712
        %v898 = vunpack.c.l.b16 %v713
        %v899 = vunpack.c.h.b16 %v713
        %v900 = vunpack.c.l.b16 %v714
        %v901 = vunpack.c.h.b16 %v714
        %v902 = vunpack.c.l.b16 %v715
        %v903 = vunpack.c.h.b16 %v715
        %v904 = vunpack.c.l.b16 %v716
        %v905 = vunpack.c.h.b16 %v716
        %v906 = vunpack.c.l.b16 %v717
        %v907 = vunpack.c.h.b16 %v717
        %v908 = vunpack.c.l.b16 %v718
        %v909 = vunpack.c.h.b16 %v718
        %v910 = vunpack.c.l.b16 %v719
        %v911 = vunpack.c.h.b16 %v719
        %v912 = vunpack.c.l.b16 %v720
        %v913 = vunpack.c.h.b16 %v720
        %v914 = vunpack.c.l.b16 %v721
        %v915 = vunpack.c.h.b16 %v721
        %v916 = vunpack.c.l.b16 %v722
        %v917 = vunpack.c.h.b16 %v722
        %v918 = vunpack.c.l.b16 %v723
        %v919 = vunpack.c.h.b16 %v723
        %v920 = vunpack.c.l.b16 %v724
        %v921 = vunpack.c.h.b16 %v724
        %v922 = vunpack.c.l.b16 %v725
        %v923 = vunpack.c.h.b16 %v725
        %v924 = vunpack.c.l.b16 %v726
        %v925 = vunpack.c.h.b16 %v726
        %v926 = vunpack.c.l.b16 %v727
        %v927 = vunpack.c.h.b16 %v727
        %v928 = vunpack.c.l.b16 %v728
        %v929 = vunpack.c.h.b16 %v728
        %v930 = vunpack.c.l.b16 %v729
        %v931 = vunpack.c.h.b16 %v729
        %v932 = vunpack.c.l.b16 %v730
        %v933 = vunpack.c.h.b16 %v730
        %v934 = vunpack.c.l.b16 %v731
        %v935 = vunpack.c.h.b16 %v731
        %v936 = vunpack.c.l.b16 %v732
        %v937 = vunpack.c.h.b16 %v732
        %v938 = vunpack.c.l.b16 %v733
        %v939 = vunpack.c.h.b16 %v733
        %v940 = vpack.c.b16 %v814, %v812
        %v941 = vpack.c.b16 %v815, %v813
        %v942 = vpack.c.b16 %v818, %v816
        %v943 = vpack.c.b16 %v819, %v817
        %v944 = vpack.c.b16 %v822, %v820
        %v945 = vpack.c.b16 %v823, %v821
        %v946 = vpack.c.b16 %v826, %v824
        %v947 = vpack.c.b16 %v827, %v825
        %v948 = vpack.c.b16 %v830, %v828
        %v949 = vpack.c.b16 %v831, %v829
        %v950 = vpack.c.b16 %v834, %v832
        %v951 = vpack.c.b16 %v835, %v833
        %v952 = vpack.c.b16 %v838, %v836
        %v953 = vpack.c.b16 %v839, %v837
        %v954 = vpack.c.b16 %v842, %v840
        %v955 = vpack.c.b16 %v843, %v841
        %v956 = vpack.c.b16 %v846, %v844
        %v957 = vpack.c.b16 %v847, %v845
        %v958 = vpack.c.b16 %v850, %v848
        %v959 = vpack.c.b16 %v851, %v849
        %v960 = vpack.c.b16 %v854, %v852
        %v961 = vpack.c.b16 %v855, %v853
        %v962 = vpack.c.b16 %v858, %v856
        %v963 = vpack.c.b16 %v859, %v857
        %v964 = vpack.c.b16 %v862, %v860
        %v965 = vpack.c.b16 %v863, %v861
        %v966 = vpack.c.b16 %v866, %v864
        %v967 = vpack.c.b16 %v867, %v865
        %v968 = vpack.c.b16 %v870, %v868
        %v969 = vpack.c.b16 %v871, %v869
        %v970 = vpack.c.b16 %v874, %v872
        %v971 = vpack.c.b16 %v875, %v873
        %v972 = vpack.c.b16 %v878, %v876
        %v973 = vpack.c.b16 %v879, %v877
        %v974 = vpack.c.b16 %v882, %v880
        %v975 = vpack.c.b16 %v883, %v881
        %v976 = vpack.c.b16 %v886, %v884
        %v977 = vpack.c.b16 %v887, %v885
        %v978 = vpack.c.b16 %v890, %v888
        %v979 = vpack.c.b16 %v891, %v889
        %v980 = vpack.c.b16 %v894, %v892
        %v981 = vpack.c.b16 %v895, %v893
        %v982 = vpack.c.b16 %v898, %v896
        %v983 = vpack.c.b16 %v899, %v897
        %v984 = vpack.c.b16 %v902, %v900
        %v985 = vpack.c.b16 %v903, %v901
        %v986 = vpack.c.b16 %v906, %v904
        %v987 = vpack.c.b16 %v907, %v905
        %v988 = vpack.c.b16 %v910, %v908
        %v989 = vpack.c.b16 %v911, %v909
        %v990 = vpack.c.b16 %v914, %v912
        %v991 = vpack.c.b16 %v915, %v913
        %v992 = vpack.c.b16 %v918, %v916
        %v993 = vpack.c.b16 %v919, %v917
        %v994 = vpack.c.b16 %v922, %v920
        %v995 = vpack.c.b16 %v923, %v921
        %v996 = vpack.c.b16 %v926, %v924
        %v997 = vpack.c.b16 %v927, %v925
        %v998 = vpack.c.b16 %v930, %v928
        %v999 = vpack.c.b16 %v931, %v929
        %v1000 = vpack.c.b16 %v934, %v932
        %v1001 = vpack.c.b16 %v935, %v933
        %v1002 = vpack.c.b16 %v938, %v936
        %v1003 = vpack.c.b16 %v939, %v937
        %1068 = vmatprep.subr.bf16.mxu0 %v955
        %1069 = vmatpush1.bf16.msra.mxu0 %v954
        %1070 = vmatprep.subr.bf16.mxu0 %v953
        %1071 = vmatpush1.bf16.msra.mxu0 %v952
        %1072 = vmatprep.subr.bf16.mxu0 %v951
        %1073 = vmatpush1.bf16.msra.mxu0 %v950
        %1074 = vmatprep.subr.bf16.mxu0 %v949
        %1075 = vmatpush1.bf16.msra.mxu0 %v948
        %1076 = vmatprep.subr.bf16.mxu0 %v947
        %1077 = vmatpush1.bf16.msra.mxu0 %v946
        %1078 = vmatprep.subr.bf16.mxu0 %v945
        %1079 = vmatpush1.bf16.msra.mxu0 %v944
        %1080 = vmatprep.subr.bf16.mxu0 %v943
        %1081 = vmatpush1.bf16.msra.mxu0 %v942
        %1082 = vmatprep.subr.bf16.mxu0 %v941
        %1083 = vmatpush1.bf16.msra.mxu0 %v940
        %1084 = vmatprep.subr.bf16.mxu0 %v971
        %1085 = vmatpush2.bf16.msra.mxu0 %v970
        %1086 = vmatprep.subr.bf16.mxu0 %v969
        %1087 = vmatpush2.bf16.msra.mxu0 %v968
        %1088 = vmatprep.subr.bf16.mxu0 %v967
        %1089 = vmatpush2.bf16.msra.mxu0 %v966
        %1090 = vmatprep.subr.bf16.mxu0 %v965
        %1091 = vmatpush2.bf16.msra.mxu0 %v964
        %1092 = vmatprep.subr.bf16.mxu0 %v963
        %1093 = vmatpush2.bf16.msra.mxu0 %v962
        %1094 = vmatprep.subr.bf16.mxu0 %v961
        %1095 = vmatpush2.bf16.msra.mxu0 %v960
        %1096 = vmatprep.subr.bf16.mxu0 %v959
        %1097 = vmatpush2.bf16.msra.mxu0 %v958
        %1098 = vmatprep.subr.bf16.mxu0 %v957
        %1099 = vmatpush2.bf16.msra.mxu0 %v956
        %1100 = vmatprep.mubr.bf16.mxu0 %v741
        %1101 = vmatmul.mubr.bf16.gmra.mxu0 %v740
        %v1102 = vpop.f32.mrf.mxu0
        %v1103 = vadd.f32 0.0, %v1102
        %v1104 = vpop.f32.mrf.mxu0
        %v1105 = vadd.f32 0.0, %v1104
        %v1106 = vpop.f32.mrf.mxu0
        %v1107 = vpop.f32.mrf.mxu0
        %1108 = vdwg.mxu0
        %1109 = vmatprep.subr.bf16.mxu0 %v987
        %1110 = vmatpush1.bf16.msra.mxu0 %v986
        %1111 = vmatprep.subr.bf16.mxu0 %v985
        %1112 = vmatpush1.bf16.msra.mxu0 %v984
        %1113 = vmatprep.subr.bf16.mxu0 %v983
        %1114 = vmatpush1.bf16.msra.mxu0 %v982
        %1115 = vmatprep.subr.bf16.mxu0 %v981
        %1116 = vmatpush1.bf16.msra.mxu0 %v980
        %1117 = vmatprep.subr.bf16.mxu0 %v979
        %1118 = vmatpush1.bf16.msra.mxu0 %v978
        %1119 = vmatprep.subr.bf16.mxu0 %v977
        %1120 = vmatpush1.bf16.msra.mxu0 %v976
        %1121 = vmatprep.subr.bf16.mxu0 %v975
        %1122 = vmatpush1.bf16.msra.mxu0 %v974
        %1123 = vmatprep.subr.bf16.mxu0 %v973
        %1124 = vmatpush1.bf16.msra.mxu0 %v972
        %1125 = vmatprep.subr.bf16.mxu0 %v1003
        %1126 = vmatpush2.bf16.msra.mxu0 %v1002
        %1127 = vmatprep.subr.bf16.mxu0 %v1001
        %1128 = vmatpush2.bf16.msra.mxu0 %v1000
        %1129 = vmatprep.subr.bf16.mxu0 %v999
        %1130 = vmatpush2.bf16.msra.mxu0 %v998
        %1131 = vmatprep.subr.bf16.mxu0 %v997
        %1132 = vmatpush2.bf16.msra.mxu0 %v996
        %1133 = vmatprep.subr.bf16.mxu0 %v995
        %1134 = vmatpush2.bf16.msra.mxu0 %v994
        %1135 = vmatprep.subr.bf16.mxu0 %v993
        %1136 = vmatpush2.bf16.msra.mxu0 %v992
        %1137 = vmatprep.subr.bf16.mxu0 %v991
        %1138 = vmatpush2.bf16.msra.mxu0 %v990
        %1139 = vmatprep.subr.bf16.mxu0 %v989
        %1140 = vmatpush2.bf16.msra.mxu0 %v988
        %1141 = vmatprep.mubr.bf16.mxu0 %v743
        %1142 = vmatmul.mubr.bf16.gmra.mxu0 %v742
        %v1143 = vpop.f32.mrf.mxu0
        %v1144 = vadd.f32 %v1103, %v1143
        %v1145 = vpop.f32.mrf.mxu0
        %v1146 = vadd.f32 %v1105, %v1145
        %v1147 = vpop.f32.mrf.mxu0
        %v1148 = vpop.f32.mrf.mxu0
        %1149 = vdwg.mxu0
        %v1150 = vadd.f32 %v666, %v1144
        %v1151 = vadd.f32 %v667, %v1146
        %1152 = vst [vmem:[#allocation2] sm:$0xff] %v1150
        %1153 = vst [vmem:[#allocation2 + $0x8] sm:$0xff] %v1151
        %p1154 = scmp.eq.s32.totalorder %s23, 8
        // Predicated region
        $region83: #{custom_resnet_forward.22} parent=73 // pred_check
          %p1155 = pneg %p1154
        $region84: #{custom_resnet_forward.22} parent=73 // pred_check_branch
          %1157 = sbr.rel (%p1155) target = $region86
        $region85: #{custom_resnet_forward.22} parent=73 // pred_region
          %v1158 = vld [vmem:[#allocation2] sm:$0xff]
          %v1159 = vld [vmem:[#allocation2 + $0x8] sm:$0xff]
          %v1160 = vld [vmem:[%s633] sm:$0x3]
          %v1162 = vlaneseq
          %v1163 = vshrl.u32 %v1162, 7
          %v1164 = vsub.s32 0, %v1163
          %v1165 = vrot.slane %v1160, %v1164
          %v1166 = vlaneseq
          %v1167 = vshrl.u32 %v1166, 7
          %v1168 = vsub.s32 1, %v1167
          %v1169 = vrot.slane %v1160, %v1168
          %v1172 = vmul.f32 %v1158, %v1165
          %v1173 = vmul.f32 %v1159, %v1169
          %v1174 = vld [vmem:[%s638] sm:$0x3]
          %v1176 = vlaneseq
          %v1177 = vshrl.u32 %v1176, 7
          %v1178 = vsub.s32 0, %v1177
          %v1179 = vrot.slane %v1174, %v1178
          %v1180 = vlaneseq
          %v1181 = vshrl.u32 %v1180, 7
          %v1182 = vsub.s32 1, %v1181
          %v1183 = vrot.slane %v1174, %v1182
          %v1186 = vadd.f32 %v1172, %v1179
          %v1187 = vadd.f32 %v1173, %v1183
          %v1188 = vld [vmem:[%s648] sm:$0xff]
          %v1189 = vld [vmem:[%s648 + $0x8] sm:$0xff]
          %v1190 = vadd.f32 %v1186, %v1188
          %v1191 = vadd.f32 %v1187, %v1189
          %v1192 = vmax.f32 %v1190, 0.0
          %v1193 = vmax.f32 %v1191, 0.0
          %1194 = vst [vmem:[%s658] sm:$0xff] %v1192
          %1195 = vst [vmem:[%s658 + $0x8] sm:$0xff] %v1193
        $region86: #{custom_resnet_forward.22} parent=73 // pred_fallthru
          _
        %s1196 = smul.u32 2, %s22
        %p1197 = scmp.lt.s32.totalorder %s21, 0
        %s1198 = scalar_select %p1197, %s21, 0
        %p1199 = scmp.lt.s32.totalorder %s1196, 3
        %s1200 = scalar_select %p1199, %s1196, 3
        %s1201 = smul.addr %s1198, 4
        %s1202 = sadd.s32 %s1200, %s1201
        %s1203 = smul.addr %s1202, 8
        %s1204 = scalar_lea.vmem %s5, %s1203
        // Predicated region
        $region87: #{custom_resnet_forward.22} parent=73 // pred_check
          %p1205 = pneg %p191
        $region88: #{custom_resnet_forward.22} parent=73 // pred_check_branch
          %1207 = sbr.rel (%p1205) target = $region90
        $region89: #{custom_resnet_forward.22} parent=73 // pred_region
          %s1208 = smul.u32 2, %s22
        $region90: #{custom_resnet_forward.22} parent=73 // pred_fallthru
          _
      $region74: #{custom_resnet_forward.22} parent=5 // pred_fallthru
        _
      %p1209 = scmp.le.s32.totalorder 2, %s11
      // Predicated region
      $region91: #{custom_resnet_forward.22} parent=5 // pred_check
        %p1210 = pneg %p1209
      $region92: #{custom_resnet_forward.22} parent=5 // pred_check_branch
        %1212 = sbr.rel (%p1210) target = $region94
      $region93: #{custom_resnet_forward.22} parent=5 // pred_region
        %s1213 = ssub.s32 %s11, 2
        // Predicated region
        $region95: #{custom_resnet_forward.22} parent=93 // pred_check
          %p1214 = pneg %p197
        $region96: #{custom_resnet_forward.22} parent=93 // pred_check_branch
          %1216 = sbr.rel (%p1214) target = $region98
        $region97: #{custom_resnet_forward.22} parent=93 // pred_region
          %s1217 = smul.u32 2, %s25
          %p1218 = scmp.lt.s32.totalorder %s24, 0
          %s1219 = scalar_select %p1218, %s24, 0
          %p1220 = scmp.lt.s32.totalorder %s1217, 3
          %s1221 = scalar_select %p1220, %s1217, 3
          %s1222 = smul.addr %s1219, 4
          %s1223 = sadd.s32 %s1221, %s1222
          %s1224 = smul.addr %s1223, 8
          %s1225 = scalar_lea.vmem %s5, %s1224
        $region98: #{custom_resnet_forward.22} parent=93 // pred_fallthru
          _
      $region94: #{custom_resnet_forward.22} parent=5 // pred_fallthru
        _
    $region6: #{custom_resnet_forward.22} parent=1 // loop_footer
      %s15 = sadd.s32 1, %s11
    $region7: #{custom_resnet_forward.22} parent=1 // loop_footer_branch
      %10 = sbr.rel target = $region3
    $region8: #{custom_resnet_forward.22} parent=1 // loop_exit
      _

// kernel: custom_resnet_forward.23
$region0: #{custom_resnet_forward.23}
  #allocation0 [shape = 'u32[]', space=smem, size = 0x4, offset = 0x4, fixed_abs, tag = 'smem constant byte address 0x4 - core index']
  #allocation1 [shape = 'u32[144,128]{1,0:T(1,128)}', space=vmem, size = 0x12000, scoped, tag = 'internal scratch']
  %s0 = inlined_call_operand.vmem [shape: f32[2,1,512], index: 0, kind: input, shape index: {}]
  %s1 = inlined_call_operand.vmem [shape: f32[512,128], index: 1, kind: input, shape index: {}]
  %s2 = inlined_call_operand.vmem [shape: f32[1,128], index: 2, kind: input, shape index: {}]
  %s3 = inlined_call_operand.hbm [shape: f32[2,128], index: 3, kind: output, shape index: {}]
  %s4 = sld [smem:[#allocation0]]
  $region22: #{custom_resnet_forward.23} parent=0
    _
  %s6 = ssub.s32 1, %s4
  %s7 = scalar_select 0, %s6, %s4
  $region1: #{custom_resnet_forward.23} parent=0
    #allocation2 [shape = 'u8[1024]{0}', space=vmem, size = 0x400, scoped, tag = 'output window, operand 0, single buffered']
    #allocation3 [shape = 's32[1]{0}', space=sflag, size = 0x4, scoped, tag = 'scoped memory for custom_resnet_forward.23']
    %8 = vsyncpa [#allocation3], 0
    // Predicated region
    $region2: #{custom_resnet_forward.23} parent=1 // pred_check
      _
    $region3: #{custom_resnet_forward.23} parent=1 // pred_check_branch
      %10 = sbr.rel (0) target = $region5
    $region4: #{custom_resnet_forward.23} parent=1 // pred_region
      _
    $region5: #{custom_resnet_forward.23} parent=1 // pred_fallthru
      _
    // Predicated region
    $region6: #{custom_resnet_forward.23} parent=1 // pred_check
      _
    $region7: #{custom_resnet_forward.23} parent=1 // pred_check_branch
      %12 = sbr.rel (0) target = $region9
    $region8: #{custom_resnet_forward.23} parent=1 // pred_region
      _
    $region9: #{custom_resnet_forward.23} parent=1 // pred_fallthru
      _
    // Predicated region
    $region10: #{custom_resnet_forward.23} parent=1 // pred_check
      _
    $region11: #{custom_resnet_forward.23} parent=1 // pred_check_branch
      %14 = sbr.rel (0) target = $region13
    $region12: #{custom_resnet_forward.23} parent=1 // pred_region
      _
    $region13: #{custom_resnet_forward.23} parent=1 // pred_fallthru
      _
    %v15 = vld [vmem:[%s0] sm:$0xf]
    %v16 = vld [vmem:[%s0 + $0x4] sm:$0xf]
    %v17 = vadd.f32 %v15, 0.0
    %v18 = vadd.f32 %v16, 0.0
    %v19 = vld [vmem:[%s1] sm:$0xff]
    %v20 = vld [vmem:[%s1 + $0x8] sm:$0xff]
    %v21 = vld [vmem:[%s1 + $0x10] sm:$0xff]
    %v22 = vld [vmem:[%s1 + $0x18] sm:$0xff]
    %v23 = vld [vmem:[%s1 + $0x20] sm:$0xff]
    %v24 = vld [vmem:[%s1 + $0x28] sm:$0xff]
    %v25 = vld [vmem:[%s1 + $0x30] sm:$0xff]
    %v26 = vld [vmem:[%s1 + $0x38] sm:$0xff]
    %v27 = vld [vmem:[%s1 + $0x40] sm:$0xff]
    %v28 = vld [vmem:[%s1 + $0x48] sm:$0xff]
    %v29 = vld [vmem:[%s1 + $0x50] sm:$0xff]
    %v30 = vld [vmem:[%s1 + $0x58] sm:$0xff]
    %v31 = vld [vmem:[%s1 + $0x60] sm:$0xff]
    %v32 = vld [vmem:[%s1 + $0x68] sm:$0xff]
    %v33 = vld [vmem:[%s1 + $0x70] sm:$0xff]
    %v34 = vld [vmem:[%s1 + $0x78] sm:$0xff]
    %v35 = vld [vmem:[%s1 + $0x80] sm:$0xff]
    %v36 = vld [vmem:[%s1 + $0x88] sm:$0xff]
    %v37 = vld [vmem:[%s1 + $0x90] sm:$0xff]
    %v38 = vld [vmem:[%s1 + $0x98] sm:$0xff]
    %v39 = vld [vmem:[%s1 + $0xa0] sm:$0xff]
    %v40 = vld [vmem:[%s1 + $0xa8] sm:$0xff]
    %v41 = vld [vmem:[%s1 + $0xb0] sm:$0xff]
    %v42 = vld [vmem:[%s1 + $0xb8] sm:$0xff]
    %v43 = vld [vmem:[%s1 + $0xc0] sm:$0xff]
    %v44 = vld [vmem:[%s1 + $0xc8] sm:$0xff]
    %v45 = vld [vmem:[%s1 + $0xd0] sm:$0xff]
    %v46 = vld [vmem:[%s1 + $0xd8] sm:$0xff]
    %v47 = vld [vmem:[%s1 + $0xe0] sm:$0xff]
    %v48 = vld [vmem:[%s1 + $0xe8] sm:$0xff]
    %v49 = vld [vmem:[%s1 + $0xf0] sm:$0xff]
    %v50 = vld [vmem:[%s1 + $0xf8] sm:$0xff]
    %v51 = vld [vmem:[%s1 + $0x100] sm:$0xff]
    %v52 = vld [vmem:[%s1 + $0x108] sm:$0xff]
    %v53 = vld [vmem:[%s1 + $0x110] sm:$0xff]
    %v54 = vld [vmem:[%s1 + $0x118] sm:$0xff]
    %v55 = vld [vmem:[%s1 + $0x120] sm:$0xff]
    %v56 = vld [vmem:[%s1 + $0x128] sm:$0xff]
    %v57 = vld [vmem:[%s1 + $0x130] sm:$0xff]
    %v58 = vld [vmem:[%s1 + $0x138] sm:$0xff]
    %v59 = vld [vmem:[%s1 + $0x140] sm:$0xff]
    %v60 = vld [vmem:[%s1 + $0x148] sm:$0xff]
    %v61 = vld [vmem:[%s1 + $0x150] sm:$0xff]
    %v62 = vld [vmem:[%s1 + $0x158] sm:$0xff]
    %v63 = vld [vmem:[%s1 + $0x160] sm:$0xff]
    %v64 = vld [vmem:[%s1 + $0x168] sm:$0xff]
    %v65 = vld [vmem:[%s1 + $0x170] sm:$0xff]
    %v66 = vld [vmem:[%s1 + $0x178] sm:$0xff]
    %v67 = vld [vmem:[%s1 + $0x180] sm:$0xff]
    %v68 = vld [vmem:[%s1 + $0x188] sm:$0xff]
    %v69 = vld [vmem:[%s1 + $0x190] sm:$0xff]
    %v70 = vld [vmem:[%s1 + $0x198] sm:$0xff]
    %v71 = vld [vmem:[%s1 + $0x1a0] sm:$0xff]
    %v72 = vld [vmem:[%s1 + $0x1a8] sm:$0xff]
    %v73 = vld [vmem:[%s1 + $0x1b0] sm:$0xff]
    %v74 = vld [vmem:[%s1 + $0x1b8] sm:$0xff]
    %v75 = vld [vmem:[%s1 + $0x1c0] sm:$0xff]
    %v76 = vld [vmem:[%s1 + $0x1c8] sm:$0xff]
    %v77 = vld [vmem:[%s1 + $0x1d0] sm:$0xff]
    %v78 = vld [vmem:[%s1 + $0x1d8] sm:$0xff]
    %v79 = vld [vmem:[%s1 + $0x1e0] sm:$0xff]
    %v80 = vld [vmem:[%s1 + $0x1e8] sm:$0xff]
    %v81 = vld [vmem:[%s1 + $0x1f0] sm:$0xff]
    %v82 = vld [vmem:[%s1 + $0x1f8] sm:$0xff]
    %v83 = vld [vmem:[%s2] sm:$0x1]
    %v85 = vlaneseq
    %v86 = vshrl.u32 %v85, 7
    %v87 = vsub.s32 0, %v86
    %v88 = vrot.slane %v83, %v87
    %v92 = vcombine.low %v17, %v18
    %v94 = vunpack.c.l.s4 1966171168
    %v95 = vunpack.c.0.s8 %v94
    %v96 = vlaneseq
    %v97 = vshrl.u32 %v96, 7
    %v98 = vsub.s32 %v95, %v97
    %v99 = vrot.slane %v92, %v98
    %v100 = vcombine.high %v99, %v99
    %v102 = vunpack.c.l.s4 1966171168
    %v103 = vunpack.c.0.s8 %v102
    %v104 = vlaneseq
    %v105 = vshrl.u32 %v104, 7
    %v106 = vsub.s32 %v103, %v105
    %v107 = vrot.slane %v99, %v106
    %v109 = vunpack.c.l.s4 1966171168
    %v110 = vunpack.c.0.s8 %v109
    %v111 = vlaneseq
    %v112 = vshrl.u32 %v111, 7
    %v113 = vsub.s32 %v110, %v112
    %v114 = vrot.slane %v100, %v113
    %v115 = vcombine.high %v107, %v107
    %v116 = vcombine.high %v114, %v114
    %121 = vmatprep.subr.mxu0 0.0
    %122 = vmatpush1.msra.mxu0 %v34
    %123 = vmatprep.subr.mxu0 0.0
    %124 = vmatpush1.msra.mxu0 %v33
    %125 = vmatprep.subr.mxu0 0.0
    %126 = vmatpush1.msra.mxu0 %v32
    %127 = vmatprep.subr.mxu0 0.0
    %128 = vmatpush1.msra.mxu0 %v31
    %129 = vmatprep.subr.mxu0 0.0
    %130 = vmatpush1.msra.mxu0 %v30
    %131 = vmatprep.subr.mxu0 0.0
    %132 = vmatpush1.msra.mxu0 %v29
    %133 = vmatprep.subr.mxu0 0.0
    %134 = vmatpush1.msra.mxu0 %v28
    %135 = vmatprep.subr.mxu0 0.0
    %136 = vmatpush1.msra.mxu0 %v27
    %137 = vmatprep.subr.mxu0 0.0
    %138 = vmatpush1.msra.mxu0 %v26
    %139 = vmatprep.subr.mxu0 0.0
    %140 = vmatpush1.msra.mxu0 %v25
    %141 = vmatprep.subr.mxu0 0.0
    %142 = vmatpush1.msra.mxu0 %v24
    %143 = vmatprep.subr.mxu0 0.0
    %144 = vmatpush1.msra.mxu0 %v23
    %145 = vmatprep.subr.mxu0 0.0
    %146 = vmatpush1.msra.mxu0 %v22
    %147 = vmatprep.subr.mxu0 0.0
    %148 = vmatpush1.msra.mxu0 %v21
    %149 = vmatprep.subr.mxu0 0.0
    %150 = vmatpush1.msra.mxu0 %v20
    %151 = vmatprep.subr.mxu0 0.0
    %152 = vmatpush1.msra.mxu0 %v19
    %153 = vmatprep.subr.mxu0 0.0
    %154 = vmatpush2.msra.mxu0 %v50
    %155 = vmatprep.subr.mxu0 0.0
    %156 = vmatpush2.msra.mxu0 %v49
    %157 = vmatprep.subr.mxu0 0.0
    %158 = vmatpush2.msra.mxu0 %v48
    %159 = vmatprep.subr.mxu0 0.0
    %160 = vmatpush2.msra.mxu0 %v47
    %161 = vmatprep.subr.mxu0 0.0
    %162 = vmatpush2.msra.mxu0 %v46
    %163 = vmatprep.subr.mxu0 0.0
    %164 = vmatpush2.msra.mxu0 %v45
    %165 = vmatprep.subr.mxu0 0.0
    %166 = vmatpush2.msra.mxu0 %v44
    %167 = vmatprep.subr.mxu0 0.0
    %168 = vmatpush2.msra.mxu0 %v43
    %169 = vmatprep.subr.mxu0 0.0
    %170 = vmatpush2.msra.mxu0 %v42
    %171 = vmatprep.subr.mxu0 0.0
    %172 = vmatpush2.msra.mxu0 %v41
    %173 = vmatprep.subr.mxu0 0.0
    %174 = vmatpush2.msra.mxu0 %v40
    %175 = vmatprep.subr.mxu0 0.0
    %176 = vmatpush2.msra.mxu0 %v39
    %177 = vmatprep.subr.mxu0 0.0
    %178 = vmatpush2.msra.mxu0 %v38
    %179 = vmatprep.subr.mxu0 0.0
    %180 = vmatpush2.msra.mxu0 %v37
    %181 = vmatprep.subr.mxu0 0.0
    %182 = vmatpush2.msra.mxu0 %v36
    %183 = vmatprep.subr.mxu0 0.0
    %184 = vmatpush2.msra.mxu0 %v35
    %185 = vmatprep.mubr.f32.mxu0 %v114
    %186 = vmatmul.mubr.f32.gmra.mxu0 %v107
    %v187 = vpop.f32.mrf.mxu0
    %v188 = vadd.f32 %v88, %v187
    %v189 = vpop.f32.mrf.mxu0
    %190 = vdwg.mxu0
    %191 = vmatprep.subr.mxu0 0.0
    %192 = vmatpush1.msra.mxu0 %v66
    %193 = vmatprep.subr.mxu0 0.0
    %194 = vmatpush1.msra.mxu0 %v65
    %195 = vmatprep.subr.mxu0 0.0
    %196 = vmatpush1.msra.mxu0 %v64
    %197 = vmatprep.subr.mxu0 0.0
    %198 = vmatpush1.msra.mxu0 %v63
    %199 = vmatprep.subr.mxu0 0.0
    %200 = vmatpush1.msra.mxu0 %v62
    %201 = vmatprep.subr.mxu0 0.0
    %202 = vmatpush1.msra.mxu0 %v61
    %203 = vmatprep.subr.mxu0 0.0
    %204 = vmatpush1.msra.mxu0 %v60
    %205 = vmatprep.subr.mxu0 0.0
    %206 = vmatpush1.msra.mxu0 %v59
    %207 = vmatprep.subr.mxu0 0.0
    %208 = vmatpush1.msra.mxu0 %v58
    %209 = vmatprep.subr.mxu0 0.0
    %210 = vmatpush1.msra.mxu0 %v57
    %211 = vmatprep.subr.mxu0 0.0
    %212 = vmatpush1.msra.mxu0 %v56
    %213 = vmatprep.subr.mxu0 0.0
    %214 = vmatpush1.msra.mxu0 %v55
    %215 = vmatprep.subr.mxu0 0.0
    %216 = vmatpush1.msra.mxu0 %v54
    %217 = vmatprep.subr.mxu0 0.0
    %218 = vmatpush1.msra.mxu0 %v53
    %219 = vmatprep.subr.mxu0 0.0
    %220 = vmatpush1.msra.mxu0 %v52
    %221 = vmatprep.subr.mxu0 0.0
    %222 = vmatpush1.msra.mxu0 %v51
    %223 = vmatprep.subr.mxu0 0.0
    %224 = vmatpush2.msra.mxu0 %v82
    %225 = vmatprep.subr.mxu0 0.0
    %226 = vmatpush2.msra.mxu0 %v81
    %227 = vmatprep.subr.mxu0 0.0
    %228 = vmatpush2.msra.mxu0 %v80
    %229 = vmatprep.subr.mxu0 0.0
    %230 = vmatpush2.msra.mxu0 %v79
    %231 = vmatprep.subr.mxu0 0.0
    %232 = vmatpush2.msra.mxu0 %v78
    %233 = vmatprep.subr.mxu0 0.0
    %234 = vmatpush2.msra.mxu0 %v77
    %235 = vmatprep.subr.mxu0 0.0
    %236 = vmatpush2.msra.mxu0 %v76
    %237 = vmatprep.subr.mxu0 0.0
    %238 = vmatpush2.msra.mxu0 %v75
    %239 = vmatprep.subr.mxu0 0.0
    %240 = vmatpush2.msra.mxu0 %v74
    %241 = vmatprep.subr.mxu0 0.0
    %242 = vmatpush2.msra.mxu0 %v73
    %243 = vmatprep.subr.mxu0 0.0
    %244 = vmatpush2.msra.mxu0 %v72
    %245 = vmatprep.subr.mxu0 0.0
    %246 = vmatpush2.msra.mxu0 %v71
    %247 = vmatprep.subr.mxu0 0.0
    %248 = vmatpush2.msra.mxu0 %v70
    %249 = vmatprep.subr.mxu0 0.0
    %250 = vmatpush2.msra.mxu0 %v69
    %251 = vmatprep.subr.mxu0 0.0
    %252 = vmatpush2.msra.mxu0 %v68
    %253 = vmatprep.subr.mxu0 0.0
    %254 = vmatpush2.msra.mxu0 %v67
    %255 = vmatprep.mubr.f32.mxu0 %v116
    %256 = vmatmul.mubr.f32.gmra.mxu0 %v115
    %v257 = vpop.f32.mrf.mxu0
    %v258 = vadd.f32 %v188, %v257
    %v259 = vpop.f32.mrf.mxu0
    %260 = vdwg.mxu0
    %261 = vst [vmem:[#allocation2] sm:$0x3] %v258
    // Predicated region
    $region14: #{custom_resnet_forward.23} parent=1 // pred_check
      _
    $region15: #{custom_resnet_forward.23} parent=1 // pred_check_branch
      %263 = sbr.rel (0) target = $region17
    $region16: #{custom_resnet_forward.23} parent=1 // pred_region
      %s265 = ssub.s32 32, 32
      %266 = vsyncadd [#allocation3], %s265
      %s268 = sshll.u32 [#allocation2], 4
      %s269 = int_to_ptr.vmem [resolvable:$true] %s268
      %271 = dma.vmem_to_hbm [thread:$0]  %s269, 32, %s3, [#allocation3]
    $region17: #{custom_resnet_forward.23} parent=1 // pred_fallthru
      _
    // Predicated region
    $region18: #{custom_resnet_forward.23} parent=1 // pred_check
      _
    $region19: #{custom_resnet_forward.23} parent=1 // pred_check_branch
      %273 = sbr.rel (0) target = $region21
    $region20: #{custom_resnet_forward.23} parent=1 // pred_region
      %274 = dma.done [#allocation3], 32
    $region21: #{custom_resnet_forward.23} parent=1 // pred_fallthru
      _
    %275 = vsyncpa [#allocation3], 1

</llo_original>
